<compile_context>
chip_gen: v5e
topology: v5e:2x2
jax: 0.10.0
libtpu: 0.0.40
codegen_flags: <defaults>
</compile_context>

<pallas_src>
import math
import functools

import jax
import jax.numpy as jnp
from jax import lax
from jax.experimental import pallas as pl
from jax.experimental.pallas import tpu as pltpu


VMEM_LIMIT_BYTES = 32 * 1024 * 1024  # safe on v5e/v6e (128 MiB) and v7x (64 MiB)


def _cparams(*semantics):
    return pltpu.CompilerParams(dimension_semantics=semantics,
                                vmem_limit_bytes=VMEM_LIMIT_BYTES)


# ----------------------------- small math helpers ---------------------------

def log_add_exp(a, b):
    m = jnp.maximum(a, b)
    return m + jnp.log(jnp.exp(a - m) + jnp.exp(b - m))


# ------------------------------- fused kernel --------------------------------

def _cdm_fused_kernel(consts_ref, x_ref, lx0_ref, lxt_ref, pos_ref, temb_ref,
                      w_in_ref, b_in_ref, hm_ref,
                      ln1g_ref, ln1b_ref, wqkv_ref, bqkv_ref, wo_ref, bo_ref,
                      ln2g_ref, ln2b_ref, w1_ref, b1_ref, w2_ref, b2_ref,
                      wout_ref, bout_ref,
                      out_ref,
                      h_ref,
                      *, depth, heads, dim, K):
    """One batch element: full DynamicsTransformer + diffusion VB terms."""
    logK = math.log(K)
    log_alpha_t = consts_ref[0]
    log_1m_alpha_t = consts_ref[1]
    log_cum_tm1 = consts_ref[2]
    log_1m_cum_tm1 = consts_ref[3]
    log_cum_T = consts_ref[4]
    log_1m_cum_T = consts_ref[5]
    rezero_alpha = consts_ref[6]

    dh = dim // heads
    scale = dh ** -0.5

    # ---------------- in_proj: token projection + pos + time embedding -------
    h = jnp.dot(x_ref[...].astype(jnp.bfloat16), w_in_ref[...],
                preferred_element_type=jnp.float32)
    h_ref[...] = h + b_in_ref[...] + pos_ref[...] + temb_ref[...]   # (S, dim) f32

    hm = hm_ref[...]                       # (dim, dim) bf16 block-diag head mask
    hm_f32 = hm.astype(jnp.float32)

    def layer_norm(x, g, b):
        mu = jnp.mean(x, axis=-1, keepdims=True)
        xc = x - mu
        var = jnp.mean(xc * xc, axis=-1, keepdims=True)
        return xc * lax.rsqrt(var + 1e-5) * g + b

    # TODO(synk): local-attention heads / n_blocks wrapper / reversible mode /
    # dropout of LinearAttentionTransformer not implemented; all heads use
    # global linear attention, deterministic (eval-style) forward.
    for l in range(depth):
        # ------------- attention block (PreNorm + linear attn + residual) ----
        xn = layer_norm(h_ref[...], ln1g_ref[l], ln1b_ref[l])
        qkv = jnp.dot(xn.astype(jnp.bfloat16), wqkv_ref[l],
                      preferred_element_type=jnp.float32) + bqkv_ref[l]
        q = qkv[:, :dim]
        k = qkv[:, dim:2 * dim]
        v = qkv[:, 2 * dim:]

        # softmax(q) within each head's feature group: subtracting the
        # row-global max is a valid per-row shift; per-head denominators come
        # from one bf16 MXU matmul against the block-diagonal head mask.
        q = jnp.exp(q - jnp.max(q, axis=-1, keepdims=True))
        q_den = jnp.dot(q.astype(jnp.bfloat16), hm,
                        preferred_element_type=jnp.float32)
        q = q / q_den * scale

        # softmax(k) over the sequence axis (heads already independent).
        # NOTE: assumes the full sequence S is resident in this block.
        k = jnp.exp(k - jnp.max(k, axis=0, keepdims=True))
        k = k / jnp.sum(k, axis=0, keepdims=True)

        # per-head context k_h^T v_h via one full matmul + block-diag masking
        ctx = lax.dot_general(k.astype(jnp.bfloat16), v.astype(jnp.bfloat16),
                              (((0,), (0,)), ((), ())),
                              preferred_element_type=jnp.float32)
        ctx = ctx * hm_f32                               # zero cross-head terms
        attn = jnp.dot(q.astype(jnp.bfloat16), ctx.astype(jnp.bfloat16),
                       preferred_element_type=jnp.float32)          # (S, dim)
        out = jnp.dot(attn.astype(jnp.bfloat16), wo_ref[l],
                      preferred_element_type=jnp.float32) + bo_ref[l]
        h_ref[...] = h_ref[...] + out                    # f32 residual

        # ------------- feed-forward block (PreNorm + GELU MLP + residual) ----
        xn = layer_norm(h_ref[...], ln2g_ref[l], ln2b_ref[l])
        f = jnp.dot(xn.astype(jnp.bfloat16), w1_ref[l],
                    preferred_element_type=jnp.float32) + b1_ref[l]
        f = jax.nn.gelu(f)
        f2 = jnp.dot(f.astype(jnp.bfloat16), w2_ref[l],
                     preferred_element_type=jnp.float32) + b2_ref[l]
        h_ref[...] = h_ref[...] + f2                     # f32 residual

    # -------- final projection, lane-dense (K, S), Rezero scale --------------
    # (K, S) = W_out^T @ h^T via dot_general contracting both `dim` axes; this
    # keeps the K=16 categories on sublanes and tokens on the 128 lanes.
    logits = lax.dot_general(wout_ref[...], h_ref[...].astype(jnp.bfloat16),
                             (((0,), (1,)), ((), ())),
                             preferred_element_type=jnp.float32)     # (K, S)
    logits = (logits + bout_ref[...]) * rezero_alpha

    # -------- multinomial-diffusion variational bound (x0 parametrization) ---
    lx0 = lx0_ref[...]                                   # (K, S)
    lxt = lxt_ref[...]                                   # (K, S)

    # predict_start: log_softmax(model_out) over K (sublane reduce)
    m = jnp.max(logits, axis=0, keepdims=True)
    lse = m + jnp.log(jnp.sum(jnp.exp(logits - m), axis=0, keepdims=True))
    log_model_x0 = logits - lse

    def lae(a, b):
        mx = jnp.maximum(a, b)
        return mx + jnp.log(jnp.exp(a - mx) + jnp.exp(b - mx))

    def q_pred(lx, log_cum, log_1m_cum):
        return lae(lx + log_cum, log_1m_cum - logK)

    # x_t-dependent factor of q_posterior is independent of x0 -> hoisted once.
    lxt_term = lae(lxt + log_alpha_t, log_1m_alpha_t - logK)

    def q_posterior(lx0_):
        un = q_pred(lx0_, log_cum_tm1, log_1m_cum_tm1) + lxt_term
        mm = jnp.max(un, axis=0, keepdims=True)
        nrm = mm + jnp.log(jnp.sum(jnp.exp(un - mm), axis=0, keepdims=True))
        return un - nrm

    log_true = q_posterior(lx0)
    log_model = q_posterior(log_model_x0)
    kl = jnp.sum(jnp.exp(log_true) * (log_true - log_model),
                 axis=0, keepdims=True)                               # (1, S)

    log_qxT = q_pred(lx0, log_cum_T, log_1m_cum_T)
    kl_prior = jnp.sum(jnp.exp(log_qxT) * (log_qxT + logK),
                       axis=0, keepdims=True)                         # (1, S)

    out_ref[...] = jnp.concatenate([kl, kl_prior], axis=0)            # (2, S)


def cdm_vb_fused(params, head_mask, consts, x_sk, lx0_kn, lxt_kn, temb,
                 *, B, S, K, dim, heads, depth):
    """Fused DynamicsTransformer + diffusion VB.  Returns (2, B*S) f32:
    row 0 = per-token L_t KL, row 1 = per-token prior KL."""
    N = B * S
    full2 = lambda b: (0, 0)
    full3 = lambda b: (0, 0, 0)
    kernel = functools.partial(_cdm_fused_kernel,
                               depth=depth, heads=heads, dim=dim, K=K)
    return pl.pallas_call(
        kernel,
        grid=(B,),
        in_specs=[
            pl.BlockSpec(memory_space=pltpu.MemorySpace.SMEM),     # schedule + alpha
            pl.BlockSpec((S, K), lambda b: (b, 0)),                # x_t log-one-hot (S,K)
            pl.BlockSpec((K, S), lambda b: (0, b)),                # log x0 (K,S)
            pl.BlockSpec((K, S), lambda b: (0, b)),                # log x_t (K,S)
            pl.BlockSpec((S, dim), full2),                         # pos_emb
            pl.BlockSpec((1, dim), full2),                         # time emb (t)
            pl.BlockSpec((K, dim), full2),                         # w_in
            pl.BlockSpec((1, dim), full2),                         # b_in
            pl.BlockSpec((dim, dim), full2),                       # head mask (bf16)
            pl.BlockSpec((depth, 1, dim), full3),                  # ln1 gamma
            pl.BlockSpec((depth, 1, dim), full3),                  # ln1 beta
            pl.BlockSpec((depth, dim, 3 * dim), full3),            # wqkv
            pl.BlockSpec((depth, 1, 3 * dim), full3),              # bqkv
            pl.BlockSpec((depth, dim, dim), full3),                # wo
            pl.BlockSpec((depth, 1, dim), full3),                  # bo
            pl.BlockSpec((depth, 1, dim), full3),                  # ln2 gamma
            pl.BlockSpec((depth, 1, dim), full3),                  # ln2 beta
            pl.BlockSpec((depth, dim, 4 * dim), full3),            # w1
            pl.BlockSpec((depth, 1, 4 * dim), full3),              # b1
            pl.BlockSpec((depth, 4 * dim, dim), full3),            # w2
            pl.BlockSpec((depth, 1, dim), full3),                  # b2
            pl.BlockSpec((dim, K), full2),                         # w_out
            pl.BlockSpec((K, 1), full2),                           # b_out (per-category)
        ],
        out_specs=pl.BlockSpec((2, S), lambda b: (0, b)),
        out_shape=jax.ShapeDtypeStruct((2, N), jnp.float32),
        scratch_shapes=[pltpu.VMEM((S, dim), jnp.float32)],        # f32 residual stream
        compiler_params=_cparams("parallel"),
    )(consts, x_sk, lx0_kn, lxt_kn, params["pos_emb"], temb,
      params["w_in"], params["b_in"], head_mask,
      params["ln1_g"], params["ln1_b"], params["wqkv"], params["bqkv"],
      params["wo"], params["bo"], params["ln2_g"], params["ln2_b"],
      params["w1"], params["b1"], params["w2"], params["b2"],
      params["w_out"], params["b_out"])


# --------------------------- model setup / glue -------------------------------

def init_params(key, *, K, S, dim, heads, depth, cdm_T, ff_mult=4):
    keys = iter(jax.random.split(key, 16))

    def nrm(shape, scale=0.02, dtype=jnp.bfloat16):
        return (scale * jax.random.normal(next(keys), shape)).astype(dtype)

    return dict(
        w_in=nrm((K, dim)),
        b_in=jnp.zeros((1, dim), jnp.float32),
        pos_emb=nrm((S, dim), dtype=jnp.float32),        # TODO(synk): reference uses axial pos emb
        time_emb=nrm((cdm_T, dim), dtype=jnp.float32),   # TODO(synk): reference uses sinusoidal t-emb + MLP
        ln1_g=jnp.ones((depth, 1, dim), jnp.float32),
        ln1_b=jnp.zeros((depth, 1, dim), jnp.float32),
        wqkv=nrm((depth, dim, 3 * dim)),
        bqkv=jnp.zeros((depth, 1, 3 * dim), jnp.float32),
        wo=nrm((depth, dim, dim)),
        bo=jnp.zeros((depth, 1, dim), jnp.float32),
        ln2_g=jnp.ones((depth, 1, dim), jnp.float32),
        ln2_b=jnp.zeros((depth, 1, dim), jnp.float32),
        w1=nrm((depth, dim, ff_mult * dim)),
        b1=jnp.zeros((depth, 1, ff_mult * dim), jnp.float32),
        w2=nrm((depth, ff_mult * dim, dim)),
        b2=jnp.zeros((depth, 1, dim), jnp.float32),
        w_out=nrm((dim, K)),
        b_out=jnp.zeros((K, 1), jnp.float32),
        alpha=jnp.zeros((), jnp.float32),                # Rezero init = 0 (matches reference)
    )


def make_head_mask(dim, heads):
    dh = dim // heads
    hid = jnp.arange(dim, dtype=jnp.int32) // dh
    return (hid[:, None] == hid[None, :]).astype(jnp.bfloat16)   # exact 0/1 in bf16


def cosine_alpha_schedule(T, s=0.008):
    steps = jnp.arange(T + 1, dtype=jnp.float32)
    abar = jnp.cos(((steps / T) + s) / (1 + s) * math.pi * 0.5) ** 2
    abar = abar / abar[0]
    return jnp.clip(abar[1:] / abar[:-1], 0.001, 0.9999)


def index_to_log_onehot_kn(z_flat, K):
    # (K, N): categories on sublanes, tokens on lanes (1e-30 clamp as in reference)
    return jnp.log(jnp.clip(jax.nn.one_hot(z_flat, K, axis=0, dtype=jnp.float32),
                            1e-30, 1.0))


# ------------------------------------ main -----------------------------------

if __name__ == "__main__":
    # Small config consistent with the module: S=seq len, K=categories, cdm_T steps.
    B, S, Kc = 2, 128, 16
    cdm_T = 8
    dim, heads, depth = 128, 4, 2
    N = B * S

    key = jax.random.PRNGKey(0)
    kz, kp, kg = jax.random.split(key, 3)
    z = jax.random.randint(kz, (B, S), 0, Kc, dtype=jnp.int32)
    params = init_params(kp, K=Kc, S=S, dim=dim, heads=heads, depth=depth, cdm_T=cdm_T)
    head_mask = make_head_mask(dim, heads)

    # diffusion schedule (MultinomialDiffusion, cosine alpha-bar) — stays on device
    alphas = cosine_alpha_schedule(cdm_T)
    log_alpha = jnp.log(alphas)
    log_cum = jnp.cumsum(log_alpha)
    log_1m_alpha = jnp.log1p(-jnp.exp(log_alpha))
    log_1m_cum = jnp.log1p(-jnp.exp(log_cum))

    # TODO(synk): vb_stochastic samples t ~ Uniform{0..T-1} and handles the t=0
    # decoder-NLL branch; here t is fixed (>= 1) for determinism.
    t = cdm_T // 2

    # log one-hots in (K, B*S) layout (categories on sublanes, tokens on lanes)
    z_flat = z.reshape(N)
    log_x0_kn = index_to_log_onehot_kn(z_flat, Kc)                        # (K, N)

    # sample x_t ~ q(x_t | x_0) via Gumbel-argmax (deterministic key)
    log_q_xt = log_add_exp(log_x0_kn + log_cum[t], log_1m_cum[t] - math.log(Kc))
    u = jax.random.uniform(kg, log_q_xt.shape, minval=1e-6, maxval=1.0)
    xt_flat = jnp.argmax(log_q_xt - jnp.log(-jnp.log(u)), axis=0)         # (N,)
    log_xt_kn = index_to_log_onehot_kn(xt_flat, Kc)                       # (K, N)
    log_xt_sk = jnp.transpose(log_xt_kn)                                  # (N, K) transformer input

    # runtime schedule scalars + Rezero alpha -> SMEM (no host sync, no recompile per t)
    consts = jnp.stack([log_alpha[t], log_1m_alpha[t],
                        log_cum[t - 1], log_1m_cum[t - 1],
                        log_cum[-1], log_1m_cum[-1],
                        params["alpha"], jnp.float32(0.0)]).astype(jnp.float32)

    temb = params["time_emb"][t].reshape(1, dim)

    # one fused Pallas call: transformer + final projection + variational bound
    vb = cdm_vb_fused(params, head_mask, consts, log_xt_sk, log_x0_kn, log_xt_kn,
                      temb, B=B, S=S, K=Kc, dim=dim, heads=heads, depth=depth)

    kl_t = vb[0].reshape(B, S)
    kl_prior = vb[1].reshape(B, S)

    # vb_stochastic with uniform pt = 1/T:  loss = kl_prior + T * L_t ;  log_prob = -loss
    # TODO(synk): eval-mode nll (sum over all T timesteps) would loop the fused call over t.
    log_prob = -(jnp.sum(kl_prior, axis=-1) + cdm_T * jnp.sum(kl_t, axis=-1))  # (B,)
    log_prob = jax.block_until_ready(log_prob)

    assert log_prob.shape == (B,)
    assert bool(jnp.all(jnp.isfinite(log_prob)))
    print("KERNEL_OK")
</pallas_src>

<mosaic_0001>
module attributes {stable_mosaic.version = 11 : i64} {
  func.func @_cdm_fused_kernel(%arg0: i32, %arg1: memref<8xf32, #tpu.memory_space<smem>>, %arg2: memref<128x16xf32, #tpu.memory_space<vmem>>, %arg3: memref<16x128xf32, #tpu.memory_space<vmem>>, %arg4: memref<16x128xf32, #tpu.memory_space<vmem>>, %arg5: memref<128x128xf32, #tpu.memory_space<vmem>>, %arg6: memref<1x128xf32, #tpu.memory_space<vmem>>, %arg7: memref<16x128xbf16, #tpu.memory_space<vmem>>, %arg8: memref<1x128xf32, #tpu.memory_space<vmem>>, %arg9: memref<128x128xbf16, #tpu.memory_space<vmem>>, %arg10: memref<2x1x128xf32, #tpu.memory_space<vmem>>, %arg11: memref<2x1x128xf32, #tpu.memory_space<vmem>>, %arg12: memref<2x128x384xbf16, #tpu.memory_space<vmem>>, %arg13: memref<2x1x384xf32, #tpu.memory_space<vmem>>, %arg14: memref<2x128x128xbf16, #tpu.memory_space<vmem>>, %arg15: memref<2x1x128xf32, #tpu.memory_space<vmem>>, %arg16: memref<2x1x128xf32, #tpu.memory_space<vmem>>, %arg17: memref<2x1x128xf32, #tpu.memory_space<vmem>>, %arg18: memref<2x128x512xbf16, #tpu.memory_space<vmem>>, %arg19: memref<2x1x512xf32, #tpu.memory_space<vmem>>, %arg20: memref<2x512x128xbf16, #tpu.memory_space<vmem>>, %arg21: memref<2x1x128xf32, #tpu.memory_space<vmem>>, %arg22: memref<128x16xbf16, #tpu.memory_space<vmem>>, %arg23: memref<16x1xf32, #tpu.memory_space<vmem>>, %arg24: memref<2x128xf32, #tpu.memory_space<vmem>>, %arg25: memref<128x128xf32, #tpu.memory_space<vmem>>) attributes {dimension_semantics = [#tpu.dimension_semantics<parallel>], iteration_bounds = array<i64: 2>, scalar_prefetch = 0 : i64, scratch_operands = 1 : i64, tpu.core_type = #tpu.core_type<tc>, window_params = [{transform_indices = @transform_0, window_bounds = array<i64: 8>}, {transform_indices = @transform_1, window_bounds = array<i64: 128, 16>}, {transform_indices = @transform_2, window_bounds = array<i64: 16, 128>}, {transform_indices = @transform_3, window_bounds = array<i64: 16, 128>}, {pipeline_mode = #tpu.pipeline_mode<synchronous>, transform_indices = @transform_4, window_bounds = array<i64: 128, 128>}, {pipeline_mode = #tpu.pipeline_mode<synchronous>, transform_indices = @transform_5, window_bounds = array<i64: 1, 128>}, {pipeline_mode = #tpu.pipeline_mode<synchronous>, transform_indices = @transform_6, window_bounds = array<i64: 16, 128>}, {pipeline_mode = #tpu.pipeline_mode<synchronous>, transform_indices = @transform_7, window_bounds = array<i64: 1, 128>}, {pipeline_mode = #tpu.pipeline_mode<synchronous>, transform_indices = @transform_8, window_bounds = array<i64: 128, 128>}, {pipeline_mode = #tpu.pipeline_mode<synchronous>, transform_indices = @transform_9, window_bounds = array<i64: 2, 1, 128>}, {pipeline_mode = #tpu.pipeline_mode<synchronous>, transform_indices = @transform_10, window_bounds = array<i64: 2, 1, 128>}, {pipeline_mode = #tpu.pipeline_mode<synchronous>, transform_indices = @transform_11, window_bounds = array<i64: 2, 128, 384>}, {pipeline_mode = #tpu.pipeline_mode<synchronous>, transform_indices = @transform_12, window_bounds = array<i64: 2, 1, 384>}, {pipeline_mode = #tpu.pipeline_mode<synchronous>, transform_indices = @transform_13, window_bounds = array<i64: 2, 128, 128>}, {pipeline_mode = #tpu.pipeline_mode<synchronous>, transform_indices = @transform_14, window_bounds = array<i64: 2, 1, 128>}, {pipeline_mode = #tpu.pipeline_mode<synchronous>, transform_indices = @transform_15, window_bounds = array<i64: 2, 1, 128>}, {pipeline_mode = #tpu.pipeline_mode<synchronous>, transform_indices = @transform_16, window_bounds = array<i64: 2, 1, 128>}, {pipeline_mode = #tpu.pipeline_mode<synchronous>, transform_indices = @transform_17, window_bounds = array<i64: 2, 128, 512>}, {pipeline_mode = #tpu.pipeline_mode<synchronous>, transform_indices = @transform_18, window_bounds = array<i64: 2, 1, 512>}, {pipeline_mode = #tpu.pipeline_mode<synchronous>, transform_indices = @transform_19, window_bounds = array<i64: 2, 512, 128>}, {pipeline_mode = #tpu.pipeline_mode<synchronous>, transform_indices = @transform_20, window_bounds = array<i64: 2, 1, 128>}, {pipeline_mode = #tpu.pipeline_mode<synchronous>, transform_indices = @transform_21, window_bounds = array<i64: 128, 16>}, {pipeline_mode = #tpu.pipeline_mode<synchronous>, transform_indices = @transform_22, window_bounds = array<i64: 16, 1>}, {transform_indices = @transform_23, window_bounds = array<i64: 2, 128>}]} {
    %c0 = arith.constant 0 : index
    %0 = memref.load %arg1[%c0] : memref<8xf32, #tpu.memory_space<smem>>
    %c1 = arith.constant 1 : index
    %1 = memref.load %arg1[%c1] : memref<8xf32, #tpu.memory_space<smem>>
    %c2 = arith.constant 2 : index
    %2 = memref.load %arg1[%c2] : memref<8xf32, #tpu.memory_space<smem>>
    %c3 = arith.constant 3 : index
    %3 = memref.load %arg1[%c3] : memref<8xf32, #tpu.memory_space<smem>>
    %c4 = arith.constant 4 : index
    %4 = memref.load %arg1[%c4] : memref<8xf32, #tpu.memory_space<smem>>
    %c5 = arith.constant 5 : index
    %5 = memref.load %arg1[%c5] : memref<8xf32, #tpu.memory_space<smem>>
    %c6 = arith.constant 6 : index
    %6 = memref.load %arg1[%c6] : memref<8xf32, #tpu.memory_space<smem>>
    %c0_0 = arith.constant 0 : index
    %c0_1 = arith.constant 0 : index
    %7 = vector.load %arg2[%c0_0, %c0_1] : memref<128x16xf32, #tpu.memory_space<vmem>>, vector<128x16xf32>
    %8 = arith.truncf %7 : vector<128x16xf32> to vector<128x16xbf16>
    %c0_2 = arith.constant 0 : index
    %c0_3 = arith.constant 0 : index
    %9 = vector.load %arg7[%c0_2, %c0_3] : memref<16x128xbf16, #tpu.memory_space<vmem>>, vector<16x128xbf16>
    %cst = arith.constant dense<0.000000e+00> : vector<128x128xf32>
    %10 = tpu.matmul %8, %9, %cst {dimension_numbers = #tpu.dot_dimension_numbers<[1], [0], [0], [1], [0, 0, 1, 1], [], []>} : vector<128x16xbf16>, vector<16x128xbf16>, vector<128x128xf32> -> vector<128x128xf32>
    %c0_4 = arith.constant 0 : index
    %c0_5 = arith.constant 0 : index
    %11 = vector.load %arg8[%c0_4, %c0_5] : memref<1x128xf32, #tpu.memory_space<vmem>>, vector<1x128xf32>
    %12 = vector.broadcast %11 : vector<1x128xf32> to vector<128x128xf32>
    %13 = arith.addf %10, %12 : vector<128x128xf32>
    %c0_6 = arith.constant 0 : index
    %c0_7 = arith.constant 0 : index
    %14 = vector.load %arg5[%c0_6, %c0_7] : memref<128x128xf32, #tpu.memory_space<vmem>>, vector<128x128xf32>
    %15 = arith.addf %13, %14 : vector<128x128xf32>
    %c0_8 = arith.constant 0 : index
    %c0_9 = arith.constant 0 : index
    %16 = vector.load %arg6[%c0_8, %c0_9] : memref<1x128xf32, #tpu.memory_space<vmem>>, vector<1x128xf32>
    %17 = vector.broadcast %16 : vector<1x128xf32> to vector<128x128xf32>
    %18 = arith.addf %15, %17 : vector<128x128xf32>
    %c0_10 = arith.constant 0 : index
    %c0_11 = arith.constant 0 : index
    %19 = vector.load %arg25[%c0_10, %c0_11] : memref<128x128xf32, #tpu.memory_space<vmem>>, vector<128x128xf32>
    tpu.vector_store %arg25[%c0_10, %c0_11], %18 {strides = array<i32>} : memref<128x128xf32, #tpu.memory_space<vmem>>, vector<128x128xf32>,
    %c0_12 = arith.constant 0 : index
    %c0_13 = arith.constant 0 : index
    %20 = vector.load %arg9[%c0_12, %c0_13] : memref<128x128xbf16, #tpu.memory_space<vmem>>, vector<128x128xbf16>
    %21 = arith.extf %20 : vector<128x128xbf16> to vector<128x128xf32>
    %c0_14 = arith.constant 0 : index
    %c0_15 = arith.constant 0 : index
    %22 = vector.load %arg25[%c0_14, %c0_15] : memref<128x128xf32, #tpu.memory_space<vmem>>, vector<128x128xf32>
    %c0_16 = arith.constant 0 : index
    %c0_17 = arith.constant 0 : index
    %c0_18 = arith.constant 0 : index
    %23 = vector.load %arg10[%c0_16, %c0_17, %c0_18] : memref<2x1x128xf32, #tpu.memory_space<vmem>>, vector<1x1x128xf32>
    %24 = vector.shape_cast %23 : vector<1x1x128xf32> to vector<1x128xf32>
    %c0_19 = arith.constant 0 : index
    %c0_20 = arith.constant 0 : index
    %c0_21 = arith.constant 0 : index
    %25 = vector.load %arg11[%c0_19, %c0_20, %c0_21] : memref<2x1x128xf32, #tpu.memory_space<vmem>>, vector<1x1x128xf32>
    %26 = vector.shape_cast %25 : vector<1x1x128xf32> to vector<1x128xf32>
    %cst_22 = arith.constant dense<0.000000e+00> : vector<128xf32>
    %27 = vector.multi_reduction <add>, %22, %cst_22 [1] : vector<128x128xf32> to vector<128xf32>
    %28 = vector.shape_cast %27 : vector<128xf32> to vector<128x1xf32>
    %cst_23 = arith.constant 1.280000e+02 : f32
    %29 = vector.broadcast %cst_23 : f32 to vector<128x1xf32>
    %30 = arith.divf %28, %29 : vector<128x1xf32>
    %31 = vector.broadcast %30 : vector<128x1xf32> to vector<128x128xf32>
    %32 = arith.subf %22, %31 : vector<128x128xf32>
    %33 = arith.mulf %32, %32 : vector<128x128xf32>
    %cst_24 = arith.constant dense<0.000000e+00> : vector<128xf32>
    %34 = vector.multi_reduction <add>, %33, %cst_24 [1] : vector<128x128xf32> to vector<128xf32>
    %35 = vector.shape_cast %34 : vector<128xf32> to vector<128x1xf32>
    %cst_25 = arith.constant 1.280000e+02 : f32
    %36 = vector.broadcast %cst_25 : f32 to vector<128x1xf32>
    %37 = arith.divf %35, %36 : vector<128x1xf32>
    %cst_26 = arith.constant 9.99999974E-6 : f32
    %38 = vector.broadcast %cst_26 : f32 to vector<128x1xf32>
    %39 = arith.addf %37, %38 : vector<128x1xf32>
    %40 = math.rsqrt %39 : vector<128x1xf32>
    %41 = vector.broadcast %40 : vector<128x1xf32> to vector<128x128xf32>
    %42 = arith.mulf %32, %41 : vector<128x128xf32>
    %43 = vector.broadcast %24 : vector<1x128xf32> to vector<128x128xf32>
    %44 = arith.mulf %42, %43 : vector<128x128xf32>
    %45 = vector.broadcast %26 : vector<1x128xf32> to vector<128x128xf32>
    %46 = arith.addf %44, %45 : vector<128x128xf32>
    %47 = arith.truncf %46 : vector<128x128xf32> to vector<128x128xbf16>
    %c0_27 = arith.constant 0 : index
    %c0_28 = arith.constant 0 : index
    %c0_29 = arith.constant 0 : index
    %48 = vector.load %arg12[%c0_27, %c0_28, %c0_29] : memref<2x128x384xbf16, #tpu.memory_space<vmem>>, vector<1x128x384xbf16>
    %49 = vector.shape_cast %48 : vector<1x128x384xbf16> to vector<128x384xbf16>
    %cst_30 = arith.constant dense<0.000000e+00> : vector<128x384xf32>
    %50 = tpu.matmul %47, %49, %cst_30 {dimension_numbers = #tpu.dot_dimension_numbers<[1], [0], [0], [1], [0, 0, 1, 1], [], []>} : vector<128x128xbf16>, vector<128x384xbf16>, vector<128x384xf32> -> vector<128x384xf32>
    %c0_31 = arith.constant 0 : index
    %c0_32 = arith.constant 0 : index
    %c0_33 = arith.constant 0 : index
    %51 = vector.load %arg13[%c0_31, %c0_32, %c0_33] : memref<2x1x384xf32, #tpu.memory_space<vmem>>, vector<1x1x384xf32>
    %52 = vector.shape_cast %51 : vector<1x1x384xf32> to vector<1x384xf32>
    %53 = vector.broadcast %52 : vector<1x384xf32> to vector<128x384xf32>
    %54 = arith.addf %50, %53 : vector<128x384xf32>
    %55 = vector.extract_strided_slice %54 {offsets = [0, 0], sizes = [128, 128], strides = [1, 1]} : vector<128x384xf32> to vector<128x128xf32>
    %56 = vector.extract_strided_slice %54 {offsets = [0, 128], sizes = [128, 128], strides = [1, 1]} : vector<128x384xf32> to vector<128x128xf32>
    %57 = vector.extract_strided_slice %54 {offsets = [0, 256], sizes = [128, 128], strides = [1, 1]} : vector<128x384xf32> to vector<128x128xf32>
    %cst_34 = arith.constant dense<0xFF800000> : vector<128xf32>
    %58 = vector.multi_reduction <maximumf>, %55, %cst_34 [1] : vector<128x128xf32> to vector<128xf32>
    %59 = vector.shape_cast %58 : vector<128xf32> to vector<128x1xf32>
    %60 = vector.broadcast %59 : vector<128x1xf32> to vector<128x128xf32>
    %61 = arith.subf %55, %60 : vector<128x128xf32>
    %62 = math.exp %61 : vector<128x128xf32>
    %63 = arith.truncf %62 : vector<128x128xf32> to vector<128x128xbf16>
    %cst_35 = arith.constant dense<0.000000e+00> : vector<128x128xf32>
    %64 = tpu.matmul %63, %20, %cst_35 {dimension_numbers = #tpu.dot_dimension_numbers<[1], [0], [0], [1], [0, 0, 1, 1], [], []>} : vector<128x128xbf16>, vector<128x128xbf16>, vector<128x128xf32> -> vector<128x128xf32>
    %65 = arith.divf %62, %64 : vector<128x128xf32>
    %cst_36 = arith.constant 0.176776692 : f32
    %66 = vector.broadcast %cst_36 : f32 to vector<128x128xf32>
    %67 = arith.mulf %65, %66 : vector<128x128xf32>
    %cst_37 = arith.constant dense<0xFF800000> : vector<128xf32>
    %68 = vector.multi_reduction <maximumf>, %56, %cst_37 [0] : vector<128x128xf32> to vector<128xf32>
    %69 = vector.shape_cast %68 : vector<128xf32> to vector<1x128xf32>
    %70 = vector.broadcast %69 : vector<1x128xf32> to vector<128x128xf32>
    %71 = arith.subf %56, %70 : vector<128x128xf32>
    %72 = math.exp %71 : vector<128x128xf32>
    %cst_38 = arith.constant dense<0.000000e+00> : vector<128xf32>
    %73 = vector.multi_reduction <add>, %72, %cst_38 [0] : vector<128x128xf32> to vector<128xf32>
    %74 = vector.shape_cast %73 : vector<128xf32> to vector<1x128xf32>
    %75 = vector.broadcast %74 : vector<1x128xf32> to vector<128x128xf32>
    %76 = arith.divf %72, %75 : vector<128x128xf32>
    %77 = arith.truncf %76 : vector<128x128xf32> to vector<128x128xbf16>
    %78 = arith.truncf %57 : vector<128x128xf32> to vector<128x128xbf16>
    %cst_39 = arith.constant dense<0.000000e+00> : vector<128x128xf32>
    %79 = tpu.matmul %77, %78, %cst_39 {dimension_numbers = #tpu.dot_dimension_numbers<[0], [0], [1], [1], [0, 1, 1, 1], [], []>} : vector<128x128xbf16>, vector<128x128xbf16>, vector<128x128xf32> -> vector<128x128xf32>
    %80 = arith.mulf %79, %21 : vector<128x128xf32>
    %81 = arith.truncf %67 : vector<128x128xf32> to vector<128x128xbf16>
    %82 = arith.truncf %80 : vector<128x128xf32> to vector<128x128xbf16>
    %cst_40 = arith.constant dense<0.000000e+00> : vector<128x128xf32>
    %83 = tpu.matmul %81, %82, %cst_40 {dimension_numbers = #tpu.dot_dimension_numbers<[1], [0], [0], [1], [0, 0, 1, 1], [], []>} : vector<128x128xbf16>, vector<128x128xbf16>, vector<128x128xf32> -> vector<128x128xf32>
    %84 = arith.truncf %83 : vector<128x128xf32> to vector<128x128xbf16>
    %c0_41 = arith.constant 0 : index
    %c0_42 = arith.constant 0 : index
    %c0_43 = arith.constant 0 : index
    %85 = vector.load %arg14[%c0_41, %c0_42, %c0_43] : memref<2x128x128xbf16, #tpu.memory_space<vmem>>, vector<1x128x128xbf16>
    %86 = vector.shape_cast %85 : vector<1x128x128xbf16> to vector<128x128xbf16>
    %cst_44 = arith.constant dense<0.000000e+00> : vector<128x128xf32>
    %87 = tpu.matmul %84, %86, %cst_44 {dimension_numbers = #tpu.dot_dimension_numbers<[1], [0], [0], [1], [0, 0, 1, 1], [], []>} : vector<128x128xbf16>, vector<128x128xbf16>, vector<128x128xf32> -> vector<128x128xf32>
    %c0_45 = arith.constant 0 : index
    %c0_46 = arith.constant 0 : index
    %c0_47 = arith.constant 0 : index
    %88 = vector.load %arg15[%c0_45, %c0_46, %c0_47] : memref<2x1x128xf32, #tpu.memory_space<vmem>>, vector<1x1x128xf32>
    %89 = vector.shape_cast %88 : vector<1x1x128xf32> to vector<1x128xf32>
    %90 = vector.broadcast %89 : vector<1x128xf32> to vector<128x128xf32>
    %91 = arith.addf %87, %90 : vector<128x128xf32>
    %c0_48 = arith.constant 0 : index
    %c0_49 = arith.constant 0 : index
    %92 = vector.load %arg25[%c0_48, %c0_49] : memref<128x128xf32, #tpu.memory_space<vmem>>, vector<128x128xf32>
    %93 = arith.addf %92, %91 : vector<128x128xf32>
    %c0_50 = arith.constant 0 : index
    %c0_51 = arith.constant 0 : index
    %94 = vector.load %arg25[%c0_50, %c0_51] : memref<128x128xf32, #tpu.memory_space<vmem>>, vector<128x128xf32>
    tpu.vector_store %arg25[%c0_50, %c0_51], %93 {strides = array<i32>} : memref<128x128xf32, #tpu.memory_space<vmem>>, vector<128x128xf32>,
    %c0_52 = arith.constant 0 : index
    %c0_53 = arith.constant 0 : index
    %95 = vector.load %arg25[%c0_52, %c0_53] : memref<128x128xf32, #tpu.memory_space<vmem>>, vector<128x128xf32>
    %c0_54 = arith.constant 0 : index
    %c0_55 = arith.constant 0 : index
    %c0_56 = arith.constant 0 : index
    %96 = vector.load %arg16[%c0_54, %c0_55, %c0_56] : memref<2x1x128xf32, #tpu.memory_space<vmem>>, vector<1x1x128xf32>
    %97 = vector.shape_cast %96 : vector<1x1x128xf32> to vector<1x128xf32>
    %c0_57 = arith.constant 0 : index
    %c0_58 = arith.constant 0 : index
    %c0_59 = arith.constant 0 : index
    %98 = vector.load %arg17[%c0_57, %c0_58, %c0_59] : memref<2x1x128xf32, #tpu.memory_space<vmem>>, vector<1x1x128xf32>
    %99 = vector.shape_cast %98 : vector<1x1x128xf32> to vector<1x128xf32>
    %cst_60 = arith.constant dense<0.000000e+00> : vector<128xf32>
    %100 = vector.multi_reduction <add>, %95, %cst_60 [1] : vector<128x128xf32> to vector<128xf32>
    %101 = vector.shape_cast %100 : vector<128xf32> to vector<128x1xf32>
    %cst_61 = arith.constant 1.280000e+02 : f32
    %102 = vector.broadcast %cst_61 : f32 to vector<128x1xf32>
    %103 = arith.divf %101, %102 : vector<128x1xf32>
    %104 = vector.broadcast %103 : vector<128x1xf32> to vector<128x128xf32>
    %105 = arith.subf %95, %104 : vector<128x128xf32>
    %106 = arith.mulf %105, %105 : vector<128x128xf32>
    %cst_62 = arith.constant dense<0.000000e+00> : vector<128xf32>
    %107 = vector.multi_reduction <add>, %106, %cst_62 [1] : vector<128x128xf32> to vector<128xf32>
    %108 = vector.shape_cast %107 : vector<128xf32> to vector<128x1xf32>
    %cst_63 = arith.constant 1.280000e+02 : f32
    %109 = vector.broadcast %cst_63 : f32 to vector<128x1xf32>
    %110 = arith.divf %108, %109 : vector<128x1xf32>
    %cst_64 = arith.constant 9.99999974E-6 : f32
    %111 = vector.broadcast %cst_64 : f32 to vector<128x1xf32>
    %112 = arith.addf %110, %111 : vector<128x1xf32>
    %113 = math.rsqrt %112 : vector<128x1xf32>
    %114 = vector.broadcast %113 : vector<128x1xf32> to vector<128x128xf32>
    %115 = arith.mulf %105, %114 : vector<128x128xf32>
    %116 = vector.broadcast %97 : vector<1x128xf32> to vector<128x128xf32>
    %117 = arith.mulf %115, %116 : vector<128x128xf32>
    %118 = vector.broadcast %99 : vector<1x128xf32> to vector<128x128xf32>
    %119 = arith.addf %117, %118 : vector<128x128xf32>
    %120 = arith.truncf %119 : vector<128x128xf32> to vector<128x128xbf16>
    %c0_65 = arith.constant 0 : index
    %c0_66 = arith.constant 0 : index
    %c0_67 = arith.constant 0 : index
    %121 = vector.load %arg18[%c0_65, %c0_66, %c0_67] : memref<2x128x512xbf16, #tpu.memory_space<vmem>>, vector<1x128x512xbf16>
    %122 = vector.shape_cast %121 : vector<1x128x512xbf16> to vector<128x512xbf16>
    %cst_68 = arith.constant dense<0.000000e+00> : vector<128x512xf32>
    %123 = tpu.matmul %120, %122, %cst_68 {dimension_numbers = #tpu.dot_dimension_numbers<[1], [0], [0], [1], [0, 0, 1, 1], [], []>} : vector<128x128xbf16>, vector<128x512xbf16>, vector<128x512xf32> -> vector<128x512xf32>
    %c0_69 = arith.constant 0 : index
    %c0_70 = arith.constant 0 : index
    %c0_71 = arith.constant 0 : index
    %124 = vector.load %arg19[%c0_69, %c0_70, %c0_71] : memref<2x1x512xf32, #tpu.memory_space<vmem>>, vector<1x1x512xf32>
    %125 = vector.shape_cast %124 : vector<1x1x512xf32> to vector<1x512xf32>
    %126 = vector.broadcast %125 : vector<1x512xf32> to vector<128x512xf32>
    %127 = arith.addf %123, %126 : vector<128x512xf32>
    %128 = arith.mulf %127, %127 : vector<128x512xf32>
    %129 = arith.mulf %127, %128 : vector<128x512xf32>
    %cst_72 = arith.constant 4.471500e-02 : f32
    %130 = vector.broadcast %cst_72 : f32 to vector<128x512xf32>
    %131 = arith.mulf %130, %129 : vector<128x512xf32>
    %132 = arith.addf %127, %131 : vector<128x512xf32>
    %cst_73 = arith.constant 0.797884583 : f32
    %133 = vector.broadcast %cst_73 : f32 to vector<128x512xf32>
    %134 = arith.mulf %133, %132 : vector<128x512xf32>
    %135 = math.tanh %134 : vector<128x512xf32>
    %cst_74 = arith.constant 1.000000e+00 : f32
    %136 = vector.broadcast %cst_74 : f32 to vector<128x512xf32>
    %137 = arith.addf %136, %135 : vector<128x512xf32>
    %cst_75 = arith.constant 5.000000e-01 : f32
    %138 = vector.broadcast %cst_75 : f32 to vector<128x512xf32>
    %139 = arith.mulf %138, %137 : vector<128x512xf32>
    %140 = arith.mulf %127, %139 : vector<128x512xf32>
    %141 = arith.truncf %140 : vector<128x512xf32> to vector<128x512xbf16>
    %c0_76 = arith.constant 0 : index
    %c0_77 = arith.constant 0 : index
    %c0_78 = arith.constant 0 : index
    %142 = vector.load %arg20[%c0_76, %c0_77, %c0_78] : memref<2x512x128xbf16, #tpu.memory_space<vmem>>, vector<1x512x128xbf16>
    %143 = vector.shape_cast %142 : vector<1x512x128xbf16> to vector<512x128xbf16>
    %cst_79 = arith.constant dense<0.000000e+00> : vector<128x128xf32>
    %144 = tpu.matmul %141, %143, %cst_79 {dimension_numbers = #tpu.dot_dimension_numbers<[1], [0], [0], [1], [0, 0, 1, 1], [], []>} : vector<128x512xbf16>, vector<512x128xbf16>, vector<128x128xf32> -> vector<128x128xf32>
    %c0_80 = arith.constant 0 : index
    %c0_81 = arith.constant 0 : index
    %c0_82 = arith.constant 0 : index
    %145 = vector.load %arg21[%c0_80, %c0_81, %c0_82] : memref<2x1x128xf32, #tpu.memory_space<vmem>>, vector<1x1x128xf32>
    %146 = vector.shape_cast %145 : vector<1x1x128xf32> to vector<1x128xf32>
    %147 = vector.broadcast %146 : vector<1x128xf32> to vector<128x128xf32>
    %148 = arith.addf %144, %147 : vector<128x128xf32>
    %c0_83 = arith.constant 0 : index
    %c0_84 = arith.constant 0 : index
    %149 = vector.load %arg25[%c0_83, %c0_84] : memref<128x128xf32, #tpu.memory_space<vmem>>, vector<128x128xf32>
    %150 = arith.addf %149, %148 : vector<128x128xf32>
    %c0_85 = arith.constant 0 : index
    %c0_86 = arith.constant 0 : index
    %151 = vector.load %arg25[%c0_85, %c0_86] : memref<128x128xf32, #tpu.memory_space<vmem>>, vector<128x128xf32>
    tpu.vector_store %arg25[%c0_85, %c0_86], %150 {strides = array<i32>} : memref<128x128xf32, #tpu.memory_space<vmem>>, vector<128x128xf32>,
    %c0_87 = arith.constant 0 : index
    %c0_88 = arith.constant 0 : index
    %152 = vector.load %arg25[%c0_87, %c0_88] : memref<128x128xf32, #tpu.memory_space<vmem>>, vector<128x128xf32>
    %c1_89 = arith.constant 1 : index
    %c0_90 = arith.constant 0 : index
    %c0_91 = arith.constant 0 : index
    %153 = vector.load %arg10[%c1_89, %c0_90, %c0_91] : memref<2x1x128xf32, #tpu.memory_space<vmem>>, vector<1x1x128xf32>
    %154 = vector.shape_cast %153 : vector<1x1x128xf32> to vector<1x128xf32>
    %c1_92 = arith.constant 1 : index
    %c0_93 = arith.constant 0 : index
    %c0_94 = arith.constant 0 : index
    %155 = vector.load %arg11[%c1_92, %c0_93, %c0_94] : memref<2x1x128xf32, #tpu.memory_space<vmem>>, vector<1x1x128xf32>
    %156 = vector.shape_cast %155 : vector<1x1x128xf32> to vector<1x128xf32>
    %cst_95 = arith.constant dense<0.000000e+00> : vector<128xf32>
    %157 = vector.multi_reduction <add>, %152, %cst_95 [1] : vector<128x128xf32> to vector<128xf32>
    %158 = vector.shape_cast %157 : vector<128xf32> to vector<128x1xf32>
    %cst_96 = arith.constant 1.280000e+02 : f32
    %159 = vector.broadcast %cst_96 : f32 to vector<128x1xf32>
    %160 = arith.divf %158, %159 : vector<128x1xf32>
    %161 = vector.broadcast %160 : vector<128x1xf32> to vector<128x128xf32>
    %162 = arith.subf %152, %161 : vector<128x128xf32>
    %163 = arith.mulf %162, %162 : vector<128x128xf32>
    %cst_97 = arith.constant dense<0.000000e+00> : vector<128xf32>
    %164 = vector.multi_reduction <add>, %163, %cst_97 [1] : vector<128x128xf32> to vector<128xf32>
    %165 = vector.shape_cast %164 : vector<128xf32> to vector<128x1xf32>
    %cst_98 = arith.constant 1.280000e+02 : f32
    %166 = vector.broadcast %cst_98 : f32 to vector<128x1xf32>
    %167 = arith.divf %165, %166 : vector<128x1xf32>
    %cst_99 = arith.constant 9.99999974E-6 : f32
    %168 = vector.broadcast %cst_99 : f32 to vector<128x1xf32>
    %169 = arith.addf %167, %168 : vector<128x1xf32>
    %170 = math.rsqrt %169 : vector<128x1xf32>
    %171 = vector.broadcast %170 : vector<128x1xf32> to vector<128x128xf32>
    %172 = arith.mulf %162, %171 : vector<128x128xf32>
    %173 = vector.broadcast %154 : vector<1x128xf32> to vector<128x128xf32>
    %174 = arith.mulf %172, %173 : vector<128x128xf32>
    %175 = vector.broadcast %156 : vector<1x128xf32> to vector<128x128xf32>
    %176 = arith.addf %174, %175 : vector<128x128xf32>
    %177 = arith.truncf %176 : vector<128x128xf32> to vector<128x128xbf16>
    %c1_100 = arith.constant 1 : index
    %c0_101 = arith.constant 0 : index
    %c0_102 = arith.constant 0 : index
    %178 = vector.load %arg12[%c1_100, %c0_101, %c0_102] : memref<2x128x384xbf16, #tpu.memory_space<vmem>>, vector<1x128x384xbf16>
    %179 = vector.shape_cast %178 : vector<1x128x384xbf16> to vector<128x384xbf16>
    %cst_103 = arith.constant dense<0.000000e+00> : vector<128x384xf32>
    %180 = tpu.matmul %177, %179, %cst_103 {dimension_numbers = #tpu.dot_dimension_numbers<[1], [0], [0], [1], [0, 0, 1, 1], [], []>} : vector<128x128xbf16>, vector<128x384xbf16>, vector<128x384xf32> -> vector<128x384xf32>
    %c1_104 = arith.constant 1 : index
    %c0_105 = arith.constant 0 : index
    %c0_106 = arith.constant 0 : index
    %181 = vector.load %arg13[%c1_104, %c0_105, %c0_106] : memref<2x1x384xf32, #tpu.memory_space<vmem>>, vector<1x1x384xf32>
    %182 = vector.shape_cast %181 : vector<1x1x384xf32> to vector<1x384xf32>
    %183 = vector.broadcast %182 : vector<1x384xf32> to vector<128x384xf32>
    %184 = arith.addf %180, %183 : vector<128x384xf32>
    %185 = vector.extract_strided_slice %184 {offsets = [0, 0], sizes = [128, 128], strides = [1, 1]} : vector<128x384xf32> to vector<128x128xf32>
    %186 = vector.extract_strided_slice %184 {offsets = [0, 128], sizes = [128, 128], strides = [1, 1]} : vector<128x384xf32> to vector<128x128xf32>
    %187 = vector.extract_strided_slice %184 {offsets = [0, 256], sizes = [128, 128], strides = [1, 1]} : vector<128x384xf32> to vector<128x128xf32>
    %cst_107 = arith.constant dense<0xFF800000> : vector<128xf32>
    %188 = vector.multi_reduction <maximumf>, %185, %cst_107 [1] : vector<128x128xf32> to vector<128xf32>
    %189 = vector.shape_cast %188 : vector<128xf32> to vector<128x1xf32>
    %190 = vector.broadcast %189 : vector<128x1xf32> to vector<128x128xf32>
    %191 = arith.subf %185, %190 : vector<128x128xf32>
    %192 = math.exp %191 : vector<128x128xf32>
    %193 = arith.truncf %192 : vector<128x128xf32> to vector<128x128xbf16>
    %cst_108 = arith.constant dense<0.000000e+00> : vector<128x128xf32>
    %194 = tpu.matmul %193, %20, %cst_108 {dimension_numbers = #tpu.dot_dimension_numbers<[1], [0], [0], [1], [0, 0, 1, 1], [], []>} : vector<128x128xbf16>, vector<128x128xbf16>, vector<128x128xf32> -> vector<128x128xf32>
    %195 = arith.divf %192, %194 : vector<128x128xf32>
    %cst_109 = arith.constant 0.176776692 : f32
    %196 = vector.broadcast %cst_109 : f32 to vector<128x128xf32>
    %197 = arith.mulf %195, %196 : vector<128x128xf32>
    %cst_110 = arith.constant dense<0xFF800000> : vector<128xf32>
    %198 = vector.multi_reduction <maximumf>, %186, %cst_110 [0] : vector<128x128xf32> to vector<128xf32>
    %199 = vector.shape_cast %198 : vector<128xf32> to vector<1x128xf32>
    %200 = vector.broadcast %199 : vector<1x128xf32> to vector<128x128xf32>
    %201 = arith.subf %186, %200 : vector<128x128xf32>
    %202 = math.exp %201 : vector<128x128xf32>
    %cst_111 = arith.constant dense<0.000000e+00> : vector<128xf32>
    %203 = vector.multi_reduction <add>, %202, %cst_111 [0] : vector<128x128xf32> to vector<128xf32>
    %204 = vector.shape_cast %203 : vector<128xf32> to vector<1x128xf32>
    %205 = vector.broadcast %204 : vector<1x128xf32> to vector<128x128xf32>
    %206 = arith.divf %202, %205 : vector<128x128xf32>
    %207 = arith.truncf %206 : vector<128x128xf32> to vector<128x128xbf16>
    %208 = arith.truncf %187 : vector<128x128xf32> to vector<128x128xbf16>
    %cst_112 = arith.constant dense<0.000000e+00> : vector<128x128xf32>
    %209 = tpu.matmul %207, %208, %cst_112 {dimension_numbers = #tpu.dot_dimension_numbers<[0], [0], [1], [1], [0, 1, 1, 1], [], []>} : vector<128x128xbf16>, vector<128x128xbf16>, vector<128x128xf32> -> vector<128x128xf32>
    %210 = arith.mulf %209, %21 : vector<128x128xf32>
    %211 = arith.truncf %197 : vector<128x128xf32> to vector<128x128xbf16>
    %212 = arith.truncf %210 : vector<128x128xf32> to vector<128x128xbf16>
    %cst_113 = arith.constant dense<0.000000e+00> : vector<128x128xf32>
    %213 = tpu.matmul %211, %212, %cst_113 {dimension_numbers = #tpu.dot_dimension_numbers<[1], [0], [0], [1], [0, 0, 1, 1], [], []>} : vector<128x128xbf16>, vector<128x128xbf16>, vector<128x128xf32> -> vector<128x128xf32>
    %214 = arith.truncf %213 : vector<128x128xf32> to vector<128x128xbf16>
    %c1_114 = arith.constant 1 : index
    %c0_115 = arith.constant 0 : index
    %c0_116 = arith.constant 0 : index
    %215 = vector.load %arg14[%c1_114, %c0_115, %c0_116] : memref<2x128x128xbf16, #tpu.memory_space<vmem>>, vector<1x128x128xbf16>
    %216 = vector.shape_cast %215 : vector<1x128x128xbf16> to vector<128x128xbf16>
    %cst_117 = arith.constant dense<0.000000e+00> : vector<128x128xf32>
    %217 = tpu.matmul %214, %216, %cst_117 {dimension_numbers = #tpu.dot_dimension_numbers<[1], [0], [0], [1], [0, 0, 1, 1], [], []>} : vector<128x128xbf16>, vector<128x128xbf16>, vector<128x128xf32> -> vector<128x128xf32>
    %c1_118 = arith.constant 1 : index
    %c0_119 = arith.constant 0 : index
    %c0_120 = arith.constant 0 : index
    %218 = vector.load %arg15[%c1_118, %c0_119, %c0_120] : memref<2x1x128xf32, #tpu.memory_space<vmem>>, vector<1x1x128xf32>
    %219 = vector.shape_cast %218 : vector<1x1x128xf32> to vector<1x128xf32>
    %220 = vector.broadcast %219 : vector<1x128xf32> to vector<128x128xf32>
    %221 = arith.addf %217, %220 : vector<128x128xf32>
    %c0_121 = arith.constant 0 : index
    %c0_122 = arith.constant 0 : index
    %222 = vector.load %arg25[%c0_121, %c0_122] : memref<128x128xf32, #tpu.memory_space<vmem>>, vector<128x128xf32>
    %223 = arith.addf %222, %221 : vector<128x128xf32>
    %c0_123 = arith.constant 0 : index
    %c0_124 = arith.constant 0 : index
    %224 = vector.load %arg25[%c0_123, %c0_124] : memref<128x128xf32, #tpu.memory_space<vmem>>, vector<128x128xf32>
    tpu.vector_store %arg25[%c0_123, %c0_124], %223 {strides = array<i32>} : memref<128x128xf32, #tpu.memory_space<vmem>>, vector<128x128xf32>,
    %c0_125 = arith.constant 0 : index
    %c0_126 = arith.constant 0 : index
    %225 = vector.load %arg25[%c0_125, %c0_126] : memref<128x128xf32, #tpu.memory_space<vmem>>, vector<128x128xf32>
    %c1_127 = arith.constant 1 : index
    %c0_128 = arith.constant 0 : index
    %c0_129 = arith.constant 0 : index
    %226 = vector.load %arg16[%c1_127, %c0_128, %c0_129] : memref<2x1x128xf32, #tpu.memory_space<vmem>>, vector<1x1x128xf32>
    %227 = vector.shape_cast %226 : vector<1x1x128xf32> to vector<1x128xf32>
    %c1_130 = arith.constant 1 : index
    %c0_131 = arith.constant 0 : index
    %c0_132 = arith.constant 0 : index
    %228 = vector.load %arg17[%c1_130, %c0_131, %c0_132] : memref<2x1x128xf32, #tpu.memory_space<vmem>>, vector<1x1x128xf32>
    %229 = vector.shape_cast %228 : vector<1x1x128xf32> to vector<1x128xf32>
    %cst_133 = arith.constant dense<0.000000e+00> : vector<128xf32>
    %230 = vector.multi_reduction <add>, %225, %cst_133 [1] : vector<128x128xf32> to vector<128xf32>
    %231 = vector.shape_cast %230 : vector<128xf32> to vector<128x1xf32>
    %cst_134 = arith.constant 1.280000e+02 : f32
    %232 = vector.broadcast %cst_134 : f32 to vector<128x1xf32>
    %233 = arith.divf %231, %232 : vector<128x1xf32>
    %234 = vector.broadcast %233 : vector<128x1xf32> to vector<128x128xf32>
    %235 = arith.subf %225, %234 : vector<128x128xf32>
    %236 = arith.mulf %235, %235 : vector<128x128xf32>
    %cst_135 = arith.constant dense<0.000000e+00> : vector<128xf32>
    %237 = vector.multi_reduction <add>, %236, %cst_135 [1] : vector<128x128xf32> to vector<128xf32>
    %238 = vector.shape_cast %237 : vector<128xf32> to vector<128x1xf32>
    %cst_136 = arith.constant 1.280000e+02 : f32
    %239 = vector.broadcast %cst_136 : f32 to vector<128x1xf32>
    %240 = arith.divf %238, %239 : vector<128x1xf32>
    %cst_137 = arith.constant 9.99999974E-6 : f32
    %241 = vector.broadcast %cst_137 : f32 to vector<128x1xf32>
    %242 = arith.addf %240, %241 : vector<128x1xf32>
    %243 = math.rsqrt %242 : vector<128x1xf32>
    %244 = vector.broadcast %243 : vector<128x1xf32> to vector<128x128xf32>
    %245 = arith.mulf %235, %244 : vector<128x128xf32>
    %246 = vector.broadcast %227 : vector<1x128xf32> to vector<128x128xf32>
    %247 = arith.mulf %245, %246 : vector<128x128xf32>
    %248 = vector.broadcast %229 : vector<1x128xf32> to vector<128x128xf32>
    %249 = arith.addf %247, %248 : vector<128x128xf32>
    %250 = arith.truncf %249 : vector<128x128xf32> to vector<128x128xbf16>
    %c1_138 = arith.constant 1 : index
    %c0_139 = arith.constant 0 : index
    %c0_140 = arith.constant 0 : index
    %251 = vector.load %arg18[%c1_138, %c0_139, %c0_140] : memref<2x128x512xbf16, #tpu.memory_space<vmem>>, vector<1x128x512xbf16>
    %252 = vector.shape_cast %251 : vector<1x128x512xbf16> to vector<128x512xbf16>
    %cst_141 = arith.constant dense<0.000000e+00> : vector<128x512xf32>
    %253 = tpu.matmul %250, %252, %cst_141 {dimension_numbers = #tpu.dot_dimension_numbers<[1], [0], [0], [1], [0, 0, 1, 1], [], []>} : vector<128x128xbf16>, vector<128x512xbf16>, vector<128x512xf32> -> vector<128x512xf32>
    %c1_142 = arith.constant 1 : index
    %c0_143 = arith.constant 0 : index
    %c0_144 = arith.constant 0 : index
    %254 = vector.load %arg19[%c1_142, %c0_143, %c0_144] : memref<2x1x512xf32, #tpu.memory_space<vmem>>, vector<1x1x512xf32>
    %255 = vector.shape_cast %254 : vector<1x1x512xf32> to vector<1x512xf32>
    %256 = vector.broadcast %255 : vector<1x512xf32> to vector<128x512xf32>
    %257 = arith.addf %253, %256 : vector<128x512xf32>
    %258 = arith.mulf %257, %257 : vector<128x512xf32>
    %259 = arith.mulf %257, %258 : vector<128x512xf32>
    %cst_145 = arith.constant 4.471500e-02 : f32
    %260 = vector.broadcast %cst_145 : f32 to vector<128x512xf32>
    %261 = arith.mulf %260, %259 : vector<128x512xf32>
    %262 = arith.addf %257, %261 : vector<128x512xf32>
    %cst_146 = arith.constant 0.797884583 : f32
    %263 = vector.broadcast %cst_146 : f32 to vector<128x512xf32>
    %264 = arith.mulf %263, %262 : vector<128x512xf32>
    %265 = math.tanh %264 : vector<128x512xf32>
    %cst_147 = arith.constant 1.000000e+00 : f32
    %266 = vector.broadcast %cst_147 : f32 to vector<128x512xf32>
    %267 = arith.addf %266, %265 : vector<128x512xf32>
    %cst_148 = arith.constant 5.000000e-01 : f32
    %268 = vector.broadcast %cst_148 : f32 to vector<128x512xf32>
    %269 = arith.mulf %268, %267 : vector<128x512xf32>
    %270 = arith.mulf %257, %269 : vector<128x512xf32>
    %271 = arith.truncf %270 : vector<128x512xf32> to vector<128x512xbf16>
    %c1_149 = arith.constant 1 : index
    %c0_150 = arith.constant 0 : index
    %c0_151 = arith.constant 0 : index
    %272 = vector.load %arg20[%c1_149, %c0_150, %c0_151] : memref<2x512x128xbf16, #tpu.memory_space<vmem>>, vector<1x512x128xbf16>
    %273 = vector.shape_cast %272 : vector<1x512x128xbf16> to vector<512x128xbf16>
    %cst_152 = arith.constant dense<0.000000e+00> : vector<128x128xf32>
    %274 = tpu.matmul %271, %273, %cst_152 {dimension_numbers = #tpu.dot_dimension_numbers<[1], [0], [0], [1], [0, 0, 1, 1], [], []>} : vector<128x512xbf16>, vector<512x128xbf16>, vector<128x128xf32> -> vector<128x128xf32>
    %c1_153 = arith.constant 1 : index
    %c0_154 = arith.constant 0 : index
    %c0_155 = arith.constant 0 : index
    %275 = vector.load %arg21[%c1_153, %c0_154, %c0_155] : memref<2x1x128xf32, #tpu.memory_space<vmem>>, vector<1x1x128xf32>
    %276 = vector.shape_cast %275 : vector<1x1x128xf32> to vector<1x128xf32>
    %277 = vector.broadcast %276 : vector<1x128xf32> to vector<128x128xf32>
    %278 = arith.addf %274, %277 : vector<128x128xf32>
    %c0_156 = arith.constant 0 : index
    %c0_157 = arith.constant 0 : index
    %279 = vector.load %arg25[%c0_156, %c0_157] : memref<128x128xf32, #tpu.memory_space<vmem>>, vector<128x128xf32>
    %280 = arith.addf %279, %278 : vector<128x128xf32>
    %c0_158 = arith.constant 0 : index
    %c0_159 = arith.constant 0 : index
    %281 = vector.load %arg25[%c0_158, %c0_159] : memref<128x128xf32, #tpu.memory_space<vmem>>, vector<128x128xf32>
    tpu.vector_store %arg25[%c0_158, %c0_159], %280 {strides = array<i32>} : memref<128x128xf32, #tpu.memory_space<vmem>>, vector<128x128xf32>,
    %c0_160 = arith.constant 0 : index
    %c0_161 = arith.constant 0 : index
    %282 = vector.load %arg22[%c0_160, %c0_161] : memref<128x16xbf16, #tpu.memory_space<vmem>>, vector<128x16xbf16>
    %c0_162 = arith.constant 0 : index
    %c0_163 = arith.constant 0 : index
    %283 = vector.load %arg25[%c0_162, %c0_163] : memref<128x128xf32, #tpu.memory_space<vmem>>, vector<128x128xf32>
    %284 = arith.truncf %283 : vector<128x128xf32> to vector<128x128xbf16>
    %cst_164 = arith.constant dense<0.000000e+00> : vector<16x128xf32>
    %285 = tpu.matmul %282, %284, %cst_164 {dimension_numbers = #tpu.dot_dimension_numbers<[0], [1], [1], [0], [0, 1, 1, 0], [], []>} : vector<128x16xbf16>, vector<128x128xbf16>, vector<16x128xf32> -> vector<16x128xf32>
    %c0_165 = arith.constant 0 : index
    %c0_166 = arith.constant 0 : index
    %286 = vector.load %arg23[%c0_165, %c0_166] : memref<16x1xf32, #tpu.memory_space<vmem>>, vector<16x1xf32>
    %287 = vector.broadcast %286 : vector<16x1xf32> to vector<16x128xf32>
    %288 = arith.addf %285, %287 : vector<16x128xf32>
    %289 = vector.broadcast %6 : f32 to vector<16x128xf32>
    %290 = arith.mulf %288, %289 : vector<16x128xf32>
    %c0_167 = arith.constant 0 : index
    %c0_168 = arith.constant 0 : index
    %291 = vector.load %arg3[%c0_167, %c0_168] : memref<16x128xf32, #tpu.memory_space<vmem>>, vector<16x128xf32>
    %c0_169 = arith.constant 0 : index
    %c0_170 = arith.constant 0 : index
    %292 = vector.load %arg4[%c0_169, %c0_170] : memref<16x128xf32, #tpu.memory_space<vmem>>, vector<16x128xf32>
    %cst_171 = arith.constant dense<0xFF800000> : vector<128xf32>
    %293 = vector.multi_reduction <maximumf>, %290, %cst_171 [0] : vector<16x128xf32> to vector<128xf32>
    %294 = vector.shape_cast %293 : vector<128xf32> to vector<1x128xf32>
    %295 = vector.broadcast %294 : vector<1x128xf32> to vector<16x128xf32>
    %296 = arith.subf %290, %295 : vector<16x128xf32>
    %297 = math.exp %296 : vector<16x128xf32>
    %cst_172 = arith.constant dense<0.000000e+00> : vector<128xf32>
    %298 = vector.multi_reduction <add>, %297, %cst_172 [0] : vector<16x128xf32> to vector<128xf32>
    %299 = vector.shape_cast %298 : vector<128xf32> to vector<1x128xf32>
    %300 = math.log %299 : vector<1x128xf32>
    %301 = arith.addf %294, %300 : vector<1x128xf32>
    %302 = vector.broadcast %301 : vector<1x128xf32> to vector<16x128xf32>
    %303 = arith.subf %290, %302 : vector<16x128xf32>
    %304 = vector.broadcast %0 : f32 to vector<16x128xf32>
    %305 = arith.addf %292, %304 : vector<16x128xf32>
    %cst_173 = arith.constant 2.77258873 : f32
    %306 = arith.subf %1, %cst_173 : f32
    %307 = vector.broadcast %306 : f32 to vector<16x128xf32>
    %308 = arith.maximumf %305, %307 : vector<16x128xf32>
    %309 = arith.subf %305, %308 : vector<16x128xf32>
    %310 = math.exp %309 : vector<16x128xf32>
    %311 = vector.broadcast %306 : f32 to vector<16x128xf32>
    %312 = arith.subf %311, %308 : vector<16x128xf32>
    %313 = math.exp %312 : vector<16x128xf32>
    %314 = arith.addf %310, %313 : vector<16x128xf32>
    %315 = math.log %314 : vector<16x128xf32>
    %316 = arith.addf %308, %315 : vector<16x128xf32>
    %317 = vector.broadcast %2 : f32 to vector<16x128xf32>
    %318 = arith.addf %291, %317 : vector<16x128xf32>
    %cst_174 = arith.constant 2.77258873 : f32
    %319 = arith.subf %3, %cst_174 : f32
    %320 = vector.broadcast %319 : f32 to vector<16x128xf32>
    %321 = arith.maximumf %318, %320 : vector<16x128xf32>
    %322 = arith.subf %318, %321 : vector<16x128xf32>
    %323 = math.exp %322 : vector<16x128xf32>
    %324 = vector.broadcast %319 : f32 to vector<16x128xf32>
    %325 = arith.subf %324, %321 : vector<16x128xf32>
    %326 = math.exp %325 : vector<16x128xf32>
    %327 = arith.addf %323, %326 : vector<16x128xf32>
    %328 = math.log %327 : vector<16x128xf32>
    %329 = arith.addf %321, %328 : vector<16x128xf32>
    %330 = arith.addf %329, %316 : vector<16x128xf32>
    %cst_175 = arith.constant dense<0xFF800000> : vector<128xf32>
    %331 = vector.multi_reduction <maximumf>, %330, %cst_175 [0] : vector<16x128xf32> to vector<128xf32>
    %332 = vector.shape_cast %331 : vector<128xf32> to vector<1x128xf32>
    %333 = vector.broadcast %332 : vector<1x128xf32> to vector<16x128xf32>
    %334 = arith.subf %330, %333 : vector<16x128xf32>
    %335 = math.exp %334 : vector<16x128xf32>
    %cst_176 = arith.constant dense<0.000000e+00> : vector<128xf32>
    %336 = vector.multi_reduction <add>, %335, %cst_176 [0] : vector<16x128xf32> to vector<128xf32>
    %337 = vector.shape_cast %336 : vector<128xf32> to vector<1x128xf32>
    %338 = math.log %337 : vector<1x128xf32>
    %339 = arith.addf %332, %338 : vector<1x128xf32>
    %340 = vector.broadcast %339 : vector<1x128xf32> to vector<16x128xf32>
    %341 = arith.subf %330, %340 : vector<16x128xf32>
    %342 = vector.broadcast %2 : f32 to vector<16x128xf32>
    %343 = arith.addf %303, %342 : vector<16x128xf32>
    %cst_177 = arith.constant 2.77258873 : f32
    %344 = arith.subf %3, %cst_177 : f32
    %345 = vector.broadcast %344 : f32 to vector<16x128xf32>
    %346 = arith.maximumf %343, %345 : vector<16x128xf32>
    %347 = arith.subf %343, %346 : vector<16x128xf32>
    %348 = math.exp %347 : vector<16x128xf32>
    %349 = vector.broadcast %344 : f32 to vector<16x128xf32>
    %350 = arith.subf %349, %346 : vector<16x128xf32>
    %351 = math.exp %350 : vector<16x128xf32>
    %352 = arith.addf %348, %351 : vector<16x128xf32>
    %353 = math.log %352 : vector<16x128xf32>
    %354 = arith.addf %346, %353 : vector<16x128xf32>
    %355 = arith.addf %354, %316 : vector<16x128xf32>
    %cst_178 = arith.constant dense<0xFF800000> : vector<128xf32>
    %356 = vector.multi_reduction <maximumf>, %355, %cst_178 [0] : vector<16x128xf32> to vector<128xf32>
    %357 = vector.shape_cast %356 : vector<128xf32> to vector<1x128xf32>
    %358 = vector.broadcast %357 : vector<1x128xf32> to vector<16x128xf32>
    %359 = arith.subf %355, %358 : vector<16x128xf32>
    %360 = math.exp %359 : vector<16x128xf32>
    %cst_179 = arith.constant dense<0.000000e+00> : vector<128xf32>
    %361 = vector.multi_reduction <add>, %360, %cst_179 [0] : vector<16x128xf32> to vector<128xf32>
    %362 = vector.shape_cast %361 : vector<128xf32> to vector<1x128xf32>
    %363 = math.log %362 : vector<1x128xf32>
    %364 = arith.addf %357, %363 : vector<1x128xf32>
    %365 = vector.broadcast %364 : vector<1x128xf32> to vector<16x128xf32>
    %366 = arith.subf %355, %365 : vector<16x128xf32>
    %367 = math.exp %341 : vector<16x128xf32>
    %368 = arith.subf %341, %366 : vector<16x128xf32>
    %369 = arith.mulf %367, %368 : vector<16x128xf32>
    %cst_180 = arith.constant dense<0.000000e+00> : vector<128xf32>
    %370 = vector.multi_reduction <add>, %369, %cst_180 [0] : vector<16x128xf32> to vector<128xf32>
    %371 = vector.shape_cast %370 : vector<128xf32> to vector<1x128xf32>
    %372 = vector.broadcast %4 : f32 to vector<16x128xf32>
    %373 = arith.addf %291, %372 : vector<16x128xf32>
    %cst_181 = arith.constant 2.77258873 : f32
    %374 = arith.subf %5, %cst_181 : f32
    %375 = vector.broadcast %374 : f32 to vector<16x128xf32>
    %376 = arith.maximumf %373, %375 : vector<16x128xf32>
    %377 = arith.subf %373, %376 : vector<16x128xf32>
    %378 = math.exp %377 : vector<16x128xf32>
    %379 = vector.broadcast %374 : f32 to vector<16x128xf32>
    %380 = arith.subf %379, %376 : vector<16x128xf32>
    %381 = math.exp %380 : vector<16x128xf32>
    %382 = arith.addf %378, %381 : vector<16x128xf32>
    %383 = math.log %382 : vector<16x128xf32>
    %384 = arith.addf %376, %383 : vector<16x128xf32>
    %385 = math.exp %384 : vector<16x128xf32>
    %cst_182 = arith.constant 2.77258873 : f32
    %386 = vector.broadcast %cst_182 : f32 to vector<16x128xf32>
    %387 = arith.addf %384, %386 : vector<16x128xf32>
    %388 = arith.mulf %385, %387 : vector<16x128xf32>
    %cst_183 = arith.constant dense<0.000000e+00> : vector<128xf32>
    %389 = vector.multi_reduction <add>, %388, %cst_183 [0] : vector<16x128xf32> to vector<128xf32>
    %390 = vector.shape_cast %389 : vector<128xf32> to vector<1x128xf32>
    %391 = tpu.concatenate %371, %390 in 0 : vector<1x128xf32>, vector<1x128xf32> -> vector<2x128xf32>
    %c0_184 = arith.constant 0 : index
    %c0_185 = arith.constant 0 : index
    %392 = vector.load %arg24[%c0_184, %c0_185] : memref<2x128xf32, #tpu.memory_space<vmem>>, vector<2x128xf32>
    tpu.vector_store %arg24[%c0_184, %c0_185], %391 {strides = array<i32>} : memref<2x128xf32, #tpu.memory_space<vmem>>, vector<2x128xf32>,
    return
  }
  func.func @transform_0(%arg0: i32) -> i32 {
    %c0_i32 = arith.constant 0 : i32
    %c0_i32_0 = arith.constant 0 : i32
    return %c0_i32 : i32
  }
  func.func @transform_1(%arg0: i32) -> (i32, i32) {
    %c0_i32 = arith.constant 0 : i32
    %c0_i32_0 = arith.constant 0 : i32
    return %arg0, %c0_i32 : i32, i32
  }
  func.func @transform_2(%arg0: i32) -> (i32, i32) {
    %c0_i32 = arith.constant 0 : i32
    %c0_i32_0 = arith.constant 0 : i32
    return %c0_i32, %arg0 : i32, i32
  }
  func.func @transform_3(%arg0: i32) -> (i32, i32) {
    %c0_i32 = arith.constant 0 : i32
    %c0_i32_0 = arith.constant 0 : i32
    return %c0_i32, %arg0 : i32, i32
  }
  func.func @transform_4(%arg0: i32) -> (i32, i32) {
    %c0_i32 = arith.constant 0 : i32
    %c0_i32_0 = arith.constant 0 : i32
    %c0_i32_1 = arith.constant 0 : i32
    return %c0_i32, %c0_i32_0 : i32, i32
  }
  func.func @transform_5(%arg0: i32) -> (i32, i32) {
    %c0_i32 = arith.constant 0 : i32
    %c0_i32_0 = arith.constant 0 : i32
    %c0_i32_1 = arith.constant 0 : i32
    return %c0_i32, %c0_i32_0 : i32, i32
  }
  func.func @transform_6(%arg0: i32) -> (i32, i32) {
    %c0_i32 = arith.constant 0 : i32
    %c0_i32_0 = arith.constant 0 : i32
    %c0_i32_1 = arith.constant 0 : i32
    return %c0_i32, %c0_i32_0 : i32, i32
  }
  func.func @transform_7(%arg0: i32) -> (i32, i32) {
    %c0_i32 = arith.constant 0 : i32
    %c0_i32_0 = arith.constant 0 : i32
    %c0_i32_1 = arith.constant 0 : i32
    return %c0_i32, %c0_i32_0 : i32, i32
  }
  func.func @transform_8(%arg0: i32) -> (i32, i32) {
    %c0_i32 = arith.constant 0 : i32
    %c0_i32_0 = arith.constant 0 : i32
    %c0_i32_1 = arith.constant 0 : i32
    return %c0_i32, %c0_i32_0 : i32, i32
  }
  func.func @transform_9(%arg0: i32) -> (i32, i32, i32) {
    %c0_i32 = arith.constant 0 : i32
    %c0_i32_0 = arith.constant 0 : i32
    %c0_i32_1 = arith.constant 0 : i32
    %c0_i32_2 = arith.constant 0 : i32
    return %c0_i32, %c0_i32_0, %c0_i32_1 : i32, i32, i32
  }
  func.func @transform_10(%arg0: i32) -> (i32, i32, i32) {
    %c0_i32 = arith.constant 0 : i32
    %c0_i32_0 = arith.constant 0 : i32
    %c0_i32_1 = arith.constant 0 : i32
    %c0_i32_2 = arith.constant 0 : i32
    return %c0_i32, %c0_i32_0, %c0_i32_1 : i32, i32, i32
  }
  func.func @transform_11(%arg0: i32) -> (i32, i32, i32) {
    %c0_i32 = arith.constant 0 : i32
    %c0_i32_0 = arith.constant 0 : i32
    %c0_i32_1 = arith.constant 0 : i32
    %c0_i32_2 = arith.constant 0 : i32
    return %c0_i32, %c0_i32_0, %c0_i32_1 : i32, i32, i32
  }
  func.func @transform_12(%arg0: i32) -> (i32, i32, i32) {
    %c0_i32 = arith.constant 0 : i32
    %c0_i32_0 = arith.constant 0 : i32
    %c0_i32_1 = arith.constant 0 : i32
    %c0_i32_2 = arith.constant 0 : i32
    return %c0_i32, %c0_i32_0, %c0_i32_1 : i32, i32, i32
  }
  func.func @transform_13(%arg0: i32) -> (i32, i32, i32) {
    %c0_i32 = arith.constant 0 : i32
    %c0_i32_0 = arith.constant 0 : i32
    %c0_i32_1 = arith.constant 0 : i32
    %c0_i32_2 = arith.constant 0 : i32
    return %c0_i32, %c0_i32_0, %c0_i32_1 : i32, i32, i32
  }
  func.func @transform_14(%arg0: i32) -> (i32, i32, i32) {
    %c0_i32 = arith.constant 0 : i32
    %c0_i32_0 = arith.constant 0 : i32
    %c0_i32_1 = arith.constant 0 : i32
    %c0_i32_2 = arith.constant 0 : i32
    return %c0_i32, %c0_i32_0, %c0_i32_1 : i32, i32, i32
  }
  func.func @transform_15(%arg0: i32) -> (i32, i32, i32) {
    %c0_i32 = arith.constant 0 : i32
    %c0_i32_0 = arith.constant 0 : i32
    %c0_i32_1 = arith.constant 0 : i32
    %c0_i32_2 = arith.constant 0 : i32
    return %c0_i32, %c0_i32_0, %c0_i32_1 : i32, i32, i32
  }
  func.func @transform_16(%arg0: i32) -> (i32, i32, i32) {
    %c0_i32 = arith.constant 0 : i32
    %c0_i32_0 = arith.constant 0 : i32
    %c0_i32_1 = arith.constant 0 : i32
    %c0_i32_2 = arith.constant 0 : i32
    return %c0_i32, %c0_i32_0, %c0_i32_1 : i32, i32, i32
  }
  func.func @transform_17(%arg0: i32) -> (i32, i32, i32) {
    %c0_i32 = arith.constant 0 : i32
    %c0_i32_0 = arith.constant 0 : i32
    %c0_i32_1 = arith.constant 0 : i32
    %c0_i32_2 = arith.constant 0 : i32
    return %c0_i32, %c0_i32_0, %c0_i32_1 : i32, i32, i32
  }
  func.func @transform_18(%arg0: i32) -> (i32, i32, i32) {
    %c0_i32 = arith.constant 0 : i32
    %c0_i32_0 = arith.constant 0 : i32
    %c0_i32_1 = arith.constant 0 : i32
    %c0_i32_2 = arith.constant 0 : i32
    return %c0_i32, %c0_i32_0, %c0_i32_1 : i32, i32, i32
  }
  func.func @transform_19(%arg0: i32) -> (i32, i32, i32) {
    %c0_i32 = arith.constant 0 : i32
    %c0_i32_0 = arith.constant 0 : i32
    %c0_i32_1 = arith.constant 0 : i32
    %c0_i32_2 = arith.constant 0 : i32
    return %c0_i32, %c0_i32_0, %c0_i32_1 : i32, i32, i32
  }
  func.func @transform_20(%arg0: i32) -> (i32, i32, i32) {
    %c0_i32 = arith.constant 0 : i32
    %c0_i32_0 = arith.constant 0 : i32
    %c0_i32_1 = arith.constant 0 : i32
    %c0_i32_2 = arith.constant 0 : i32
    return %c0_i32, %c0_i32_0, %c0_i32_1 : i32, i32, i32
  }
  func.func @transform_21(%arg0: i32) -> (i32, i32) {
    %c0_i32 = arith.constant 0 : i32
    %c0_i32_0 = arith.constant 0 : i32
    %c0_i32_1 = arith.constant 0 : i32
    return %c0_i32, %c0_i32_0 : i32, i32
  }
  func.func @transform_22(%arg0: i32) -> (i32, i32) {
    %c0_i32 = arith.constant 0 : i32
    %c0_i32_0 = arith.constant 0 : i32
    %c0_i32_1 = arith.constant 0 : i32
    return %c0_i32, %c0_i32_0 : i32, i32
  }
  func.func @transform_23(%arg0: i32) -> (i32, i32) {
    %c0_i32 = arith.constant 0 : i32
    %c0_i32_0 = arith.constant 0 : i32
    return %c0_i32, %arg0 : i32, i32
  }
}

</mosaic_0001>

<llo_original>
// kernel: tpu_custom_call.1
$region0: #{tpu_custom_call.1}
  #allocation0 [shape = 'u32[]', space=smem, size = 0x4, offset = 0x4, fixed_abs, tag = 'smem constant byte address 0x4 - core index']
  #allocation1 [shape = 'u32[72,128]{1,0:T(1,128)}', space=vmem, size = 0x9000, scoped, tag = 'internal scratch']
  #allocation2 [shape = 'f32[128,128]{1,0:T(8,128)}', space=vmem, size = 0x10000, scoped, tag = 'scratch operand']
  %s0 = inlined_call_operand.vmem [shape: f32[8], index: 0, kind: input, shape index: {}]
  %s1 = inlined_call_operand.vmem [shape: f32[256,16], index: 1, kind: input, shape index: {}]
  %s2 = inlined_call_operand.hbm [shape: f32[16,256], index: 2, kind: input, shape index: {}]
  %s3 = inlined_call_operand.hbm [shape: f32[16,256], index: 3, kind: input, shape index: {}]
  %s4 = inlined_call_operand.vmem [shape: f32[128,128], index: 4, kind: input, shape index: {}]
  %s5 = inlined_call_operand.hbm [shape: f32[1,128], index: 5, kind: input, shape index: {}]
  %s6 = inlined_call_operand.vmem [shape: bf16[16,128], index: 6, kind: input, shape index: {}]
  %s7 = inlined_call_operand.hbm [shape: f32[1,128], index: 7, kind: input, shape index: {}]
  %s8 = inlined_call_operand.vmem [shape: bf16[128,128], index: 8, kind: input, shape index: {}]
  %s9 = inlined_call_operand.vmem [shape: f32[2,1,128], index: 9, kind: input, shape index: {}]
  %s10 = inlined_call_operand.hbm [shape: f32[2,1,128], index: 10, kind: input, shape index: {}]
  %s11 = inlined_call_operand.hbm [shape: bf16[2,128,384], index: 11, kind: input, shape index: {}]
  %s12 = inlined_call_operand.vmem [shape: f32[2,1,384], index: 12, kind: input, shape index: {}]
  %s13 = inlined_call_operand.vmem [shape: bf16[2,128,128], index: 13, kind: input, shape index: {}]
  %s14 = inlined_call_operand.hbm [shape: f32[2,1,128], index: 14, kind: input, shape index: {}]
  %s15 = inlined_call_operand.vmem [shape: f32[2,1,128], index: 15, kind: input, shape index: {}]
  %s16 = inlined_call_operand.vmem [shape: f32[2,1,128], index: 16, kind: input, shape index: {}]
  %s17 = inlined_call_operand.hbm [shape: bf16[2,128,512], index: 17, kind: input, shape index: {}]
  %s18 = inlined_call_operand.vmem [shape: f32[2,1,512], index: 18, kind: input, shape index: {}]
  %s19 = inlined_call_operand.hbm [shape: bf16[2,512,128], index: 19, kind: input, shape index: {}]
  %s20 = inlined_call_operand.vmem [shape: f32[2,1,128], index: 20, kind: input, shape index: {}]
  %s21 = inlined_call_operand.vmem [shape: bf16[128,16], index: 21, kind: input, shape index: {}]
  %s22 = inlined_call_operand.vmem [shape: f32[16,1], index: 22, kind: input, shape index: {}]
  %s23 = inlined_call_operand.hbm [shape: f32[2,256], index: 23, kind: output, shape index: {}]
  %s24 = sld [smem:[#allocation0]]
  $region165: #{tpu_custom_call.1} parent=0
    _
  %s26 = ssub.s32 1, %s24
  %s27 = scalar_select 0, %s26, %s24
  $region1: #{tpu_custom_call.1} parent=0
    #allocation3 [shape = 'u8[512]{0}', space=smem, size = 0x200, scoped, tag = 'input window, operand 0, single buffered']
    #allocation4 [shape = 's32[2]{0}', space=sflag, size = 0x8, scoped, tag = 'scoped memory for tpu_custom_call.1']
    #allocation5 [shape = 's32[2]{0}', space=sflag, size = 0x8, scoped, tag = 'scoped memory for tpu_custom_call.1']
    #allocation6 [shape = 's32[2]{0}', space=sflag, size = 0x8, scoped, tag = 'scoped memory for tpu_custom_call.1']
    #allocation7 [shape = 'u8[16384]{0}', space=vmem, size = 0x4000, scoped, tag = 'input window, operand 2']
    #allocation8 [shape = 'u8[16384]{0}', space=vmem, size = 0x4000, scoped, tag = 'input window, operand 3']
    #allocation9 [shape = 's32[2]{0}', space=sflag, size = 0x8, scoped, tag = 'scoped memory for tpu_custom_call.1']
    #allocation10 [shape = 'u8[512]{0}', space=vmem, size = 0x400, scoped, tag = 'input window, operand 5, single buffered']
    #allocation11 [shape = 'u8[512]{0}', space=vmem, size = 0x400, scoped, tag = 'input window, operand 7, single buffered']
    #allocation12 [shape = 's32[1]{0}', space=sflag, size = 0x4, scoped, tag = 'scoped memory for tpu_custom_call.1']
    #allocation13 [shape = 'u8[1024]{0}', space=vmem, size = 0x400, scoped, tag = 'input window, operand 10, single buffered']
    #allocation14 [shape = 'u8[196608]{0}', space=vmem, size = 0x30000, scoped, tag = 'input window, operand 11, single buffered']
    #allocation15 [shape = 's32[1]{0}', space=sflag, size = 0x4, scoped, tag = 'scoped memory for tpu_custom_call.1']
    #allocation16 [shape = 'u8[1024]{0}', space=vmem, size = 0x400, scoped, tag = 'input window, operand 14, single buffered']
    #allocation17 [shape = 'u8[262144]{0}', space=vmem, size = 0x40000, scoped, tag = 'input window, operand 17, single buffered']
    #allocation18 [shape = 's32[1]{0}', space=sflag, size = 0x4, scoped, tag = 'scoped memory for tpu_custom_call.1']
    #allocation19 [shape = 'u8[262144]{0}', space=vmem, size = 0x40000, scoped, tag = 'input window, operand 19, single buffered']
    #allocation20 [shape = 'u8[2048]{0}', space=vmem, size = 0x800, scoped, tag = 'output window, operand 0']
    %28 = vsyncpa [#allocation6], 0
    %29 = vsyncpa [#allocation4], 0
    %s30 = scalar_lea.sflag [#allocation4], 1
    %31 = vsyncpa %s30, 0
    %32 = vsyncpa [#allocation9], 0
    %s33 = scalar_lea.sflag [#allocation9], 1
    %34 = vsyncpa %s33, 0
    %35 = vsyncpa [#allocation12], 0
    %36 = vsyncpa [#allocation15], 0
    %37 = vsyncpa [#allocation18], 0
    %38 = vsyncpa [#allocation5], 0
    %s39 = scalar_lea.sflag [#allocation5], 1
    %40 = vsyncpa %s39, 0
    loop: start=0, step=1, limit=4
    $region2: #{tpu_custom_call.1} parent=1 // loop_pre_header
      _
    $region3: #{tpu_custom_call.1} parent=1 // loop_header
      %s42 = sphi 0, %s46
      %p43 = scmp.ge.s32.totalorder %s42, 4
      %s50 = sphi 0, %s50
      %s52 = sphi 0, %s50
      %s53 = sphi 0, %s52
      %s67 = sphi 0, %s53
      %s73 = sphi 0, %s75
      %s76 = sphi 0, %s73
      %s77 = sphi 0, %s76
      %s93 = sphi 0, %s77
      %s99 = sphi 0, %s101
      %s102 = sphi 0, %s99
      %s103 = sphi 0, %s102
      %s119 = sphi 0, %s103
      %s125 = sphi 0, %s127
      %s128 = sphi 0, %s125
      %s129 = sphi 0, %s128
      %s145 = sphi 0, %s129
      %s149 = sphi 0, %s149
      %s151 = sphi 0, %s149
      %s152 = sphi 0, %s151
      %s166 = sphi 0, %s152
      %s170 = sphi 0, %s170
      %s172 = sphi 0, %s170
      %s173 = sphi 0, %s172
      %s187 = sphi 0, %s173
      %s191 = sphi 0, %s191
      %s193 = sphi 0, %s191
      %s194 = sphi 0, %s193
      %s208 = sphi 0, %s194
      %s212 = sphi 0, %s212
      %s214 = sphi 0, %s212
      %s215 = sphi 0, %s214
      %s229 = sphi 0, %s215
      %s233 = sphi 0, %s233
      %s235 = sphi 0, %s233
      %s236 = sphi 0, %s235
      %s250 = sphi 0, %s236
      %s254 = sphi 0, %s254
      %s256 = sphi 0, %s254
      %s257 = sphi 0, %s256
      %s271 = sphi 0, %s257
      %s275 = sphi 0, %s275
      %s277 = sphi 0, %s275
      %s278 = sphi 0, %s277
      %s292 = sphi 0, %s278
      %s296 = sphi 0, %s296
      %s298 = sphi 0, %s296
      %s299 = sphi 0, %s298
      %s313 = sphi 0, %s299
      %s317 = sphi 0, %s317
      %s319 = sphi 0, %s317
      %s320 = sphi 0, %s319
      %s334 = sphi 0, %s320
      %s338 = sphi 0, %s338
      %s340 = sphi 0, %s338
      %s341 = sphi 0, %s340
      %s355 = sphi 0, %s341
      %s359 = sphi 0, %s359
      %s361 = sphi 0, %s359
      %s362 = sphi 0, %s361
      %s376 = sphi 0, %s362
      %s380 = sphi 0, %s380
      %s382 = sphi 0, %s380
      %s383 = sphi 0, %s382
      %s397 = sphi 0, %s383
      %s401 = sphi 0, %s401
      %s403 = sphi 0, %s401
      %s404 = sphi 0, %s403
      %s418 = sphi 0, %s404
      %s422 = sphi 0, %s422
      %s424 = sphi 0, %s422
      %s425 = sphi 0, %s424
      %s439 = sphi 0, %s425
      %s443 = sphi 0, %s443
      %s445 = sphi 0, %s443
      %s446 = sphi 0, %s445
      %s460 = sphi 0, %s446
      %s464 = sphi 0, %s464
      %s466 = sphi 0, %s464
      %s467 = sphi 0, %s466
      %s481 = sphi 0, %s467
      %s485 = sphi 0, %s485
      %s487 = sphi 0, %s485
      %s488 = sphi 0, %s487
      %s502 = sphi 0, %s488
      %s506 = sphi 0, %s506
      %s508 = sphi 0, %s506
      %s509 = sphi 0, %s508
      %s523 = sphi 0, %s509
      %s527 = sphi 0, %s527
      %s529 = sphi 0, %s527
      %s530 = sphi 0, %s529
      %s544 = sphi 0, %s530
      %s550 = sphi 0, %s552
      %s553 = sphi 0, %s550
      %s554 = sphi 0, %s553
      %s570 = sphi 0, %s554
    $region4: #{tpu_custom_call.1} parent=1 // loop_header_branch
      %45 = sbr.rel (%p43) target = $region8
    $region5: #{tpu_custom_call.1} parent=1 // loop_body
      %s47 = ssub.s32 %s42, 1
      %s48 = ssub.s32 %s42, 2
      %s49 = sadd.s32 %s42, 1
      %s51 = sadd.s32 %s50, 1
      %p54 = scmp.eq.s32.totalorder %s42, 1
      %p55 = scmp.ne.s32.totalorder %s50, %s52
      %p56 = scmp.eq.s32.totalorder %s42, 0
      %p57 = por %p55, %p56
      %p58 = scmp.ne.s32.totalorder %s50, %s52
      %p59 = scmp.eq.s32.totalorder %s47, 1
      %p60 = por %p58, %p59
      %p61 = scmp.ne.s32.totalorder %s52, %s53
      %p62 = scmp.eq.s32.totalorder %s47, 0
      %p63 = por %p61, %p62
      %p64 = scmp.ne.s32.totalorder %s52, %s53
      %p65 = scmp.eq.s32.totalorder %s48, 1
      %p66 = por %p64, %p65
      %p68 = scmp.ne.s32.totalorder %s53, %s67
      %p69 = scmp.eq.s32.totalorder %s48, 0
      %p70 = por %p68, %p69
      %s71 = ssub.s32 %s42, %s49
      %p72 = scmp.eq.s32.totalorder %s71, 0
      %s74 = sadd.s32 %s73, 1
      %s75 = scalar_select %p72, %s73, %s74
      %p78 = pneg %p72
      %p79 = scmp.eq.s32.totalorder %s42, 1
      %p80 = por %p78, %p79
      %p81 = scmp.ne.s32.totalorder %s73, %s76
      %p82 = scmp.eq.s32.totalorder %s42, 0
      %p83 = por %p81, %p82
      %p84 = scmp.ne.s32.totalorder %s73, %s76
      %p85 = scmp.eq.s32.totalorder %s47, 1
      %p86 = por %p84, %p85
      %p87 = scmp.ne.s32.totalorder %s76, %s77
      %p88 = scmp.eq.s32.totalorder %s47, 0
      %p89 = por %p87, %p88
      %p90 = scmp.ne.s32.totalorder %s76, %s77
      %p91 = scmp.eq.s32.totalorder %s48, 1
      %p92 = por %p90, %p91
      %p94 = scmp.ne.s32.totalorder %s77, %s93
      %p95 = scmp.eq.s32.totalorder %s48, 0
      %p96 = por %p94, %p95
      %s97 = ssub.s32 %s42, %s49
      %p98 = scmp.eq.s32.totalorder %s97, 0
      %s100 = sadd.s32 %s99, 1
      %s101 = scalar_select %p98, %s99, %s100
      %p104 = pneg %p98
      %p105 = scmp.eq.s32.totalorder %s42, 1
      %p106 = por %p104, %p105
      %p107 = scmp.ne.s32.totalorder %s99, %s102
      %p108 = scmp.eq.s32.totalorder %s42, 0
      %p109 = por %p107, %p108
      %p110 = scmp.ne.s32.totalorder %s99, %s102
      %p111 = scmp.eq.s32.totalorder %s47, 1
      %p112 = por %p110, %p111
      %p113 = scmp.ne.s32.totalorder %s102, %s103
      %p114 = scmp.eq.s32.totalorder %s47, 0
      %p115 = por %p113, %p114
      %p116 = scmp.ne.s32.totalorder %s102, %s103
      %p117 = scmp.eq.s32.totalorder %s48, 1
      %p118 = por %p116, %p117
      %p120 = scmp.ne.s32.totalorder %s103, %s119
      %p121 = scmp.eq.s32.totalorder %s48, 0
      %p122 = por %p120, %p121
      %s123 = ssub.s32 %s42, %s49
      %p124 = scmp.eq.s32.totalorder %s123, 0
      %s126 = sadd.s32 %s125, 1
      %s127 = scalar_select %p124, %s125, %s126
      %p130 = pneg %p124
      %p131 = scmp.eq.s32.totalorder %s42, 1
      %p132 = por %p130, %p131
      %p133 = scmp.ne.s32.totalorder %s125, %s128
      %p134 = scmp.eq.s32.totalorder %s42, 0
      %p135 = por %p133, %p134
      %p136 = scmp.ne.s32.totalorder %s125, %s128
      %p137 = scmp.eq.s32.totalorder %s47, 1
      %p138 = por %p136, %p137
      %p139 = scmp.ne.s32.totalorder %s128, %s129
      %p140 = scmp.eq.s32.totalorder %s47, 0
      %p141 = por %p139, %p140
      %p142 = scmp.ne.s32.totalorder %s128, %s129
      %p143 = scmp.eq.s32.totalorder %s48, 1
      %p144 = por %p142, %p143
      %p146 = scmp.ne.s32.totalorder %s129, %s145
      %p147 = scmp.eq.s32.totalorder %s48, 0
      %p148 = por %p146, %p147
      %s150 = sadd.s32 %s149, 1
      %p153 = scmp.eq.s32.totalorder %s42, 1
      %p154 = scmp.ne.s32.totalorder %s149, %s151
      %p155 = scmp.eq.s32.totalorder %s42, 0
      %p156 = por %p154, %p155
      %p157 = scmp.ne.s32.totalorder %s149, %s151
      %p158 = scmp.eq.s32.totalorder %s47, 1
      %p159 = por %p157, %p158
      %p160 = scmp.ne.s32.totalorder %s151, %s152
      %p161 = scmp.eq.s32.totalorder %s47, 0
      %p162 = por %p160, %p161
      %p163 = scmp.ne.s32.totalorder %s151, %s152
      %p164 = scmp.eq.s32.totalorder %s48, 1
      %p165 = por %p163, %p164
      %p167 = scmp.ne.s32.totalorder %s152, %s166
      %p168 = scmp.eq.s32.totalorder %s48, 0
      %p169 = por %p167, %p168
      %s171 = sadd.s32 %s170, 1
      %p174 = scmp.eq.s32.totalorder %s42, 1
      %p175 = scmp.ne.s32.totalorder %s170, %s172
      %p176 = scmp.eq.s32.totalorder %s42, 0
      %p177 = por %p175, %p176
      %p178 = scmp.ne.s32.totalorder %s170, %s172
      %p179 = scmp.eq.s32.totalorder %s47, 1
      %p180 = por %p178, %p179
      %p181 = scmp.ne.s32.totalorder %s172, %s173
      %p182 = scmp.eq.s32.totalorder %s47, 0
      %p183 = por %p181, %p182
      %p184 = scmp.ne.s32.totalorder %s172, %s173
      %p185 = scmp.eq.s32.totalorder %s48, 1
      %p186 = por %p184, %p185
      %p188 = scmp.ne.s32.totalorder %s173, %s187
      %p189 = scmp.eq.s32.totalorder %s48, 0
      %p190 = por %p188, %p189
      %s192 = sadd.s32 %s191, 1
      %p195 = scmp.eq.s32.totalorder %s42, 1
      %p196 = scmp.ne.s32.totalorder %s191, %s193
      %p197 = scmp.eq.s32.totalorder %s42, 0
      %p198 = por %p196, %p197
      %p199 = scmp.ne.s32.totalorder %s191, %s193
      %p200 = scmp.eq.s32.totalorder %s47, 1
      %p201 = por %p199, %p200
      %p202 = scmp.ne.s32.totalorder %s193, %s194
      %p203 = scmp.eq.s32.totalorder %s47, 0
      %p204 = por %p202, %p203
      %p205 = scmp.ne.s32.totalorder %s193, %s194
      %p206 = scmp.eq.s32.totalorder %s48, 1
      %p207 = por %p205, %p206
      %p209 = scmp.ne.s32.totalorder %s194, %s208
      %p210 = scmp.eq.s32.totalorder %s48, 0
      %p211 = por %p209, %p210
      %s213 = sadd.s32 %s212, 1
      %p216 = scmp.eq.s32.totalorder %s42, 1
      %p217 = scmp.ne.s32.totalorder %s212, %s214
      %p218 = scmp.eq.s32.totalorder %s42, 0
      %p219 = por %p217, %p218
      %p220 = scmp.ne.s32.totalorder %s212, %s214
      %p221 = scmp.eq.s32.totalorder %s47, 1
      %p222 = por %p220, %p221
      %p223 = scmp.ne.s32.totalorder %s214, %s215
      %p224 = scmp.eq.s32.totalorder %s47, 0
      %p225 = por %p223, %p224
      %p226 = scmp.ne.s32.totalorder %s214, %s215
      %p227 = scmp.eq.s32.totalorder %s48, 1
      %p228 = por %p226, %p227
      %p230 = scmp.ne.s32.totalorder %s215, %s229
      %p231 = scmp.eq.s32.totalorder %s48, 0
      %p232 = por %p230, %p231
      %s234 = sadd.s32 %s233, 1
      %p237 = scmp.eq.s32.totalorder %s42, 1
      %p238 = scmp.ne.s32.totalorder %s233, %s235
      %p239 = scmp.eq.s32.totalorder %s42, 0
      %p240 = por %p238, %p239
      %p241 = scmp.ne.s32.totalorder %s233, %s235
      %p242 = scmp.eq.s32.totalorder %s47, 1
      %p243 = por %p241, %p242
      %p244 = scmp.ne.s32.totalorder %s235, %s236
      %p245 = scmp.eq.s32.totalorder %s47, 0
      %p246 = por %p244, %p245
      %p247 = scmp.ne.s32.totalorder %s235, %s236
      %p248 = scmp.eq.s32.totalorder %s48, 1
      %p249 = por %p247, %p248
      %p251 = scmp.ne.s32.totalorder %s236, %s250
      %p252 = scmp.eq.s32.totalorder %s48, 0
      %p253 = por %p251, %p252
      %s255 = sadd.s32 %s254, 1
      %p258 = scmp.eq.s32.totalorder %s42, 1
      %p259 = scmp.ne.s32.totalorder %s254, %s256
      %p260 = scmp.eq.s32.totalorder %s42, 0
      %p261 = por %p259, %p260
      %p262 = scmp.ne.s32.totalorder %s254, %s256
      %p263 = scmp.eq.s32.totalorder %s47, 1
      %p264 = por %p262, %p263
      %p265 = scmp.ne.s32.totalorder %s256, %s257
      %p266 = scmp.eq.s32.totalorder %s47, 0
      %p267 = por %p265, %p266
      %p268 = scmp.ne.s32.totalorder %s256, %s257
      %p269 = scmp.eq.s32.totalorder %s48, 1
      %p270 = por %p268, %p269
      %p272 = scmp.ne.s32.totalorder %s257, %s271
      %p273 = scmp.eq.s32.totalorder %s48, 0
      %p274 = por %p272, %p273
      %s276 = sadd.s32 %s275, 1
      %p279 = scmp.eq.s32.totalorder %s42, 1
      %p280 = scmp.ne.s32.totalorder %s275, %s277
      %p281 = scmp.eq.s32.totalorder %s42, 0
      %p282 = por %p280, %p281
      %p283 = scmp.ne.s32.totalorder %s275, %s277
      %p284 = scmp.eq.s32.totalorder %s47, 1
      %p285 = por %p283, %p284
      %p286 = scmp.ne.s32.totalorder %s277, %s278
      %p287 = scmp.eq.s32.totalorder %s47, 0
      %p288 = por %p286, %p287
      %p289 = scmp.ne.s32.totalorder %s277, %s278
      %p290 = scmp.eq.s32.totalorder %s48, 1
      %p291 = por %p289, %p290
      %p293 = scmp.ne.s32.totalorder %s278, %s292
      %p294 = scmp.eq.s32.totalorder %s48, 0
      %p295 = por %p293, %p294
      %s297 = sadd.s32 %s296, 1
      %p300 = scmp.eq.s32.totalorder %s42, 1
      %p301 = scmp.ne.s32.totalorder %s296, %s298
      %p302 = scmp.eq.s32.totalorder %s42, 0
      %p303 = por %p301, %p302
      %p304 = scmp.ne.s32.totalorder %s296, %s298
      %p305 = scmp.eq.s32.totalorder %s47, 1
      %p306 = por %p304, %p305
      %p307 = scmp.ne.s32.totalorder %s298, %s299
      %p308 = scmp.eq.s32.totalorder %s47, 0
      %p309 = por %p307, %p308
      %p310 = scmp.ne.s32.totalorder %s298, %s299
      %p311 = scmp.eq.s32.totalorder %s48, 1
      %p312 = por %p310, %p311
      %p314 = scmp.ne.s32.totalorder %s299, %s313
      %p315 = scmp.eq.s32.totalorder %s48, 0
      %p316 = por %p314, %p315
      %s318 = sadd.s32 %s317, 1
      %p321 = scmp.eq.s32.totalorder %s42, 1
      %p322 = scmp.ne.s32.totalorder %s317, %s319
      %p323 = scmp.eq.s32.totalorder %s42, 0
      %p324 = por %p322, %p323
      %p325 = scmp.ne.s32.totalorder %s317, %s319
      %p326 = scmp.eq.s32.totalorder %s47, 1
      %p327 = por %p325, %p326
      %p328 = scmp.ne.s32.totalorder %s319, %s320
      %p329 = scmp.eq.s32.totalorder %s47, 0
      %p330 = por %p328, %p329
      %p331 = scmp.ne.s32.totalorder %s319, %s320
      %p332 = scmp.eq.s32.totalorder %s48, 1
      %p333 = por %p331, %p332
      %p335 = scmp.ne.s32.totalorder %s320, %s334
      %p336 = scmp.eq.s32.totalorder %s48, 0
      %p337 = por %p335, %p336
      %s339 = sadd.s32 %s338, 1
      %p342 = scmp.eq.s32.totalorder %s42, 1
      %p343 = scmp.ne.s32.totalorder %s338, %s340
      %p344 = scmp.eq.s32.totalorder %s42, 0
      %p345 = por %p343, %p344
      %p346 = scmp.ne.s32.totalorder %s338, %s340
      %p347 = scmp.eq.s32.totalorder %s47, 1
      %p348 = por %p346, %p347
      %p349 = scmp.ne.s32.totalorder %s340, %s341
      %p350 = scmp.eq.s32.totalorder %s47, 0
      %p351 = por %p349, %p350
      %p352 = scmp.ne.s32.totalorder %s340, %s341
      %p353 = scmp.eq.s32.totalorder %s48, 1
      %p354 = por %p352, %p353
      %p356 = scmp.ne.s32.totalorder %s341, %s355
      %p357 = scmp.eq.s32.totalorder %s48, 0
      %p358 = por %p356, %p357
      %s360 = sadd.s32 %s359, 1
      %p363 = scmp.eq.s32.totalorder %s42, 1
      %p364 = scmp.ne.s32.totalorder %s359, %s361
      %p365 = scmp.eq.s32.totalorder %s42, 0
      %p366 = por %p364, %p365
      %p367 = scmp.ne.s32.totalorder %s359, %s361
      %p368 = scmp.eq.s32.totalorder %s47, 1
      %p369 = por %p367, %p368
      %p370 = scmp.ne.s32.totalorder %s361, %s362
      %p371 = scmp.eq.s32.totalorder %s47, 0
      %p372 = por %p370, %p371
      %p373 = scmp.ne.s32.totalorder %s361, %s362
      %p374 = scmp.eq.s32.totalorder %s48, 1
      %p375 = por %p373, %p374
      %p377 = scmp.ne.s32.totalorder %s362, %s376
      %p378 = scmp.eq.s32.totalorder %s48, 0
      %p379 = por %p377, %p378
      %s381 = sadd.s32 %s380, 1
      %p384 = scmp.eq.s32.totalorder %s42, 1
      %p385 = scmp.ne.s32.totalorder %s380, %s382
      %p386 = scmp.eq.s32.totalorder %s42, 0
      %p387 = por %p385, %p386
      %p388 = scmp.ne.s32.totalorder %s380, %s382
      %p389 = scmp.eq.s32.totalorder %s47, 1
      %p390 = por %p388, %p389
      %p391 = scmp.ne.s32.totalorder %s382, %s383
      %p392 = scmp.eq.s32.totalorder %s47, 0
      %p393 = por %p391, %p392
      %p394 = scmp.ne.s32.totalorder %s382, %s383
      %p395 = scmp.eq.s32.totalorder %s48, 1
      %p396 = por %p394, %p395
      %p398 = scmp.ne.s32.totalorder %s383, %s397
      %p399 = scmp.eq.s32.totalorder %s48, 0
      %p400 = por %p398, %p399
      %s402 = sadd.s32 %s401, 1
      %p405 = scmp.eq.s32.totalorder %s42, 1
      %p406 = scmp.ne.s32.totalorder %s401, %s403
      %p407 = scmp.eq.s32.totalorder %s42, 0
      %p408 = por %p406, %p407
      %p409 = scmp.ne.s32.totalorder %s401, %s403
      %p410 = scmp.eq.s32.totalorder %s47, 1
      %p411 = por %p409, %p410
      %p412 = scmp.ne.s32.totalorder %s403, %s404
      %p413 = scmp.eq.s32.totalorder %s47, 0
      %p414 = por %p412, %p413
      %p415 = scmp.ne.s32.totalorder %s403, %s404
      %p416 = scmp.eq.s32.totalorder %s48, 1
      %p417 = por %p415, %p416
      %p419 = scmp.ne.s32.totalorder %s404, %s418
      %p420 = scmp.eq.s32.totalorder %s48, 0
      %p421 = por %p419, %p420
      %s423 = sadd.s32 %s422, 1
      %p426 = scmp.eq.s32.totalorder %s42, 1
      %p427 = scmp.ne.s32.totalorder %s422, %s424
      %p428 = scmp.eq.s32.totalorder %s42, 0
      %p429 = por %p427, %p428
      %p430 = scmp.ne.s32.totalorder %s422, %s424
      %p431 = scmp.eq.s32.totalorder %s47, 1
      %p432 = por %p430, %p431
      %p433 = scmp.ne.s32.totalorder %s424, %s425
      %p434 = scmp.eq.s32.totalorder %s47, 0
      %p435 = por %p433, %p434
      %p436 = scmp.ne.s32.totalorder %s424, %s425
      %p437 = scmp.eq.s32.totalorder %s48, 1
      %p438 = por %p436, %p437
      %p440 = scmp.ne.s32.totalorder %s425, %s439
      %p441 = scmp.eq.s32.totalorder %s48, 0
      %p442 = por %p440, %p441
      %s444 = sadd.s32 %s443, 1
      %p447 = scmp.eq.s32.totalorder %s42, 1
      %p448 = scmp.ne.s32.totalorder %s443, %s445
      %p449 = scmp.eq.s32.totalorder %s42, 0
      %p450 = por %p448, %p449
      %p451 = scmp.ne.s32.totalorder %s443, %s445
      %p452 = scmp.eq.s32.totalorder %s47, 1
      %p453 = por %p451, %p452
      %p454 = scmp.ne.s32.totalorder %s445, %s446
      %p455 = scmp.eq.s32.totalorder %s47, 0
      %p456 = por %p454, %p455
      %p457 = scmp.ne.s32.totalorder %s445, %s446
      %p458 = scmp.eq.s32.totalorder %s48, 1
      %p459 = por %p457, %p458
      %p461 = scmp.ne.s32.totalorder %s446, %s460
      %p462 = scmp.eq.s32.totalorder %s48, 0
      %p463 = por %p461, %p462
      %s465 = sadd.s32 %s464, 1
      %p468 = scmp.eq.s32.totalorder %s42, 1
      %p469 = scmp.ne.s32.totalorder %s464, %s466
      %p470 = scmp.eq.s32.totalorder %s42, 0
      %p471 = por %p469, %p470
      %p472 = scmp.ne.s32.totalorder %s464, %s466
      %p473 = scmp.eq.s32.totalorder %s47, 1
      %p474 = por %p472, %p473
      %p475 = scmp.ne.s32.totalorder %s466, %s467
      %p476 = scmp.eq.s32.totalorder %s47, 0
      %p477 = por %p475, %p476
      %p478 = scmp.ne.s32.totalorder %s466, %s467
      %p479 = scmp.eq.s32.totalorder %s48, 1
      %p480 = por %p478, %p479
      %p482 = scmp.ne.s32.totalorder %s467, %s481
      %p483 = scmp.eq.s32.totalorder %s48, 0
      %p484 = por %p482, %p483
      %s486 = sadd.s32 %s485, 1
      %p489 = scmp.eq.s32.totalorder %s42, 1
      %p490 = scmp.ne.s32.totalorder %s485, %s487
      %p491 = scmp.eq.s32.totalorder %s42, 0
      %p492 = por %p490, %p491
      %p493 = scmp.ne.s32.totalorder %s485, %s487
      %p494 = scmp.eq.s32.totalorder %s47, 1
      %p495 = por %p493, %p494
      %p496 = scmp.ne.s32.totalorder %s487, %s488
      %p497 = scmp.eq.s32.totalorder %s47, 0
      %p498 = por %p496, %p497
      %p499 = scmp.ne.s32.totalorder %s487, %s488
      %p500 = scmp.eq.s32.totalorder %s48, 1
      %p501 = por %p499, %p500
      %p503 = scmp.ne.s32.totalorder %s488, %s502
      %p504 = scmp.eq.s32.totalorder %s48, 0
      %p505 = por %p503, %p504
      %s507 = sadd.s32 %s506, 1
      %p510 = scmp.eq.s32.totalorder %s42, 1
      %p511 = scmp.ne.s32.totalorder %s506, %s508
      %p512 = scmp.eq.s32.totalorder %s42, 0
      %p513 = por %p511, %p512
      %p514 = scmp.ne.s32.totalorder %s506, %s508
      %p515 = scmp.eq.s32.totalorder %s47, 1
      %p516 = por %p514, %p515
      %p517 = scmp.ne.s32.totalorder %s508, %s509
      %p518 = scmp.eq.s32.totalorder %s47, 0
      %p519 = por %p517, %p518
      %p520 = scmp.ne.s32.totalorder %s508, %s509
      %p521 = scmp.eq.s32.totalorder %s48, 1
      %p522 = por %p520, %p521
      %p524 = scmp.ne.s32.totalorder %s509, %s523
      %p525 = scmp.eq.s32.totalorder %s48, 0
      %p526 = por %p524, %p525
      %s528 = sadd.s32 %s527, 1
      %p531 = scmp.eq.s32.totalorder %s42, 1
      %p532 = scmp.ne.s32.totalorder %s527, %s529
      %p533 = scmp.eq.s32.totalorder %s42, 0
      %p534 = por %p532, %p533
      %p535 = scmp.ne.s32.totalorder %s527, %s529
      %p536 = scmp.eq.s32.totalorder %s47, 1
      %p537 = por %p535, %p536
      %p538 = scmp.ne.s32.totalorder %s529, %s530
      %p539 = scmp.eq.s32.totalorder %s47, 0
      %p540 = por %p538, %p539
      %p541 = scmp.ne.s32.totalorder %s529, %s530
      %p542 = scmp.eq.s32.totalorder %s48, 1
      %p543 = por %p541, %p542
      %p545 = scmp.ne.s32.totalorder %s530, %s544
      %p546 = scmp.eq.s32.totalorder %s48, 0
      %p547 = por %p545, %p546
      %s548 = ssub.s32 %s42, %s49
      %p549 = scmp.eq.s32.totalorder %s548, 0
      %s551 = sadd.s32 %s550, 1
      %s552 = scalar_select %p549, %s550, %s551
      %p555 = pneg %p549
      %p556 = scmp.eq.s32.totalorder %s42, 1
      %p557 = por %p555, %p556
      %p558 = scmp.ne.s32.totalorder %s550, %s553
      %p559 = scmp.eq.s32.totalorder %s42, 0
      %p560 = por %p558, %p559
      %p561 = scmp.ne.s32.totalorder %s550, %s553
      %p562 = scmp.eq.s32.totalorder %s47, 1
      %p563 = por %p561, %p562
      %p564 = scmp.ne.s32.totalorder %s553, %s554
      %p565 = scmp.eq.s32.totalorder %s47, 0
      %p566 = por %p564, %p565
      %p567 = scmp.ne.s32.totalorder %s553, %s554
      %p568 = scmp.eq.s32.totalorder %s48, 1
      %p569 = por %p567, %p568
      %p571 = scmp.ne.s32.totalorder %s554, %s570
      %p572 = scmp.eq.s32.totalorder %s48, 0
      %p573 = por %p571, %p572
      %p574 = scmp.le.s32.totalorder 1, %s42
      %p575 = scmp.lt.s32.totalorder %s42, 3
      %p576 = pnand %p574, %p575
      %p577 = pneg %p576
      // Predicated region
      $region9: #{tpu_custom_call.1} parent=5 // pred_check
        _
      $region10: #{tpu_custom_call.1} parent=5 // pred_check_branch
        %579 = sbr.rel (%p576) target = $region12
      $region11: #{tpu_custom_call.1} parent=5 // pred_region
        %s580 = ssub.s32 %s42, 1
        // Predicated region
        $region13: #{tpu_custom_call.1} parent=11 // pred_check
          %p581 = pneg %p63
        $region14: #{tpu_custom_call.1} parent=11 // pred_check_branch
          %583 = sbr.rel (%p581) target = $region16
        $region15: #{tpu_custom_call.1} parent=11 // pred_region
          %585 = vsyncadd [#allocation6], 0
          %s587 = sshll.u32 %s0, 4
          %s588 = int_to_ptr.vmem [resolvable:$true] %s587
          %590 = dma.vmem_to_smem %s588, 16, [#allocation3], [#allocation6]
        $region16: #{tpu_custom_call.1} parent=11 // pred_fallthru
          _
        // Predicated region
        $region17: #{tpu_custom_call.1} parent=11 // pred_check
          %p591 = pneg %p162
        $region18: #{tpu_custom_call.1} parent=11 // pred_check_branch
          %593 = sbr.rel (%p591) target = $region20
        $region19: #{tpu_custom_call.1} parent=11 // pred_region
          _
        $region20: #{tpu_custom_call.1} parent=11 // pred_fallthru
          _
        // Predicated region
        $region21: #{tpu_custom_call.1} parent=11 // pred_check
          %p594 = pneg %p183
        $region22: #{tpu_custom_call.1} parent=11 // pred_check_branch
          %596 = sbr.rel (%p594) target = $region24
        $region23: #{tpu_custom_call.1} parent=11 // pred_region
          %598 = vsyncadd [#allocation9], 0
          %s600 = sshll.u32 %s5, 4
          %s601 = int_to_ptr.hbm [resolvable:$true] %s600
          %s602 = sshll.u32 [#allocation10], 4
          %s603 = int_to_ptr.vmem [resolvable:$true] %s602
          %605 = dma.hbm_to_vmem [thread:$0]  %s601, 16, %s603, [#allocation9]
        $region24: #{tpu_custom_call.1} parent=11 // pred_fallthru
          _
        // Predicated region
        $region25: #{tpu_custom_call.1} parent=11 // pred_check
          %p606 = pneg %p204
        $region26: #{tpu_custom_call.1} parent=11 // pred_check_branch
          %608 = sbr.rel (%p606) target = $region28
        $region27: #{tpu_custom_call.1} parent=11 // pred_region
          _
        $region28: #{tpu_custom_call.1} parent=11 // pred_fallthru
          _
        // Predicated region
        $region29: #{tpu_custom_call.1} parent=11 // pred_check
          %p609 = pneg %p225
        $region30: #{tpu_custom_call.1} parent=11 // pred_check_branch
          %611 = sbr.rel (%p609) target = $region32
        $region31: #{tpu_custom_call.1} parent=11 // pred_region
          %613 = vsyncadd [#allocation12], 0
          %s615 = sshll.u32 %s7, 4
          %s616 = int_to_ptr.hbm [resolvable:$true] %s615
          %s617 = sshll.u32 [#allocation11], 4
          %s618 = int_to_ptr.vmem [resolvable:$true] %s617
          %620 = dma.hbm_to_vmem [thread:$0]  %s616, 16, %s618, [#allocation12]
        $region32: #{tpu_custom_call.1} parent=11 // pred_fallthru
          _
        // Predicated region
        $region33: #{tpu_custom_call.1} parent=11 // pred_check
          %p621 = pneg %p246
        $region34: #{tpu_custom_call.1} parent=11 // pred_check_branch
          %623 = sbr.rel (%p621) target = $region36
        $region35: #{tpu_custom_call.1} parent=11 // pred_region
          _
        $region36: #{tpu_custom_call.1} parent=11 // pred_fallthru
          _
        // Predicated region
        $region37: #{tpu_custom_call.1} parent=11 // pred_check
          %p624 = pneg %p267
        $region38: #{tpu_custom_call.1} parent=11 // pred_check_branch
          %626 = sbr.rel (%p624) target = $region40
        $region39: #{tpu_custom_call.1} parent=11 // pred_region
          _
        $region40: #{tpu_custom_call.1} parent=11 // pred_fallthru
          _
        // Predicated region
        $region41: #{tpu_custom_call.1} parent=11 // pred_check
          %p627 = pneg %p288
        $region42: #{tpu_custom_call.1} parent=11 // pred_check_branch
          %629 = sbr.rel (%p627) target = $region44
        $region43: #{tpu_custom_call.1} parent=11 // pred_region
          %631 = vsyncadd [#allocation12], 0
          %s632 = sshll.u32 %s10, 4
          %s633 = int_to_ptr.hbm [resolvable:$true] %s632
          %s634 = sshll.u32 [#allocation13], 4
          %s635 = int_to_ptr.vmem [resolvable:$true] %s634
          %640 = dma.hbm_to_vmem [thread:$0]  %s633, 32, %s635, [#allocation12], 16, 16, 1
        $region44: #{tpu_custom_call.1} parent=11 // pred_fallthru
          _
        // Predicated region
        $region45: #{tpu_custom_call.1} parent=11 // pred_check
          %p641 = pneg %p309
        $region46: #{tpu_custom_call.1} parent=11 // pred_check_branch
          %643 = sbr.rel (%p641) target = $region48
        $region47: #{tpu_custom_call.1} parent=11 // pred_region
          %645 = vsyncadd [#allocation15], 0
          %s646 = sshll.u32 %s11, 4
          %s647 = int_to_ptr.hbm [resolvable:$true] %s646
          %s648 = sshll.u32 [#allocation14], 4
          %s649 = int_to_ptr.vmem [resolvable:$true] %s648
          %654 = dma.hbm_to_vmem [thread:$0]  %s647, 6144, %s649, [#allocation15], 192, 192, 12
        $region48: #{tpu_custom_call.1} parent=11 // pred_fallthru
          _
        // Predicated region
        $region49: #{tpu_custom_call.1} parent=11 // pred_check
          %p655 = pneg %p330
        $region50: #{tpu_custom_call.1} parent=11 // pred_check_branch
          %657 = sbr.rel (%p655) target = $region52
        $region51: #{tpu_custom_call.1} parent=11 // pred_region
          _
        $region52: #{tpu_custom_call.1} parent=11 // pred_fallthru
          _
        // Predicated region
        $region53: #{tpu_custom_call.1} parent=11 // pred_check
          %p658 = pneg %p351
        $region54: #{tpu_custom_call.1} parent=11 // pred_check_branch
          %660 = sbr.rel (%p658) target = $region56
        $region55: #{tpu_custom_call.1} parent=11 // pred_region
          _
        $region56: #{tpu_custom_call.1} parent=11 // pred_fallthru
          _
        // Predicated region
        $region57: #{tpu_custom_call.1} parent=11 // pred_check
          %p661 = pneg %p372
        $region58: #{tpu_custom_call.1} parent=11 // pred_check_branch
          %663 = sbr.rel (%p661) target = $region60
        $region59: #{tpu_custom_call.1} parent=11 // pred_region
          %665 = vsyncadd [#allocation15], 0
          %s666 = sshll.u32 %s14, 4
          %s667 = int_to_ptr.hbm [resolvable:$true] %s666
          %s668 = sshll.u32 [#allocation16], 4
          %s669 = int_to_ptr.vmem [resolvable:$true] %s668
          %674 = dma.hbm_to_vmem [thread:$0]  %s667, 32, %s669, [#allocation15], 16, 16, 1
        $region60: #{tpu_custom_call.1} parent=11 // pred_fallthru
          _
        // Predicated region
        $region61: #{tpu_custom_call.1} parent=11 // pred_check
          %p675 = pneg %p393
        $region62: #{tpu_custom_call.1} parent=11 // pred_check_branch
          %677 = sbr.rel (%p675) target = $region64
        $region63: #{tpu_custom_call.1} parent=11 // pred_region
          _
        $region64: #{tpu_custom_call.1} parent=11 // pred_fallthru
          _
        // Predicated region
        $region65: #{tpu_custom_call.1} parent=11 // pred_check
          %p678 = pneg %p414
        $region66: #{tpu_custom_call.1} parent=11 // pred_check_branch
          %680 = sbr.rel (%p678) target = $region68
        $region67: #{tpu_custom_call.1} parent=11 // pred_region
          _
        $region68: #{tpu_custom_call.1} parent=11 // pred_fallthru
          _
        // Predicated region
        $region69: #{tpu_custom_call.1} parent=11 // pred_check
          %p681 = pneg %p435
        $region70: #{tpu_custom_call.1} parent=11 // pred_check_branch
          %683 = sbr.rel (%p681) target = $region72
        $region71: #{tpu_custom_call.1} parent=11 // pred_region
          %685 = vsyncadd [#allocation18], 0
          %s686 = sshll.u32 %s17, 4
          %s687 = int_to_ptr.hbm [resolvable:$true] %s686
          %s688 = sshll.u32 [#allocation17], 4
          %s689 = int_to_ptr.vmem [resolvable:$true] %s688
          %694 = dma.hbm_to_vmem [thread:$0]  %s687, 8192, %s689, [#allocation18], 256, 256, 16
        $region72: #{tpu_custom_call.1} parent=11 // pred_fallthru
          _
        // Predicated region
        $region73: #{tpu_custom_call.1} parent=11 // pred_check
          %p695 = pneg %p456
        $region74: #{tpu_custom_call.1} parent=11 // pred_check_branch
          %697 = sbr.rel (%p695) target = $region76
        $region75: #{tpu_custom_call.1} parent=11 // pred_region
          _
        $region76: #{tpu_custom_call.1} parent=11 // pred_fallthru
          _
        // Predicated region
        $region77: #{tpu_custom_call.1} parent=11 // pred_check
          %p698 = pneg %p477
        $region78: #{tpu_custom_call.1} parent=11 // pred_check_branch
          %700 = sbr.rel (%p698) target = $region80
        $region79: #{tpu_custom_call.1} parent=11 // pred_region
          %702 = vsyncadd [#allocation18], 0
          %s703 = sshll.u32 %s19, 4
          %s704 = int_to_ptr.hbm [resolvable:$true] %s703
          %s705 = sshll.u32 [#allocation19], 4
          %s706 = int_to_ptr.vmem [resolvable:$true] %s705
          %711 = dma.hbm_to_vmem [thread:$0]  %s704, 8192, %s706, [#allocation18], 64, 64, 4
        $region80: #{tpu_custom_call.1} parent=11 // pred_fallthru
          _
        // Predicated region
        $region81: #{tpu_custom_call.1} parent=11 // pred_check
          %p712 = pneg %p498
        $region82: #{tpu_custom_call.1} parent=11 // pred_check_branch
          %714 = sbr.rel (%p712) target = $region84
        $region83: #{tpu_custom_call.1} parent=11 // pred_region
          _
        $region84: #{tpu_custom_call.1} parent=11 // pred_fallthru
          _
        // Predicated region
        $region85: #{tpu_custom_call.1} parent=11 // pred_check
          %p715 = pneg %p519
        $region86: #{tpu_custom_call.1} parent=11 // pred_check_branch
          %717 = sbr.rel (%p715) target = $region88
        $region87: #{tpu_custom_call.1} parent=11 // pred_region
          _
        $region88: #{tpu_custom_call.1} parent=11 // pred_fallthru
          _
        // Predicated region
        $region89: #{tpu_custom_call.1} parent=11 // pred_check
          %p718 = pneg %p540
        $region90: #{tpu_custom_call.1} parent=11 // pred_check_branch
          %720 = sbr.rel (%p718) target = $region92
        $region91: #{tpu_custom_call.1} parent=11 // pred_region
          _
        $region92: #{tpu_custom_call.1} parent=11 // pred_fallthru
          _
      $region12: #{tpu_custom_call.1} parent=5 // pred_fallthru
        _
      %p721 = scmp.lt.s32.totalorder %s42, 2
      // Predicated region
      $region93: #{tpu_custom_call.1} parent=5 // pred_check
        %p722 = pneg %p721
      $region94: #{tpu_custom_call.1} parent=5 // pred_check_branch
        %724 = sbr.rel (%p722) target = $region96
      $region95: #{tpu_custom_call.1} parent=5 // pred_region
        // Predicated region
        $region97: #{tpu_custom_call.1} parent=95 // pred_check
          %p725 = pneg %p83
        $region98: #{tpu_custom_call.1} parent=95 // pred_check_branch
          %727 = sbr.rel (%p725) target = $region100
        $region99: #{tpu_custom_call.1} parent=95 // pred_region
          %s728 = smul.u32 16, %s42
          %p729 = scmp.lt.s32.totalorder %s728, 31
          %s730 = scalar_select %p729, %s728, 31
          %s731 = smul.addr %s730, 8
          %s732 = scalar_lea.vmem %s1, %s731
          %s733 = smul.u32 16, %s42
        $region100: #{tpu_custom_call.1} parent=95 // pred_fallthru
          _
        // Predicated region
        $region101: #{tpu_custom_call.1} parent=95 // pred_check
          %p734 = pneg %p109
        $region102: #{tpu_custom_call.1} parent=95 // pred_check_branch
          %736 = sbr.rel (%p734) target = $region104
        $region103: #{tpu_custom_call.1} parent=95 // pred_region
          %s737 = sand.u32 %s99, 1
          %s738 = scalar_lea.sflag [#allocation4], %s737
          %s739 = sand.u32 %s99, 1
          %s740 = smul.addr %s739, 16
          %s741 = scalar_lea.vmem [#allocation7], %s740
          %743 = vsyncadd %s738, 0
          %s744 = smul.addr %s42, 8
          %s745 = scalar_lea.hbm %s2, %s744
          %s746 = sshll.u32 %s745, 4
          %s747 = int_to_ptr.hbm [resolvable:$true] %s746
          %s748 = sshll.u32 %s741, 4
          %s749 = int_to_ptr.vmem [resolvable:$true] %s748
          %754 = dma.hbm_to_vmem [thread:$0]  %s747, 256, %s749, %s738, 256, 128, 8
        $region104: #{tpu_custom_call.1} parent=95 // pred_fallthru
          _
        // Predicated region
        $region105: #{tpu_custom_call.1} parent=95 // pred_check
          %p755 = pneg %p135
        $region106: #{tpu_custom_call.1} parent=95 // pred_check_branch
          %757 = sbr.rel (%p755) target = $region108
        $region107: #{tpu_custom_call.1} parent=95 // pred_region
          %s758 = sand.u32 %s42, 1
          %s759 = scalar_lea.sflag [#allocation9], %s758
          %s760 = sand.u32 %s125, 1
          %s761 = smul.addr %s760, 16
          %s762 = scalar_lea.vmem [#allocation8], %s761
          %764 = vsyncadd %s759, 0
          %s765 = smul.addr %s42, 8
          %s766 = scalar_lea.hbm %s3, %s765
          %s767 = sshll.u32 %s766, 4
          %s768 = int_to_ptr.hbm [resolvable:$true] %s767
          %s769 = sshll.u32 %s762, 4
          %s770 = int_to_ptr.vmem [resolvable:$true] %s769
          %775 = dma.hbm_to_vmem [thread:$0]  %s768, 256, %s770, %s759, 256, 128, 8
        $region108: #{tpu_custom_call.1} parent=95 // pred_fallthru
          _
      $region96: #{tpu_custom_call.1} parent=5 // pred_fallthru
        _
      %p776 = scmp.le.s32.totalorder 1, %s42
      %p777 = scmp.lt.s32.totalorder %s42, 3
      %p778 = pnand %p776, %p777
      %p779 = pneg %p778
      // Predicated region
      $region109: #{tpu_custom_call.1} parent=5 // pred_check
        _
      $region110: #{tpu_custom_call.1} parent=5 // pred_check_branch
        %781 = sbr.rel (%p778) target = $region112
      $region111: #{tpu_custom_call.1} parent=5 // pred_region
        %s782 = ssub.s32 %s42, 1
        // Predicated region
        $region113: #{tpu_custom_call.1} parent=111 // pred_check
          %p783 = pneg %p63
        $region114: #{tpu_custom_call.1} parent=111 // pred_check_branch
          %785 = sbr.rel (%p783) target = $region116
        $region115: #{tpu_custom_call.1} parent=111 // pred_region
          %787 = dma.done [#allocation6], 16
        $region116: #{tpu_custom_call.1} parent=111 // pred_fallthru
          _
        %s788 = sand.u32 %s102, 1
        %s789 = scalar_lea.sflag [#allocation4], %s788
        %s790 = sand.u32 %s102, 1
        %s791 = smul.addr %s790, 16
        %s792 = scalar_lea.vmem [#allocation7], %s791
        // Predicated region
        $region117: #{tpu_custom_call.1} parent=111 // pred_check
          %p793 = pneg %p115
        $region118: #{tpu_custom_call.1} parent=111 // pred_check_branch
          %795 = sbr.rel (%p793) target = $region120
        $region119: #{tpu_custom_call.1} parent=111 // pred_region
          %797 = dma.done %s789, 256
        $region120: #{tpu_custom_call.1} parent=111 // pred_fallthru
          _
        %s798 = sand.u32 %s47, 1
        %s799 = scalar_lea.sflag [#allocation9], %s798
        %s800 = sand.u32 %s128, 1
        %s801 = smul.addr %s800, 16
        %s802 = scalar_lea.vmem [#allocation8], %s801
        // Predicated region
        $region121: #{tpu_custom_call.1} parent=111 // pred_check
          %p803 = pneg %p141
        $region122: #{tpu_custom_call.1} parent=111 // pred_check_branch
          %805 = sbr.rel (%p803) target = $region124
        $region123: #{tpu_custom_call.1} parent=111 // pred_region
          %807 = dma.done %s799, 256
        $region124: #{tpu_custom_call.1} parent=111 // pred_fallthru
          _
        // Predicated region
        $region125: #{tpu_custom_call.1} parent=111 // pred_check
          %p808 = pneg %p183
        $region126: #{tpu_custom_call.1} parent=111 // pred_check_branch
          %810 = sbr.rel (%p808) target = $region128
        $region127: #{tpu_custom_call.1} parent=111 // pred_region
          %812 = dma.done [#allocation9], 16
        $region128: #{tpu_custom_call.1} parent=111 // pred_fallthru
          _
        // Predicated region
        $region129: #{tpu_custom_call.1} parent=111 // pred_check
          %p813 = pneg %p225
        $region130: #{tpu_custom_call.1} parent=111 // pred_check_branch
          %815 = sbr.rel (%p813) target = $region132
        $region131: #{tpu_custom_call.1} parent=111 // pred_region
          %817 = dma.done [#allocation12], 16
        $region132: #{tpu_custom_call.1} parent=111 // pred_fallthru
          _
        // Predicated region
        $region133: #{tpu_custom_call.1} parent=111 // pred_check
          %p818 = pneg %p288
        $region134: #{tpu_custom_call.1} parent=111 // pred_check_branch
          %820 = sbr.rel (%p818) target = $region136
        $region135: #{tpu_custom_call.1} parent=111 // pred_region
          %822 = dma.done [#allocation12], 32
        $region136: #{tpu_custom_call.1} parent=111 // pred_fallthru
          _
        // Predicated region
        $region137: #{tpu_custom_call.1} parent=111 // pred_check
          %p823 = pneg %p309
        $region138: #{tpu_custom_call.1} parent=111 // pred_check_branch
          %825 = sbr.rel (%p823) target = $region140
        $region139: #{tpu_custom_call.1} parent=111 // pred_region
          %827 = dma.done [#allocation15], 6144
        $region140: #{tpu_custom_call.1} parent=111 // pred_fallthru
          _
        // Predicated region
        $region141: #{tpu_custom_call.1} parent=111 // pred_check
          %p828 = pneg %p372
        $region142: #{tpu_custom_call.1} parent=111 // pred_check_branch
          %830 = sbr.rel (%p828) target = $region144
        $region143: #{tpu_custom_call.1} parent=111 // pred_region
          %832 = dma.done [#allocation15], 32
        $region144: #{tpu_custom_call.1} parent=111 // pred_fallthru
          _
        // Predicated region
        $region145: #{tpu_custom_call.1} parent=111 // pred_check
          %p833 = pneg %p435
        $region146: #{tpu_custom_call.1} parent=111 // pred_check_branch
          %835 = sbr.rel (%p833) target = $region148
        $region147: #{tpu_custom_call.1} parent=111 // pred_region
          %837 = dma.done [#allocation18], 8192
        $region148: #{tpu_custom_call.1} parent=111 // pred_fallthru
          _
        // Predicated region
        $region149: #{tpu_custom_call.1} parent=111 // pred_check
          %p838 = pneg %p477
        $region150: #{tpu_custom_call.1} parent=111 // pred_check_branch
          %840 = sbr.rel (%p838) target = $region152
        $region151: #{tpu_custom_call.1} parent=111 // pred_region
          %842 = dma.done [#allocation18], 8192
        $region152: #{tpu_custom_call.1} parent=111 // pred_fallthru
          _
        %843 = sfence
        %p844 = pneg %p63
        %p845 = pneg %p60
        %s846 = smul.u32 16, %s47
        %p847 = scmp.lt.s32.totalorder %s846, 31
        %s848 = scalar_select %p847, %s846, 31
        %s849 = smul.addr %s848, 8
        %s850 = scalar_lea.vmem %s1, %s849
        %p851 = pneg %p89
        %p852 = pneg %p86
        %s853 = sand.u32 %s102, 1
        %s854 = scalar_lea.sflag [#allocation4], %s853
        %s855 = sand.u32 %s102, 1
        %s856 = smul.addr %s855, 16
        %s857 = scalar_lea.vmem [#allocation7], %s856
        %p858 = pneg %p115
        %p859 = pneg %p112
        %s860 = sand.u32 %s47, 1
        %s861 = scalar_lea.sflag [#allocation9], %s860
        %s862 = sand.u32 %s128, 1
        %s863 = smul.addr %s862, 16
        %s864 = scalar_lea.vmem [#allocation8], %s863
        %p865 = pneg %p141
        %p866 = pneg %p138
        %p867 = pneg %p162
        %p868 = pneg %p159
        %p869 = pneg %p183
        %p870 = pneg %p180
        %p871 = pneg %p204
        %p872 = pneg %p201
        %p873 = pneg %p225
        %p874 = pneg %p222
        %p875 = pneg %p246
        %p876 = pneg %p243
        %p877 = pneg %p267
        %p878 = pneg %p264
        %p879 = pneg %p288
        %p880 = pneg %p285
        %p881 = pneg %p309
        %p882 = pneg %p306
        %p883 = pneg %p330
        %p884 = pneg %p327
        %p885 = pneg %p351
        %p886 = pneg %p348
        %p887 = pneg %p372
        %p888 = pneg %p369
        %p889 = pneg %p393
        %p890 = pneg %p390
        %p891 = pneg %p414
        %p892 = pneg %p411
        %p893 = pneg %p435
        %p894 = pneg %p432
        %p895 = pneg %p456
        %p896 = pneg %p453
        %p897 = pneg %p477
        %p898 = pneg %p474
        %p899 = pneg %p498
        %p900 = pneg %p495
        %p901 = pneg %p519
        %p902 = pneg %p516
        %p903 = pneg %p540
        %p904 = pneg %p537
        %p905 = pneg %p566
        %p906 = pneg %p563
        %s907 = sand.u32 %s553, 1
        %s908 = scalar_lea.sflag [#allocation5], %s907
        %s909 = sand.u32 %s553, 1
        %s910 = smul.addr %s909, 2
        %s911 = scalar_lea.vmem [#allocation20], %s910
        %s912 = smul.u32 16, %s47
        %p913 = scmp.lt.s32.totalorder %s912, 31
        %s914 = scalar_select %p913, %s912, 31
        %s915 = smul.addr %s914, 8
        %s916 = scalar_lea.vmem %s1, %s915
        %s917 = smul.u32 16, %s47
        %s919 = sld [smem:[#allocation3]]
        %s920 = sld [smem:[#allocation3 + $0x1]]
        %s921 = sld [smem:[#allocation3 + $0x2]]
        %s922 = sld [smem:[#allocation3 + $0x3]]
        %s923 = sld [smem:[#allocation3 + $0x4]]
        %s924 = sld [smem:[#allocation3 + $0x5]]
        %s925 = sld [smem:[#allocation3 + $0x6]]
        %v926 = vld [vmem:[%s916] sm:$0xff]
        %v927 = vld [vmem:[%s916 + $0x8] sm:$0xff]
        %v928 = vld [vmem:[%s916 + $0x10] sm:$0xff]
        %v929 = vld [vmem:[%s916 + $0x18] sm:$0xff]
        %v930 = vld [vmem:[%s916 + $0x20] sm:$0xff]
        %v931 = vld [vmem:[%s916 + $0x28] sm:$0xff]
        %v932 = vld [vmem:[%s916 + $0x30] sm:$0xff]
        %v933 = vld [vmem:[%s916 + $0x38] sm:$0xff]
        %v934 = vld [vmem:[%s916 + $0x40] sm:$0xff]
        %v935 = vld [vmem:[%s916 + $0x48] sm:$0xff]
        %v936 = vld [vmem:[%s916 + $0x50] sm:$0xff]
        %v937 = vld [vmem:[%s916 + $0x58] sm:$0xff]
        %v938 = vld [vmem:[%s916 + $0x60] sm:$0xff]
        %v939 = vld [vmem:[%s916 + $0x68] sm:$0xff]
        %v940 = vld [vmem:[%s916 + $0x70] sm:$0xff]
        %v941 = vld [vmem:[%s916 + $0x78] sm:$0xff]
        %v942 = vpack.c.bf16 %v927, %v926
        %v943 = vpack.c.bf16 %v929, %v928
        %v944 = vpack.c.bf16 %v931, %v930
        %v945 = vpack.c.bf16 %v933, %v932
        %v946 = vpack.c.bf16 %v935, %v934
        %v947 = vpack.c.bf16 %v937, %v936
        %v948 = vpack.c.bf16 %v939, %v938
        %v949 = vpack.c.bf16 %v941, %v940
        %v950 = vld [vmem:[%s6] sm:$0xf]
        %v951 = vld [vmem:[%s6 + $0x4] sm:$0xf]
        %v952 = vld [vmem:[#allocation11] sm:$0x1]
        %v954 = vperm.slane %v952, 0
        %v958 = vunpack.c.l.b16 %v950
        %v959 = vunpack.c.l.b16 %v951
        %v960 = vpack.c.b16 %v959, %v958
        %vm962 = vcmask 130048
        %v964 = vsel %vm962, %v942, 0
        %v967 = vsel %vm962, %v943, 0
        %v970 = vsel %vm962, %v944, 0
        %v973 = vsel %vm962, %v945, 0
        %v976 = vsel %vm962, %v946, 0
        %v979 = vsel %vm962, %v947, 0
        %v982 = vsel %vm962, %v948, 0
        %v985 = vsel %vm962, %v949, 0
        %987 = vmatpush.bf16.msra.mxu0 0
        %988 = vmatpush.bf16.msra.mxu0 0
        %989 = vmatpush.bf16.msra.mxu0 0
        %990 = vmatpush.bf16.msra.mxu0 0
        %991 = vmatpush.bf16.msra.mxu0 0
        %992 = vmatpush.bf16.msra.mxu0 0
        %993 = vmatpush.bf16.msra.mxu0 0
        %994 = vmatpush.bf16.msra.mxu0 %v960
        %995 = vmatmul.bf16.gmra.mxu0 %v964
        %v996 = vpop.f32.mrf.mxu0
        %v997 = vadd.f32 %v954, %v996
        %v998 = vpop.f32.mrf.mxu0
        %v999 = vadd.f32 %v954, %v998
        %1000 = vmatmul.bf16.gmra.mxu0 %v967
        %v1001 = vpop.f32.mrf.mxu0
        %v1002 = vadd.f32 %v954, %v1001
        %v1003 = vpop.f32.mrf.mxu0
        %v1004 = vadd.f32 %v954, %v1003
        %1005 = vmatmul.bf16.gmra.mxu0 %v970
        %v1006 = vpop.f32.mrf.mxu0
        %v1007 = vadd.f32 %v954, %v1006
        %v1008 = vpop.f32.mrf.mxu0
        %v1009 = vadd.f32 %v954, %v1008
        %1010 = vmatmul.bf16.gmra.mxu0 %v973
        %v1011 = vpop.f32.mrf.mxu0
        %v1012 = vadd.f32 %v954, %v1011
        %v1013 = vpop.f32.mrf.mxu0
        %v1014 = vadd.f32 %v954, %v1013
        %1015 = vmatmul.bf16.gmra.mxu0 %v976
        %v1016 = vpop.f32.mrf.mxu0
        %v1017 = vadd.f32 %v954, %v1016
        %v1018 = vpop.f32.mrf.mxu0
        %v1019 = vadd.f32 %v954, %v1018
        %1020 = vmatmul.bf16.gmra.mxu0 %v979
        %v1021 = vpop.f32.mrf.mxu0
        %v1022 = vadd.f32 %v954, %v1021
        %v1023 = vpop.f32.mrf.mxu0
        %v1024 = vadd.f32 %v954, %v1023
        %1025 = vmatmul.bf16.gmra.mxu0 %v982
        %v1026 = vpop.f32.mrf.mxu0
        %v1027 = vadd.f32 %v954, %v1026
        %v1028 = vpop.f32.mrf.mxu0
        %v1029 = vadd.f32 %v954, %v1028
        %1030 = vmatmul.bf16.gmra.mxu0 %v985
        %v1031 = vpop.f32.mrf.mxu0
        %v1032 = vadd.f32 %v954, %v1031
        %v1033 = vpop.f32.mrf.mxu0
        %v1034 = vadd.f32 %v954, %v1033
        %1035 = vdwg.mxu0
        %v1036 = vld [vmem:[%s4] sm:$0xff]
        %v1037 = vld [vmem:[%s4 + $0x8] sm:$0xff]
        %v1038 = vld [vmem:[%s4 + $0x10] sm:$0xff]
        %v1039 = vld [vmem:[%s4 + $0x18] sm:$0xff]
        %v1040 = vld [vmem:[%s4 + $0x20] sm:$0xff]
        %v1041 = vld [vmem:[%s4 + $0x28] sm:$0xff]
        %v1042 = vld [vmem:[%s4 + $0x30] sm:$0xff]
        %v1043 = vld [vmem:[%s4 + $0x38] sm:$0xff]
        %v1044 = vld [vmem:[%s4 + $0x40] sm:$0xff]
        %v1045 = vld [vmem:[%s4 + $0x48] sm:$0xff]
        %v1046 = vld [vmem:[%s4 + $0x50] sm:$0xff]
        %v1047 = vld [vmem:[%s4 + $0x58] sm:$0xff]
        %v1048 = vld [vmem:[%s4 + $0x60] sm:$0xff]
        %v1049 = vld [vmem:[%s4 + $0x68] sm:$0xff]
        %v1050 = vld [vmem:[%s4 + $0x70] sm:$0xff]
        %v1051 = vld [vmem:[%s4 + $0x78] sm:$0xff]
        %v1052 = vadd.f32 %v997, %v1036
        %v1053 = vadd.f32 %v999, %v1037
        %v1054 = vadd.f32 %v1002, %v1038
        %v1055 = vadd.f32 %v1004, %v1039
        %v1056 = vadd.f32 %v1007, %v1040
        %v1057 = vadd.f32 %v1009, %v1041
        %v1058 = vadd.f32 %v1012, %v1042
        %v1059 = vadd.f32 %v1014, %v1043
        %v1060 = vadd.f32 %v1017, %v1044
        %v1061 = vadd.f32 %v1019, %v1045
        %v1062 = vadd.f32 %v1022, %v1046
        %v1063 = vadd.f32 %v1024, %v1047
        %v1064 = vadd.f32 %v1027, %v1048
        %v1065 = vadd.f32 %v1029, %v1049
        %v1066 = vadd.f32 %v1032, %v1050
        %v1067 = vadd.f32 %v1034, %v1051
        %v1068 = vld [vmem:[#allocation10] sm:$0x1]
        %v1070 = vperm.slane %v1068, 0
        %v1072 = vadd.f32 %v1052, %v1070
        %v1073 = vadd.f32 %v1053, %v1070
        %v1074 = vadd.f32 %v1054, %v1070
        %v1075 = vadd.f32 %v1055, %v1070
        %v1076 = vadd.f32 %v1056, %v1070
        %v1077 = vadd.f32 %v1057, %v1070
        %v1078 = vadd.f32 %v1058, %v1070
        %v1079 = vadd.f32 %v1059, %v1070
        %v1080 = vadd.f32 %v1060, %v1070
        %v1081 = vadd.f32 %v1061, %v1070
        %v1082 = vadd.f32 %v1062, %v1070
        %v1083 = vadd.f32 %v1063, %v1070
        %v1084 = vadd.f32 %v1064, %v1070
        %v1085 = vadd.f32 %v1065, %v1070
        %v1086 = vadd.f32 %v1066, %v1070
        %v1087 = vadd.f32 %v1067, %v1070
        %1088 = vst [vmem:[#allocation2] sm:$0xff] %v1072
        %1089 = vst [vmem:[#allocation2 + $0x8] sm:$0xff] %v1073
        %1090 = vst [vmem:[#allocation2 + $0x10] sm:$0xff] %v1074
        %1091 = vst [vmem:[#allocation2 + $0x18] sm:$0xff] %v1075
        %1092 = vst [vmem:[#allocation2 + $0x20] sm:$0xff] %v1076
        %1093 = vst [vmem:[#allocation2 + $0x28] sm:$0xff] %v1077
        %1094 = vst [vmem:[#allocation2 + $0x30] sm:$0xff] %v1078
        %1095 = vst [vmem:[#allocation2 + $0x38] sm:$0xff] %v1079
        %1096 = vst [vmem:[#allocation2 + $0x40] sm:$0xff] %v1080
        %1097 = vst [vmem:[#allocation2 + $0x48] sm:$0xff] %v1081
        %1098 = vst [vmem:[#allocation2 + $0x50] sm:$0xff] %v1082
        %1099 = vst [vmem:[#allocation2 + $0x58] sm:$0xff] %v1083
        %1100 = vst [vmem:[#allocation2 + $0x60] sm:$0xff] %v1084
        %1101 = vst [vmem:[#allocation2 + $0x68] sm:$0xff] %v1085
        %1102 = vst [vmem:[#allocation2 + $0x70] sm:$0xff] %v1086
        %1103 = vst [vmem:[#allocation2 + $0x78] sm:$0xff] %v1087
        %v1104 = vld [vmem:[%s8] sm:$0xf]
        %v1105 = vld [vmem:[%s8 + $0x4] sm:$0xf]
        %v1106 = vld [vmem:[%s8 + $0x8] sm:$0xf]
        %v1107 = vld [vmem:[%s8 + $0xc] sm:$0xf]
        %v1108 = vld [vmem:[%s8 + $0x10] sm:$0xf]
        %v1109 = vld [vmem:[%s8 + $0x14] sm:$0xf]
        %v1110 = vld [vmem:[%s8 + $0x18] sm:$0xf]
        %v1111 = vld [vmem:[%s8 + $0x1c] sm:$0xf]
        %v1112 = vld [vmem:[%s8 + $0x20] sm:$0xf]
        %v1113 = vld [vmem:[%s8 + $0x24] sm:$0xf]
        %v1114 = vld [vmem:[%s8 + $0x28] sm:$0xf]
        %v1115 = vld [vmem:[%s8 + $0x2c] sm:$0xf]
        %v1116 = vld [vmem:[%s8 + $0x30] sm:$0xf]
        %v1117 = vld [vmem:[%s8 + $0x34] sm:$0xf]
        %v1118 = vld [vmem:[%s8 + $0x38] sm:$0xf]
        %v1119 = vld [vmem:[%s8 + $0x3c] sm:$0xf]
        %v1120 = vunpack.c.l.bf16 %v1104
        %v1121 = vunpack.c.l.bf16 %v1105
        %v1122 = vunpack.c.l.bf16 %v1106
        %v1123 = vunpack.c.l.bf16 %v1107
        %v1124 = vunpack.c.l.bf16 %v1108
        %v1125 = vunpack.c.l.bf16 %v1109
        %v1126 = vunpack.c.l.bf16 %v1110
        %v1127 = vunpack.c.l.bf16 %v1111
        %v1128 = vunpack.c.l.bf16 %v1112
        %v1129 = vunpack.c.l.bf16 %v1113
        %v1130 = vunpack.c.l.bf16 %v1114
        %v1131 = vunpack.c.l.bf16 %v1115
        %v1132 = vunpack.c.l.bf16 %v1116
        %v1133 = vunpack.c.l.bf16 %v1117
        %v1134 = vunpack.c.l.bf16 %v1118
        %v1135 = vunpack.c.l.bf16 %v1119
        %v1136 = vld [vmem:[#allocation2] sm:$0xff]
        %v1137 = vld [vmem:[#allocation2 + $0x8] sm:$0xff]
        %v1138 = vld [vmem:[#allocation2 + $0x10] sm:$0xff]
        %v1139 = vld [vmem:[#allocation2 + $0x18] sm:$0xff]
        %v1140 = vld [vmem:[#allocation2 + $0x20] sm:$0xff]
        %v1141 = vld [vmem:[#allocation2 + $0x28] sm:$0xff]
        %v1142 = vld [vmem:[#allocation2 + $0x30] sm:$0xff]
        %v1143 = vld [vmem:[#allocation2 + $0x38] sm:$0xff]
        %v1144 = vld [vmem:[#allocation2 + $0x40] sm:$0xff]
        %v1145 = vld [vmem:[#allocation2 + $0x48] sm:$0xff]
        %v1146 = vld [vmem:[#allocation2 + $0x50] sm:$0xff]
        %v1147 = vld [vmem:[#allocation2 + $0x58] sm:$0xff]
        %v1148 = vld [vmem:[#allocation2 + $0x60] sm:$0xff]
        %v1149 = vld [vmem:[#allocation2 + $0x68] sm:$0xff]
        %v1150 = vld [vmem:[#allocation2 + $0x70] sm:$0xff]
        %v1151 = vld [vmem:[#allocation2 + $0x78] sm:$0xff]
        %v1152 = vld [vmem:[%s9] sm:$0x1]
        %v1153 = vld [vmem:[#allocation13] sm:$0x1]
        %1154 = vadd.xlane.f32.xlu0 %v1136
        %v1155 = vpop.xlane.xlu0 %1154
        %1156 = vadd.xlane.f32.xlu0 %v1137
        %v1157 = vpop.xlane.xlu0 %1156
        %1158 = vadd.xlane.f32.xlu0 %v1138
        %v1159 = vpop.xlane.xlu0 %1158
        %1160 = vadd.xlane.f32.xlu0 %v1139
        %v1161 = vpop.xlane.xlu0 %1160
        %1162 = vadd.xlane.f32.xlu0 %v1140
        %v1163 = vpop.xlane.xlu0 %1162
        %1164 = vadd.xlane.f32.xlu0 %v1141
        %v1165 = vpop.xlane.xlu0 %1164
        %1166 = vadd.xlane.f32.xlu0 %v1142
        %v1167 = vpop.xlane.xlu0 %1166
        %1168 = vadd.xlane.f32.xlu0 %v1143
        %v1169 = vpop.xlane.xlu0 %1168
        %1170 = vadd.xlane.f32.xlu0 %v1144
        %v1171 = vpop.xlane.xlu0 %1170
        %1172 = vadd.xlane.f32.xlu0 %v1145
        %v1173 = vpop.xlane.xlu0 %1172
        %1174 = vadd.xlane.f32.xlu0 %v1146
        %v1175 = vpop.xlane.xlu0 %1174
        %1176 = vadd.xlane.f32.xlu0 %v1147
        %v1177 = vpop.xlane.xlu0 %1176
        %1178 = vadd.xlane.f32.xlu0 %v1148
        %v1179 = vpop.xlane.xlu0 %1178
        %1180 = vadd.xlane.f32.xlu0 %v1149
        %v1181 = vpop.xlane.xlu0 %1180
        %1182 = vadd.xlane.f32.xlu0 %v1150
        %v1183 = vpop.xlane.xlu0 %1182
        %1184 = vadd.xlane.f32.xlu0 %v1151
        %v1185 = vpop.xlane.xlu0 %1184
        %v1186 = vrcp.pop 128.0
        %v1187 = vmul.f32 128.0, %v1186
        %v1188 = vsub.f32 1.0, %v1187
        %v1189 = vmul.f32 %v1186, %v1188
        %v1190 = vadd.f32 %v1186, %v1189
        %vm1191 = vweird.f32 %v1186
        %v1192 = vsel %vm1191, %v1186, %v1190
        %v1193 = vmul.f32 %v1155, %v1192
        %v1194 = vmul.f32 %v1157, %v1192
        %v1195 = vmul.f32 %v1159, %v1192
        %v1196 = vmul.f32 %v1161, %v1192
        %v1197 = vmul.f32 %v1163, %v1192
        %v1198 = vmul.f32 %v1165, %v1192
        %v1199 = vmul.f32 %v1167, %v1192
        %v1200 = vmul.f32 %v1169, %v1192
        %v1201 = vmul.f32 %v1171, %v1192
        %v1202 = vmul.f32 %v1173, %v1192
        %v1203 = vmul.f32 %v1175, %v1192
        %v1204 = vmul.f32 %v1177, %v1192
        %v1205 = vmul.f32 %v1179, %v1192
        %v1206 = vmul.f32 %v1181, %v1192
        %v1207 = vmul.f32 %v1183, %v1192
        %v1208 = vmul.f32 %v1185, %v1192
        %v1209 = vsub.f32 %v1136, %v1193
        %v1210 = vsub.f32 %v1137, %v1194
        %v1211 = vsub.f32 %v1138, %v1195
        %v1212 = vsub.f32 %v1139, %v1196
        %v1213 = vsub.f32 %v1140, %v1197
        %v1214 = vsub.f32 %v1141, %v1198
        %v1215 = vsub.f32 %v1142, %v1199
        %v1216 = vsub.f32 %v1143, %v1200
        %v1217 = vsub.f32 %v1144, %v1201
        %v1218 = vsub.f32 %v1145, %v1202
        %v1219 = vsub.f32 %v1146, %v1203
        %v1220 = vsub.f32 %v1147, %v1204
        %v1221 = vsub.f32 %v1148, %v1205
        %v1222 = vsub.f32 %v1149, %v1206
        %v1223 = vsub.f32 %v1150, %v1207
        %v1224 = vsub.f32 %v1151, %v1208
        %v1225 = vmul.f32 %v1209, %v1209
        %v1226 = vmul.f32 %v1210, %v1210
        %v1227 = vmul.f32 %v1211, %v1211
        %v1228 = vmul.f32 %v1212, %v1212
        %v1229 = vmul.f32 %v1213, %v1213
        %v1230 = vmul.f32 %v1214, %v1214
        %v1231 = vmul.f32 %v1215, %v1215
        %v1232 = vmul.f32 %v1216, %v1216
        %v1233 = vmul.f32 %v1217, %v1217
        %v1234 = vmul.f32 %v1218, %v1218
        %v1235 = vmul.f32 %v1219, %v1219
        %v1236 = vmul.f32 %v1220, %v1220
        %v1237 = vmul.f32 %v1221, %v1221
        %v1238 = vmul.f32 %v1222, %v1222
        %v1239 = vmul.f32 %v1223, %v1223
        %v1240 = vmul.f32 %v1224, %v1224
        %1241 = vadd.xlane.f32.xlu0 %v1225
        %v1242 = vpop.xlane.xlu0 %1241
        %1243 = vadd.xlane.f32.xlu0 %v1226
        %v1244 = vpop.xlane.xlu0 %1243
        %1245 = vadd.xlane.f32.xlu0 %v1227
        %v1246 = vpop.xlane.xlu0 %1245
        %1247 = vadd.xlane.f32.xlu0 %v1228
        %v1248 = vpop.xlane.xlu0 %1247
        %1249 = vadd.xlane.f32.xlu0 %v1229
        %v1250 = vpop.xlane.xlu0 %1249
        %1251 = vadd.xlane.f32.xlu0 %v1230
        %v1252 = vpop.xlane.xlu0 %1251
        %1253 = vadd.xlane.f32.xlu0 %v1231
        %v1254 = vpop.xlane.xlu0 %1253
        %1255 = vadd.xlane.f32.xlu0 %v1232
        %v1256 = vpop.xlane.xlu0 %1255
        %1257 = vadd.xlane.f32.xlu0 %v1233
        %v1258 = vpop.xlane.xlu0 %1257
        %1259 = vadd.xlane.f32.xlu0 %v1234
        %v1260 = vpop.xlane.xlu0 %1259
        %1261 = vadd.xlane.f32.xlu0 %v1235
        %v1262 = vpop.xlane.xlu0 %1261
        %1263 = vadd.xlane.f32.xlu0 %v1236
        %v1264 = vpop.xlane.xlu0 %1263
        %1265 = vadd.xlane.f32.xlu0 %v1237
        %v1266 = vpop.xlane.xlu0 %1265
        %1267 = vadd.xlane.f32.xlu0 %v1238
        %v1268 = vpop.xlane.xlu0 %1267
        %1269 = vadd.xlane.f32.xlu0 %v1239
        %v1270 = vpop.xlane.xlu0 %1269
        %1271 = vadd.xlane.f32.xlu0 %v1240
        %v1272 = vpop.xlane.xlu0 %1271
        %v1273 = vmul.f32 %v1242, %v1192
        %v1274 = vmul.f32 %v1244, %v1192
        %v1275 = vmul.f32 %v1246, %v1192
        %v1276 = vmul.f32 %v1248, %v1192
        %v1277 = vmul.f32 %v1250, %v1192
        %v1278 = vmul.f32 %v1252, %v1192
        %v1279 = vmul.f32 %v1254, %v1192
        %v1280 = vmul.f32 %v1256, %v1192
        %v1281 = vmul.f32 %v1258, %v1192
        %v1282 = vmul.f32 %v1260, %v1192
        %v1283 = vmul.f32 %v1262, %v1192
        %v1284 = vmul.f32 %v1264, %v1192
        %v1285 = vmul.f32 %v1266, %v1192
        %v1286 = vmul.f32 %v1268, %v1192
        %v1287 = vmul.f32 %v1270, %v1192
        %v1288 = vmul.f32 %v1272, %v1192
        %v1289 = vadd.f32 %v1273, 1e-05
        %v1290 = vadd.f32 %v1274, 1e-05
        %v1291 = vadd.f32 %v1275, 1e-05
        %v1292 = vadd.f32 %v1276, 1e-05
        %v1293 = vadd.f32 %v1277, 1e-05
        %v1294 = vadd.f32 %v1278, 1e-05
        %v1295 = vadd.f32 %v1279, 1e-05
        %v1296 = vadd.f32 %v1280, 1e-05
        %v1297 = vadd.f32 %v1281, 1e-05
        %v1298 = vadd.f32 %v1282, 1e-05
        %v1299 = vadd.f32 %v1283, 1e-05
        %v1300 = vadd.f32 %v1284, 1e-05
        %v1301 = vadd.f32 %v1285, 1e-05
        %v1302 = vadd.f32 %v1286, 1e-05
        %v1303 = vadd.f32 %v1287, 1e-05
        %v1304 = vadd.f32 %v1288, 1e-05
        %v1305 = vrsqrt.pop %v1289
        %v1306 = vmul.f32 %v1305, %v1289
        %v1307 = vmul.f32 %v1306, %v1305
        %v1308 = vmul.f32 0.5, %v1307
        %v1309 = vsub.f32 1.5, %v1308
        %v1310 = vmul.f32 %v1305, %v1309
        %vm1311 = vweird.f32 %v1289
        %vm1312 = vweird.f32 %v1305
        %vm1313 = vmor %vm1311, %vm1312
        %v1314 = vsel %vm1313, %v1305, %v1310
        %v1315 = vrsqrt.pop %v1290
        %v1316 = vmul.f32 %v1315, %v1290
        %v1317 = vmul.f32 %v1316, %v1315
        %v1318 = vmul.f32 0.5, %v1317
        %v1319 = vsub.f32 1.5, %v1318
        %v1320 = vmul.f32 %v1315, %v1319
        %vm1321 = vweird.f32 %v1290
        %vm1322 = vweird.f32 %v1315
        %vm1323 = vmor %vm1321, %vm1322
        %v1324 = vsel %vm1323, %v1315, %v1320
        %v1325 = vrsqrt.pop %v1291
        %v1326 = vmul.f32 %v1325, %v1291
        %v1327 = vmul.f32 %v1326, %v1325
        %v1328 = vmul.f32 0.5, %v1327
        %v1329 = vsub.f32 1.5, %v1328
        %v1330 = vmul.f32 %v1325, %v1329
        %vm1331 = vweird.f32 %v1291
        %vm1332 = vweird.f32 %v1325
        %vm1333 = vmor %vm1331, %vm1332
        %v1334 = vsel %vm1333, %v1325, %v1330
        %v1335 = vrsqrt.pop %v1292
        %v1336 = vmul.f32 %v1335, %v1292
        %v1337 = vmul.f32 %v1336, %v1335
        %v1338 = vmul.f32 0.5, %v1337
        %v1339 = vsub.f32 1.5, %v1338
        %v1340 = vmul.f32 %v1335, %v1339
        %vm1341 = vweird.f32 %v1292
        %vm1342 = vweird.f32 %v1335
        %vm1343 = vmor %vm1341, %vm1342
        %v1344 = vsel %vm1343, %v1335, %v1340
        %v1345 = vrsqrt.pop %v1293
        %v1346 = vmul.f32 %v1345, %v1293
        %v1347 = vmul.f32 %v1346, %v1345
        %v1348 = vmul.f32 0.5, %v1347
        %v1349 = vsub.f32 1.5, %v1348
        %v1350 = vmul.f32 %v1345, %v1349
        %vm1351 = vweird.f32 %v1293
        %vm1352 = vweird.f32 %v1345
        %vm1353 = vmor %vm1351, %vm1352
        %v1354 = vsel %vm1353, %v1345, %v1350
        %v1355 = vrsqrt.pop %v1294
        %v1356 = vmul.f32 %v1355, %v1294
        %v1357 = vmul.f32 %v1356, %v1355
        %v1358 = vmul.f32 0.5, %v1357
        %v1359 = vsub.f32 1.5, %v1358
        %v1360 = vmul.f32 %v1355, %v1359
        %vm1361 = vweird.f32 %v1294
        %vm1362 = vweird.f32 %v1355
        %vm1363 = vmor %vm1361, %vm1362
        %v1364 = vsel %vm1363, %v1355, %v1360
        %v1365 = vrsqrt.pop %v1295
        %v1366 = vmul.f32 %v1365, %v1295
        %v1367 = vmul.f32 %v1366, %v1365
        %v1368 = vmul.f32 0.5, %v1367
        %v1369 = vsub.f32 1.5, %v1368
        %v1370 = vmul.f32 %v1365, %v1369
        %vm1371 = vweird.f32 %v1295
        %vm1372 = vweird.f32 %v1365
        %vm1373 = vmor %vm1371, %vm1372
        %v1374 = vsel %vm1373, %v1365, %v1370
        %v1375 = vrsqrt.pop %v1296
        %v1376 = vmul.f32 %v1375, %v1296
        %v1377 = vmul.f32 %v1376, %v1375
        %v1378 = vmul.f32 0.5, %v1377
        %v1379 = vsub.f32 1.5, %v1378
        %v1380 = vmul.f32 %v1375, %v1379
        %vm1381 = vweird.f32 %v1296
        %vm1382 = vweird.f32 %v1375
        %vm1383 = vmor %vm1381, %vm1382
        %v1384 = vsel %vm1383, %v1375, %v1380
        %v1385 = vrsqrt.pop %v1297
        %v1386 = vmul.f32 %v1385, %v1297
        %v1387 = vmul.f32 %v1386, %v1385
        %v1388 = vmul.f32 0.5, %v1387
        %v1389 = vsub.f32 1.5, %v1388
        %v1390 = vmul.f32 %v1385, %v1389
        %vm1391 = vweird.f32 %v1297
        %vm1392 = vweird.f32 %v1385
        %vm1393 = vmor %vm1391, %vm1392
        %v1394 = vsel %vm1393, %v1385, %v1390
        %v1395 = vrsqrt.pop %v1298
        %v1396 = vmul.f32 %v1395, %v1298
        %v1397 = vmul.f32 %v1396, %v1395
        %v1398 = vmul.f32 0.5, %v1397
        %v1399 = vsub.f32 1.5, %v1398
        %v1400 = vmul.f32 %v1395, %v1399
        %vm1401 = vweird.f32 %v1298
        %vm1402 = vweird.f32 %v1395
        %vm1403 = vmor %vm1401, %vm1402
        %v1404 = vsel %vm1403, %v1395, %v1400
        %v1405 = vrsqrt.pop %v1299
        %v1406 = vmul.f32 %v1405, %v1299
        %v1407 = vmul.f32 %v1406, %v1405
        %v1408 = vmul.f32 0.5, %v1407
        %v1409 = vsub.f32 1.5, %v1408
        %v1410 = vmul.f32 %v1405, %v1409
        %vm1411 = vweird.f32 %v1299
        %vm1412 = vweird.f32 %v1405
        %vm1413 = vmor %vm1411, %vm1412
        %v1414 = vsel %vm1413, %v1405, %v1410
        %v1415 = vrsqrt.pop %v1300
        %v1416 = vmul.f32 %v1415, %v1300
        %v1417 = vmul.f32 %v1416, %v1415
        %v1418 = vmul.f32 0.5, %v1417
        %v1419 = vsub.f32 1.5, %v1418
        %v1420 = vmul.f32 %v1415, %v1419
        %vm1421 = vweird.f32 %v1300
        %vm1422 = vweird.f32 %v1415
        %vm1423 = vmor %vm1421, %vm1422
        %v1424 = vsel %vm1423, %v1415, %v1420
        %v1425 = vrsqrt.pop %v1301
        %v1426 = vmul.f32 %v1425, %v1301
        %v1427 = vmul.f32 %v1426, %v1425
        %v1428 = vmul.f32 0.5, %v1427
        %v1429 = vsub.f32 1.5, %v1428
        %v1430 = vmul.f32 %v1425, %v1429
        %vm1431 = vweird.f32 %v1301
        %vm1432 = vweird.f32 %v1425
        %vm1433 = vmor %vm1431, %vm1432
        %v1434 = vsel %vm1433, %v1425, %v1430
        %v1435 = vrsqrt.pop %v1302
        %v1436 = vmul.f32 %v1435, %v1302
        %v1437 = vmul.f32 %v1436, %v1435
        %v1438 = vmul.f32 0.5, %v1437
        %v1439 = vsub.f32 1.5, %v1438
        %v1440 = vmul.f32 %v1435, %v1439
        %vm1441 = vweird.f32 %v1302
        %vm1442 = vweird.f32 %v1435
        %vm1443 = vmor %vm1441, %vm1442
        %v1444 = vsel %vm1443, %v1435, %v1440
        %v1445 = vrsqrt.pop %v1303
        %v1446 = vmul.f32 %v1445, %v1303
        %v1447 = vmul.f32 %v1446, %v1445
        %v1448 = vmul.f32 0.5, %v1447
        %v1449 = vsub.f32 1.5, %v1448
        %v1450 = vmul.f32 %v1445, %v1449
        %vm1451 = vweird.f32 %v1303
        %vm1452 = vweird.f32 %v1445
        %vm1453 = vmor %vm1451, %vm1452
        %v1454 = vsel %vm1453, %v1445, %v1450
        %v1455 = vrsqrt.pop %v1304
        %v1456 = vmul.f32 %v1455, %v1304
        %v1457 = vmul.f32 %v1456, %v1455
        %v1458 = vmul.f32 0.5, %v1457
        %v1459 = vsub.f32 1.5, %v1458
        %v1460 = vmul.f32 %v1455, %v1459
        %vm1461 = vweird.f32 %v1304
        %vm1462 = vweird.f32 %v1455
        %vm1463 = vmor %vm1461, %vm1462
        %v1464 = vsel %vm1463, %v1455, %v1460
        %v1465 = vmul.f32 %v1209, %v1314
        %v1466 = vmul.f32 %v1210, %v1324
        %v1467 = vmul.f32 %v1211, %v1334
        %v1468 = vmul.f32 %v1212, %v1344
        %v1469 = vmul.f32 %v1213, %v1354
        %v1470 = vmul.f32 %v1214, %v1364
        %v1471 = vmul.f32 %v1215, %v1374
        %v1472 = vmul.f32 %v1216, %v1384
        %v1473 = vmul.f32 %v1217, %v1394
        %v1474 = vmul.f32 %v1218, %v1404
        %v1475 = vmul.f32 %v1219, %v1414
        %v1476 = vmul.f32 %v1220, %v1424
        %v1477 = vmul.f32 %v1221, %v1434
        %v1478 = vmul.f32 %v1222, %v1444
        %v1479 = vmul.f32 %v1223, %v1454
        %v1480 = vmul.f32 %v1224, %v1464
        %v1482 = vperm.slane %v1152, 0
        %v1484 = vmul.f32 %v1465, %v1482
        %v1485 = vmul.f32 %v1466, %v1482
        %v1486 = vmul.f32 %v1467, %v1482
        %v1487 = vmul.f32 %v1468, %v1482
        %v1488 = vmul.f32 %v1469, %v1482
        %v1489 = vmul.f32 %v1470, %v1482
        %v1490 = vmul.f32 %v1471, %v1482
        %v1491 = vmul.f32 %v1472, %v1482
        %v1492 = vmul.f32 %v1473, %v1482
        %v1493 = vmul.f32 %v1474, %v1482
        %v1494 = vmul.f32 %v1475, %v1482
        %v1495 = vmul.f32 %v1476, %v1482
        %v1496 = vmul.f32 %v1477, %v1482
        %v1497 = vmul.f32 %v1478, %v1482
        %v1498 = vmul.f32 %v1479, %v1482
        %v1499 = vmul.f32 %v1480, %v1482
        %v1501 = vperm.slane %v1153, 0
        %v1503 = vadd.f32 %v1484, %v1501
        %v1504 = vadd.f32 %v1485, %v1501
        %v1505 = vadd.f32 %v1486, %v1501
        %v1506 = vadd.f32 %v1487, %v1501
        %v1507 = vadd.f32 %v1488, %v1501
        %v1508 = vadd.f32 %v1489, %v1501
        %v1509 = vadd.f32 %v1490, %v1501
        %v1510 = vadd.f32 %v1491, %v1501
        %v1511 = vadd.f32 %v1492, %v1501
        %v1512 = vadd.f32 %v1493, %v1501
        %v1513 = vadd.f32 %v1494, %v1501
        %v1514 = vadd.f32 %v1495, %v1501
        %v1515 = vadd.f32 %v1496, %v1501
        %v1516 = vadd.f32 %v1497, %v1501
        %v1517 = vadd.f32 %v1498, %v1501
        %v1518 = vadd.f32 %v1499, %v1501
        %v1519 = vpack.c.bf16 %v1504, %v1503
        %v1520 = vpack.c.bf16 %v1506, %v1505
        %v1521 = vpack.c.bf16 %v1508, %v1507
        %v1522 = vpack.c.bf16 %v1510, %v1509
        %v1523 = vpack.c.bf16 %v1512, %v1511
        %v1524 = vpack.c.bf16 %v1514, %v1513
        %v1525 = vpack.c.bf16 %v1516, %v1515
        %v1526 = vpack.c.bf16 %v1518, %v1517
        %v1527 = vld [vmem:[#allocation14] sm:$0xff]
        %v1528 = vld [vmem:[#allocation14 + $0x8] sm:$0xf]
        %v1529 = vld [vmem:[#allocation14 + $0xc] sm:$0xff]
        %v1530 = vld [vmem:[#allocation14 + $0x14] sm:$0xf]
        %v1531 = vld [vmem:[#allocation14 + $0x18] sm:$0xff]
        %v1532 = vld [vmem:[#allocation14 + $0x20] sm:$0xf]
        %v1533 = vld [vmem:[#allocation14 + $0x24] sm:$0xff]
        %v1534 = vld [vmem:[#allocation14 + $0x2c] sm:$0xf]
        %v1535 = vld [vmem:[#allocation14 + $0x30] sm:$0xff]
        %v1536 = vld [vmem:[#allocation14 + $0x38] sm:$0xf]
        %v1537 = vld [vmem:[#allocation14 + $0x3c] sm:$0xff]
        %v1538 = vld [vmem:[#allocation14 + $0x44] sm:$0xf]
        %v1539 = vld [vmem:[#allocation14 + $0x48] sm:$0xff]
        %v1540 = vld [vmem:[#allocation14 + $0x50] sm:$0xf]
        %v1541 = vld [vmem:[#allocation14 + $0x54] sm:$0xff]
        %v1542 = vld [vmem:[#allocation14 + $0x5c] sm:$0xf]
        %v1543 = vld [vmem:[#allocation14 + $0x60] sm:$0xff]
        %v1544 = vld [vmem:[#allocation14 + $0x68] sm:$0xf]
        %v1545 = vld [vmem:[#allocation14 + $0x6c] sm:$0xff]
        %v1546 = vld [vmem:[#allocation14 + $0x74] sm:$0xf]
        %v1547 = vld [vmem:[#allocation14 + $0x78] sm:$0xff]
        %v1548 = vld [vmem:[#allocation14 + $0x80] sm:$0xf]
        %v1549 = vld [vmem:[#allocation14 + $0x84] sm:$0xff]
        %v1550 = vld [vmem:[#allocation14 + $0x8c] sm:$0xf]
        %v1551 = vld [vmem:[#allocation14 + $0x90] sm:$0xff]
        %v1552 = vld [vmem:[#allocation14 + $0x98] sm:$0xf]
        %v1553 = vld [vmem:[#allocation14 + $0x9c] sm:$0xff]
        %v1554 = vld [vmem:[#allocation14 + $0xa4] sm:$0xf]
        %v1555 = vld [vmem:[#allocation14 + $0xa8] sm:$0xff]
        %v1556 = vld [vmem:[#allocation14 + $0xb0] sm:$0xf]
        %v1557 = vld [vmem:[#allocation14 + $0xb4] sm:$0xff]
        %v1558 = vld [vmem:[#allocation14 + $0xbc] sm:$0xf]
        %v1559 = vld [vmem:[%s12] sm:$0x7]
        %v1561 = vperm.slane %v1559, 0
        %v1562 = vperm.slane %v1559, 1
        %v1563 = vperm.slane %v1559, 2
        %v1599 = vunpack.c.l.b16 %v1527
        %v1600 = vunpack.c.h.b16 %v1527
        %v1601 = vunpack.c.l.b16 %v1528
        %v1602 = vunpack.c.l.b16 %v1529
        %v1603 = vunpack.c.h.b16 %v1529
        %v1604 = vunpack.c.l.b16 %v1530
        %v1605 = vunpack.c.l.b16 %v1531
        %v1606 = vunpack.c.h.b16 %v1531
        %v1607 = vunpack.c.l.b16 %v1532
        %v1608 = vunpack.c.l.b16 %v1533
        %v1609 = vunpack.c.h.b16 %v1533
        %v1610 = vunpack.c.l.b16 %v1534
        %v1611 = vunpack.c.l.b16 %v1535
        %v1612 = vunpack.c.h.b16 %v1535
        %v1613 = vunpack.c.l.b16 %v1536
        %v1614 = vunpack.c.l.b16 %v1537
        %v1615 = vunpack.c.h.b16 %v1537
        %v1616 = vunpack.c.l.b16 %v1538
        %v1617 = vunpack.c.l.b16 %v1539
        %v1618 = vunpack.c.h.b16 %v1539
        %v1619 = vunpack.c.l.b16 %v1540
        %v1620 = vunpack.c.l.b16 %v1541
        %v1621 = vunpack.c.h.b16 %v1541
        %v1622 = vunpack.c.l.b16 %v1542
        %v1623 = vunpack.c.l.b16 %v1543
        %v1624 = vunpack.c.h.b16 %v1543
        %v1625 = vunpack.c.l.b16 %v1544
        %v1626 = vunpack.c.l.b16 %v1545
        %v1627 = vunpack.c.h.b16 %v1545
        %v1628 = vunpack.c.l.b16 %v1546
        %v1629 = vunpack.c.l.b16 %v1547
        %v1630 = vunpack.c.h.b16 %v1547
        %v1631 = vunpack.c.l.b16 %v1548
        %v1632 = vunpack.c.l.b16 %v1549
        %v1633 = vunpack.c.h.b16 %v1549
        %v1634 = vunpack.c.l.b16 %v1550
        %v1635 = vunpack.c.l.b16 %v1551
        %v1636 = vunpack.c.h.b16 %v1551
        %v1637 = vunpack.c.l.b16 %v1552
        %v1638 = vunpack.c.l.b16 %v1553
        %v1639 = vunpack.c.h.b16 %v1553
        %v1640 = vunpack.c.l.b16 %v1554
        %v1641 = vunpack.c.l.b16 %v1555
        %v1642 = vunpack.c.h.b16 %v1555
        %v1643 = vunpack.c.l.b16 %v1556
        %v1644 = vunpack.c.l.b16 %v1557
        %v1645 = vunpack.c.h.b16 %v1557
        %v1646 = vunpack.c.l.b16 %v1558
        %v1647 = vpack.c.b16 %v1602, %v1599
        %v1648 = vpack.c.b16 %v1603, %v1600
        %v1649 = vpack.c.b16 %v1604, %v1601
        %v1650 = vpack.c.b16 %v1608, %v1605
        %v1651 = vpack.c.b16 %v1609, %v1606
        %v1652 = vpack.c.b16 %v1610, %v1607
        %v1653 = vpack.c.b16 %v1614, %v1611
        %v1654 = vpack.c.b16 %v1615, %v1612
        %v1655 = vpack.c.b16 %v1616, %v1613
        %v1656 = vpack.c.b16 %v1620, %v1617
        %v1657 = vpack.c.b16 %v1621, %v1618
        %v1658 = vpack.c.b16 %v1622, %v1619
        %v1659 = vpack.c.b16 %v1626, %v1623
        %v1660 = vpack.c.b16 %v1627, %v1624
        %v1661 = vpack.c.b16 %v1628, %v1625
        %v1662 = vpack.c.b16 %v1632, %v1629
        %v1663 = vpack.c.b16 %v1633, %v1630
        %v1664 = vpack.c.b16 %v1634, %v1631
        %v1665 = vpack.c.b16 %v1638, %v1635
        %v1666 = vpack.c.b16 %v1639, %v1636
        %v1667 = vpack.c.b16 %v1640, %v1637
        %v1668 = vpack.c.b16 %v1644, %v1641
        %v1669 = vpack.c.b16 %v1645, %v1642
        %v1670 = vpack.c.b16 %v1646, %v1643
        %1695 = vmatpush.bf16.msra.mxu0 %v1668
        %1696 = vmatpush.bf16.msra.mxu0 %v1665
        %1697 = vmatpush.bf16.msra.mxu0 %v1662
        %1698 = vmatpush.bf16.msra.mxu0 %v1659
        %1699 = vmatpush.bf16.msra.mxu0 %v1656
        %1700 = vmatpush.bf16.msra.mxu0 %v1653
        %1701 = vmatpush.bf16.msra.mxu0 %v1650
        %1702 = vmatpush.bf16.msra.mxu0 %v1647
        %1703 = vmatmul.bf16.gmra.mxu0 %v1519
        %v1704 = vpop.f32.mrf.mxu0
        %v1705 = vadd.f32 %v1561, %v1704
        %v1706 = vpop.f32.mrf.mxu0
        %v1707 = vadd.f32 %v1561, %v1706
        %1708 = vmatmul.bf16.gmra.mxu0 %v1520
        %v1709 = vpop.f32.mrf.mxu0
        %v1710 = vadd.f32 %v1561, %v1709
        %v1711 = vpop.f32.mrf.mxu0
        %v1712 = vadd.f32 %v1561, %v1711
        %1713 = vmatmul.bf16.gmra.mxu0 %v1521
        %v1714 = vpop.f32.mrf.mxu0
        %v1715 = vadd.f32 %v1561, %v1714
        %v1716 = vpop.f32.mrf.mxu0
        %v1717 = vadd.f32 %v1561, %v1716
        %1718 = vmatmul.bf16.gmra.mxu0 %v1522
        %v1719 = vpop.f32.mrf.mxu0
        %v1720 = vadd.f32 %v1561, %v1719
        %v1721 = vpop.f32.mrf.mxu0
        %v1722 = vadd.f32 %v1561, %v1721
        %1723 = vmatmul.bf16.gmra.mxu0 %v1523
        %v1724 = vpop.f32.mrf.mxu0
        %v1725 = vadd.f32 %v1561, %v1724
        %v1726 = vpop.f32.mrf.mxu0
        %v1727 = vadd.f32 %v1561, %v1726
        %1728 = vmatmul.bf16.gmra.mxu0 %v1524
        %v1729 = vpop.f32.mrf.mxu0
        %v1730 = vadd.f32 %v1561, %v1729
        %v1731 = vpop.f32.mrf.mxu0
        %v1732 = vadd.f32 %v1561, %v1731
        %1733 = vmatmul.bf16.gmra.mxu0 %v1525
        %v1734 = vpop.f32.mrf.mxu0
        %v1735 = vadd.f32 %v1561, %v1734
        %v1736 = vpop.f32.mrf.mxu0
        %v1737 = vadd.f32 %v1561, %v1736
        %1738 = vmatmul.bf16.gmra.mxu0 %v1526
        %v1739 = vpop.f32.mrf.mxu0
        %v1740 = vadd.f32 %v1561, %v1739
        %v1741 = vpop.f32.mrf.mxu0
        %v1742 = vadd.f32 %v1561, %v1741
        %1743 = vdwg.mxu0
        %1744 = vmatpush.bf16.msra.mxu0 %v1669
        %1745 = vmatpush.bf16.msra.mxu0 %v1666
        %1746 = vmatpush.bf16.msra.mxu0 %v1663
        %1747 = vmatpush.bf16.msra.mxu0 %v1660
        %1748 = vmatpush.bf16.msra.mxu0 %v1657
        %1749 = vmatpush.bf16.msra.mxu0 %v1654
        %1750 = vmatpush.bf16.msra.mxu0 %v1651
        %1751 = vmatpush.bf16.msra.mxu0 %v1648
        %1752 = vmatmul.bf16.gmra.mxu0 %v1519
        %v1753 = vpop.f32.mrf.mxu0
        %v1754 = vadd.f32 %v1562, %v1753
        %v1755 = vpop.f32.mrf.mxu0
        %v1756 = vadd.f32 %v1562, %v1755
        %1757 = vmatmul.bf16.gmra.mxu0 %v1520
        %v1758 = vpop.f32.mrf.mxu0
        %v1759 = vadd.f32 %v1562, %v1758
        %v1760 = vpop.f32.mrf.mxu0
        %v1761 = vadd.f32 %v1562, %v1760
        %1762 = vmatmul.bf16.gmra.mxu0 %v1521
        %v1763 = vpop.f32.mrf.mxu0
        %v1764 = vadd.f32 %v1562, %v1763
        %v1765 = vpop.f32.mrf.mxu0
        %v1766 = vadd.f32 %v1562, %v1765
        %1767 = vmatmul.bf16.gmra.mxu0 %v1522
        %v1768 = vpop.f32.mrf.mxu0
        %v1769 = vadd.f32 %v1562, %v1768
        %v1770 = vpop.f32.mrf.mxu0
        %v1771 = vadd.f32 %v1562, %v1770
        %1772 = vmatmul.bf16.gmra.mxu0 %v1523
        %v1773 = vpop.f32.mrf.mxu0
        %v1774 = vadd.f32 %v1562, %v1773
        %v1775 = vpop.f32.mrf.mxu0
        %v1776 = vadd.f32 %v1562, %v1775
        %1777 = vmatmul.bf16.gmra.mxu0 %v1524
        %v1778 = vpop.f32.mrf.mxu0
        %v1779 = vadd.f32 %v1562, %v1778
        %v1780 = vpop.f32.mrf.mxu0
        %v1781 = vadd.f32 %v1562, %v1780
        %1782 = vmatmul.bf16.gmra.mxu0 %v1525
        %v1783 = vpop.f32.mrf.mxu0
        %v1784 = vadd.f32 %v1562, %v1783
        %v1785 = vpop.f32.mrf.mxu0
        %v1786 = vadd.f32 %v1562, %v1785
        %1787 = vmatmul.bf16.gmra.mxu0 %v1526
        %v1788 = vpop.f32.mrf.mxu0
        %v1789 = vadd.f32 %v1562, %v1788
        %v1790 = vpop.f32.mrf.mxu0
        %v1791 = vadd.f32 %v1562, %v1790
        %1792 = vdwg.mxu0
        %1793 = vmatpush.bf16.msra.mxu0 %v1670
        %1794 = vmatpush.bf16.msra.mxu0 %v1667
        %1795 = vmatpush.bf16.msra.mxu0 %v1664
        %1796 = vmatpush.bf16.msra.mxu0 %v1661
        %1797 = vmatpush.bf16.msra.mxu0 %v1658
        %1798 = vmatpush.bf16.msra.mxu0 %v1655
        %1799 = vmatpush.bf16.msra.mxu0 %v1652
        %1800 = vmatpush.bf16.msra.mxu0 %v1649
        %1801 = vmatmul.bf16.gmra.mxu0 %v1519
        %v1802 = vpop.f32.mrf.mxu0
        %v1803 = vadd.f32 %v1563, %v1802
        %v1804 = vpop.f32.mrf.mxu0
        %v1805 = vadd.f32 %v1563, %v1804
        %1806 = vmatmul.bf16.gmra.mxu0 %v1520
        %v1807 = vpop.f32.mrf.mxu0
        %v1808 = vadd.f32 %v1563, %v1807
        %v1809 = vpop.f32.mrf.mxu0
        %v1810 = vadd.f32 %v1563, %v1809
        %1811 = vmatmul.bf16.gmra.mxu0 %v1521
        %v1812 = vpop.f32.mrf.mxu0
        %v1813 = vadd.f32 %v1563, %v1812
        %v1814 = vpop.f32.mrf.mxu0
        %v1815 = vadd.f32 %v1563, %v1814
        %1816 = vmatmul.bf16.gmra.mxu0 %v1522
        %v1817 = vpop.f32.mrf.mxu0
        %v1818 = vadd.f32 %v1563, %v1817
        %v1819 = vpop.f32.mrf.mxu0
        %v1820 = vadd.f32 %v1563, %v1819
        %1821 = vmatmul.bf16.gmra.mxu0 %v1523
        %v1822 = vpop.f32.mrf.mxu0
        %v1823 = vadd.f32 %v1563, %v1822
        %v1824 = vpop.f32.mrf.mxu0
        %v1825 = vadd.f32 %v1563, %v1824
        %1826 = vmatmul.bf16.gmra.mxu0 %v1524
        %v1827 = vpop.f32.mrf.mxu0
        %v1828 = vadd.f32 %v1563, %v1827
        %v1829 = vpop.f32.mrf.mxu0
        %v1830 = vadd.f32 %v1563, %v1829
        %1831 = vmatmul.bf16.gmra.mxu0 %v1525
        %v1832 = vpop.f32.mrf.mxu0
        %v1833 = vadd.f32 %v1563, %v1832
        %v1834 = vpop.f32.mrf.mxu0
        %v1835 = vadd.f32 %v1563, %v1834
        %1836 = vmatmul.bf16.gmra.mxu0 %v1526
        %v1837 = vpop.f32.mrf.mxu0
        %v1838 = vadd.f32 %v1563, %v1837
        %v1839 = vpop.f32.mrf.mxu0
        %v1840 = vadd.f32 %v1563, %v1839
        %1841 = vdwg.mxu0
        %1842 = vmax.xlane.f32.xlu0 %v1705
        %v1843 = vpop.xlane.xlu0 %1842
        %1844 = vmax.xlane.f32.xlu0 %v1707
        %v1845 = vpop.xlane.xlu0 %1844
        %1846 = vmax.xlane.f32.xlu0 %v1710
        %v1847 = vpop.xlane.xlu0 %1846
        %1848 = vmax.xlane.f32.xlu0 %v1712
        %v1849 = vpop.xlane.xlu0 %1848
        %1850 = vmax.xlane.f32.xlu0 %v1715
        %v1851 = vpop.xlane.xlu0 %1850
        %1852 = vmax.xlane.f32.xlu0 %v1717
        %v1853 = vpop.xlane.xlu0 %1852
        %1854 = vmax.xlane.f32.xlu0 %v1720
        %v1855 = vpop.xlane.xlu0 %1854
        %1856 = vmax.xlane.f32.xlu0 %v1722
        %v1857 = vpop.xlane.xlu0 %1856
        %1858 = vmax.xlane.f32.xlu0 %v1725
        %v1859 = vpop.xlane.xlu0 %1858
        %1860 = vmax.xlane.f32.xlu0 %v1727
        %v1861 = vpop.xlane.xlu0 %1860
        %1862 = vmax.xlane.f32.xlu0 %v1730
        %v1863 = vpop.xlane.xlu0 %1862
        %1864 = vmax.xlane.f32.xlu0 %v1732
        %v1865 = vpop.xlane.xlu0 %1864
        %1866 = vmax.xlane.f32.xlu0 %v1735
        %v1867 = vpop.xlane.xlu0 %1866
        %1868 = vmax.xlane.f32.xlu0 %v1737
        %v1869 = vpop.xlane.xlu0 %1868
        %1870 = vmax.xlane.f32.xlu0 %v1740
        %v1871 = vpop.xlane.xlu0 %1870
        %1872 = vmax.xlane.f32.xlu0 %v1742
        %v1873 = vpop.xlane.xlu0 %1872
        %v1874 = vsub.f32 %v1705, %v1843
        %v1875 = vsub.f32 %v1707, %v1845
        %v1876 = vsub.f32 %v1710, %v1847
        %v1877 = vsub.f32 %v1712, %v1849
        %v1878 = vsub.f32 %v1715, %v1851
        %v1879 = vsub.f32 %v1717, %v1853
        %v1880 = vsub.f32 %v1720, %v1855
        %v1881 = vsub.f32 %v1722, %v1857
        %v1882 = vsub.f32 %v1725, %v1859
        %v1883 = vsub.f32 %v1727, %v1861
        %v1884 = vsub.f32 %v1730, %v1863
        %v1885 = vsub.f32 %v1732, %v1865
        %v1886 = vsub.f32 %v1735, %v1867
        %v1887 = vsub.f32 %v1737, %v1869
        %v1888 = vsub.f32 %v1740, %v1871
        %v1889 = vsub.f32 %v1742, %v1873
        %v1890 = vmul.f32 %v1874, 1.442695
        %v1891 = vpow.pop %v1890
        %v1892 = vmul.f32 %v1875, 1.442695
        %v1893 = vpow.pop %v1892
        %v1894 = vmul.f32 %v1876, 1.442695
        %v1895 = vpow.pop %v1894
        %v1896 = vmul.f32 %v1877, 1.442695
        %v1897 = vpow.pop %v1896
        %v1898 = vmul.f32 %v1878, 1.442695
        %v1899 = vpow.pop %v1898
        %v1900 = vmul.f32 %v1879, 1.442695
        %v1901 = vpow.pop %v1900
        %v1902 = vmul.f32 %v1880, 1.442695
        %v1903 = vpow.pop %v1902
        %v1904 = vmul.f32 %v1881, 1.442695
        %v1905 = vpow.pop %v1904
        %v1906 = vmul.f32 %v1882, 1.442695
        %v1907 = vpow.pop %v1906
        %v1908 = vmul.f32 %v1883, 1.442695
        %v1909 = vpow.pop %v1908
        %v1910 = vmul.f32 %v1884, 1.442695
        %v1911 = vpow.pop %v1910
        %v1912 = vmul.f32 %v1885, 1.442695
        %v1913 = vpow.pop %v1912
        %v1914 = vmul.f32 %v1886, 1.442695
        %v1915 = vpow.pop %v1914
        %v1916 = vmul.f32 %v1887, 1.442695
        %v1917 = vpow.pop %v1916
        %v1918 = vmul.f32 %v1888, 1.442695
        %v1919 = vpow.pop %v1918
        %v1920 = vmul.f32 %v1889, 1.442695
        %v1921 = vpow.pop %v1920
        %v1922 = vpack.c.bf16 %v1893, %v1891
        %v1923 = vpack.c.bf16 %v1897, %v1895
        %v1924 = vpack.c.bf16 %v1901, %v1899
        %v1925 = vpack.c.bf16 %v1905, %v1903
        %v1926 = vpack.c.bf16 %v1909, %v1907
        %v1927 = vpack.c.bf16 %v1913, %v1911
        %v1928 = vpack.c.bf16 %v1917, %v1915
        %v1929 = vpack.c.bf16 %v1921, %v1919
        %v1946 = vunpack.c.l.b16 %v1104
        %v1947 = vunpack.c.l.b16 %v1105
        %v1948 = vunpack.c.l.b16 %v1106
        %v1949 = vunpack.c.l.b16 %v1107
        %v1950 = vunpack.c.l.b16 %v1108
        %v1951 = vunpack.c.l.b16 %v1109
        %v1952 = vunpack.c.l.b16 %v1110
        %v1953 = vunpack.c.l.b16 %v1111
        %v1954 = vunpack.c.l.b16 %v1112
        %v1955 = vunpack.c.l.b16 %v1113
        %v1956 = vunpack.c.l.b16 %v1114
        %v1957 = vunpack.c.l.b16 %v1115
        %v1958 = vunpack.c.l.b16 %v1116
        %v1959 = vunpack.c.l.b16 %v1117
        %v1960 = vunpack.c.l.b16 %v1118
        %v1961 = vunpack.c.l.b16 %v1119
        %v1962 = vpack.c.b16 %v1947, %v1946
        %v1963 = vpack.c.b16 %v1949, %v1948
        %v1964 = vpack.c.b16 %v1951, %v1950
        %v1965 = vpack.c.b16 %v1953, %v1952
        %v1966 = vpack.c.b16 %v1955, %v1954
        %v1967 = vpack.c.b16 %v1957, %v1956
        %v1968 = vpack.c.b16 %v1959, %v1958
        %v1969 = vpack.c.b16 %v1961, %v1960
        %1978 = vmatpush.bf16.msra.mxu0 %v1969
        %1979 = vmatpush.bf16.msra.mxu0 %v1968
        %1980 = vmatpush.bf16.msra.mxu0 %v1967
        %1981 = vmatpush.bf16.msra.mxu0 %v1966
        %1982 = vmatpush.bf16.msra.mxu0 %v1965
        %1983 = vmatpush.bf16.msra.mxu0 %v1964
        %1984 = vmatpush.bf16.msra.mxu0 %v1963
        %1985 = vmatpush.bf16.msra.mxu0 %v1962
        %1986 = vmatmul.bf16.gmra.mxu0 %v1922
        %v1987 = vpop.f32.mrf.mxu0
        %v1988 = vadd.f32 0.0, %v1987
        %v1989 = vpop.f32.mrf.mxu0
        %v1990 = vadd.f32 0.0, %v1989
        %1991 = vmatmul.bf16.gmra.mxu0 %v1923
        %v1992 = vpop.f32.mrf.mxu0
        %v1993 = vadd.f32 0.0, %v1992
        %v1994 = vpop.f32.mrf.mxu0
        %v1995 = vadd.f32 0.0, %v1994
        %1996 = vmatmul.bf16.gmra.mxu0 %v1924
        %v1997 = vpop.f32.mrf.mxu0
        %v1998 = vadd.f32 0.0, %v1997
        %v1999 = vpop.f32.mrf.mxu0
        %v2000 = vadd.f32 0.0, %v1999
        %2001 = vmatmul.bf16.gmra.mxu0 %v1925
        %v2002 = vpop.f32.mrf.mxu0
        %v2003 = vadd.f32 0.0, %v2002
        %v2004 = vpop.f32.mrf.mxu0
        %v2005 = vadd.f32 0.0, %v2004
        %2006 = vmatmul.bf16.gmra.mxu0 %v1926
        %v2007 = vpop.f32.mrf.mxu0
        %v2008 = vadd.f32 0.0, %v2007
        %v2009 = vpop.f32.mrf.mxu0
        %v2010 = vadd.f32 0.0, %v2009
        %2011 = vmatmul.bf16.gmra.mxu0 %v1927
        %v2012 = vpop.f32.mrf.mxu0
        %v2013 = vadd.f32 0.0, %v2012
        %v2014 = vpop.f32.mrf.mxu0
        %v2015 = vadd.f32 0.0, %v2014
        %2016 = vmatmul.bf16.gmra.mxu0 %v1928
        %v2017 = vpop.f32.mrf.mxu0
        %v2018 = vadd.f32 0.0, %v2017
        %v2019 = vpop.f32.mrf.mxu0
        %v2020 = vadd.f32 0.0, %v2019
        %2021 = vmatmul.bf16.gmra.mxu0 %v1929
        %v2022 = vpop.f32.mrf.mxu0
        %v2023 = vadd.f32 0.0, %v2022
        %v2024 = vpop.f32.mrf.mxu0
        %v2025 = vadd.f32 0.0, %v2024
        %2026 = vdwg.mxu0
        %v2027 = vrcp.pop %v1988
        %v2028 = vmul.f32 %v1988, %v2027
        %v2029 = vsub.f32 1.0, %v2028
        %v2030 = vmul.f32 %v2027, %v2029
        %v2031 = vadd.f32 %v2027, %v2030
        %vm2032 = vweird.f32 %v1988
        %vm2033 = vweird.f32 %v2027
        %vm2034 = vmor %vm2032, %vm2033
        %v2035 = vsel %vm2034, %v2027, %v2031
        %v2036 = vand.u32 2147483647, %v1988
        %vm2037 = vcmp.eq.f32.partialorder %v2036, 8.507059e+37
        %v2038 = vand.u32 %v1988, 2147483648
        %v2039 = vor.u32 1.1754944e-38, %v2038
        %v2040 = vsel %vm2037, %v2039, %v2035
        %v2041 = vmul.f32 %v1891, %v2040
        %v2042 = vrcp.pop %v1990
        %v2043 = vmul.f32 %v1990, %v2042
        %v2044 = vsub.f32 1.0, %v2043
        %v2045 = vmul.f32 %v2042, %v2044
        %v2046 = vadd.f32 %v2042, %v2045
        %vm2047 = vweird.f32 %v1990
        %vm2048 = vweird.f32 %v2042
        %vm2049 = vmor %vm2047, %vm2048
        %v2050 = vsel %vm2049, %v2042, %v2046
        %v2051 = vand.u32 2147483647, %v1990
        %vm2052 = vcmp.eq.f32.partialorder %v2051, 8.507059e+37
        %v2053 = vand.u32 %v1990, 2147483648
        %v2054 = vor.u32 1.1754944e-38, %v2053
        %v2055 = vsel %vm2052, %v2054, %v2050
        %v2056 = vmul.f32 %v1893, %v2055
        %v2057 = vrcp.pop %v1993
        %v2058 = vmul.f32 %v1993, %v2057
        %v2059 = vsub.f32 1.0, %v2058
        %v2060 = vmul.f32 %v2057, %v2059
        %v2061 = vadd.f32 %v2057, %v2060
        %vm2062 = vweird.f32 %v1993
        %vm2063 = vweird.f32 %v2057
        %vm2064 = vmor %vm2062, %vm2063
        %v2065 = vsel %vm2064, %v2057, %v2061
        %v2066 = vand.u32 2147483647, %v1993
        %vm2067 = vcmp.eq.f32.partialorder %v2066, 8.507059e+37
        %v2068 = vand.u32 %v1993, 2147483648
        %v2069 = vor.u32 1.1754944e-38, %v2068
        %v2070 = vsel %vm2067, %v2069, %v2065
        %v2071 = vmul.f32 %v1895, %v2070
        %v2072 = vrcp.pop %v1995
        %v2073 = vmul.f32 %v1995, %v2072
        %v2074 = vsub.f32 1.0, %v2073
        %v2075 = vmul.f32 %v2072, %v2074
        %v2076 = vadd.f32 %v2072, %v2075
        %vm2077 = vweird.f32 %v1995
        %vm2078 = vweird.f32 %v2072
        %vm2079 = vmor %vm2077, %vm2078
        %v2080 = vsel %vm2079, %v2072, %v2076
        %v2081 = vand.u32 2147483647, %v1995
        %vm2082 = vcmp.eq.f32.partialorder %v2081, 8.507059e+37
        %v2083 = vand.u32 %v1995, 2147483648
        %v2084 = vor.u32 1.1754944e-38, %v2083
        %v2085 = vsel %vm2082, %v2084, %v2080
        %v2086 = vmul.f32 %v1897, %v2085
        %v2087 = vrcp.pop %v1998
        %v2088 = vmul.f32 %v1998, %v2087
        %v2089 = vsub.f32 1.0, %v2088
        %v2090 = vmul.f32 %v2087, %v2089
        %v2091 = vadd.f32 %v2087, %v2090
        %vm2092 = vweird.f32 %v1998
        %vm2093 = vweird.f32 %v2087
        %vm2094 = vmor %vm2092, %vm2093
        %v2095 = vsel %vm2094, %v2087, %v2091
        %v2096 = vand.u32 2147483647, %v1998
        %vm2097 = vcmp.eq.f32.partialorder %v2096, 8.507059e+37
        %v2098 = vand.u32 %v1998, 2147483648
        %v2099 = vor.u32 1.1754944e-38, %v2098
        %v2100 = vsel %vm2097, %v2099, %v2095
        %v2101 = vmul.f32 %v1899, %v2100
        %v2102 = vrcp.pop %v2000
        %v2103 = vmul.f32 %v2000, %v2102
        %v2104 = vsub.f32 1.0, %v2103
        %v2105 = vmul.f32 %v2102, %v2104
        %v2106 = vadd.f32 %v2102, %v2105
        %vm2107 = vweird.f32 %v2000
        %vm2108 = vweird.f32 %v2102
        %vm2109 = vmor %vm2107, %vm2108
        %v2110 = vsel %vm2109, %v2102, %v2106
        %v2111 = vand.u32 2147483647, %v2000
        %vm2112 = vcmp.eq.f32.partialorder %v2111, 8.507059e+37
        %v2113 = vand.u32 %v2000, 2147483648
        %v2114 = vor.u32 1.1754944e-38, %v2113
        %v2115 = vsel %vm2112, %v2114, %v2110
        %v2116 = vmul.f32 %v1901, %v2115
        %v2117 = vrcp.pop %v2003
        %v2118 = vmul.f32 %v2003, %v2117
        %v2119 = vsub.f32 1.0, %v2118
        %v2120 = vmul.f32 %v2117, %v2119
        %v2121 = vadd.f32 %v2117, %v2120
        %vm2122 = vweird.f32 %v2003
        %vm2123 = vweird.f32 %v2117
        %vm2124 = vmor %vm2122, %vm2123
        %v2125 = vsel %vm2124, %v2117, %v2121
        %v2126 = vand.u32 2147483647, %v2003
        %vm2127 = vcmp.eq.f32.partialorder %v2126, 8.507059e+37
        %v2128 = vand.u32 %v2003, 2147483648
        %v2129 = vor.u32 1.1754944e-38, %v2128
        %v2130 = vsel %vm2127, %v2129, %v2125
        %v2131 = vmul.f32 %v1903, %v2130
        %v2132 = vrcp.pop %v2005
        %v2133 = vmul.f32 %v2005, %v2132
        %v2134 = vsub.f32 1.0, %v2133
        %v2135 = vmul.f32 %v2132, %v2134
        %v2136 = vadd.f32 %v2132, %v2135
        %vm2137 = vweird.f32 %v2005
        %vm2138 = vweird.f32 %v2132
        %vm2139 = vmor %vm2137, %vm2138
        %v2140 = vsel %vm2139, %v2132, %v2136
        %v2141 = vand.u32 2147483647, %v2005
        %vm2142 = vcmp.eq.f32.partialorder %v2141, 8.507059e+37
        %v2143 = vand.u32 %v2005, 2147483648
        %v2144 = vor.u32 1.1754944e-38, %v2143
        %v2145 = vsel %vm2142, %v2144, %v2140
        %v2146 = vmul.f32 %v1905, %v2145
        %v2147 = vrcp.pop %v2008
        %v2148 = vmul.f32 %v2008, %v2147
        %v2149 = vsub.f32 1.0, %v2148
        %v2150 = vmul.f32 %v2147, %v2149
        %v2151 = vadd.f32 %v2147, %v2150
        %vm2152 = vweird.f32 %v2008
        %vm2153 = vweird.f32 %v2147
        %vm2154 = vmor %vm2152, %vm2153
        %v2155 = vsel %vm2154, %v2147, %v2151
        %v2156 = vand.u32 2147483647, %v2008
        %vm2157 = vcmp.eq.f32.partialorder %v2156, 8.507059e+37
        %v2158 = vand.u32 %v2008, 2147483648
        %v2159 = vor.u32 1.1754944e-38, %v2158
        %v2160 = vsel %vm2157, %v2159, %v2155
        %v2161 = vmul.f32 %v1907, %v2160
        %v2162 = vrcp.pop %v2010
        %v2163 = vmul.f32 %v2010, %v2162
        %v2164 = vsub.f32 1.0, %v2163
        %v2165 = vmul.f32 %v2162, %v2164
        %v2166 = vadd.f32 %v2162, %v2165
        %vm2167 = vweird.f32 %v2010
        %vm2168 = vweird.f32 %v2162
        %vm2169 = vmor %vm2167, %vm2168
        %v2170 = vsel %vm2169, %v2162, %v2166
        %v2171 = vand.u32 2147483647, %v2010
        %vm2172 = vcmp.eq.f32.partialorder %v2171, 8.507059e+37
        %v2173 = vand.u32 %v2010, 2147483648
        %v2174 = vor.u32 1.1754944e-38, %v2173
        %v2175 = vsel %vm2172, %v2174, %v2170
        %v2176 = vmul.f32 %v1909, %v2175
        %v2177 = vrcp.pop %v2013
        %v2178 = vmul.f32 %v2013, %v2177
        %v2179 = vsub.f32 1.0, %v2178
        %v2180 = vmul.f32 %v2177, %v2179
        %v2181 = vadd.f32 %v2177, %v2180
        %vm2182 = vweird.f32 %v2013
        %vm2183 = vweird.f32 %v2177
        %vm2184 = vmor %vm2182, %vm2183
        %v2185 = vsel %vm2184, %v2177, %v2181
        %v2186 = vand.u32 2147483647, %v2013
        %vm2187 = vcmp.eq.f32.partialorder %v2186, 8.507059e+37
        %v2188 = vand.u32 %v2013, 2147483648
        %v2189 = vor.u32 1.1754944e-38, %v2188
        %v2190 = vsel %vm2187, %v2189, %v2185
        %v2191 = vmul.f32 %v1911, %v2190
        %v2192 = vrcp.pop %v2015
        %v2193 = vmul.f32 %v2015, %v2192
        %v2194 = vsub.f32 1.0, %v2193
        %v2195 = vmul.f32 %v2192, %v2194
        %v2196 = vadd.f32 %v2192, %v2195
        %vm2197 = vweird.f32 %v2015
        %vm2198 = vweird.f32 %v2192
        %vm2199 = vmor %vm2197, %vm2198
        %v2200 = vsel %vm2199, %v2192, %v2196
        %v2201 = vand.u32 2147483647, %v2015
        %vm2202 = vcmp.eq.f32.partialorder %v2201, 8.507059e+37
        %v2203 = vand.u32 %v2015, 2147483648
        %v2204 = vor.u32 1.1754944e-38, %v2203
        %v2205 = vsel %vm2202, %v2204, %v2200
        %v2206 = vmul.f32 %v1913, %v2205
        %v2207 = vrcp.pop %v2018
        %v2208 = vmul.f32 %v2018, %v2207
        %v2209 = vsub.f32 1.0, %v2208
        %v2210 = vmul.f32 %v2207, %v2209
        %v2211 = vadd.f32 %v2207, %v2210
        %vm2212 = vweird.f32 %v2018
        %vm2213 = vweird.f32 %v2207
        %vm2214 = vmor %vm2212, %vm2213
        %v2215 = vsel %vm2214, %v2207, %v2211
        %v2216 = vand.u32 2147483647, %v2018
        %vm2217 = vcmp.eq.f32.partialorder %v2216, 8.507059e+37
        %v2218 = vand.u32 %v2018, 2147483648
        %v2219 = vor.u32 1.1754944e-38, %v2218
        %v2220 = vsel %vm2217, %v2219, %v2215
        %v2221 = vmul.f32 %v1915, %v2220
        %v2222 = vrcp.pop %v2020
        %v2223 = vmul.f32 %v2020, %v2222
        %v2224 = vsub.f32 1.0, %v2223
        %v2225 = vmul.f32 %v2222, %v2224
        %v2226 = vadd.f32 %v2222, %v2225
        %vm2227 = vweird.f32 %v2020
        %vm2228 = vweird.f32 %v2222
        %vm2229 = vmor %vm2227, %vm2228
        %v2230 = vsel %vm2229, %v2222, %v2226
        %v2231 = vand.u32 2147483647, %v2020
        %vm2232 = vcmp.eq.f32.partialorder %v2231, 8.507059e+37
        %v2233 = vand.u32 %v2020, 2147483648
        %v2234 = vor.u32 1.1754944e-38, %v2233
        %v2235 = vsel %vm2232, %v2234, %v2230
        %v2236 = vmul.f32 %v1917, %v2235
        %v2237 = vrcp.pop %v2023
        %v2238 = vmul.f32 %v2023, %v2237
        %v2239 = vsub.f32 1.0, %v2238
        %v2240 = vmul.f32 %v2237, %v2239
        %v2241 = vadd.f32 %v2237, %v2240
        %vm2242 = vweird.f32 %v2023
        %vm2243 = vweird.f32 %v2237
        %vm2244 = vmor %vm2242, %vm2243
        %v2245 = vsel %vm2244, %v2237, %v2241
        %v2246 = vand.u32 2147483647, %v2023
        %vm2247 = vcmp.eq.f32.partialorder %v2246, 8.507059e+37
        %v2248 = vand.u32 %v2023, 2147483648
        %v2249 = vor.u32 1.1754944e-38, %v2248
        %v2250 = vsel %vm2247, %v2249, %v2245
        %v2251 = vmul.f32 %v1919, %v2250
        %v2252 = vrcp.pop %v2025
        %v2253 = vmul.f32 %v2025, %v2252
        %v2254 = vsub.f32 1.0, %v2253
        %v2255 = vmul.f32 %v2252, %v2254
        %v2256 = vadd.f32 %v2252, %v2255
        %vm2257 = vweird.f32 %v2025
        %vm2258 = vweird.f32 %v2252
        %vm2259 = vmor %vm2257, %vm2258
        %v2260 = vsel %vm2259, %v2252, %v2256
        %v2261 = vand.u32 2147483647, %v2025
        %vm2262 = vcmp.eq.f32.partialorder %v2261, 8.507059e+37
        %v2263 = vand.u32 %v2025, 2147483648
        %v2264 = vor.u32 1.1754944e-38, %v2263
        %v2265 = vsel %vm2262, %v2264, %v2260
        %v2266 = vmul.f32 %v1921, %v2265
        %v2267 = vmul.f32 %v2041, 0.17677669
        %v2268 = vmul.f32 %v2056, 0.17677669
        %v2269 = vmul.f32 %v2071, 0.17677669
        %v2270 = vmul.f32 %v2086, 0.17677669
        %v2271 = vmul.f32 %v2101, 0.17677669
        %v2272 = vmul.f32 %v2116, 0.17677669
        %v2273 = vmul.f32 %v2131, 0.17677669
        %v2274 = vmul.f32 %v2146, 0.17677669
        %v2275 = vmul.f32 %v2161, 0.17677669
        %v2276 = vmul.f32 %v2176, 0.17677669
        %v2277 = vmul.f32 %v2191, 0.17677669
        %v2278 = vmul.f32 %v2206, 0.17677669
        %v2279 = vmul.f32 %v2221, 0.17677669
        %v2280 = vmul.f32 %v2236, 0.17677669
        %v2281 = vmul.f32 %v2251, 0.17677669
        %v2282 = vmul.f32 %v2266, 0.17677669
        %v2283 = vmax.f32 %v1754, %v1764
        %v2284 = vmax.f32 %v1756, %v1766
        %v2285 = vmax.f32 %v1759, %v1769
        %v2286 = vmax.f32 %v1761, %v1771
        %v2287 = vmax.f32 %v2283, %v1774
        %v2288 = vmax.f32 %v2284, %v1776
        %v2289 = vmax.f32 %v2285, %v1779
        %v2290 = vmax.f32 %v2286, %v1781
        %v2291 = vmax.f32 %v2287, %v1784
        %v2292 = vmax.f32 %v2288, %v1786
        %v2293 = vmax.f32 %v2289, %v1789
        %v2294 = vmax.f32 %v2290, %v1791
        %v2295 = vmax.f32 %v2291, %v2292
        %v2296 = vmax.f32 %v2293, %v2294
        %v2297 = vmax.f32 %v2295, %v2296
        %v2298 = vrot.slane %v2297, 4
        %v2299 = vmax.f32 %v2297, %v2298
        %v2300 = vrot.slane %v2299, 2
        %v2301 = vmax.f32 %v2299, %v2300
        %v2302 = vrot.slane %v2301, 1
        %v2303 = vmax.f32 %v2301, %v2302
        %v2304 = vsub.f32 %v1754, %v2303
        %v2305 = vsub.f32 %v1756, %v2303
        %v2306 = vsub.f32 %v1759, %v2303
        %v2307 = vsub.f32 %v1761, %v2303
        %v2308 = vsub.f32 %v1764, %v2303
        %v2309 = vsub.f32 %v1766, %v2303
        %v2310 = vsub.f32 %v1769, %v2303
        %v2311 = vsub.f32 %v1771, %v2303
        %v2312 = vsub.f32 %v1774, %v2303
        %v2313 = vsub.f32 %v1776, %v2303
        %v2314 = vsub.f32 %v1779, %v2303
        %v2315 = vsub.f32 %v1781, %v2303
        %v2316 = vsub.f32 %v1784, %v2303
        %v2317 = vsub.f32 %v1786, %v2303
        %v2318 = vsub.f32 %v1789, %v2303
        %v2319 = vsub.f32 %v1791, %v2303
        %v2320 = vmul.f32 %v2304, 1.442695
        %v2321 = vpow.pop %v2320
        %v2322 = vmul.f32 %v2305, 1.442695
        %v2323 = vpow.pop %v2322
        %v2324 = vmul.f32 %v2306, 1.442695
        %v2325 = vpow.pop %v2324
        %v2326 = vmul.f32 %v2307, 1.442695
        %v2327 = vpow.pop %v2326
        %v2328 = vmul.f32 %v2308, 1.442695
        %v2329 = vpow.pop %v2328
        %v2330 = vmul.f32 %v2309, 1.442695
        %v2331 = vpow.pop %v2330
        %v2332 = vmul.f32 %v2310, 1.442695
        %v2333 = vpow.pop %v2332
        %v2334 = vmul.f32 %v2311, 1.442695
        %v2335 = vpow.pop %v2334
        %v2336 = vmul.f32 %v2312, 1.442695
        %v2337 = vpow.pop %v2336
        %v2338 = vmul.f32 %v2313, 1.442695
        %v2339 = vpow.pop %v2338
        %v2340 = vmul.f32 %v2314, 1.442695
        %v2341 = vpow.pop %v2340
        %v2342 = vmul.f32 %v2315, 1.442695
        %v2343 = vpow.pop %v2342
        %v2344 = vmul.f32 %v2316, 1.442695
        %v2345 = vpow.pop %v2344
        %v2346 = vmul.f32 %v2317, 1.442695
        %v2347 = vpow.pop %v2346
        %v2348 = vmul.f32 %v2318, 1.442695
        %v2349 = vpow.pop %v2348
        %v2350 = vmul.f32 %v2319, 1.442695
        %v2351 = vpow.pop %v2350
        %v2352 = vadd.f32 %v2321, %v2323
        %v2353 = vadd.f32 %v2352, %v2325
        %v2354 = vadd.f32 %v2353, %v2327
        %v2355 = vadd.f32 %v2354, %v2329
        %v2356 = vadd.f32 %v2355, %v2331
        %v2357 = vadd.f32 %v2356, %v2333
        %v2358 = vadd.f32 %v2357, %v2335
        %v2359 = vadd.f32 %v2358, %v2337
        %v2360 = vadd.f32 %v2359, %v2339
        %v2361 = vadd.f32 %v2360, %v2341
        %v2362 = vadd.f32 %v2361, %v2343
        %v2363 = vadd.f32 %v2362, %v2345
        %v2364 = vadd.f32 %v2363, %v2347
        %v2365 = vadd.f32 %v2364, %v2349
        %v2366 = vadd.f32 %v2365, %v2351
        %v2367 = vrot.slane %v2366, 4
        %v2368 = vadd.f32 %v2366, %v2367
        %v2369 = vrot.slane %v2368, 2
        %v2370 = vadd.f32 %v2368, %v2369
        %v2371 = vrot.slane %v2370, 1
        %v2372 = vadd.f32 %v2370, %v2371
        %v2373 = vrcp.pop %v2372
        %v2374 = vmul.f32 %v2372, %v2373
        %v2375 = vsub.f32 1.0, %v2374
        %v2376 = vmul.f32 %v2373, %v2375
        %v2377 = vadd.f32 %v2373, %v2376
        %vm2378 = vweird.f32 %v2372
        %vm2379 = vweird.f32 %v2373
        %vm2380 = vmor %vm2378, %vm2379
        %v2381 = vsel %vm2380, %v2373, %v2377
        %v2382 = vand.u32 2147483647, %v2372
        %vm2383 = vcmp.eq.f32.partialorder %v2382, 8.507059e+37
        %v2384 = vand.u32 %v2372, 2147483648
        %v2385 = vor.u32 1.1754944e-38, %v2384
        %v2386 = vsel %vm2383, %v2385, %v2381
        %v2387 = vmul.f32 %v2321, %v2386
        %v2388 = vmul.f32 %v2323, %v2386
        %v2389 = vmul.f32 %v2325, %v2386
        %v2390 = vmul.f32 %v2327, %v2386
        %v2391 = vmul.f32 %v2329, %v2386
        %v2392 = vmul.f32 %v2331, %v2386
        %v2393 = vmul.f32 %v2333, %v2386
        %v2394 = vmul.f32 %v2335, %v2386
        %v2395 = vmul.f32 %v2337, %v2386
        %v2396 = vmul.f32 %v2339, %v2386
        %v2397 = vmul.f32 %v2341, %v2386
        %v2398 = vmul.f32 %v2343, %v2386
        %v2399 = vmul.f32 %v2345, %v2386
        %v2400 = vmul.f32 %v2347, %v2386
        %v2401 = vmul.f32 %v2349, %v2386
        %v2402 = vmul.f32 %v2351, %v2386
        %v2403 = vpack.c.bf16 %v2388, %v2387
        %v2404 = vpack.c.bf16 %v2390, %v2389
        %v2405 = vpack.c.bf16 %v2392, %v2391
        %v2406 = vpack.c.bf16 %v2394, %v2393
        %v2407 = vpack.c.bf16 %v2396, %v2395
        %v2408 = vpack.c.bf16 %v2398, %v2397
        %v2409 = vpack.c.bf16 %v2400, %v2399
        %v2410 = vpack.c.bf16 %v2402, %v2401
        %v2411 = vpack.c.bf16 %v1805, %v1803
        %v2412 = vpack.c.bf16 %v1810, %v1808
        %v2413 = vpack.c.bf16 %v1815, %v1813
        %v2414 = vpack.c.bf16 %v1820, %v1818
        %v2415 = vpack.c.bf16 %v1825, %v1823
        %v2416 = vpack.c.bf16 %v1830, %v1828
        %v2417 = vpack.c.bf16 %v1835, %v1833
        %v2418 = vpack.c.bf16 %v1840, %v1838
        %2419 = vxpose.xlu0.c.b16.start [1/8] %v2403, 128
        %2420 = vxpose.xlu0.c.b16.cont [2/8] %v2404, 128
        %2421 = vxpose.xlu0.c.b16.cont [3/8] %v2405, 128
        %2422 = vxpose.xlu0.c.b16.cont [4/8] %v2406, 128
        %2423 = vxpose.xlu0.c.b16.cont [5/8] %v2407, 128
        %2424 = vxpose.xlu0.c.b16.cont [6/8] %v2408, 128
        %2425 = vxpose.xlu0.c.b16.cont [7/8] %v2409, 128
        %2426 = vxpose.xlu0.c.b16.end [8/8] %v2410, 128
        %v2427 = vpop.trf.xlu0
        %v2428 = vpop.trf.xlu0
        %v2429 = vpop.trf.xlu0
        %v2430 = vpop.trf.xlu0
        %v2431 = vpop.trf.xlu0
        %v2432 = vpop.trf.xlu0
        %v2433 = vpop.trf.xlu0
        %v2434 = vpop.trf.xlu0
        %2435 = vmatpush.bf16.msra.mxu0 %v2418
        %2436 = vmatpush.bf16.msra.mxu0 %v2417
        %2437 = vmatpush.bf16.msra.mxu0 %v2416
        %2438 = vmatpush.bf16.msra.mxu0 %v2415
        %2439 = vmatpush.bf16.msra.mxu0 %v2414
        %2440 = vmatpush.bf16.msra.mxu0 %v2413
        %2441 = vmatpush.bf16.msra.mxu0 %v2412
        %2442 = vmatpush.bf16.msra.mxu0 %v2411
        %2443 = vmatmul.bf16.gmra.mxu0 %v2427
        %v2444 = vpop.f32.mrf.mxu0
        %v2445 = vadd.f32 0.0, %v2444
        %v2446 = vpop.f32.mrf.mxu0
        %v2447 = vadd.f32 0.0, %v2446
        %2448 = vmatmul.bf16.gmra.mxu0 %v2428
        %v2449 = vpop.f32.mrf.mxu0
        %v2450 = vadd.f32 0.0, %v2449
        %v2451 = vpop.f32.mrf.mxu0
        %v2452 = vadd.f32 0.0, %v2451
        %2453 = vmatmul.bf16.gmra.mxu0 %v2429
        %v2454 = vpop.f32.mrf.mxu0
        %v2455 = vadd.f32 0.0, %v2454
        %v2456 = vpop.f32.mrf.mxu0
        %v2457 = vadd.f32 0.0, %v2456
        %2458 = vmatmul.bf16.gmra.mxu0 %v2430
        %v2459 = vpop.f32.mrf.mxu0
        %v2460 = vadd.f32 0.0, %v2459
        %v2461 = vpop.f32.mrf.mxu0
        %v2462 = vadd.f32 0.0, %v2461
        %2463 = vmatmul.bf16.gmra.mxu0 %v2431
        %v2464 = vpop.f32.mrf.mxu0
        %v2465 = vadd.f32 0.0, %v2464
        %v2466 = vpop.f32.mrf.mxu0
        %v2467 = vadd.f32 0.0, %v2466
        %2468 = vmatmul.bf16.gmra.mxu0 %v2432
        %v2469 = vpop.f32.mrf.mxu0
        %v2470 = vadd.f32 0.0, %v2469
        %v2471 = vpop.f32.mrf.mxu0
        %v2472 = vadd.f32 0.0, %v2471
        %2473 = vmatmul.bf16.gmra.mxu0 %v2433
        %v2474 = vpop.f32.mrf.mxu0
        %v2475 = vadd.f32 0.0, %v2474
        %v2476 = vpop.f32.mrf.mxu0
        %v2477 = vadd.f32 0.0, %v2476
        %2478 = vmatmul.bf16.gmra.mxu0 %v2434
        %v2479 = vpop.f32.mrf.mxu0
        %v2480 = vadd.f32 0.0, %v2479
        %v2481 = vpop.f32.mrf.mxu0
        %v2482 = vadd.f32 0.0, %v2481
        %2483 = vdwg.mxu0
        %v2484 = vmul.f32 %v2445, %v1120
        %v2485 = vmul.f32 %v2447, %v1121
        %v2486 = vmul.f32 %v2450, %v1122
        %v2487 = vmul.f32 %v2452, %v1123
        %v2488 = vmul.f32 %v2455, %v1124
        %v2489 = vmul.f32 %v2457, %v1125
        %v2490 = vmul.f32 %v2460, %v1126
        %v2491 = vmul.f32 %v2462, %v1127
        %v2492 = vmul.f32 %v2465, %v1128
        %v2493 = vmul.f32 %v2467, %v1129
        %v2494 = vmul.f32 %v2470, %v1130
        %v2495 = vmul.f32 %v2472, %v1131
        %v2496 = vmul.f32 %v2475, %v1132
        %v2497 = vmul.f32 %v2477, %v1133
        %v2498 = vmul.f32 %v2480, %v1134
        %v2499 = vmul.f32 %v2482, %v1135
        %v2500 = vpack.c.bf16 %v2268, %v2267
        %v2501 = vpack.c.bf16 %v2270, %v2269
        %v2502 = vpack.c.bf16 %v2272, %v2271
        %v2503 = vpack.c.bf16 %v2274, %v2273
        %v2504 = vpack.c.bf16 %v2276, %v2275
        %v2505 = vpack.c.bf16 %v2278, %v2277
        %v2506 = vpack.c.bf16 %v2280, %v2279
        %v2507 = vpack.c.bf16 %v2282, %v2281
        %v2508 = vpack.c.bf16 %v2485, %v2484
        %v2509 = vpack.c.bf16 %v2487, %v2486
        %v2510 = vpack.c.bf16 %v2489, %v2488
        %v2511 = vpack.c.bf16 %v2491, %v2490
        %v2512 = vpack.c.bf16 %v2493, %v2492
        %v2513 = vpack.c.bf16 %v2495, %v2494
        %v2514 = vpack.c.bf16 %v2497, %v2496
        %v2515 = vpack.c.bf16 %v2499, %v2498
        %2516 = vmatpush.bf16.msra.mxu0 %v2515
        %2517 = vmatpush.bf16.msra.mxu0 %v2514
        %2518 = vmatpush.bf16.msra.mxu0 %v2513
        %2519 = vmatpush.bf16.msra.mxu0 %v2512
        %2520 = vmatpush.bf16.msra.mxu0 %v2511
        %2521 = vmatpush.bf16.msra.mxu0 %v2510
        %2522 = vmatpush.bf16.msra.mxu0 %v2509
        %2523 = vmatpush.bf16.msra.mxu0 %v2508
        %2524 = vmatmul.bf16.gmra.mxu0 %v2500
        %v2525 = vpop.f32.mrf.mxu0
        %v2526 = vadd.f32 0.0, %v2525
        %v2527 = vpop.f32.mrf.mxu0
        %v2528 = vadd.f32 0.0, %v2527
        %2529 = vmatmul.bf16.gmra.mxu0 %v2501
        %v2530 = vpop.f32.mrf.mxu0
        %v2531 = vadd.f32 0.0, %v2530
        %v2532 = vpop.f32.mrf.mxu0
        %v2533 = vadd.f32 0.0, %v2532
        %2534 = vmatmul.bf16.gmra.mxu0 %v2502
        %v2535 = vpop.f32.mrf.mxu0
        %v2536 = vadd.f32 0.0, %v2535
        %v2537 = vpop.f32.mrf.mxu0
        %v2538 = vadd.f32 0.0, %v2537
        %2539 = vmatmul.bf16.gmra.mxu0 %v2503
        %v2540 = vpop.f32.mrf.mxu0
        %v2541 = vadd.f32 0.0, %v2540
        %v2542 = vpop.f32.mrf.mxu0
        %v2543 = vadd.f32 0.0, %v2542
        %2544 = vmatmul.bf16.gmra.mxu0 %v2504
        %v2545 = vpop.f32.mrf.mxu0
        %v2546 = vadd.f32 0.0, %v2545
        %v2547 = vpop.f32.mrf.mxu0
        %v2548 = vadd.f32 0.0, %v2547
        %2549 = vmatmul.bf16.gmra.mxu0 %v2505
        %v2550 = vpop.f32.mrf.mxu0
        %v2551 = vadd.f32 0.0, %v2550
        %v2552 = vpop.f32.mrf.mxu0
        %v2553 = vadd.f32 0.0, %v2552
        %2554 = vmatmul.bf16.gmra.mxu0 %v2506
        %v2555 = vpop.f32.mrf.mxu0
        %v2556 = vadd.f32 0.0, %v2555
        %v2557 = vpop.f32.mrf.mxu0
        %v2558 = vadd.f32 0.0, %v2557
        %2559 = vmatmul.bf16.gmra.mxu0 %v2507
        %v2560 = vpop.f32.mrf.mxu0
        %v2561 = vadd.f32 0.0, %v2560
        %v2562 = vpop.f32.mrf.mxu0
        %v2563 = vadd.f32 0.0, %v2562
        %2564 = vdwg.mxu0
        %v2565 = vpack.c.bf16 %v2528, %v2526
        %v2566 = vpack.c.bf16 %v2533, %v2531
        %v2567 = vpack.c.bf16 %v2538, %v2536
        %v2568 = vpack.c.bf16 %v2543, %v2541
        %v2569 = vpack.c.bf16 %v2548, %v2546
        %v2570 = vpack.c.bf16 %v2553, %v2551
        %v2571 = vpack.c.bf16 %v2558, %v2556
        %v2572 = vpack.c.bf16 %v2563, %v2561
        %v2573 = vld [vmem:[%s13] sm:$0xf]
        %v2574 = vld [vmem:[%s13 + $0x4] sm:$0xf]
        %v2575 = vld [vmem:[%s13 + $0x8] sm:$0xf]
        %v2576 = vld [vmem:[%s13 + $0xc] sm:$0xf]
        %v2577 = vld [vmem:[%s13 + $0x10] sm:$0xf]
        %v2578 = vld [vmem:[%s13 + $0x14] sm:$0xf]
        %v2579 = vld [vmem:[%s13 + $0x18] sm:$0xf]
        %v2580 = vld [vmem:[%s13 + $0x1c] sm:$0xf]
        %v2581 = vld [vmem:[%s13 + $0x20] sm:$0xf]
        %v2582 = vld [vmem:[%s13 + $0x24] sm:$0xf]
        %v2583 = vld [vmem:[%s13 + $0x28] sm:$0xf]
        %v2584 = vld [vmem:[%s13 + $0x2c] sm:$0xf]
        %v2585 = vld [vmem:[%s13 + $0x30] sm:$0xf]
        %v2586 = vld [vmem:[%s13 + $0x34] sm:$0xf]
        %v2587 = vld [vmem:[%s13 + $0x38] sm:$0xf]
        %v2588 = vld [vmem:[%s13 + $0x3c] sm:$0xf]
        %v2589 = vld [vmem:[#allocation16] sm:$0x1]
        %v2591 = vperm.slane %v2589, 0
        %v2609 = vunpack.c.l.b16 %v2573
        %v2610 = vunpack.c.l.b16 %v2574
        %v2611 = vunpack.c.l.b16 %v2575
        %v2612 = vunpack.c.l.b16 %v2576
        %v2613 = vunpack.c.l.b16 %v2577
        %v2614 = vunpack.c.l.b16 %v2578
        %v2615 = vunpack.c.l.b16 %v2579
        %v2616 = vunpack.c.l.b16 %v2580
        %v2617 = vunpack.c.l.b16 %v2581
        %v2618 = vunpack.c.l.b16 %v2582
        %v2619 = vunpack.c.l.b16 %v2583
        %v2620 = vunpack.c.l.b16 %v2584
        %v2621 = vunpack.c.l.b16 %v2585
        %v2622 = vunpack.c.l.b16 %v2586
        %v2623 = vunpack.c.l.b16 %v2587
        %v2624 = vunpack.c.l.b16 %v2588
        %v2625 = vpack.c.b16 %v2610, %v2609
        %v2626 = vpack.c.b16 %v2612, %v2611
        %v2627 = vpack.c.b16 %v2614, %v2613
        %v2628 = vpack.c.b16 %v2616, %v2615
        %v2629 = vpack.c.b16 %v2618, %v2617
        %v2630 = vpack.c.b16 %v2620, %v2619
        %v2631 = vpack.c.b16 %v2622, %v2621
        %v2632 = vpack.c.b16 %v2624, %v2623
        %2641 = vmatpush.bf16.msra.mxu0 %v2632
        %2642 = vmatpush.bf16.msra.mxu0 %v2631
        %2643 = vmatpush.bf16.msra.mxu0 %v2630
        %2644 = vmatpush.bf16.msra.mxu0 %v2629
        %2645 = vmatpush.bf16.msra.mxu0 %v2628
        %2646 = vmatpush.bf16.msra.mxu0 %v2627
        %2647 = vmatpush.bf16.msra.mxu0 %v2626
        %2648 = vmatpush.bf16.msra.mxu0 %v2625
        %2649 = vmatmul.bf16.gmra.mxu0 %v2565
        %v2650 = vpop.f32.mrf.mxu0
        %v2651 = vadd.f32 %v2591, %v2650
        %v2652 = vpop.f32.mrf.mxu0
        %v2653 = vadd.f32 %v2591, %v2652
        %2654 = vmatmul.bf16.gmra.mxu0 %v2566
        %v2655 = vpop.f32.mrf.mxu0
        %v2656 = vadd.f32 %v2591, %v2655
        %v2657 = vpop.f32.mrf.mxu0
        %v2658 = vadd.f32 %v2591, %v2657
        %2659 = vmatmul.bf16.gmra.mxu0 %v2567
        %v2660 = vpop.f32.mrf.mxu0
        %v2661 = vadd.f32 %v2591, %v2660
        %v2662 = vpop.f32.mrf.mxu0
        %v2663 = vadd.f32 %v2591, %v2662
        %2664 = vmatmul.bf16.gmra.mxu0 %v2568
        %v2665 = vpop.f32.mrf.mxu0
        %v2666 = vadd.f32 %v2591, %v2665
        %v2667 = vpop.f32.mrf.mxu0
        %v2668 = vadd.f32 %v2591, %v2667
        %2669 = vmatmul.bf16.gmra.mxu0 %v2569
        %v2670 = vpop.f32.mrf.mxu0
        %v2671 = vadd.f32 %v2591, %v2670
        %v2672 = vpop.f32.mrf.mxu0
        %v2673 = vadd.f32 %v2591, %v2672
        %2674 = vmatmul.bf16.gmra.mxu0 %v2570
        %v2675 = vpop.f32.mrf.mxu0
        %v2676 = vadd.f32 %v2591, %v2675
        %v2677 = vpop.f32.mrf.mxu0
        %v2678 = vadd.f32 %v2591, %v2677
        %2679 = vmatmul.bf16.gmra.mxu0 %v2571
        %v2680 = vpop.f32.mrf.mxu0
        %v2681 = vadd.f32 %v2591, %v2680
        %v2682 = vpop.f32.mrf.mxu0
        %v2683 = vadd.f32 %v2591, %v2682
        %2684 = vmatmul.bf16.gmra.mxu0 %v2572
        %v2685 = vpop.f32.mrf.mxu0
        %v2686 = vadd.f32 %v2591, %v2685
        %v2687 = vpop.f32.mrf.mxu0
        %v2688 = vadd.f32 %v2591, %v2687
        %2689 = vdwg.mxu0
        %v2690 = vadd.f32 %v1136, %v2651
        %v2691 = vadd.f32 %v1137, %v2653
        %v2692 = vadd.f32 %v1138, %v2656
        %v2693 = vadd.f32 %v1139, %v2658
        %v2694 = vadd.f32 %v1140, %v2661
        %v2695 = vadd.f32 %v1141, %v2663
        %v2696 = vadd.f32 %v1142, %v2666
        %v2697 = vadd.f32 %v1143, %v2668
        %v2698 = vadd.f32 %v1144, %v2671
        %v2699 = vadd.f32 %v1145, %v2673
        %v2700 = vadd.f32 %v1146, %v2676
        %v2701 = vadd.f32 %v1147, %v2678
        %v2702 = vadd.f32 %v1148, %v2681
        %v2703 = vadd.f32 %v1149, %v2683
        %v2704 = vadd.f32 %v1150, %v2686
        %v2705 = vadd.f32 %v1151, %v2688
        %2706 = vst [vmem:[#allocation2] sm:$0xff] %v2690
        %2707 = vst [vmem:[#allocation2 + $0x8] sm:$0xff] %v2691
        %2708 = vst [vmem:[#allocation2 + $0x10] sm:$0xff] %v2692
        %2709 = vst [vmem:[#allocation2 + $0x18] sm:$0xff] %v2693
        %2710 = vst [vmem:[#allocation2 + $0x20] sm:$0xff] %v2694
        %2711 = vst [vmem:[#allocation2 + $0x28] sm:$0xff] %v2695
        %2712 = vst [vmem:[#allocation2 + $0x30] sm:$0xff] %v2696
        %2713 = vst [vmem:[#allocation2 + $0x38] sm:$0xff] %v2697
        %2714 = vst [vmem:[#allocation2 + $0x40] sm:$0xff] %v2698
        %2715 = vst [vmem:[#allocation2 + $0x48] sm:$0xff] %v2699
        %2716 = vst [vmem:[#allocation2 + $0x50] sm:$0xff] %v2700
        %2717 = vst [vmem:[#allocation2 + $0x58] sm:$0xff] %v2701
        %2718 = vst [vmem:[#allocation2 + $0x60] sm:$0xff] %v2702
        %2719 = vst [vmem:[#allocation2 + $0x68] sm:$0xff] %v2703
        %2720 = vst [vmem:[#allocation2 + $0x70] sm:$0xff] %v2704
        %2721 = vst [vmem:[#allocation2 + $0x78] sm:$0xff] %v2705
        %v2722 = vld [vmem:[#allocation2] sm:$0xff]
        %v2723 = vld [vmem:[#allocation2 + $0x8] sm:$0xff]
        %v2724 = vld [vmem:[#allocation2 + $0x10] sm:$0xff]
        %v2725 = vld [vmem:[#allocation2 + $0x18] sm:$0xff]
        %v2726 = vld [vmem:[#allocation2 + $0x20] sm:$0xff]
        %v2727 = vld [vmem:[#allocation2 + $0x28] sm:$0xff]
        %v2728 = vld [vmem:[#allocation2 + $0x30] sm:$0xff]
        %v2729 = vld [vmem:[#allocation2 + $0x38] sm:$0xff]
        %v2730 = vld [vmem:[#allocation2 + $0x40] sm:$0xff]
        %v2731 = vld [vmem:[#allocation2 + $0x48] sm:$0xff]
        %v2732 = vld [vmem:[#allocation2 + $0x50] sm:$0xff]
        %v2733 = vld [vmem:[#allocation2 + $0x58] sm:$0xff]
        %v2734 = vld [vmem:[#allocation2 + $0x60] sm:$0xff]
        %v2735 = vld [vmem:[#allocation2 + $0x68] sm:$0xff]
        %v2736 = vld [vmem:[#allocation2 + $0x70] sm:$0xff]
        %v2737 = vld [vmem:[#allocation2 + $0x78] sm:$0xff]
        %v2738 = vld [vmem:[%s15] sm:$0x1]
        %v2739 = vld [vmem:[%s16] sm:$0x1]
        %2740 = vadd.xlane.f32.xlu0 %v2722
        %v2741 = vpop.xlane.xlu0 %2740
        %2742 = vadd.xlane.f32.xlu0 %v2723
        %v2743 = vpop.xlane.xlu0 %2742
        %2744 = vadd.xlane.f32.xlu0 %v2724
        %v2745 = vpop.xlane.xlu0 %2744
        %2746 = vadd.xlane.f32.xlu0 %v2725
        %v2747 = vpop.xlane.xlu0 %2746
        %2748 = vadd.xlane.f32.xlu0 %v2726
        %v2749 = vpop.xlane.xlu0 %2748
        %2750 = vadd.xlane.f32.xlu0 %v2727
        %v2751 = vpop.xlane.xlu0 %2750
        %2752 = vadd.xlane.f32.xlu0 %v2728
        %v2753 = vpop.xlane.xlu0 %2752
        %2754 = vadd.xlane.f32.xlu0 %v2729
        %v2755 = vpop.xlane.xlu0 %2754
        %2756 = vadd.xlane.f32.xlu0 %v2730
        %v2757 = vpop.xlane.xlu0 %2756
        %2758 = vadd.xlane.f32.xlu0 %v2731
        %v2759 = vpop.xlane.xlu0 %2758
        %2760 = vadd.xlane.f32.xlu0 %v2732
        %v2761 = vpop.xlane.xlu0 %2760
        %2762 = vadd.xlane.f32.xlu0 %v2733
        %v2763 = vpop.xlane.xlu0 %2762
        %2764 = vadd.xlane.f32.xlu0 %v2734
        %v2765 = vpop.xlane.xlu0 %2764
        %2766 = vadd.xlane.f32.xlu0 %v2735
        %v2767 = vpop.xlane.xlu0 %2766
        %2768 = vadd.xlane.f32.xlu0 %v2736
        %v2769 = vpop.xlane.xlu0 %2768
        %2770 = vadd.xlane.f32.xlu0 %v2737
        %v2771 = vpop.xlane.xlu0 %2770
        %v2772 = vmul.f32 %v2741, %v1192
        %v2773 = vmul.f32 %v2743, %v1192
        %v2774 = vmul.f32 %v2745, %v1192
        %v2775 = vmul.f32 %v2747, %v1192
        %v2776 = vmul.f32 %v2749, %v1192
        %v2777 = vmul.f32 %v2751, %v1192
        %v2778 = vmul.f32 %v2753, %v1192
        %v2779 = vmul.f32 %v2755, %v1192
        %v2780 = vmul.f32 %v2757, %v1192
        %v2781 = vmul.f32 %v2759, %v1192
        %v2782 = vmul.f32 %v2761, %v1192
        %v2783 = vmul.f32 %v2763, %v1192
        %v2784 = vmul.f32 %v2765, %v1192
        %v2785 = vmul.f32 %v2767, %v1192
        %v2786 = vmul.f32 %v2769, %v1192
        %v2787 = vmul.f32 %v2771, %v1192
        %v2788 = vsub.f32 %v2722, %v2772
        %v2789 = vsub.f32 %v2723, %v2773
        %v2790 = vsub.f32 %v2724, %v2774
        %v2791 = vsub.f32 %v2725, %v2775
        %v2792 = vsub.f32 %v2726, %v2776
        %v2793 = vsub.f32 %v2727, %v2777
        %v2794 = vsub.f32 %v2728, %v2778
        %v2795 = vsub.f32 %v2729, %v2779
        %v2796 = vsub.f32 %v2730, %v2780
        %v2797 = vsub.f32 %v2731, %v2781
        %v2798 = vsub.f32 %v2732, %v2782
        %v2799 = vsub.f32 %v2733, %v2783
        %v2800 = vsub.f32 %v2734, %v2784
        %v2801 = vsub.f32 %v2735, %v2785
        %v2802 = vsub.f32 %v2736, %v2786
        %v2803 = vsub.f32 %v2737, %v2787
        %v2804 = vmul.f32 %v2788, %v2788
        %v2805 = vmul.f32 %v2789, %v2789
        %v2806 = vmul.f32 %v2790, %v2790
        %v2807 = vmul.f32 %v2791, %v2791
        %v2808 = vmul.f32 %v2792, %v2792
        %v2809 = vmul.f32 %v2793, %v2793
        %v2810 = vmul.f32 %v2794, %v2794
        %v2811 = vmul.f32 %v2795, %v2795
        %v2812 = vmul.f32 %v2796, %v2796
        %v2813 = vmul.f32 %v2797, %v2797
        %v2814 = vmul.f32 %v2798, %v2798
        %v2815 = vmul.f32 %v2799, %v2799
        %v2816 = vmul.f32 %v2800, %v2800
        %v2817 = vmul.f32 %v2801, %v2801
        %v2818 = vmul.f32 %v2802, %v2802
        %v2819 = vmul.f32 %v2803, %v2803
        %2820 = vadd.xlane.f32.xlu0 %v2804
        %v2821 = vpop.xlane.xlu0 %2820
        %2822 = vadd.xlane.f32.xlu0 %v2805
        %v2823 = vpop.xlane.xlu0 %2822
        %2824 = vadd.xlane.f32.xlu0 %v2806
        %v2825 = vpop.xlane.xlu0 %2824
        %2826 = vadd.xlane.f32.xlu0 %v2807
        %v2827 = vpop.xlane.xlu0 %2826
        %2828 = vadd.xlane.f32.xlu0 %v2808
        %v2829 = vpop.xlane.xlu0 %2828
        %2830 = vadd.xlane.f32.xlu0 %v2809
        %v2831 = vpop.xlane.xlu0 %2830
        %2832 = vadd.xlane.f32.xlu0 %v2810
        %v2833 = vpop.xlane.xlu0 %2832
        %2834 = vadd.xlane.f32.xlu0 %v2811
        %v2835 = vpop.xlane.xlu0 %2834
        %2836 = vadd.xlane.f32.xlu0 %v2812
        %v2837 = vpop.xlane.xlu0 %2836
        %2838 = vadd.xlane.f32.xlu0 %v2813
        %v2839 = vpop.xlane.xlu0 %2838
        %2840 = vadd.xlane.f32.xlu0 %v2814
        %v2841 = vpop.xlane.xlu0 %2840
        %2842 = vadd.xlane.f32.xlu0 %v2815
        %v2843 = vpop.xlane.xlu0 %2842
        %2844 = vadd.xlane.f32.xlu0 %v2816
        %v2845 = vpop.xlane.xlu0 %2844
        %2846 = vadd.xlane.f32.xlu0 %v2817
        %v2847 = vpop.xlane.xlu0 %2846
        %2848 = vadd.xlane.f32.xlu0 %v2818
        %v2849 = vpop.xlane.xlu0 %2848
        %2850 = vadd.xlane.f32.xlu0 %v2819
        %v2851 = vpop.xlane.xlu0 %2850
        %v2852 = vmul.f32 %v2821, %v1192
        %v2853 = vmul.f32 %v2823, %v1192
        %v2854 = vmul.f32 %v2825, %v1192
        %v2855 = vmul.f32 %v2827, %v1192
        %v2856 = vmul.f32 %v2829, %v1192
        %v2857 = vmul.f32 %v2831, %v1192
        %v2858 = vmul.f32 %v2833, %v1192
        %v2859 = vmul.f32 %v2835, %v1192
        %v2860 = vmul.f32 %v2837, %v1192
        %v2861 = vmul.f32 %v2839, %v1192
        %v2862 = vmul.f32 %v2841, %v1192
        %v2863 = vmul.f32 %v2843, %v1192
        %v2864 = vmul.f32 %v2845, %v1192
        %v2865 = vmul.f32 %v2847, %v1192
        %v2866 = vmul.f32 %v2849, %v1192
        %v2867 = vmul.f32 %v2851, %v1192
        %v2868 = vadd.f32 %v2852, 1e-05
        %v2869 = vadd.f32 %v2853, 1e-05
        %v2870 = vadd.f32 %v2854, 1e-05
        %v2871 = vadd.f32 %v2855, 1e-05
        %v2872 = vadd.f32 %v2856, 1e-05
        %v2873 = vadd.f32 %v2857, 1e-05
        %v2874 = vadd.f32 %v2858, 1e-05
        %v2875 = vadd.f32 %v2859, 1e-05
        %v2876 = vadd.f32 %v2860, 1e-05
        %v2877 = vadd.f32 %v2861, 1e-05
        %v2878 = vadd.f32 %v2862, 1e-05
        %v2879 = vadd.f32 %v2863, 1e-05
        %v2880 = vadd.f32 %v2864, 1e-05
        %v2881 = vadd.f32 %v2865, 1e-05
        %v2882 = vadd.f32 %v2866, 1e-05
        %v2883 = vadd.f32 %v2867, 1e-05
        %v2884 = vrsqrt.pop %v2868
        %v2885 = vmul.f32 %v2884, %v2868
        %v2886 = vmul.f32 %v2885, %v2884
        %v2887 = vmul.f32 0.5, %v2886
        %v2888 = vsub.f32 1.5, %v2887
        %v2889 = vmul.f32 %v2884, %v2888
        %vm2890 = vweird.f32 %v2868
        %vm2891 = vweird.f32 %v2884
        %vm2892 = vmor %vm2890, %vm2891
        %v2893 = vsel %vm2892, %v2884, %v2889
        %v2894 = vrsqrt.pop %v2869
        %v2895 = vmul.f32 %v2894, %v2869
        %v2896 = vmul.f32 %v2895, %v2894
        %v2897 = vmul.f32 0.5, %v2896
        %v2898 = vsub.f32 1.5, %v2897
        %v2899 = vmul.f32 %v2894, %v2898
        %vm2900 = vweird.f32 %v2869
        %vm2901 = vweird.f32 %v2894
        %vm2902 = vmor %vm2900, %vm2901
        %v2903 = vsel %vm2902, %v2894, %v2899
        %v2904 = vrsqrt.pop %v2870
        %v2905 = vmul.f32 %v2904, %v2870
        %v2906 = vmul.f32 %v2905, %v2904
        %v2907 = vmul.f32 0.5, %v2906
        %v2908 = vsub.f32 1.5, %v2907
        %v2909 = vmul.f32 %v2904, %v2908
        %vm2910 = vweird.f32 %v2870
        %vm2911 = vweird.f32 %v2904
        %vm2912 = vmor %vm2910, %vm2911
        %v2913 = vsel %vm2912, %v2904, %v2909
        %v2914 = vrsqrt.pop %v2871
        %v2915 = vmul.f32 %v2914, %v2871
        %v2916 = vmul.f32 %v2915, %v2914
        %v2917 = vmul.f32 0.5, %v2916
        %v2918 = vsub.f32 1.5, %v2917
        %v2919 = vmul.f32 %v2914, %v2918
        %vm2920 = vweird.f32 %v2871
        %vm2921 = vweird.f32 %v2914
        %vm2922 = vmor %vm2920, %vm2921
        %v2923 = vsel %vm2922, %v2914, %v2919
        %v2924 = vrsqrt.pop %v2872
        %v2925 = vmul.f32 %v2924, %v2872
        %v2926 = vmul.f32 %v2925, %v2924
        %v2927 = vmul.f32 0.5, %v2926
        %v2928 = vsub.f32 1.5, %v2927
        %v2929 = vmul.f32 %v2924, %v2928
        %vm2930 = vweird.f32 %v2872
        %vm2931 = vweird.f32 %v2924
        %vm2932 = vmor %vm2930, %vm2931
        %v2933 = vsel %vm2932, %v2924, %v2929
        %v2934 = vrsqrt.pop %v2873
        %v2935 = vmul.f32 %v2934, %v2873
        %v2936 = vmul.f32 %v2935, %v2934
        %v2937 = vmul.f32 0.5, %v2936
        %v2938 = vsub.f32 1.5, %v2937
        %v2939 = vmul.f32 %v2934, %v2938
        %vm2940 = vweird.f32 %v2873
        %vm2941 = vweird.f32 %v2934
        %vm2942 = vmor %vm2940, %vm2941
        %v2943 = vsel %vm2942, %v2934, %v2939
        %v2944 = vrsqrt.pop %v2874
        %v2945 = vmul.f32 %v2944, %v2874
        %v2946 = vmul.f32 %v2945, %v2944
        %v2947 = vmul.f32 0.5, %v2946
        %v2948 = vsub.f32 1.5, %v2947
        %v2949 = vmul.f32 %v2944, %v2948
        %vm2950 = vweird.f32 %v2874
        %vm2951 = vweird.f32 %v2944
        %vm2952 = vmor %vm2950, %vm2951
        %v2953 = vsel %vm2952, %v2944, %v2949
        %v2954 = vrsqrt.pop %v2875
        %v2955 = vmul.f32 %v2954, %v2875
        %v2956 = vmul.f32 %v2955, %v2954
        %v2957 = vmul.f32 0.5, %v2956
        %v2958 = vsub.f32 1.5, %v2957
        %v2959 = vmul.f32 %v2954, %v2958
        %vm2960 = vweird.f32 %v2875
        %vm2961 = vweird.f32 %v2954
        %vm2962 = vmor %vm2960, %vm2961
        %v2963 = vsel %vm2962, %v2954, %v2959
        %v2964 = vrsqrt.pop %v2876
        %v2965 = vmul.f32 %v2964, %v2876
        %v2966 = vmul.f32 %v2965, %v2964
        %v2967 = vmul.f32 0.5, %v2966
        %v2968 = vsub.f32 1.5, %v2967
        %v2969 = vmul.f32 %v2964, %v2968
        %vm2970 = vweird.f32 %v2876
        %vm2971 = vweird.f32 %v2964
        %vm2972 = vmor %vm2970, %vm2971
        %v2973 = vsel %vm2972, %v2964, %v2969
        %v2974 = vrsqrt.pop %v2877
        %v2975 = vmul.f32 %v2974, %v2877
        %v2976 = vmul.f32 %v2975, %v2974
        %v2977 = vmul.f32 0.5, %v2976
        %v2978 = vsub.f32 1.5, %v2977
        %v2979 = vmul.f32 %v2974, %v2978
        %vm2980 = vweird.f32 %v2877
        %vm2981 = vweird.f32 %v2974
        %vm2982 = vmor %vm2980, %vm2981
        %v2983 = vsel %vm2982, %v2974, %v2979
        %v2984 = vrsqrt.pop %v2878
        %v2985 = vmul.f32 %v2984, %v2878
        %v2986 = vmul.f32 %v2985, %v2984
        %v2987 = vmul.f32 0.5, %v2986
        %v2988 = vsub.f32 1.5, %v2987
        %v2989 = vmul.f32 %v2984, %v2988
        %vm2990 = vweird.f32 %v2878
        %vm2991 = vweird.f32 %v2984
        %vm2992 = vmor %vm2990, %vm2991
        %v2993 = vsel %vm2992, %v2984, %v2989
        %v2994 = vrsqrt.pop %v2879
        %v2995 = vmul.f32 %v2994, %v2879
        %v2996 = vmul.f32 %v2995, %v2994
        %v2997 = vmul.f32 0.5, %v2996
        %v2998 = vsub.f32 1.5, %v2997
        %v2999 = vmul.f32 %v2994, %v2998
        %vm3000 = vweird.f32 %v2879
        %vm3001 = vweird.f32 %v2994
        %vm3002 = vmor %vm3000, %vm3001
        %v3003 = vsel %vm3002, %v2994, %v2999
        %v3004 = vrsqrt.pop %v2880
        %v3005 = vmul.f32 %v3004, %v2880
        %v3006 = vmul.f32 %v3005, %v3004
        %v3007 = vmul.f32 0.5, %v3006
        %v3008 = vsub.f32 1.5, %v3007
        %v3009 = vmul.f32 %v3004, %v3008
        %vm3010 = vweird.f32 %v2880
        %vm3011 = vweird.f32 %v3004
        %vm3012 = vmor %vm3010, %vm3011
        %v3013 = vsel %vm3012, %v3004, %v3009
        %v3014 = vrsqrt.pop %v2881
        %v3015 = vmul.f32 %v3014, %v2881
        %v3016 = vmul.f32 %v3015, %v3014
        %v3017 = vmul.f32 0.5, %v3016
        %v3018 = vsub.f32 1.5, %v3017
        %v3019 = vmul.f32 %v3014, %v3018
        %vm3020 = vweird.f32 %v2881
        %vm3021 = vweird.f32 %v3014
        %vm3022 = vmor %vm3020, %vm3021
        %v3023 = vsel %vm3022, %v3014, %v3019
        %v3024 = vrsqrt.pop %v2882
        %v3025 = vmul.f32 %v3024, %v2882
        %v3026 = vmul.f32 %v3025, %v3024
        %v3027 = vmul.f32 0.5, %v3026
        %v3028 = vsub.f32 1.5, %v3027
        %v3029 = vmul.f32 %v3024, %v3028
        %vm3030 = vweird.f32 %v2882
        %vm3031 = vweird.f32 %v3024
        %vm3032 = vmor %vm3030, %vm3031
        %v3033 = vsel %vm3032, %v3024, %v3029
        %v3034 = vrsqrt.pop %v2883
        %v3035 = vmul.f32 %v3034, %v2883
        %v3036 = vmul.f32 %v3035, %v3034
        %v3037 = vmul.f32 0.5, %v3036
        %v3038 = vsub.f32 1.5, %v3037
        %v3039 = vmul.f32 %v3034, %v3038
        %vm3040 = vweird.f32 %v2883
        %vm3041 = vweird.f32 %v3034
        %vm3042 = vmor %vm3040, %vm3041
        %v3043 = vsel %vm3042, %v3034, %v3039
        %v3044 = vmul.f32 %v2788, %v2893
        %v3045 = vmul.f32 %v2789, %v2903
        %v3046 = vmul.f32 %v2790, %v2913
        %v3047 = vmul.f32 %v2791, %v2923
        %v3048 = vmul.f32 %v2792, %v2933
        %v3049 = vmul.f32 %v2793, %v2943
        %v3050 = vmul.f32 %v2794, %v2953
        %v3051 = vmul.f32 %v2795, %v2963
        %v3052 = vmul.f32 %v2796, %v2973
        %v3053 = vmul.f32 %v2797, %v2983
        %v3054 = vmul.f32 %v2798, %v2993
        %v3055 = vmul.f32 %v2799, %v3003
        %v3056 = vmul.f32 %v2800, %v3013
        %v3057 = vmul.f32 %v2801, %v3023
        %v3058 = vmul.f32 %v2802, %v3033
        %v3059 = vmul.f32 %v2803, %v3043
        %v3061 = vperm.slane %v2738, 0
        %v3063 = vmul.f32 %v3044, %v3061
        %v3064 = vmul.f32 %v3045, %v3061
        %v3065 = vmul.f32 %v3046, %v3061
        %v3066 = vmul.f32 %v3047, %v3061
        %v3067 = vmul.f32 %v3048, %v3061
        %v3068 = vmul.f32 %v3049, %v3061
        %v3069 = vmul.f32 %v3050, %v3061
        %v3070 = vmul.f32 %v3051, %v3061
        %v3071 = vmul.f32 %v3052, %v3061
        %v3072 = vmul.f32 %v3053, %v3061
        %v3073 = vmul.f32 %v3054, %v3061
        %v3074 = vmul.f32 %v3055, %v3061
        %v3075 = vmul.f32 %v3056, %v3061
        %v3076 = vmul.f32 %v3057, %v3061
        %v3077 = vmul.f32 %v3058, %v3061
        %v3078 = vmul.f32 %v3059, %v3061
        %v3080 = vperm.slane %v2739, 0
        %v3082 = vadd.f32 %v3063, %v3080
        %v3083 = vadd.f32 %v3064, %v3080
        %v3084 = vadd.f32 %v3065, %v3080
        %v3085 = vadd.f32 %v3066, %v3080
        %v3086 = vadd.f32 %v3067, %v3080
        %v3087 = vadd.f32 %v3068, %v3080
        %v3088 = vadd.f32 %v3069, %v3080
        %v3089 = vadd.f32 %v3070, %v3080
        %v3090 = vadd.f32 %v3071, %v3080
        %v3091 = vadd.f32 %v3072, %v3080
        %v3092 = vadd.f32 %v3073, %v3080
        %v3093 = vadd.f32 %v3074, %v3080
        %v3094 = vadd.f32 %v3075, %v3080
        %v3095 = vadd.f32 %v3076, %v3080
        %v3096 = vadd.f32 %v3077, %v3080
        %v3097 = vadd.f32 %v3078, %v3080
        %v3098 = vpack.c.bf16 %v3083, %v3082
        %v3099 = vpack.c.bf16 %v3085, %v3084
        %v3100 = vpack.c.bf16 %v3087, %v3086
        %v3101 = vpack.c.bf16 %v3089, %v3088
        %v3102 = vpack.c.bf16 %v3091, %v3090
        %v3103 = vpack.c.bf16 %v3093, %v3092
        %v3104 = vpack.c.bf16 %v3095, %v3094
        %v3105 = vpack.c.bf16 %v3097, %v3096
        %v3106 = vld [vmem:[#allocation17] sm:$0xff]
        %v3107 = vld [vmem:[#allocation17 + $0x8] sm:$0xff]
        %v3108 = vld [vmem:[#allocation17 + $0x10] sm:$0xff]
        %v3109 = vld [vmem:[#allocation17 + $0x18] sm:$0xff]
        %v3110 = vld [vmem:[#allocation17 + $0x20] sm:$0xff]
        %v3111 = vld [vmem:[#allocation17 + $0x28] sm:$0xff]
        %v3112 = vld [vmem:[#allocation17 + $0x30] sm:$0xff]
        %v3113 = vld [vmem:[#allocation17 + $0x38] sm:$0xff]
        %v3114 = vld [vmem:[#allocation17 + $0x40] sm:$0xff]
        %v3115 = vld [vmem:[#allocation17 + $0x48] sm:$0xff]
        %v3116 = vld [vmem:[#allocation17 + $0x50] sm:$0xff]
        %v3117 = vld [vmem:[#allocation17 + $0x58] sm:$0xff]
        %v3118 = vld [vmem:[#allocation17 + $0x60] sm:$0xff]
        %v3119 = vld [vmem:[#allocation17 + $0x68] sm:$0xff]
        %v3120 = vld [vmem:[#allocation17 + $0x70] sm:$0xff]
        %v3121 = vld [vmem:[#allocation17 + $0x78] sm:$0xff]
        %v3122 = vld [vmem:[#allocation17 + $0x80] sm:$0xff]
        %v3123 = vld [vmem:[#allocation17 + $0x88] sm:$0xff]
        %v3124 = vld [vmem:[#allocation17 + $0x90] sm:$0xff]
        %v3125 = vld [vmem:[#allocation17 + $0x98] sm:$0xff]
        %v3126 = vld [vmem:[#allocation17 + $0xa0] sm:$0xff]
        %v3127 = vld [vmem:[#allocation17 + $0xa8] sm:$0xff]
        %v3128 = vld [vmem:[#allocation17 + $0xb0] sm:$0xff]
        %v3129 = vld [vmem:[#allocation17 + $0xb8] sm:$0xff]
        %v3130 = vld [vmem:[#allocation17 + $0xc0] sm:$0xff]
        %v3131 = vld [vmem:[#allocation17 + $0xc8] sm:$0xff]
        %v3132 = vld [vmem:[#allocation17 + $0xd0] sm:$0xff]
        %v3133 = vld [vmem:[#allocation17 + $0xd8] sm:$0xff]
        %v3134 = vld [vmem:[#allocation17 + $0xe0] sm:$0xff]
        %v3135 = vld [vmem:[#allocation17 + $0xe8] sm:$0xff]
        %v3136 = vld [vmem:[#allocation17 + $0xf0] sm:$0xff]
        %v3137 = vld [vmem:[#allocation17 + $0xf8] sm:$0xff]
        %v3138 = vld [vmem:[%s18] sm:$0xf]
        %v3140 = vperm.slane %v3138, 0
        %v3141 = vperm.slane %v3138, 1
        %v3142 = vperm.slane %v3138, 2
        %v3143 = vperm.slane %v3138, 3
        %v3180 = vunpack.c.l.b16 %v3106
        %v3181 = vunpack.c.h.b16 %v3106
        %v3182 = vunpack.c.l.b16 %v3107
        %v3183 = vunpack.c.h.b16 %v3107
        %v3184 = vunpack.c.l.b16 %v3108
        %v3185 = vunpack.c.h.b16 %v3108
        %v3186 = vunpack.c.l.b16 %v3109
        %v3187 = vunpack.c.h.b16 %v3109
        %v3188 = vunpack.c.l.b16 %v3110
        %v3189 = vunpack.c.h.b16 %v3110
        %v3190 = vunpack.c.l.b16 %v3111
        %v3191 = vunpack.c.h.b16 %v3111
        %v3192 = vunpack.c.l.b16 %v3112
        %v3193 = vunpack.c.h.b16 %v3112
        %v3194 = vunpack.c.l.b16 %v3113
        %v3195 = vunpack.c.h.b16 %v3113
        %v3196 = vunpack.c.l.b16 %v3114
        %v3197 = vunpack.c.h.b16 %v3114
        %v3198 = vunpack.c.l.b16 %v3115
        %v3199 = vunpack.c.h.b16 %v3115
        %v3200 = vunpack.c.l.b16 %v3116
        %v3201 = vunpack.c.h.b16 %v3116
        %v3202 = vunpack.c.l.b16 %v3117
        %v3203 = vunpack.c.h.b16 %v3117
        %v3204 = vunpack.c.l.b16 %v3118
        %v3205 = vunpack.c.h.b16 %v3118
        %v3206 = vunpack.c.l.b16 %v3119
        %v3207 = vunpack.c.h.b16 %v3119
        %v3208 = vunpack.c.l.b16 %v3120
        %v3209 = vunpack.c.h.b16 %v3120
        %v3210 = vunpack.c.l.b16 %v3121
        %v3211 = vunpack.c.h.b16 %v3121
        %v3212 = vunpack.c.l.b16 %v3122
        %v3213 = vunpack.c.h.b16 %v3122
        %v3214 = vunpack.c.l.b16 %v3123
        %v3215 = vunpack.c.h.b16 %v3123
        %v3216 = vunpack.c.l.b16 %v3124
        %v3217 = vunpack.c.h.b16 %v3124
        %v3218 = vunpack.c.l.b16 %v3125
        %v3219 = vunpack.c.h.b16 %v3125
        %v3220 = vunpack.c.l.b16 %v3126
        %v3221 = vunpack.c.h.b16 %v3126
        %v3222 = vunpack.c.l.b16 %v3127
        %v3223 = vunpack.c.h.b16 %v3127
        %v3224 = vunpack.c.l.b16 %v3128
        %v3225 = vunpack.c.h.b16 %v3128
        %v3226 = vunpack.c.l.b16 %v3129
        %v3227 = vunpack.c.h.b16 %v3129
        %v3228 = vunpack.c.l.b16 %v3130
        %v3229 = vunpack.c.h.b16 %v3130
        %v3230 = vunpack.c.l.b16 %v3131
        %v3231 = vunpack.c.h.b16 %v3131
        %v3232 = vunpack.c.l.b16 %v3132
        %v3233 = vunpack.c.h.b16 %v3132
        %v3234 = vunpack.c.l.b16 %v3133
        %v3235 = vunpack.c.h.b16 %v3133
        %v3236 = vunpack.c.l.b16 %v3134
        %v3237 = vunpack.c.h.b16 %v3134
        %v3238 = vunpack.c.l.b16 %v3135
        %v3239 = vunpack.c.h.b16 %v3135
        %v3240 = vunpack.c.l.b16 %v3136
        %v3241 = vunpack.c.h.b16 %v3136
        %v3242 = vunpack.c.l.b16 %v3137
        %v3243 = vunpack.c.h.b16 %v3137
        %v3244 = vpack.c.b16 %v3184, %v3180
        %v3245 = vpack.c.b16 %v3185, %v3181
        %v3246 = vpack.c.b16 %v3186, %v3182
        %v3247 = vpack.c.b16 %v3187, %v3183
        %v3248 = vpack.c.b16 %v3192, %v3188
        %v3249 = vpack.c.b16 %v3193, %v3189
        %v3250 = vpack.c.b16 %v3194, %v3190
        %v3251 = vpack.c.b16 %v3195, %v3191
        %v3252 = vpack.c.b16 %v3200, %v3196
        %v3253 = vpack.c.b16 %v3201, %v3197
        %v3254 = vpack.c.b16 %v3202, %v3198
        %v3255 = vpack.c.b16 %v3203, %v3199
        %v3256 = vpack.c.b16 %v3208, %v3204
        %v3257 = vpack.c.b16 %v3209, %v3205
        %v3258 = vpack.c.b16 %v3210, %v3206
        %v3259 = vpack.c.b16 %v3211, %v3207
        %v3260 = vpack.c.b16 %v3216, %v3212
        %v3261 = vpack.c.b16 %v3217, %v3213
        %v3262 = vpack.c.b16 %v3218, %v3214
        %v3263 = vpack.c.b16 %v3219, %v3215
        %v3264 = vpack.c.b16 %v3224, %v3220
        %v3265 = vpack.c.b16 %v3225, %v3221
        %v3266 = vpack.c.b16 %v3226, %v3222
        %v3267 = vpack.c.b16 %v3227, %v3223
        %v3268 = vpack.c.b16 %v3232, %v3228
        %v3269 = vpack.c.b16 %v3233, %v3229
        %v3270 = vpack.c.b16 %v3234, %v3230
        %v3271 = vpack.c.b16 %v3235, %v3231
        %v3272 = vpack.c.b16 %v3240, %v3236
        %v3273 = vpack.c.b16 %v3241, %v3237
        %v3274 = vpack.c.b16 %v3242, %v3238
        %v3275 = vpack.c.b16 %v3243, %v3239
        %3308 = vmatpush.bf16.msra.mxu0 %v3272
        %3309 = vmatpush.bf16.msra.mxu0 %v3268
        %3310 = vmatpush.bf16.msra.mxu0 %v3264
        %3311 = vmatpush.bf16.msra.mxu0 %v3260
        %3312 = vmatpush.bf16.msra.mxu0 %v3256
        %3313 = vmatpush.bf16.msra.mxu0 %v3252
        %3314 = vmatpush.bf16.msra.mxu0 %v3248
        %3315 = vmatpush.bf16.msra.mxu0 %v3244
        %3316 = vmatmul.bf16.gmra.mxu0 %v3098
        %v3317 = vpop.f32.mrf.mxu0
        %v3318 = vadd.f32 %v3140, %v3317
        %v3319 = vpop.f32.mrf.mxu0
        %v3320 = vadd.f32 %v3140, %v3319
        %3321 = vmatmul.bf16.gmra.mxu0 %v3099
        %v3322 = vpop.f32.mrf.mxu0
        %v3323 = vadd.f32 %v3140, %v3322
        %v3324 = vpop.f32.mrf.mxu0
        %v3325 = vadd.f32 %v3140, %v3324
        %3326 = vmatmul.bf16.gmra.mxu0 %v3100
        %v3327 = vpop.f32.mrf.mxu0
        %v3328 = vadd.f32 %v3140, %v3327
        %v3329 = vpop.f32.mrf.mxu0
        %v3330 = vadd.f32 %v3140, %v3329
        %3331 = vmatmul.bf16.gmra.mxu0 %v3101
        %v3332 = vpop.f32.mrf.mxu0
        %v3333 = vadd.f32 %v3140, %v3332
        %v3334 = vpop.f32.mrf.mxu0
        %v3335 = vadd.f32 %v3140, %v3334
        %3336 = vmatmul.bf16.gmra.mxu0 %v3102
        %v3337 = vpop.f32.mrf.mxu0
        %v3338 = vadd.f32 %v3140, %v3337
        %v3339 = vpop.f32.mrf.mxu0
        %v3340 = vadd.f32 %v3140, %v3339
        %3341 = vmatmul.bf16.gmra.mxu0 %v3103
        %v3342 = vpop.f32.mrf.mxu0
        %v3343 = vadd.f32 %v3140, %v3342
        %v3344 = vpop.f32.mrf.mxu0
        %v3345 = vadd.f32 %v3140, %v3344
        %3346 = vmatmul.bf16.gmra.mxu0 %v3104
        %v3347 = vpop.f32.mrf.mxu0
        %v3348 = vadd.f32 %v3140, %v3347
        %v3349 = vpop.f32.mrf.mxu0
        %v3350 = vadd.f32 %v3140, %v3349
        %3351 = vmatmul.bf16.gmra.mxu0 %v3105
        %v3352 = vpop.f32.mrf.mxu0
        %v3353 = vadd.f32 %v3140, %v3352
        %v3354 = vpop.f32.mrf.mxu0
        %v3355 = vadd.f32 %v3140, %v3354
        %3356 = vdwg.mxu0
        %3357 = vmatpush.bf16.msra.mxu0 %v3273
        %3358 = vmatpush.bf16.msra.mxu0 %v3269
        %3359 = vmatpush.bf16.msra.mxu0 %v3265
        %3360 = vmatpush.bf16.msra.mxu0 %v3261
        %3361 = vmatpush.bf16.msra.mxu0 %v3257
        %3362 = vmatpush.bf16.msra.mxu0 %v3253
        %3363 = vmatpush.bf16.msra.mxu0 %v3249
        %3364 = vmatpush.bf16.msra.mxu0 %v3245
        %3365 = vmatmul.bf16.gmra.mxu0 %v3098
        %v3366 = vpop.f32.mrf.mxu0
        %v3367 = vadd.f32 %v3141, %v3366
        %v3368 = vpop.f32.mrf.mxu0
        %v3369 = vadd.f32 %v3141, %v3368
        %3370 = vmatmul.bf16.gmra.mxu0 %v3099
        %v3371 = vpop.f32.mrf.mxu0
        %v3372 = vadd.f32 %v3141, %v3371
        %v3373 = vpop.f32.mrf.mxu0
        %v3374 = vadd.f32 %v3141, %v3373
        %3375 = vmatmul.bf16.gmra.mxu0 %v3100
        %v3376 = vpop.f32.mrf.mxu0
        %v3377 = vadd.f32 %v3141, %v3376
        %v3378 = vpop.f32.mrf.mxu0
        %v3379 = vadd.f32 %v3141, %v3378
        %3380 = vmatmul.bf16.gmra.mxu0 %v3101
        %v3381 = vpop.f32.mrf.mxu0
        %v3382 = vadd.f32 %v3141, %v3381
        %v3383 = vpop.f32.mrf.mxu0
        %v3384 = vadd.f32 %v3141, %v3383
        %3385 = vmatmul.bf16.gmra.mxu0 %v3102
        %v3386 = vpop.f32.mrf.mxu0
        %v3387 = vadd.f32 %v3141, %v3386
        %v3388 = vpop.f32.mrf.mxu0
        %v3389 = vadd.f32 %v3141, %v3388
        %3390 = vmatmul.bf16.gmra.mxu0 %v3103
        %v3391 = vpop.f32.mrf.mxu0
        %v3392 = vadd.f32 %v3141, %v3391
        %v3393 = vpop.f32.mrf.mxu0
        %v3394 = vadd.f32 %v3141, %v3393
        %3395 = vmatmul.bf16.gmra.mxu0 %v3104
        %v3396 = vpop.f32.mrf.mxu0
        %v3397 = vadd.f32 %v3141, %v3396
        %v3398 = vpop.f32.mrf.mxu0
        %v3399 = vadd.f32 %v3141, %v3398
        %3400 = vmatmul.bf16.gmra.mxu0 %v3105
        %v3401 = vpop.f32.mrf.mxu0
        %v3402 = vadd.f32 %v3141, %v3401
        %v3403 = vpop.f32.mrf.mxu0
        %v3404 = vadd.f32 %v3141, %v3403
        %3405 = vdwg.mxu0
        %3406 = vmatpush.bf16.msra.mxu0 %v3274
        %3407 = vmatpush.bf16.msra.mxu0 %v3270
        %3408 = vmatpush.bf16.msra.mxu0 %v3266
        %3409 = vmatpush.bf16.msra.mxu0 %v3262
        %3410 = vmatpush.bf16.msra.mxu0 %v3258
        %3411 = vmatpush.bf16.msra.mxu0 %v3254
        %3412 = vmatpush.bf16.msra.mxu0 %v3250
        %3413 = vmatpush.bf16.msra.mxu0 %v3246
        %3414 = vmatmul.bf16.gmra.mxu0 %v3098
        %v3415 = vpop.f32.mrf.mxu0
        %v3416 = vadd.f32 %v3142, %v3415
        %v3417 = vpop.f32.mrf.mxu0
        %v3418 = vadd.f32 %v3142, %v3417
        %3419 = vmatmul.bf16.gmra.mxu0 %v3099
        %v3420 = vpop.f32.mrf.mxu0
        %v3421 = vadd.f32 %v3142, %v3420
        %v3422 = vpop.f32.mrf.mxu0
        %v3423 = vadd.f32 %v3142, %v3422
        %3424 = vmatmul.bf16.gmra.mxu0 %v3100
        %v3425 = vpop.f32.mrf.mxu0
        %v3426 = vadd.f32 %v3142, %v3425
        %v3427 = vpop.f32.mrf.mxu0
        %v3428 = vadd.f32 %v3142, %v3427
        %3429 = vmatmul.bf16.gmra.mxu0 %v3101
        %v3430 = vpop.f32.mrf.mxu0
        %v3431 = vadd.f32 %v3142, %v3430
        %v3432 = vpop.f32.mrf.mxu0
        %v3433 = vadd.f32 %v3142, %v3432
        %3434 = vmatmul.bf16.gmra.mxu0 %v3102
        %v3435 = vpop.f32.mrf.mxu0
        %v3436 = vadd.f32 %v3142, %v3435
        %v3437 = vpop.f32.mrf.mxu0
        %v3438 = vadd.f32 %v3142, %v3437
        %3439 = vmatmul.bf16.gmra.mxu0 %v3103
        %v3440 = vpop.f32.mrf.mxu0
        %v3441 = vadd.f32 %v3142, %v3440
        %v3442 = vpop.f32.mrf.mxu0
        %v3443 = vadd.f32 %v3142, %v3442
        %3444 = vmatmul.bf16.gmra.mxu0 %v3104
        %v3445 = vpop.f32.mrf.mxu0
        %v3446 = vadd.f32 %v3142, %v3445
        %v3447 = vpop.f32.mrf.mxu0
        %v3448 = vadd.f32 %v3142, %v3447
        %3449 = vmatmul.bf16.gmra.mxu0 %v3105
        %v3450 = vpop.f32.mrf.mxu0
        %v3451 = vadd.f32 %v3142, %v3450
        %v3452 = vpop.f32.mrf.mxu0
        %v3453 = vadd.f32 %v3142, %v3452
        %3454 = vdwg.mxu0
        %3455 = vmatpush.bf16.msra.mxu0 %v3275
        %3456 = vmatpush.bf16.msra.mxu0 %v3271
        %3457 = vmatpush.bf16.msra.mxu0 %v3267
        %3458 = vmatpush.bf16.msra.mxu0 %v3263
        %3459 = vmatpush.bf16.msra.mxu0 %v3259
        %3460 = vmatpush.bf16.msra.mxu0 %v3255
        %3461 = vmatpush.bf16.msra.mxu0 %v3251
        %3462 = vmatpush.bf16.msra.mxu0 %v3247
        %3463 = vmatmul.bf16.gmra.mxu0 %v3098
        %v3464 = vpop.f32.mrf.mxu0
        %v3465 = vadd.f32 %v3143, %v3464
        %v3466 = vpop.f32.mrf.mxu0
        %v3467 = vadd.f32 %v3143, %v3466
        %3468 = vmatmul.bf16.gmra.mxu0 %v3099
        %v3469 = vpop.f32.mrf.mxu0
        %v3470 = vadd.f32 %v3143, %v3469
        %v3471 = vpop.f32.mrf.mxu0
        %v3472 = vadd.f32 %v3143, %v3471
        %3473 = vmatmul.bf16.gmra.mxu0 %v3100
        %v3474 = vpop.f32.mrf.mxu0
        %v3475 = vadd.f32 %v3143, %v3474
        %v3476 = vpop.f32.mrf.mxu0
        %v3477 = vadd.f32 %v3143, %v3476
        %3478 = vmatmul.bf16.gmra.mxu0 %v3101
        %v3479 = vpop.f32.mrf.mxu0
        %v3480 = vadd.f32 %v3143, %v3479
        %v3481 = vpop.f32.mrf.mxu0
        %v3482 = vadd.f32 %v3143, %v3481
        %3483 = vmatmul.bf16.gmra.mxu0 %v3102
        %v3484 = vpop.f32.mrf.mxu0
        %v3485 = vadd.f32 %v3143, %v3484
        %v3486 = vpop.f32.mrf.mxu0
        %v3487 = vadd.f32 %v3143, %v3486
        %3488 = vmatmul.bf16.gmra.mxu0 %v3103
        %v3489 = vpop.f32.mrf.mxu0
        %v3490 = vadd.f32 %v3143, %v3489
        %v3491 = vpop.f32.mrf.mxu0
        %v3492 = vadd.f32 %v3143, %v3491
        %3493 = vmatmul.bf16.gmra.mxu0 %v3104
        %v3494 = vpop.f32.mrf.mxu0
        %v3495 = vadd.f32 %v3143, %v3494
        %v3496 = vpop.f32.mrf.mxu0
        %v3497 = vadd.f32 %v3143, %v3496
        %3498 = vmatmul.bf16.gmra.mxu0 %v3105
        %v3499 = vpop.f32.mrf.mxu0
        %v3500 = vadd.f32 %v3143, %v3499
        %v3501 = vpop.f32.mrf.mxu0
        %v3502 = vadd.f32 %v3143, %v3501
        %3503 = vdwg.mxu0
        %v3504 = vmul.f32 %v3318, %v3318
        %v3505 = vmul.f32 %v3367, %v3367
        %v3506 = vmul.f32 %v3416, %v3416
        %v3507 = vmul.f32 %v3465, %v3465
        %v3508 = vmul.f32 %v3320, %v3320
        %v3509 = vmul.f32 %v3369, %v3369
        %v3510 = vmul.f32 %v3418, %v3418
        %v3511 = vmul.f32 %v3467, %v3467
        %v3512 = vmul.f32 %v3323, %v3323
        %v3513 = vmul.f32 %v3372, %v3372
        %v3514 = vmul.f32 %v3421, %v3421
        %v3515 = vmul.f32 %v3470, %v3470
        %v3516 = vmul.f32 %v3325, %v3325
        %v3517 = vmul.f32 %v3374, %v3374
        %v3518 = vmul.f32 %v3423, %v3423
        %v3519 = vmul.f32 %v3472, %v3472
        %v3520 = vmul.f32 %v3328, %v3328
        %v3521 = vmul.f32 %v3377, %v3377
        %v3522 = vmul.f32 %v3426, %v3426
        %v3523 = vmul.f32 %v3475, %v3475
        %v3524 = vmul.f32 %v3330, %v3330
        %v3525 = vmul.f32 %v3379, %v3379
        %v3526 = vmul.f32 %v3428, %v3428
        %v3527 = vmul.f32 %v3477, %v3477
        %v3528 = vmul.f32 %v3333, %v3333
        %v3529 = vmul.f32 %v3382, %v3382
        %v3530 = vmul.f32 %v3431, %v3431
        %v3531 = vmul.f32 %v3480, %v3480
        %v3532 = vmul.f32 %v3335, %v3335
        %v3533 = vmul.f32 %v3384, %v3384
        %v3534 = vmul.f32 %v3433, %v3433
        %v3535 = vmul.f32 %v3482, %v3482
        %v3536 = vmul.f32 %v3338, %v3338
        %v3537 = vmul.f32 %v3387, %v3387
        %v3538 = vmul.f32 %v3436, %v3436
        %v3539 = vmul.f32 %v3485, %v3485
        %v3540 = vmul.f32 %v3340, %v3340
        %v3541 = vmul.f32 %v3389, %v3389
        %v3542 = vmul.f32 %v3438, %v3438
        %v3543 = vmul.f32 %v3487, %v3487
        %v3544 = vmul.f32 %v3343, %v3343
        %v3545 = vmul.f32 %v3392, %v3392
        %v3546 = vmul.f32 %v3441, %v3441
        %v3547 = vmul.f32 %v3490, %v3490
        %v3548 = vmul.f32 %v3345, %v3345
        %v3549 = vmul.f32 %v3394, %v3394
        %v3550 = vmul.f32 %v3443, %v3443
        %v3551 = vmul.f32 %v3492, %v3492
        %v3552 = vmul.f32 %v3348, %v3348
        %v3553 = vmul.f32 %v3397, %v3397
        %v3554 = vmul.f32 %v3446, %v3446
        %v3555 = vmul.f32 %v3495, %v3495
        %v3556 = vmul.f32 %v3350, %v3350
        %v3557 = vmul.f32 %v3399, %v3399
        %v3558 = vmul.f32 %v3448, %v3448
        %v3559 = vmul.f32 %v3497, %v3497
        %v3560 = vmul.f32 %v3353, %v3353
        %v3561 = vmul.f32 %v3402, %v3402
        %v3562 = vmul.f32 %v3451, %v3451
        %v3563 = vmul.f32 %v3500, %v3500
        %v3564 = vmul.f32 %v3355, %v3355
        %v3565 = vmul.f32 %v3404, %v3404
        %v3566 = vmul.f32 %v3453, %v3453
        %v3567 = vmul.f32 %v3502, %v3502
        %v3568 = vmul.f32 %v3318, %v3504
        %v3569 = vmul.f32 %v3367, %v3505
        %v3570 = vmul.f32 %v3416, %v3506
        %v3571 = vmul.f32 %v3465, %v3507
        %v3572 = vmul.f32 %v3320, %v3508
        %v3573 = vmul.f32 %v3369, %v3509
        %v3574 = vmul.f32 %v3418, %v3510
        %v3575 = vmul.f32 %v3467, %v3511
        %v3576 = vmul.f32 %v3323, %v3512
        %v3577 = vmul.f32 %v3372, %v3513
        %v3578 = vmul.f32 %v3421, %v3514
        %v3579 = vmul.f32 %v3470, %v3515
        %v3580 = vmul.f32 %v3325, %v3516
        %v3581 = vmul.f32 %v3374, %v3517
        %v3582 = vmul.f32 %v3423, %v3518
        %v3583 = vmul.f32 %v3472, %v3519
        %v3584 = vmul.f32 %v3328, %v3520
        %v3585 = vmul.f32 %v3377, %v3521
        %v3586 = vmul.f32 %v3426, %v3522
        %v3587 = vmul.f32 %v3475, %v3523
        %v3588 = vmul.f32 %v3330, %v3524
        %v3589 = vmul.f32 %v3379, %v3525
        %v3590 = vmul.f32 %v3428, %v3526
        %v3591 = vmul.f32 %v3477, %v3527
        %v3592 = vmul.f32 %v3333, %v3528
        %v3593 = vmul.f32 %v3382, %v3529
        %v3594 = vmul.f32 %v3431, %v3530
        %v3595 = vmul.f32 %v3480, %v3531
        %v3596 = vmul.f32 %v3335, %v3532
        %v3597 = vmul.f32 %v3384, %v3533
        %v3598 = vmul.f32 %v3433, %v3534
        %v3599 = vmul.f32 %v3482, %v3535
        %v3600 = vmul.f32 %v3338, %v3536
        %v3601 = vmul.f32 %v3387, %v3537
        %v3602 = vmul.f32 %v3436, %v3538
        %v3603 = vmul.f32 %v3485, %v3539
        %v3604 = vmul.f32 %v3340, %v3540
        %v3605 = vmul.f32 %v3389, %v3541
        %v3606 = vmul.f32 %v3438, %v3542
        %v3607 = vmul.f32 %v3487, %v3543
        %v3608 = vmul.f32 %v3343, %v3544
        %v3609 = vmul.f32 %v3392, %v3545
        %v3610 = vmul.f32 %v3441, %v3546
        %v3611 = vmul.f32 %v3490, %v3547
        %v3612 = vmul.f32 %v3345, %v3548
        %v3613 = vmul.f32 %v3394, %v3549
        %v3614 = vmul.f32 %v3443, %v3550
        %v3615 = vmul.f32 %v3492, %v3551
        %v3616 = vmul.f32 %v3348, %v3552
        %v3617 = vmul.f32 %v3397, %v3553
        %v3618 = vmul.f32 %v3446, %v3554
        %v3619 = vmul.f32 %v3495, %v3555
        %v3620 = vmul.f32 %v3350, %v3556
        %v3621 = vmul.f32 %v3399, %v3557
        %v3622 = vmul.f32 %v3448, %v3558
        %v3623 = vmul.f32 %v3497, %v3559
        %v3624 = vmul.f32 %v3353, %v3560
        %v3625 = vmul.f32 %v3402, %v3561
        %v3626 = vmul.f32 %v3451, %v3562
        %v3627 = vmul.f32 %v3500, %v3563
        %v3628 = vmul.f32 %v3355, %v3564
        %v3629 = vmul.f32 %v3404, %v3565
        %v3630 = vmul.f32 %v3453, %v3566
        %v3631 = vmul.f32 %v3502, %v3567
        %v3632 = vmul.f32 %v3568, 0.044715
        %v3633 = vmul.f32 %v3569, 0.044715
        %v3634 = vmul.f32 %v3570, 0.044715
        %v3635 = vmul.f32 %v3571, 0.044715
        %v3636 = vmul.f32 %v3572, 0.044715
        %v3637 = vmul.f32 %v3573, 0.044715
        %v3638 = vmul.f32 %v3574, 0.044715
        %v3639 = vmul.f32 %v3575, 0.044715
        %v3640 = vmul.f32 %v3576, 0.044715
        %v3641 = vmul.f32 %v3577, 0.044715
        %v3642 = vmul.f32 %v3578, 0.044715
        %v3643 = vmul.f32 %v3579, 0.044715
        %v3644 = vmul.f32 %v3580, 0.044715
        %v3645 = vmul.f32 %v3581, 0.044715
        %v3646 = vmul.f32 %v3582, 0.044715
        %v3647 = vmul.f32 %v3583, 0.044715
        %v3648 = vmul.f32 %v3584, 0.044715
        %v3649 = vmul.f32 %v3585, 0.044715
        %v3650 = vmul.f32 %v3586, 0.044715
        %v3651 = vmul.f32 %v3587, 0.044715
        %v3652 = vmul.f32 %v3588, 0.044715
        %v3653 = vmul.f32 %v3589, 0.044715
        %v3654 = vmul.f32 %v3590, 0.044715
        %v3655 = vmul.f32 %v3591, 0.044715
        %v3656 = vmul.f32 %v3592, 0.044715
        %v3657 = vmul.f32 %v3593, 0.044715
        %v3658 = vmul.f32 %v3594, 0.044715
        %v3659 = vmul.f32 %v3595, 0.044715
        %v3660 = vmul.f32 %v3596, 0.044715
        %v3661 = vmul.f32 %v3597, 0.044715
        %v3662 = vmul.f32 %v3598, 0.044715
        %v3663 = vmul.f32 %v3599, 0.044715
        %v3664 = vmul.f32 %v3600, 0.044715
        %v3665 = vmul.f32 %v3601, 0.044715
        %v3666 = vmul.f32 %v3602, 0.044715
        %v3667 = vmul.f32 %v3603, 0.044715
        %v3668 = vmul.f32 %v3604, 0.044715
        %v3669 = vmul.f32 %v3605, 0.044715
        %v3670 = vmul.f32 %v3606, 0.044715
        %v3671 = vmul.f32 %v3607, 0.044715
        %v3672 = vmul.f32 %v3608, 0.044715
        %v3673 = vmul.f32 %v3609, 0.044715
        %v3674 = vmul.f32 %v3610, 0.044715
        %v3675 = vmul.f32 %v3611, 0.044715
        %v3676 = vmul.f32 %v3612, 0.044715
        %v3677 = vmul.f32 %v3613, 0.044715
        %v3678 = vmul.f32 %v3614, 0.044715
        %v3679 = vmul.f32 %v3615, 0.044715
        %v3680 = vmul.f32 %v3616, 0.044715
        %v3681 = vmul.f32 %v3617, 0.044715
        %v3682 = vmul.f32 %v3618, 0.044715
        %v3683 = vmul.f32 %v3619, 0.044715
        %v3684 = vmul.f32 %v3620, 0.044715
        %v3685 = vmul.f32 %v3621, 0.044715
        %v3686 = vmul.f32 %v3622, 0.044715
        %v3687 = vmul.f32 %v3623, 0.044715
        %v3688 = vmul.f32 %v3624, 0.044715
        %v3689 = vmul.f32 %v3625, 0.044715
        %v3690 = vmul.f32 %v3626, 0.044715
        %v3691 = vmul.f32 %v3627, 0.044715
        %v3692 = vmul.f32 %v3628, 0.044715
        %v3693 = vmul.f32 %v3629, 0.044715
        %v3694 = vmul.f32 %v3630, 0.044715
        %v3695 = vmul.f32 %v3631, 0.044715
        %v3696 = vadd.f32 %v3318, %v3632
        %v3697 = vadd.f32 %v3367, %v3633
        %v3698 = vadd.f32 %v3416, %v3634
        %v3699 = vadd.f32 %v3465, %v3635
        %v3700 = vadd.f32 %v3320, %v3636
        %v3701 = vadd.f32 %v3369, %v3637
        %v3702 = vadd.f32 %v3418, %v3638
        %v3703 = vadd.f32 %v3467, %v3639
        %v3704 = vadd.f32 %v3323, %v3640
        %v3705 = vadd.f32 %v3372, %v3641
        %v3706 = vadd.f32 %v3421, %v3642
        %v3707 = vadd.f32 %v3470, %v3643
        %v3708 = vadd.f32 %v3325, %v3644
        %v3709 = vadd.f32 %v3374, %v3645
        %v3710 = vadd.f32 %v3423, %v3646
        %v3711 = vadd.f32 %v3472, %v3647
        %v3712 = vadd.f32 %v3328, %v3648
        %v3713 = vadd.f32 %v3377, %v3649
        %v3714 = vadd.f32 %v3426, %v3650
        %v3715 = vadd.f32 %v3475, %v3651
        %v3716 = vadd.f32 %v3330, %v3652
        %v3717 = vadd.f32 %v3379, %v3653
        %v3718 = vadd.f32 %v3428, %v3654
        %v3719 = vadd.f32 %v3477, %v3655
        %v3720 = vadd.f32 %v3333, %v3656
        %v3721 = vadd.f32 %v3382, %v3657
        %v3722 = vadd.f32 %v3431, %v3658
        %v3723 = vadd.f32 %v3480, %v3659
        %v3724 = vadd.f32 %v3335, %v3660
        %v3725 = vadd.f32 %v3384, %v3661
        %v3726 = vadd.f32 %v3433, %v3662
        %v3727 = vadd.f32 %v3482, %v3663
        %v3728 = vadd.f32 %v3338, %v3664
        %v3729 = vadd.f32 %v3387, %v3665
        %v3730 = vadd.f32 %v3436, %v3666
        %v3731 = vadd.f32 %v3485, %v3667
        %v3732 = vadd.f32 %v3340, %v3668
        %v3733 = vadd.f32 %v3389, %v3669
        %v3734 = vadd.f32 %v3438, %v3670
        %v3735 = vadd.f32 %v3487, %v3671
        %v3736 = vadd.f32 %v3343, %v3672
        %v3737 = vadd.f32 %v3392, %v3673
        %v3738 = vadd.f32 %v3441, %v3674
        %v3739 = vadd.f32 %v3490, %v3675
        %v3740 = vadd.f32 %v3345, %v3676
        %v3741 = vadd.f32 %v3394, %v3677
        %v3742 = vadd.f32 %v3443, %v3678
        %v3743 = vadd.f32 %v3492, %v3679
        %v3744 = vadd.f32 %v3348, %v3680
        %v3745 = vadd.f32 %v3397, %v3681
        %v3746 = vadd.f32 %v3446, %v3682
        %v3747 = vadd.f32 %v3495, %v3683
        %v3748 = vadd.f32 %v3350, %v3684
        %v3749 = vadd.f32 %v3399, %v3685
        %v3750 = vadd.f32 %v3448, %v3686
        %v3751 = vadd.f32 %v3497, %v3687
        %v3752 = vadd.f32 %v3353, %v3688
        %v3753 = vadd.f32 %v3402, %v3689
        %v3754 = vadd.f32 %v3451, %v3690
        %v3755 = vadd.f32 %v3500, %v3691
        %v3756 = vadd.f32 %v3355, %v3692
        %v3757 = vadd.f32 %v3404, %v3693
        %v3758 = vadd.f32 %v3453, %v3694
        %v3759 = vadd.f32 %v3502, %v3695
        %v3760 = vmul.f32 %v3696, 0.7978846
        %v3761 = vmul.f32 %v3697, 0.7978846
        %v3762 = vmul.f32 %v3698, 0.7978846
        %v3763 = vmul.f32 %v3699, 0.7978846
        %v3764 = vmul.f32 %v3700, 0.7978846
        %v3765 = vmul.f32 %v3701, 0.7978846
        %v3766 = vmul.f32 %v3702, 0.7978846
        %v3767 = vmul.f32 %v3703, 0.7978846
        %v3768 = vmul.f32 %v3704, 0.7978846
        %v3769 = vmul.f32 %v3705, 0.7978846
        %v3770 = vmul.f32 %v3706, 0.7978846
        %v3771 = vmul.f32 %v3707, 0.7978846
        %v3772 = vmul.f32 %v3708, 0.7978846
        %v3773 = vmul.f32 %v3709, 0.7978846
        %v3774 = vmul.f32 %v3710, 0.7978846
        %v3775 = vmul.f32 %v3711, 0.7978846
        %v3776 = vmul.f32 %v3712, 0.7978846
        %v3777 = vmul.f32 %v3713, 0.7978846
        %v3778 = vmul.f32 %v3714, 0.7978846
        %v3779 = vmul.f32 %v3715, 0.7978846
        %v3780 = vmul.f32 %v3716, 0.7978846
        %v3781 = vmul.f32 %v3717, 0.7978846
        %v3782 = vmul.f32 %v3718, 0.7978846
        %v3783 = vmul.f32 %v3719, 0.7978846
        %v3784 = vmul.f32 %v3720, 0.7978846
        %v3785 = vmul.f32 %v3721, 0.7978846
        %v3786 = vmul.f32 %v3722, 0.7978846
        %v3787 = vmul.f32 %v3723, 0.7978846
        %v3788 = vmul.f32 %v3724, 0.7978846
        %v3789 = vmul.f32 %v3725, 0.7978846
        %v3790 = vmul.f32 %v3726, 0.7978846
        %v3791 = vmul.f32 %v3727, 0.7978846
        %v3792 = vmul.f32 %v3728, 0.7978846
        %v3793 = vmul.f32 %v3729, 0.7978846
        %v3794 = vmul.f32 %v3730, 0.7978846
        %v3795 = vmul.f32 %v3731, 0.7978846
        %v3796 = vmul.f32 %v3732, 0.7978846
        %v3797 = vmul.f32 %v3733, 0.7978846
        %v3798 = vmul.f32 %v3734, 0.7978846
        %v3799 = vmul.f32 %v3735, 0.7978846
        %v3800 = vmul.f32 %v3736, 0.7978846
        %v3801 = vmul.f32 %v3737, 0.7978846
        %v3802 = vmul.f32 %v3738, 0.7978846
        %v3803 = vmul.f32 %v3739, 0.7978846
        %v3804 = vmul.f32 %v3740, 0.7978846
        %v3805 = vmul.f32 %v3741, 0.7978846
        %v3806 = vmul.f32 %v3742, 0.7978846
        %v3807 = vmul.f32 %v3743, 0.7978846
        %v3808 = vmul.f32 %v3744, 0.7978846
        %v3809 = vmul.f32 %v3745, 0.7978846
        %v3810 = vmul.f32 %v3746, 0.7978846
        %v3811 = vmul.f32 %v3747, 0.7978846
        %v3812 = vmul.f32 %v3748, 0.7978846
        %v3813 = vmul.f32 %v3749, 0.7978846
        %v3814 = vmul.f32 %v3750, 0.7978846
        %v3815 = vmul.f32 %v3751, 0.7978846
        %v3816 = vmul.f32 %v3752, 0.7978846
        %v3817 = vmul.f32 %v3753, 0.7978846
        %v3818 = vmul.f32 %v3754, 0.7978846
        %v3819 = vmul.f32 %v3755, 0.7978846
        %v3820 = vmul.f32 %v3756, 0.7978846
        %v3821 = vmul.f32 %v3757, 0.7978846
        %v3822 = vmul.f32 %v3758, 0.7978846
        %v3823 = vmul.f32 %v3759, 0.7978846
        %v3824 = vtanh.pop %v3760
        %v3825 = vtanh.pop %v3761
        %v3826 = vtanh.pop %v3762
        %v3827 = vtanh.pop %v3763
        %v3828 = vtanh.pop %v3764
        %v3829 = vtanh.pop %v3765
        %v3830 = vtanh.pop %v3766
        %v3831 = vtanh.pop %v3767
        %v3832 = vtanh.pop %v3768
        %v3833 = vtanh.pop %v3769
        %v3834 = vtanh.pop %v3770
        %v3835 = vtanh.pop %v3771
        %v3836 = vtanh.pop %v3772
        %v3837 = vtanh.pop %v3773
        %v3838 = vtanh.pop %v3774
        %v3839 = vtanh.pop %v3775
        %v3840 = vtanh.pop %v3776
        %v3841 = vtanh.pop %v3777
        %v3842 = vtanh.pop %v3778
        %v3843 = vtanh.pop %v3779
        %v3844 = vtanh.pop %v3780
        %v3845 = vtanh.pop %v3781
        %v3846 = vtanh.pop %v3782
        %v3847 = vtanh.pop %v3783
        %v3848 = vtanh.pop %v3784
        %v3849 = vtanh.pop %v3785
        %v3850 = vtanh.pop %v3786
        %v3851 = vtanh.pop %v3787
        %v3852 = vtanh.pop %v3788
        %v3853 = vtanh.pop %v3789
        %v3854 = vtanh.pop %v3790
        %v3855 = vtanh.pop %v3791
        %v3856 = vtanh.pop %v3792
        %v3857 = vtanh.pop %v3793
        %v3858 = vtanh.pop %v3794
        %v3859 = vtanh.pop %v3795
        %v3860 = vtanh.pop %v3796
        %v3861 = vtanh.pop %v3797
        %v3862 = vtanh.pop %v3798
        %v3863 = vtanh.pop %v3799
        %v3864 = vtanh.pop %v3800
        %v3865 = vtanh.pop %v3801
        %v3866 = vtanh.pop %v3802
        %v3867 = vtanh.pop %v3803
        %v3868 = vtanh.pop %v3804
        %v3869 = vtanh.pop %v3805
        %v3870 = vtanh.pop %v3806
        %v3871 = vtanh.pop %v3807
        %v3872 = vtanh.pop %v3808
        %v3873 = vtanh.pop %v3809
        %v3874 = vtanh.pop %v3810
        %v3875 = vtanh.pop %v3811
        %v3876 = vtanh.pop %v3812
        %v3877 = vtanh.pop %v3813
        %v3878 = vtanh.pop %v3814
        %v3879 = vtanh.pop %v3815
        %v3880 = vtanh.pop %v3816
        %v3881 = vtanh.pop %v3817
        %v3882 = vtanh.pop %v3818
        %v3883 = vtanh.pop %v3819
        %v3884 = vtanh.pop %v3820
        %v3885 = vtanh.pop %v3821
        %v3886 = vtanh.pop %v3822
        %v3887 = vtanh.pop %v3823
        %v3888 = vadd.f32 %v3824, 1.0
        %v3889 = vadd.f32 %v3825, 1.0
        %v3890 = vadd.f32 %v3826, 1.0
        %v3891 = vadd.f32 %v3827, 1.0
        %v3892 = vadd.f32 %v3828, 1.0
        %v3893 = vadd.f32 %v3829, 1.0
        %v3894 = vadd.f32 %v3830, 1.0
        %v3895 = vadd.f32 %v3831, 1.0
        %v3896 = vadd.f32 %v3832, 1.0
        %v3897 = vadd.f32 %v3833, 1.0
        %v3898 = vadd.f32 %v3834, 1.0
        %v3899 = vadd.f32 %v3835, 1.0
        %v3900 = vadd.f32 %v3836, 1.0
        %v3901 = vadd.f32 %v3837, 1.0
        %v3902 = vadd.f32 %v3838, 1.0
        %v3903 = vadd.f32 %v3839, 1.0
        %v3904 = vadd.f32 %v3840, 1.0
        %v3905 = vadd.f32 %v3841, 1.0
        %v3906 = vadd.f32 %v3842, 1.0
        %v3907 = vadd.f32 %v3843, 1.0
        %v3908 = vadd.f32 %v3844, 1.0
        %v3909 = vadd.f32 %v3845, 1.0
        %v3910 = vadd.f32 %v3846, 1.0
        %v3911 = vadd.f32 %v3847, 1.0
        %v3912 = vadd.f32 %v3848, 1.0
        %v3913 = vadd.f32 %v3849, 1.0
        %v3914 = vadd.f32 %v3850, 1.0
        %v3915 = vadd.f32 %v3851, 1.0
        %v3916 = vadd.f32 %v3852, 1.0
        %v3917 = vadd.f32 %v3853, 1.0
        %v3918 = vadd.f32 %v3854, 1.0
        %v3919 = vadd.f32 %v3855, 1.0
        %v3920 = vadd.f32 %v3856, 1.0
        %v3921 = vadd.f32 %v3857, 1.0
        %v3922 = vadd.f32 %v3858, 1.0
        %v3923 = vadd.f32 %v3859, 1.0
        %v3924 = vadd.f32 %v3860, 1.0
        %v3925 = vadd.f32 %v3861, 1.0
        %v3926 = vadd.f32 %v3862, 1.0
        %v3927 = vadd.f32 %v3863, 1.0
        %v3928 = vadd.f32 %v3864, 1.0
        %v3929 = vadd.f32 %v3865, 1.0
        %v3930 = vadd.f32 %v3866, 1.0
        %v3931 = vadd.f32 %v3867, 1.0
        %v3932 = vadd.f32 %v3868, 1.0
        %v3933 = vadd.f32 %v3869, 1.0
        %v3934 = vadd.f32 %v3870, 1.0
        %v3935 = vadd.f32 %v3871, 1.0
        %v3936 = vadd.f32 %v3872, 1.0
        %v3937 = vadd.f32 %v3873, 1.0
        %v3938 = vadd.f32 %v3874, 1.0
        %v3939 = vadd.f32 %v3875, 1.0
        %v3940 = vadd.f32 %v3876, 1.0
        %v3941 = vadd.f32 %v3877, 1.0
        %v3942 = vadd.f32 %v3878, 1.0
        %v3943 = vadd.f32 %v3879, 1.0
        %v3944 = vadd.f32 %v3880, 1.0
        %v3945 = vadd.f32 %v3881, 1.0
        %v3946 = vadd.f32 %v3882, 1.0
        %v3947 = vadd.f32 %v3883, 1.0
        %v3948 = vadd.f32 %v3884, 1.0
        %v3949 = vadd.f32 %v3885, 1.0
        %v3950 = vadd.f32 %v3886, 1.0
        %v3951 = vadd.f32 %v3887, 1.0
        %v3952 = vmul.f32 %v3888, 0.5
        %v3953 = vmul.f32 %v3889, 0.5
        %v3954 = vmul.f32 %v3890, 0.5
        %v3955 = vmul.f32 %v3891, 0.5
        %v3956 = vmul.f32 %v3892, 0.5
        %v3957 = vmul.f32 %v3893, 0.5
        %v3958 = vmul.f32 %v3894, 0.5
        %v3959 = vmul.f32 %v3895, 0.5
        %v3960 = vmul.f32 %v3896, 0.5
        %v3961 = vmul.f32 %v3897, 0.5
        %v3962 = vmul.f32 %v3898, 0.5
        %v3963 = vmul.f32 %v3899, 0.5
        %v3964 = vmul.f32 %v3900, 0.5
        %v3965 = vmul.f32 %v3901, 0.5
        %v3966 = vmul.f32 %v3902, 0.5
        %v3967 = vmul.f32 %v3903, 0.5
        %v3968 = vmul.f32 %v3904, 0.5
        %v3969 = vmul.f32 %v3905, 0.5
        %v3970 = vmul.f32 %v3906, 0.5
        %v3971 = vmul.f32 %v3907, 0.5
        %v3972 = vmul.f32 %v3908, 0.5
        %v3973 = vmul.f32 %v3909, 0.5
        %v3974 = vmul.f32 %v3910, 0.5
        %v3975 = vmul.f32 %v3911, 0.5
        %v3976 = vmul.f32 %v3912, 0.5
        %v3977 = vmul.f32 %v3913, 0.5
        %v3978 = vmul.f32 %v3914, 0.5
        %v3979 = vmul.f32 %v3915, 0.5
        %v3980 = vmul.f32 %v3916, 0.5
        %v3981 = vmul.f32 %v3917, 0.5
        %v3982 = vmul.f32 %v3918, 0.5
        %v3983 = vmul.f32 %v3919, 0.5
        %v3984 = vmul.f32 %v3920, 0.5
        %v3985 = vmul.f32 %v3921, 0.5
        %v3986 = vmul.f32 %v3922, 0.5
        %v3987 = vmul.f32 %v3923, 0.5
        %v3988 = vmul.f32 %v3924, 0.5
        %v3989 = vmul.f32 %v3925, 0.5
        %v3990 = vmul.f32 %v3926, 0.5
        %v3991 = vmul.f32 %v3927, 0.5
        %v3992 = vmul.f32 %v3928, 0.5
        %v3993 = vmul.f32 %v3929, 0.5
        %v3994 = vmul.f32 %v3930, 0.5
        %v3995 = vmul.f32 %v3931, 0.5
        %v3996 = vmul.f32 %v3932, 0.5
        %v3997 = vmul.f32 %v3933, 0.5
        %v3998 = vmul.f32 %v3934, 0.5
        %v3999 = vmul.f32 %v3935, 0.5
        %v4000 = vmul.f32 %v3936, 0.5
        %v4001 = vmul.f32 %v3937, 0.5
        %v4002 = vmul.f32 %v3938, 0.5
        %v4003 = vmul.f32 %v3939, 0.5
        %v4004 = vmul.f32 %v3940, 0.5
        %v4005 = vmul.f32 %v3941, 0.5
        %v4006 = vmul.f32 %v3942, 0.5
        %v4007 = vmul.f32 %v3943, 0.5
        %v4008 = vmul.f32 %v3944, 0.5
        %v4009 = vmul.f32 %v3945, 0.5
        %v4010 = vmul.f32 %v3946, 0.5
        %v4011 = vmul.f32 %v3947, 0.5
        %v4012 = vmul.f32 %v3948, 0.5
        %v4013 = vmul.f32 %v3949, 0.5
        %v4014 = vmul.f32 %v3950, 0.5
        %v4015 = vmul.f32 %v3951, 0.5
        %v4016 = vmul.f32 %v3318, %v3952
        %v4017 = vmul.f32 %v3367, %v3953
        %v4018 = vmul.f32 %v3416, %v3954
        %v4019 = vmul.f32 %v3465, %v3955
        %v4020 = vmul.f32 %v3320, %v3956
        %v4021 = vmul.f32 %v3369, %v3957
        %v4022 = vmul.f32 %v3418, %v3958
        %v4023 = vmul.f32 %v3467, %v3959
        %v4024 = vmul.f32 %v3323, %v3960
        %v4025 = vmul.f32 %v3372, %v3961
        %v4026 = vmul.f32 %v3421, %v3962
        %v4027 = vmul.f32 %v3470, %v3963
        %v4028 = vmul.f32 %v3325, %v3964
        %v4029 = vmul.f32 %v3374, %v3965
        %v4030 = vmul.f32 %v3423, %v3966
        %v4031 = vmul.f32 %v3472, %v3967
        %v4032 = vmul.f32 %v3328, %v3968
        %v4033 = vmul.f32 %v3377, %v3969
        %v4034 = vmul.f32 %v3426, %v3970
        %v4035 = vmul.f32 %v3475, %v3971
        %v4036 = vmul.f32 %v3330, %v3972
        %v4037 = vmul.f32 %v3379, %v3973
        %v4038 = vmul.f32 %v3428, %v3974
        %v4039 = vmul.f32 %v3477, %v3975
        %v4040 = vmul.f32 %v3333, %v3976
        %v4041 = vmul.f32 %v3382, %v3977
        %v4042 = vmul.f32 %v3431, %v3978
        %v4043 = vmul.f32 %v3480, %v3979
        %v4044 = vmul.f32 %v3335, %v3980
        %v4045 = vmul.f32 %v3384, %v3981
        %v4046 = vmul.f32 %v3433, %v3982
        %v4047 = vmul.f32 %v3482, %v3983
        %v4048 = vmul.f32 %v3338, %v3984
        %v4049 = vmul.f32 %v3387, %v3985
        %v4050 = vmul.f32 %v3436, %v3986
        %v4051 = vmul.f32 %v3485, %v3987
        %v4052 = vmul.f32 %v3340, %v3988
        %v4053 = vmul.f32 %v3389, %v3989
        %v4054 = vmul.f32 %v3438, %v3990
        %v4055 = vmul.f32 %v3487, %v3991
        %v4056 = vmul.f32 %v3343, %v3992
        %v4057 = vmul.f32 %v3392, %v3993
        %v4058 = vmul.f32 %v3441, %v3994
        %v4059 = vmul.f32 %v3490, %v3995
        %v4060 = vmul.f32 %v3345, %v3996
        %v4061 = vmul.f32 %v3394, %v3997
        %v4062 = vmul.f32 %v3443, %v3998
        %v4063 = vmul.f32 %v3492, %v3999
        %v4064 = vmul.f32 %v3348, %v4000
        %v4065 = vmul.f32 %v3397, %v4001
        %v4066 = vmul.f32 %v3446, %v4002
        %v4067 = vmul.f32 %v3495, %v4003
        %v4068 = vmul.f32 %v3350, %v4004
        %v4069 = vmul.f32 %v3399, %v4005
        %v4070 = vmul.f32 %v3448, %v4006
        %v4071 = vmul.f32 %v3497, %v4007
        %v4072 = vmul.f32 %v3353, %v4008
        %v4073 = vmul.f32 %v3402, %v4009
        %v4074 = vmul.f32 %v3451, %v4010
        %v4075 = vmul.f32 %v3500, %v4011
        %v4076 = vmul.f32 %v3355, %v4012
        %v4077 = vmul.f32 %v3404, %v4013
        %v4078 = vmul.f32 %v3453, %v4014
        %v4079 = vmul.f32 %v3502, %v4015
        %v4080 = vpack.c.bf16 %v4020, %v4016
        %v4081 = vpack.c.bf16 %v4021, %v4017
        %v4082 = vpack.c.bf16 %v4022, %v4018
        %v4083 = vpack.c.bf16 %v4023, %v4019
        %v4084 = vpack.c.bf16 %v4028, %v4024
        %v4085 = vpack.c.bf16 %v4029, %v4025
        %v4086 = vpack.c.bf16 %v4030, %v4026
        %v4087 = vpack.c.bf16 %v4031, %v4027
        %v4088 = vpack.c.bf16 %v4036, %v4032
        %v4089 = vpack.c.bf16 %v4037, %v4033
        %v4090 = vpack.c.bf16 %v4038, %v4034
        %v4091 = vpack.c.bf16 %v4039, %v4035
        %v4092 = vpack.c.bf16 %v4044, %v4040
        %v4093 = vpack.c.bf16 %v4045, %v4041
        %v4094 = vpack.c.bf16 %v4046, %v4042
        %v4095 = vpack.c.bf16 %v4047, %v4043
        %v4096 = vpack.c.bf16 %v4052, %v4048
        %v4097 = vpack.c.bf16 %v4053, %v4049
        %v4098 = vpack.c.bf16 %v4054, %v4050
        %v4099 = vpack.c.bf16 %v4055, %v4051
        %v4100 = vpack.c.bf16 %v4060, %v4056
        %v4101 = vpack.c.bf16 %v4061, %v4057
        %v4102 = vpack.c.bf16 %v4062, %v4058
        %v4103 = vpack.c.bf16 %v4063, %v4059
        %v4104 = vpack.c.bf16 %v4068, %v4064
        %v4105 = vpack.c.bf16 %v4069, %v4065
        %v4106 = vpack.c.bf16 %v4070, %v4066
        %v4107 = vpack.c.bf16 %v4071, %v4067
        %v4108 = vpack.c.bf16 %v4076, %v4072
        %v4109 = vpack.c.bf16 %v4077, %v4073
        %v4110 = vpack.c.bf16 %v4078, %v4074
        %v4111 = vpack.c.bf16 %v4079, %v4075
        %v4112 = vld [vmem:[#allocation19] sm:$0xf]
        %v4113 = vld [vmem:[#allocation19 + $0x4] sm:$0xf]
        %v4114 = vld [vmem:[#allocation19 + $0x8] sm:$0xf]
        %v4115 = vld [vmem:[#allocation19 + $0xc] sm:$0xf]
        %v4116 = vld [vmem:[#allocation19 + $0x10] sm:$0xf]
        %v4117 = vld [vmem:[#allocation19 + $0x14] sm:$0xf]
        %v4118 = vld [vmem:[#allocation19 + $0x18] sm:$0xf]
        %v4119 = vld [vmem:[#allocation19 + $0x1c] sm:$0xf]
        %v4120 = vld [vmem:[#allocation19 + $0x20] sm:$0xf]
        %v4121 = vld [vmem:[#allocation19 + $0x24] sm:$0xf]
        %v4122 = vld [vmem:[#allocation19 + $0x28] sm:$0xf]
        %v4123 = vld [vmem:[#allocation19 + $0x2c] sm:$0xf]
        %v4124 = vld [vmem:[#allocation19 + $0x30] sm:$0xf]
        %v4125 = vld [vmem:[#allocation19 + $0x34] sm:$0xf]
        %v4126 = vld [vmem:[#allocation19 + $0x38] sm:$0xf]
        %v4127 = vld [vmem:[#allocation19 + $0x3c] sm:$0xf]
        %v4128 = vld [vmem:[#allocation19 + $0x40] sm:$0xf]
        %v4129 = vld [vmem:[#allocation19 + $0x44] sm:$0xf]
        %v4130 = vld [vmem:[#allocation19 + $0x48] sm:$0xf]
        %v4131 = vld [vmem:[#allocation19 + $0x4c] sm:$0xf]
        %v4132 = vld [vmem:[#allocation19 + $0x50] sm:$0xf]
        %v4133 = vld [vmem:[#allocation19 + $0x54] sm:$0xf]
        %v4134 = vld [vmem:[#allocation19 + $0x58] sm:$0xf]
        %v4135 = vld [vmem:[#allocation19 + $0x5c] sm:$0xf]
        %v4136 = vld [vmem:[#allocation19 + $0x60] sm:$0xf]
        %v4137 = vld [vmem:[#allocation19 + $0x64] sm:$0xf]
        %v4138 = vld [vmem:[#allocation19 + $0x68] sm:$0xf]
        %v4139 = vld [vmem:[#allocation19 + $0x6c] sm:$0xf]
        %v4140 = vld [vmem:[#allocation19 + $0x70] sm:$0xf]
        %v4141 = vld [vmem:[#allocation19 + $0x74] sm:$0xf]
        %v4142 = vld [vmem:[#allocation19 + $0x78] sm:$0xf]
        %v4143 = vld [vmem:[#allocation19 + $0x7c] sm:$0xf]
        %v4144 = vld [vmem:[#allocation19 + $0x80] sm:$0xf]
        %v4145 = vld [vmem:[#allocation19 + $0x84] sm:$0xf]
        %v4146 = vld [vmem:[#allocation19 + $0x88] sm:$0xf]
        %v4147 = vld [vmem:[#allocation19 + $0x8c] sm:$0xf]
        %v4148 = vld [vmem:[#allocation19 + $0x90] sm:$0xf]
        %v4149 = vld [vmem:[#allocation19 + $0x94] sm:$0xf]
        %v4150 = vld [vmem:[#allocation19 + $0x98] sm:$0xf]
        %v4151 = vld [vmem:[#allocation19 + $0x9c] sm:$0xf]
        %v4152 = vld [vmem:[#allocation19 + $0xa0] sm:$0xf]
        %v4153 = vld [vmem:[#allocation19 + $0xa4] sm:$0xf]
        %v4154 = vld [vmem:[#allocation19 + $0xa8] sm:$0xf]
        %v4155 = vld [vmem:[#allocation19 + $0xac] sm:$0xf]
        %v4156 = vld [vmem:[#allocation19 + $0xb0] sm:$0xf]
        %v4157 = vld [vmem:[#allocation19 + $0xb4] sm:$0xf]
        %v4158 = vld [vmem:[#allocation19 + $0xb8] sm:$0xf]
        %v4159 = vld [vmem:[#allocation19 + $0xbc] sm:$0xf]
        %v4160 = vld [vmem:[#allocation19 + $0xc0] sm:$0xf]
        %v4161 = vld [vmem:[#allocation19 + $0xc4] sm:$0xf]
        %v4162 = vld [vmem:[#allocation19 + $0xc8] sm:$0xf]
        %v4163 = vld [vmem:[#allocation19 + $0xcc] sm:$0xf]
        %v4164 = vld [vmem:[#allocation19 + $0xd0] sm:$0xf]
        %v4165 = vld [vmem:[#allocation19 + $0xd4] sm:$0xf]
        %v4166 = vld [vmem:[#allocation19 + $0xd8] sm:$0xf]
        %v4167 = vld [vmem:[#allocation19 + $0xdc] sm:$0xf]
        %v4168 = vld [vmem:[#allocation19 + $0xe0] sm:$0xf]
        %v4169 = vld [vmem:[#allocation19 + $0xe4] sm:$0xf]
        %v4170 = vld [vmem:[#allocation19 + $0xe8] sm:$0xf]
        %v4171 = vld [vmem:[#allocation19 + $0xec] sm:$0xf]
        %v4172 = vld [vmem:[#allocation19 + $0xf0] sm:$0xf]
        %v4173 = vld [vmem:[#allocation19 + $0xf4] sm:$0xf]
        %v4174 = vld [vmem:[#allocation19 + $0xf8] sm:$0xf]
        %v4175 = vld [vmem:[#allocation19 + $0xfc] sm:$0xf]
        %v4176 = vld [vmem:[%s20] sm:$0x1]
        %v4178 = vperm.slane %v4176, 0
        %v4244 = vunpack.c.l.b16 %v4112
        %v4245 = vunpack.c.l.b16 %v4113
        %v4246 = vunpack.c.l.b16 %v4114
        %v4247 = vunpack.c.l.b16 %v4115
        %v4248 = vunpack.c.l.b16 %v4116
        %v4249 = vunpack.c.l.b16 %v4117
        %v4250 = vunpack.c.l.b16 %v4118
        %v4251 = vunpack.c.l.b16 %v4119
        %v4252 = vunpack.c.l.b16 %v4120
        %v4253 = vunpack.c.l.b16 %v4121
        %v4254 = vunpack.c.l.b16 %v4122
        %v4255 = vunpack.c.l.b16 %v4123
        %v4256 = vunpack.c.l.b16 %v4124
        %v4257 = vunpack.c.l.b16 %v4125
        %v4258 = vunpack.c.l.b16 %v4126
        %v4259 = vunpack.c.l.b16 %v4127
        %v4260 = vunpack.c.l.b16 %v4128
        %v4261 = vunpack.c.l.b16 %v4129
        %v4262 = vunpack.c.l.b16 %v4130
        %v4263 = vunpack.c.l.b16 %v4131
        %v4264 = vunpack.c.l.b16 %v4132
        %v4265 = vunpack.c.l.b16 %v4133
        %v4266 = vunpack.c.l.b16 %v4134
        %v4267 = vunpack.c.l.b16 %v4135
        %v4268 = vunpack.c.l.b16 %v4136
        %v4269 = vunpack.c.l.b16 %v4137
        %v4270 = vunpack.c.l.b16 %v4138
        %v4271 = vunpack.c.l.b16 %v4139
        %v4272 = vunpack.c.l.b16 %v4140
        %v4273 = vunpack.c.l.b16 %v4141
        %v4274 = vunpack.c.l.b16 %v4142
        %v4275 = vunpack.c.l.b16 %v4143
        %v4276 = vunpack.c.l.b16 %v4144
        %v4277 = vunpack.c.l.b16 %v4145
        %v4278 = vunpack.c.l.b16 %v4146
        %v4279 = vunpack.c.l.b16 %v4147
        %v4280 = vunpack.c.l.b16 %v4148
        %v4281 = vunpack.c.l.b16 %v4149
        %v4282 = vunpack.c.l.b16 %v4150
        %v4283 = vunpack.c.l.b16 %v4151
        %v4284 = vunpack.c.l.b16 %v4152
        %v4285 = vunpack.c.l.b16 %v4153
        %v4286 = vunpack.c.l.b16 %v4154
        %v4287 = vunpack.c.l.b16 %v4155
        %v4288 = vunpack.c.l.b16 %v4156
        %v4289 = vunpack.c.l.b16 %v4157
        %v4290 = vunpack.c.l.b16 %v4158
        %v4291 = vunpack.c.l.b16 %v4159
        %v4292 = vunpack.c.l.b16 %v4160
        %v4293 = vunpack.c.l.b16 %v4161
        %v4294 = vunpack.c.l.b16 %v4162
        %v4295 = vunpack.c.l.b16 %v4163
        %v4296 = vunpack.c.l.b16 %v4164
        %v4297 = vunpack.c.l.b16 %v4165
        %v4298 = vunpack.c.l.b16 %v4166
        %v4299 = vunpack.c.l.b16 %v4167
        %v4300 = vunpack.c.l.b16 %v4168
        %v4301 = vunpack.c.l.b16 %v4169
        %v4302 = vunpack.c.l.b16 %v4170
        %v4303 = vunpack.c.l.b16 %v4171
        %v4304 = vunpack.c.l.b16 %v4172
        %v4305 = vunpack.c.l.b16 %v4173
        %v4306 = vunpack.c.l.b16 %v4174
        %v4307 = vunpack.c.l.b16 %v4175
        %v4308 = vpack.c.b16 %v4245, %v4244
        %v4309 = vpack.c.b16 %v4247, %v4246
        %v4310 = vpack.c.b16 %v4249, %v4248
        %v4311 = vpack.c.b16 %v4251, %v4250
        %v4312 = vpack.c.b16 %v4253, %v4252
        %v4313 = vpack.c.b16 %v4255, %v4254
        %v4314 = vpack.c.b16 %v4257, %v4256
        %v4315 = vpack.c.b16 %v4259, %v4258
        %v4316 = vpack.c.b16 %v4261, %v4260
        %v4317 = vpack.c.b16 %v4263, %v4262
        %v4318 = vpack.c.b16 %v4265, %v4264
        %v4319 = vpack.c.b16 %v4267, %v4266
        %v4320 = vpack.c.b16 %v4269, %v4268
        %v4321 = vpack.c.b16 %v4271, %v4270
        %v4322 = vpack.c.b16 %v4273, %v4272
        %v4323 = vpack.c.b16 %v4275, %v4274
        %v4324 = vpack.c.b16 %v4277, %v4276
        %v4325 = vpack.c.b16 %v4279, %v4278
        %v4326 = vpack.c.b16 %v4281, %v4280
        %v4327 = vpack.c.b16 %v4283, %v4282
        %v4328 = vpack.c.b16 %v4285, %v4284
        %v4329 = vpack.c.b16 %v4287, %v4286
        %v4330 = vpack.c.b16 %v4289, %v4288
        %v4331 = vpack.c.b16 %v4291, %v4290
        %v4332 = vpack.c.b16 %v4293, %v4292
        %v4333 = vpack.c.b16 %v4295, %v4294
        %v4334 = vpack.c.b16 %v4297, %v4296
        %v4335 = vpack.c.b16 %v4299, %v4298
        %v4336 = vpack.c.b16 %v4301, %v4300
        %v4337 = vpack.c.b16 %v4303, %v4302
        %v4338 = vpack.c.b16 %v4305, %v4304
        %v4339 = vpack.c.b16 %v4307, %v4306
        %4372 = vmatpush.bf16.msra.mxu0 %v4315
        %4373 = vmatpush.bf16.msra.mxu0 %v4314
        %4374 = vmatpush.bf16.msra.mxu0 %v4313
        %4375 = vmatpush.bf16.msra.mxu0 %v4312
        %4376 = vmatpush.bf16.msra.mxu0 %v4311
        %4377 = vmatpush.bf16.msra.mxu0 %v4310
        %4378 = vmatpush.bf16.msra.mxu0 %v4309
        %4379 = vmatpush.bf16.msra.mxu0 %v4308
        %4380 = vmatmul.bf16.gmra.mxu0 %v4080
        %v4381 = vpop.f32.mrf.mxu0
        %v4382 = vadd.f32 %v4178, %v4381
        %v4383 = vpop.f32.mrf.mxu0
        %v4384 = vadd.f32 %v4178, %v4383
        %4385 = vmatmul.bf16.gmra.mxu0 %v4084
        %v4386 = vpop.f32.mrf.mxu0
        %v4387 = vadd.f32 %v4178, %v4386
        %v4388 = vpop.f32.mrf.mxu0
        %v4389 = vadd.f32 %v4178, %v4388
        %4390 = vmatmul.bf16.gmra.mxu0 %v4088
        %v4391 = vpop.f32.mrf.mxu0
        %v4392 = vadd.f32 %v4178, %v4391
        %v4393 = vpop.f32.mrf.mxu0
        %v4394 = vadd.f32 %v4178, %v4393
        %4395 = vmatmul.bf16.gmra.mxu0 %v4092
        %v4396 = vpop.f32.mrf.mxu0
        %v4397 = vadd.f32 %v4178, %v4396
        %v4398 = vpop.f32.mrf.mxu0
        %v4399 = vadd.f32 %v4178, %v4398
        %4400 = vmatmul.bf16.gmra.mxu0 %v4096
        %v4401 = vpop.f32.mrf.mxu0
        %v4402 = vadd.f32 %v4178, %v4401
        %v4403 = vpop.f32.mrf.mxu0
        %v4404 = vadd.f32 %v4178, %v4403
        %4405 = vmatmul.bf16.gmra.mxu0 %v4100
        %v4406 = vpop.f32.mrf.mxu0
        %v4407 = vadd.f32 %v4178, %v4406
        %v4408 = vpop.f32.mrf.mxu0
        %v4409 = vadd.f32 %v4178, %v4408
        %4410 = vmatmul.bf16.gmra.mxu0 %v4104
        %v4411 = vpop.f32.mrf.mxu0
        %v4412 = vadd.f32 %v4178, %v4411
        %v4413 = vpop.f32.mrf.mxu0
        %v4414 = vadd.f32 %v4178, %v4413
        %4415 = vmatmul.bf16.gmra.mxu0 %v4108
        %v4416 = vpop.f32.mrf.mxu0
        %v4417 = vadd.f32 %v4178, %v4416
        %v4418 = vpop.f32.mrf.mxu0
        %v4419 = vadd.f32 %v4178, %v4418
        %4420 = vdwg.mxu0
        %4421 = vmatpush.bf16.msra.mxu0 %v4323
        %4422 = vmatpush.bf16.msra.mxu0 %v4322
        %4423 = vmatpush.bf16.msra.mxu0 %v4321
        %4424 = vmatpush.bf16.msra.mxu0 %v4320
        %4425 = vmatpush.bf16.msra.mxu0 %v4319
        %4426 = vmatpush.bf16.msra.mxu0 %v4318
        %4427 = vmatpush.bf16.msra.mxu0 %v4317
        %4428 = vmatpush.bf16.msra.mxu0 %v4316
        %4429 = vmatmul.bf16.gmra.mxu0 %v4081
        %v4430 = vpop.f32.mrf.mxu0
        %v4431 = vadd.f32 %v4382, %v4430
        %v4432 = vpop.f32.mrf.mxu0
        %v4433 = vadd.f32 %v4384, %v4432
        %4434 = vmatmul.bf16.gmra.mxu0 %v4085
        %v4435 = vpop.f32.mrf.mxu0
        %v4436 = vadd.f32 %v4387, %v4435
        %v4437 = vpop.f32.mrf.mxu0
        %v4438 = vadd.f32 %v4389, %v4437
        %4439 = vmatmul.bf16.gmra.mxu0 %v4089
        %v4440 = vpop.f32.mrf.mxu0
        %v4441 = vadd.f32 %v4392, %v4440
        %v4442 = vpop.f32.mrf.mxu0
        %v4443 = vadd.f32 %v4394, %v4442
        %4444 = vmatmul.bf16.gmra.mxu0 %v4093
        %v4445 = vpop.f32.mrf.mxu0
        %v4446 = vadd.f32 %v4397, %v4445
        %v4447 = vpop.f32.mrf.mxu0
        %v4448 = vadd.f32 %v4399, %v4447
        %4449 = vmatmul.bf16.gmra.mxu0 %v4097
        %v4450 = vpop.f32.mrf.mxu0
        %v4451 = vadd.f32 %v4402, %v4450
        %v4452 = vpop.f32.mrf.mxu0
        %v4453 = vadd.f32 %v4404, %v4452
        %4454 = vmatmul.bf16.gmra.mxu0 %v4101
        %v4455 = vpop.f32.mrf.mxu0
        %v4456 = vadd.f32 %v4407, %v4455
        %v4457 = vpop.f32.mrf.mxu0
        %v4458 = vadd.f32 %v4409, %v4457
        %4459 = vmatmul.bf16.gmra.mxu0 %v4105
        %v4460 = vpop.f32.mrf.mxu0
        %v4461 = vadd.f32 %v4412, %v4460
        %v4462 = vpop.f32.mrf.mxu0
        %v4463 = vadd.f32 %v4414, %v4462
        %4464 = vmatmul.bf16.gmra.mxu0 %v4109
        %v4465 = vpop.f32.mrf.mxu0
        %v4466 = vadd.f32 %v4417, %v4465
        %v4467 = vpop.f32.mrf.mxu0
        %v4468 = vadd.f32 %v4419, %v4467
        %4469 = vdwg.mxu0
        %4470 = vmatpush.bf16.msra.mxu0 %v4331
        %4471 = vmatpush.bf16.msra.mxu0 %v4330
        %4472 = vmatpush.bf16.msra.mxu0 %v4329
        %4473 = vmatpush.bf16.msra.mxu0 %v4328
        %4474 = vmatpush.bf16.msra.mxu0 %v4327
        %4475 = vmatpush.bf16.msra.mxu0 %v4326
        %4476 = vmatpush.bf16.msra.mxu0 %v4325
        %4477 = vmatpush.bf16.msra.mxu0 %v4324
        %4478 = vmatmul.bf16.gmra.mxu0 %v4082
        %v4479 = vpop.f32.mrf.mxu0
        %v4480 = vadd.f32 %v4431, %v4479
        %v4481 = vpop.f32.mrf.mxu0
        %v4482 = vadd.f32 %v4433, %v4481
        %4483 = vmatmul.bf16.gmra.mxu0 %v4086
        %v4484 = vpop.f32.mrf.mxu0
        %v4485 = vadd.f32 %v4436, %v4484
        %v4486 = vpop.f32.mrf.mxu0
        %v4487 = vadd.f32 %v4438, %v4486
        %4488 = vmatmul.bf16.gmra.mxu0 %v4090
        %v4489 = vpop.f32.mrf.mxu0
        %v4490 = vadd.f32 %v4441, %v4489
        %v4491 = vpop.f32.mrf.mxu0
        %v4492 = vadd.f32 %v4443, %v4491
        %4493 = vmatmul.bf16.gmra.mxu0 %v4094
        %v4494 = vpop.f32.mrf.mxu0
        %v4495 = vadd.f32 %v4446, %v4494
        %v4496 = vpop.f32.mrf.mxu0
        %v4497 = vadd.f32 %v4448, %v4496
        %4498 = vmatmul.bf16.gmra.mxu0 %v4098
        %v4499 = vpop.f32.mrf.mxu0
        %v4500 = vadd.f32 %v4451, %v4499
        %v4501 = vpop.f32.mrf.mxu0
        %v4502 = vadd.f32 %v4453, %v4501
        %4503 = vmatmul.bf16.gmra.mxu0 %v4102
        %v4504 = vpop.f32.mrf.mxu0
        %v4505 = vadd.f32 %v4456, %v4504
        %v4506 = vpop.f32.mrf.mxu0
        %v4507 = vadd.f32 %v4458, %v4506
        %4508 = vmatmul.bf16.gmra.mxu0 %v4106
        %v4509 = vpop.f32.mrf.mxu0
        %v4510 = vadd.f32 %v4461, %v4509
        %v4511 = vpop.f32.mrf.mxu0
        %v4512 = vadd.f32 %v4463, %v4511
        %4513 = vmatmul.bf16.gmra.mxu0 %v4110
        %v4514 = vpop.f32.mrf.mxu0
        %v4515 = vadd.f32 %v4466, %v4514
        %v4516 = vpop.f32.mrf.mxu0
        %v4517 = vadd.f32 %v4468, %v4516
        %4518 = vdwg.mxu0
        %4519 = vmatpush.bf16.msra.mxu0 %v4339
        %4520 = vmatpush.bf16.msra.mxu0 %v4338
        %4521 = vmatpush.bf16.msra.mxu0 %v4337
        %4522 = vmatpush.bf16.msra.mxu0 %v4336
        %4523 = vmatpush.bf16.msra.mxu0 %v4335
        %4524 = vmatpush.bf16.msra.mxu0 %v4334
        %4525 = vmatpush.bf16.msra.mxu0 %v4333
        %4526 = vmatpush.bf16.msra.mxu0 %v4332
        %4527 = vmatmul.bf16.gmra.mxu0 %v4083
        %v4528 = vpop.f32.mrf.mxu0
        %v4529 = vadd.f32 %v4480, %v4528
        %v4530 = vpop.f32.mrf.mxu0
        %v4531 = vadd.f32 %v4482, %v4530
        %4532 = vmatmul.bf16.gmra.mxu0 %v4087
        %v4533 = vpop.f32.mrf.mxu0
        %v4534 = vadd.f32 %v4485, %v4533
        %v4535 = vpop.f32.mrf.mxu0
        %v4536 = vadd.f32 %v4487, %v4535
        %4537 = vmatmul.bf16.gmra.mxu0 %v4091
        %v4538 = vpop.f32.mrf.mxu0
        %v4539 = vadd.f32 %v4490, %v4538
        %v4540 = vpop.f32.mrf.mxu0
        %v4541 = vadd.f32 %v4492, %v4540
        %4542 = vmatmul.bf16.gmra.mxu0 %v4095
        %v4543 = vpop.f32.mrf.mxu0
        %v4544 = vadd.f32 %v4495, %v4543
        %v4545 = vpop.f32.mrf.mxu0
        %v4546 = vadd.f32 %v4497, %v4545
        %4547 = vmatmul.bf16.gmra.mxu0 %v4099
        %v4548 = vpop.f32.mrf.mxu0
        %v4549 = vadd.f32 %v4500, %v4548
        %v4550 = vpop.f32.mrf.mxu0
        %v4551 = vadd.f32 %v4502, %v4550
        %4552 = vmatmul.bf16.gmra.mxu0 %v4103
        %v4553 = vpop.f32.mrf.mxu0
        %v4554 = vadd.f32 %v4505, %v4553
        %v4555 = vpop.f32.mrf.mxu0
        %v4556 = vadd.f32 %v4507, %v4555
        %4557 = vmatmul.bf16.gmra.mxu0 %v4107
        %v4558 = vpop.f32.mrf.mxu0
        %v4559 = vadd.f32 %v4510, %v4558
        %v4560 = vpop.f32.mrf.mxu0
        %v4561 = vadd.f32 %v4512, %v4560
        %4562 = vmatmul.bf16.gmra.mxu0 %v4111
        %v4563 = vpop.f32.mrf.mxu0
        %v4564 = vadd.f32 %v4515, %v4563
        %v4565 = vpop.f32.mrf.mxu0
        %v4566 = vadd.f32 %v4517, %v4565
        %4567 = vdwg.mxu0
        %v4568 = vadd.f32 %v2722, %v4529
        %v4569 = vadd.f32 %v2723, %v4531
        %v4570 = vadd.f32 %v2724, %v4534
        %v4571 = vadd.f32 %v2725, %v4536
        %v4572 = vadd.f32 %v2726, %v4539
        %v4573 = vadd.f32 %v2727, %v4541
        %v4574 = vadd.f32 %v2728, %v4544
        %v4575 = vadd.f32 %v2729, %v4546
        %v4576 = vadd.f32 %v2730, %v4549
        %v4577 = vadd.f32 %v2731, %v4551
        %v4578 = vadd.f32 %v2732, %v4554
        %v4579 = vadd.f32 %v2733, %v4556
        %v4580 = vadd.f32 %v2734, %v4559
        %v4581 = vadd.f32 %v2735, %v4561
        %v4582 = vadd.f32 %v2736, %v4564
        %v4583 = vadd.f32 %v2737, %v4566
        %4584 = vst [vmem:[#allocation2] sm:$0xff] %v4568
        %4585 = vst [vmem:[#allocation2 + $0x8] sm:$0xff] %v4569
        %4586 = vst [vmem:[#allocation2 + $0x10] sm:$0xff] %v4570
        %4587 = vst [vmem:[#allocation2 + $0x18] sm:$0xff] %v4571
        %4588 = vst [vmem:[#allocation2 + $0x20] sm:$0xff] %v4572
        %4589 = vst [vmem:[#allocation2 + $0x28] sm:$0xff] %v4573
        %4590 = vst [vmem:[#allocation2 + $0x30] sm:$0xff] %v4574
        %4591 = vst [vmem:[#allocation2 + $0x38] sm:$0xff] %v4575
        %4592 = vst [vmem:[#allocation2 + $0x40] sm:$0xff] %v4576
        %4593 = vst [vmem:[#allocation2 + $0x48] sm:$0xff] %v4577
        %4594 = vst [vmem:[#allocation2 + $0x50] sm:$0xff] %v4578
        %4595 = vst [vmem:[#allocation2 + $0x58] sm:$0xff] %v4579
        %4596 = vst [vmem:[#allocation2 + $0x60] sm:$0xff] %v4580
        %4597 = vst [vmem:[#allocation2 + $0x68] sm:$0xff] %v4581
        %4598 = vst [vmem:[#allocation2 + $0x70] sm:$0xff] %v4582
        %4599 = vst [vmem:[#allocation2 + $0x78] sm:$0xff] %v4583
        %v4600 = vld [vmem:[#allocation2] sm:$0xff]
        %v4601 = vld [vmem:[#allocation2 + $0x8] sm:$0xff]
        %v4602 = vld [vmem:[#allocation2 + $0x10] sm:$0xff]
        %v4603 = vld [vmem:[#allocation2 + $0x18] sm:$0xff]
        %v4604 = vld [vmem:[#allocation2 + $0x20] sm:$0xff]
        %v4605 = vld [vmem:[#allocation2 + $0x28] sm:$0xff]
        %v4606 = vld [vmem:[#allocation2 + $0x30] sm:$0xff]
        %v4607 = vld [vmem:[#allocation2 + $0x38] sm:$0xff]
        %v4608 = vld [vmem:[#allocation2 + $0x40] sm:$0xff]
        %v4609 = vld [vmem:[#allocation2 + $0x48] sm:$0xff]
        %v4610 = vld [vmem:[#allocation2 + $0x50] sm:$0xff]
        %v4611 = vld [vmem:[#allocation2 + $0x58] sm:$0xff]
        %v4612 = vld [vmem:[#allocation2 + $0x60] sm:$0xff]
        %v4613 = vld [vmem:[#allocation2 + $0x68] sm:$0xff]
        %v4614 = vld [vmem:[#allocation2 + $0x70] sm:$0xff]
        %v4615 = vld [vmem:[#allocation2 + $0x78] sm:$0xff]
        %s4616 = scalar_lea.vmem %s9, 1
        %v4617 = vld [vmem:[%s4616] sm:$0x1]
        %s4618 = scalar_lea.vmem [#allocation13], 1
        %v4619 = vld [vmem:[%s4618] sm:$0x1]
        %4620 = vadd.xlane.f32.xlu0 %v4600
        %v4621 = vpop.xlane.xlu0 %4620
        %4622 = vadd.xlane.f32.xlu0 %v4601
        %v4623 = vpop.xlane.xlu0 %4622
        %4624 = vadd.xlane.f32.xlu0 %v4602
        %v4625 = vpop.xlane.xlu0 %4624
        %4626 = vadd.xlane.f32.xlu0 %v4603
        %v4627 = vpop.xlane.xlu0 %4626
        %4628 = vadd.xlane.f32.xlu0 %v4604
        %v4629 = vpop.xlane.xlu0 %4628
        %4630 = vadd.xlane.f32.xlu0 %v4605
        %v4631 = vpop.xlane.xlu0 %4630
        %4632 = vadd.xlane.f32.xlu0 %v4606
        %v4633 = vpop.xlane.xlu0 %4632
        %4634 = vadd.xlane.f32.xlu0 %v4607
        %v4635 = vpop.xlane.xlu0 %4634
        %4636 = vadd.xlane.f32.xlu0 %v4608
        %v4637 = vpop.xlane.xlu0 %4636
        %4638 = vadd.xlane.f32.xlu0 %v4609
        %v4639 = vpop.xlane.xlu0 %4638
        %4640 = vadd.xlane.f32.xlu0 %v4610
        %v4641 = vpop.xlane.xlu0 %4640
        %4642 = vadd.xlane.f32.xlu0 %v4611
        %v4643 = vpop.xlane.xlu0 %4642
        %4644 = vadd.xlane.f32.xlu0 %v4612
        %v4645 = vpop.xlane.xlu0 %4644
        %4646 = vadd.xlane.f32.xlu0 %v4613
        %v4647 = vpop.xlane.xlu0 %4646
        %4648 = vadd.xlane.f32.xlu0 %v4614
        %v4649 = vpop.xlane.xlu0 %4648
        %4650 = vadd.xlane.f32.xlu0 %v4615
        %v4651 = vpop.xlane.xlu0 %4650
        %v4652 = vmul.f32 %v4621, %v1192
        %v4653 = vmul.f32 %v4623, %v1192
        %v4654 = vmul.f32 %v4625, %v1192
        %v4655 = vmul.f32 %v4627, %v1192
        %v4656 = vmul.f32 %v4629, %v1192
        %v4657 = vmul.f32 %v4631, %v1192
        %v4658 = vmul.f32 %v4633, %v1192
        %v4659 = vmul.f32 %v4635, %v1192
        %v4660 = vmul.f32 %v4637, %v1192
        %v4661 = vmul.f32 %v4639, %v1192
        %v4662 = vmul.f32 %v4641, %v1192
        %v4663 = vmul.f32 %v4643, %v1192
        %v4664 = vmul.f32 %v4645, %v1192
        %v4665 = vmul.f32 %v4647, %v1192
        %v4666 = vmul.f32 %v4649, %v1192
        %v4667 = vmul.f32 %v4651, %v1192
        %v4668 = vsub.f32 %v4600, %v4652
        %v4669 = vsub.f32 %v4601, %v4653
        %v4670 = vsub.f32 %v4602, %v4654
        %v4671 = vsub.f32 %v4603, %v4655
        %v4672 = vsub.f32 %v4604, %v4656
        %v4673 = vsub.f32 %v4605, %v4657
        %v4674 = vsub.f32 %v4606, %v4658
        %v4675 = vsub.f32 %v4607, %v4659
        %v4676 = vsub.f32 %v4608, %v4660
        %v4677 = vsub.f32 %v4609, %v4661
        %v4678 = vsub.f32 %v4610, %v4662
        %v4679 = vsub.f32 %v4611, %v4663
        %v4680 = vsub.f32 %v4612, %v4664
        %v4681 = vsub.f32 %v4613, %v4665
        %v4682 = vsub.f32 %v4614, %v4666
        %v4683 = vsub.f32 %v4615, %v4667
        %v4684 = vmul.f32 %v4668, %v4668
        %v4685 = vmul.f32 %v4669, %v4669
        %v4686 = vmul.f32 %v4670, %v4670
        %v4687 = vmul.f32 %v4671, %v4671
        %v4688 = vmul.f32 %v4672, %v4672
        %v4689 = vmul.f32 %v4673, %v4673
        %v4690 = vmul.f32 %v4674, %v4674
        %v4691 = vmul.f32 %v4675, %v4675
        %v4692 = vmul.f32 %v4676, %v4676
        %v4693 = vmul.f32 %v4677, %v4677
        %v4694 = vmul.f32 %v4678, %v4678
        %v4695 = vmul.f32 %v4679, %v4679
        %v4696 = vmul.f32 %v4680, %v4680
        %v4697 = vmul.f32 %v4681, %v4681
        %v4698 = vmul.f32 %v4682, %v4682
        %v4699 = vmul.f32 %v4683, %v4683
        %4700 = vadd.xlane.f32.xlu0 %v4684
        %v4701 = vpop.xlane.xlu0 %4700
        %4702 = vadd.xlane.f32.xlu0 %v4685
        %v4703 = vpop.xlane.xlu0 %4702
        %4704 = vadd.xlane.f32.xlu0 %v4686
        %v4705 = vpop.xlane.xlu0 %4704
        %4706 = vadd.xlane.f32.xlu0 %v4687
        %v4707 = vpop.xlane.xlu0 %4706
        %4708 = vadd.xlane.f32.xlu0 %v4688
        %v4709 = vpop.xlane.xlu0 %4708
        %4710 = vadd.xlane.f32.xlu0 %v4689
        %v4711 = vpop.xlane.xlu0 %4710
        %4712 = vadd.xlane.f32.xlu0 %v4690
        %v4713 = vpop.xlane.xlu0 %4712
        %4714 = vadd.xlane.f32.xlu0 %v4691
        %v4715 = vpop.xlane.xlu0 %4714
        %4716 = vadd.xlane.f32.xlu0 %v4692
        %v4717 = vpop.xlane.xlu0 %4716
        %4718 = vadd.xlane.f32.xlu0 %v4693
        %v4719 = vpop.xlane.xlu0 %4718
        %4720 = vadd.xlane.f32.xlu0 %v4694
        %v4721 = vpop.xlane.xlu0 %4720
        %4722 = vadd.xlane.f32.xlu0 %v4695
        %v4723 = vpop.xlane.xlu0 %4722
        %4724 = vadd.xlane.f32.xlu0 %v4696
        %v4725 = vpop.xlane.xlu0 %4724
        %4726 = vadd.xlane.f32.xlu0 %v4697
        %v4727 = vpop.xlane.xlu0 %4726
        %4728 = vadd.xlane.f32.xlu0 %v4698
        %v4729 = vpop.xlane.xlu0 %4728
        %4730 = vadd.xlane.f32.xlu0 %v4699
        %v4731 = vpop.xlane.xlu0 %4730
        %v4732 = vmul.f32 %v4701, %v1192
        %v4733 = vmul.f32 %v4703, %v1192
        %v4734 = vmul.f32 %v4705, %v1192
        %v4735 = vmul.f32 %v4707, %v1192
        %v4736 = vmul.f32 %v4709, %v1192
        %v4737 = vmul.f32 %v4711, %v1192
        %v4738 = vmul.f32 %v4713, %v1192
        %v4739 = vmul.f32 %v4715, %v1192
        %v4740 = vmul.f32 %v4717, %v1192
        %v4741 = vmul.f32 %v4719, %v1192
        %v4742 = vmul.f32 %v4721, %v1192
        %v4743 = vmul.f32 %v4723, %v1192
        %v4744 = vmul.f32 %v4725, %v1192
        %v4745 = vmul.f32 %v4727, %v1192
        %v4746 = vmul.f32 %v4729, %v1192
        %v4747 = vmul.f32 %v4731, %v1192
        %v4748 = vadd.f32 %v4732, 1e-05
        %v4749 = vadd.f32 %v4733, 1e-05
        %v4750 = vadd.f32 %v4734, 1e-05
        %v4751 = vadd.f32 %v4735, 1e-05
        %v4752 = vadd.f32 %v4736, 1e-05
        %v4753 = vadd.f32 %v4737, 1e-05
        %v4754 = vadd.f32 %v4738, 1e-05
        %v4755 = vadd.f32 %v4739, 1e-05
        %v4756 = vadd.f32 %v4740, 1e-05
        %v4757 = vadd.f32 %v4741, 1e-05
        %v4758 = vadd.f32 %v4742, 1e-05
        %v4759 = vadd.f32 %v4743, 1e-05
        %v4760 = vadd.f32 %v4744, 1e-05
        %v4761 = vadd.f32 %v4745, 1e-05
        %v4762 = vadd.f32 %v4746, 1e-05
        %v4763 = vadd.f32 %v4747, 1e-05
        %v4764 = vrsqrt.pop %v4748
        %v4765 = vmul.f32 %v4764, %v4748
        %v4766 = vmul.f32 %v4765, %v4764
        %v4767 = vmul.f32 0.5, %v4766
        %v4768 = vsub.f32 1.5, %v4767
        %v4769 = vmul.f32 %v4764, %v4768
        %vm4770 = vweird.f32 %v4748
        %vm4771 = vweird.f32 %v4764
        %vm4772 = vmor %vm4770, %vm4771
        %v4773 = vsel %vm4772, %v4764, %v4769
        %v4774 = vrsqrt.pop %v4749
        %v4775 = vmul.f32 %v4774, %v4749
        %v4776 = vmul.f32 %v4775, %v4774
        %v4777 = vmul.f32 0.5, %v4776
        %v4778 = vsub.f32 1.5, %v4777
        %v4779 = vmul.f32 %v4774, %v4778
        %vm4780 = vweird.f32 %v4749
        %vm4781 = vweird.f32 %v4774
        %vm4782 = vmor %vm4780, %vm4781
        %v4783 = vsel %vm4782, %v4774, %v4779
        %v4784 = vrsqrt.pop %v4750
        %v4785 = vmul.f32 %v4784, %v4750
        %v4786 = vmul.f32 %v4785, %v4784
        %v4787 = vmul.f32 0.5, %v4786
        %v4788 = vsub.f32 1.5, %v4787
        %v4789 = vmul.f32 %v4784, %v4788
        %vm4790 = vweird.f32 %v4750
        %vm4791 = vweird.f32 %v4784
        %vm4792 = vmor %vm4790, %vm4791
        %v4793 = vsel %vm4792, %v4784, %v4789
        %v4794 = vrsqrt.pop %v4751
        %v4795 = vmul.f32 %v4794, %v4751
        %v4796 = vmul.f32 %v4795, %v4794
        %v4797 = vmul.f32 0.5, %v4796
        %v4798 = vsub.f32 1.5, %v4797
        %v4799 = vmul.f32 %v4794, %v4798
        %vm4800 = vweird.f32 %v4751
        %vm4801 = vweird.f32 %v4794
        %vm4802 = vmor %vm4800, %vm4801
        %v4803 = vsel %vm4802, %v4794, %v4799
        %v4804 = vrsqrt.pop %v4752
        %v4805 = vmul.f32 %v4804, %v4752
        %v4806 = vmul.f32 %v4805, %v4804
        %v4807 = vmul.f32 0.5, %v4806
        %v4808 = vsub.f32 1.5, %v4807
        %v4809 = vmul.f32 %v4804, %v4808
        %vm4810 = vweird.f32 %v4752
        %vm4811 = vweird.f32 %v4804
        %vm4812 = vmor %vm4810, %vm4811
        %v4813 = vsel %vm4812, %v4804, %v4809
        %v4814 = vrsqrt.pop %v4753
        %v4815 = vmul.f32 %v4814, %v4753
        %v4816 = vmul.f32 %v4815, %v4814
        %v4817 = vmul.f32 0.5, %v4816
        %v4818 = vsub.f32 1.5, %v4817
        %v4819 = vmul.f32 %v4814, %v4818
        %vm4820 = vweird.f32 %v4753
        %vm4821 = vweird.f32 %v4814
        %vm4822 = vmor %vm4820, %vm4821
        %v4823 = vsel %vm4822, %v4814, %v4819
        %v4824 = vrsqrt.pop %v4754
        %v4825 = vmul.f32 %v4824, %v4754
        %v4826 = vmul.f32 %v4825, %v4824
        %v4827 = vmul.f32 0.5, %v4826
        %v4828 = vsub.f32 1.5, %v4827
        %v4829 = vmul.f32 %v4824, %v4828
        %vm4830 = vweird.f32 %v4754
        %vm4831 = vweird.f32 %v4824
        %vm4832 = vmor %vm4830, %vm4831
        %v4833 = vsel %vm4832, %v4824, %v4829
        %v4834 = vrsqrt.pop %v4755
        %v4835 = vmul.f32 %v4834, %v4755
        %v4836 = vmul.f32 %v4835, %v4834
        %v4837 = vmul.f32 0.5, %v4836
        %v4838 = vsub.f32 1.5, %v4837
        %v4839 = vmul.f32 %v4834, %v4838
        %vm4840 = vweird.f32 %v4755
        %vm4841 = vweird.f32 %v4834
        %vm4842 = vmor %vm4840, %vm4841
        %v4843 = vsel %vm4842, %v4834, %v4839
        %v4844 = vrsqrt.pop %v4756
        %v4845 = vmul.f32 %v4844, %v4756
        %v4846 = vmul.f32 %v4845, %v4844
        %v4847 = vmul.f32 0.5, %v4846
        %v4848 = vsub.f32 1.5, %v4847
        %v4849 = vmul.f32 %v4844, %v4848
        %vm4850 = vweird.f32 %v4756
        %vm4851 = vweird.f32 %v4844
        %vm4852 = vmor %vm4850, %vm4851
        %v4853 = vsel %vm4852, %v4844, %v4849
        %v4854 = vrsqrt.pop %v4757
        %v4855 = vmul.f32 %v4854, %v4757
        %v4856 = vmul.f32 %v4855, %v4854
        %v4857 = vmul.f32 0.5, %v4856
        %v4858 = vsub.f32 1.5, %v4857
        %v4859 = vmul.f32 %v4854, %v4858
        %vm4860 = vweird.f32 %v4757
        %vm4861 = vweird.f32 %v4854
        %vm4862 = vmor %vm4860, %vm4861
        %v4863 = vsel %vm4862, %v4854, %v4859
        %v4864 = vrsqrt.pop %v4758
        %v4865 = vmul.f32 %v4864, %v4758
        %v4866 = vmul.f32 %v4865, %v4864
        %v4867 = vmul.f32 0.5, %v4866
        %v4868 = vsub.f32 1.5, %v4867
        %v4869 = vmul.f32 %v4864, %v4868
        %vm4870 = vweird.f32 %v4758
        %vm4871 = vweird.f32 %v4864
        %vm4872 = vmor %vm4870, %vm4871
        %v4873 = vsel %vm4872, %v4864, %v4869
        %v4874 = vrsqrt.pop %v4759
        %v4875 = vmul.f32 %v4874, %v4759
        %v4876 = vmul.f32 %v4875, %v4874
        %v4877 = vmul.f32 0.5, %v4876
        %v4878 = vsub.f32 1.5, %v4877
        %v4879 = vmul.f32 %v4874, %v4878
        %vm4880 = vweird.f32 %v4759
        %vm4881 = vweird.f32 %v4874
        %vm4882 = vmor %vm4880, %vm4881
        %v4883 = vsel %vm4882, %v4874, %v4879
        %v4884 = vrsqrt.pop %v4760
        %v4885 = vmul.f32 %v4884, %v4760
        %v4886 = vmul.f32 %v4885, %v4884
        %v4887 = vmul.f32 0.5, %v4886
        %v4888 = vsub.f32 1.5, %v4887
        %v4889 = vmul.f32 %v4884, %v4888
        %vm4890 = vweird.f32 %v4760
        %vm4891 = vweird.f32 %v4884
        %vm4892 = vmor %vm4890, %vm4891
        %v4893 = vsel %vm4892, %v4884, %v4889
        %v4894 = vrsqrt.pop %v4761
        %v4895 = vmul.f32 %v4894, %v4761
        %v4896 = vmul.f32 %v4895, %v4894
        %v4897 = vmul.f32 0.5, %v4896
        %v4898 = vsub.f32 1.5, %v4897
        %v4899 = vmul.f32 %v4894, %v4898
        %vm4900 = vweird.f32 %v4761
        %vm4901 = vweird.f32 %v4894
        %vm4902 = vmor %vm4900, %vm4901
        %v4903 = vsel %vm4902, %v4894, %v4899
        %v4904 = vrsqrt.pop %v4762
        %v4905 = vmul.f32 %v4904, %v4762
        %v4906 = vmul.f32 %v4905, %v4904
        %v4907 = vmul.f32 0.5, %v4906
        %v4908 = vsub.f32 1.5, %v4907
        %v4909 = vmul.f32 %v4904, %v4908
        %vm4910 = vweird.f32 %v4762
        %vm4911 = vweird.f32 %v4904
        %vm4912 = vmor %vm4910, %vm4911
        %v4913 = vsel %vm4912, %v4904, %v4909
        %v4914 = vrsqrt.pop %v4763
        %v4915 = vmul.f32 %v4914, %v4763
        %v4916 = vmul.f32 %v4915, %v4914
        %v4917 = vmul.f32 0.5, %v4916
        %v4918 = vsub.f32 1.5, %v4917
        %v4919 = vmul.f32 %v4914, %v4918
        %vm4920 = vweird.f32 %v4763
        %vm4921 = vweird.f32 %v4914
        %vm4922 = vmor %vm4920, %vm4921
        %v4923 = vsel %vm4922, %v4914, %v4919
        %v4924 = vmul.f32 %v4668, %v4773
        %v4925 = vmul.f32 %v4669, %v4783
        %v4926 = vmul.f32 %v4670, %v4793
        %v4927 = vmul.f32 %v4671, %v4803
        %v4928 = vmul.f32 %v4672, %v4813
        %v4929 = vmul.f32 %v4673, %v4823
        %v4930 = vmul.f32 %v4674, %v4833
        %v4931 = vmul.f32 %v4675, %v4843
        %v4932 = vmul.f32 %v4676, %v4853
        %v4933 = vmul.f32 %v4677, %v4863
        %v4934 = vmul.f32 %v4678, %v4873
        %v4935 = vmul.f32 %v4679, %v4883
        %v4936 = vmul.f32 %v4680, %v4893
        %v4937 = vmul.f32 %v4681, %v4903
        %v4938 = vmul.f32 %v4682, %v4913
        %v4939 = vmul.f32 %v4683, %v4923
        %v4941 = vperm.slane %v4617, 0
        %v4943 = vmul.f32 %v4924, %v4941
        %v4944 = vmul.f32 %v4925, %v4941
        %v4945 = vmul.f32 %v4926, %v4941
        %v4946 = vmul.f32 %v4927, %v4941
        %v4947 = vmul.f32 %v4928, %v4941
        %v4948 = vmul.f32 %v4929, %v4941
        %v4949 = vmul.f32 %v4930, %v4941
        %v4950 = vmul.f32 %v4931, %v4941
        %v4951 = vmul.f32 %v4932, %v4941
        %v4952 = vmul.f32 %v4933, %v4941
        %v4953 = vmul.f32 %v4934, %v4941
        %v4954 = vmul.f32 %v4935, %v4941
        %v4955 = vmul.f32 %v4936, %v4941
        %v4956 = vmul.f32 %v4937, %v4941
        %v4957 = vmul.f32 %v4938, %v4941
        %v4958 = vmul.f32 %v4939, %v4941
        %v4960 = vperm.slane %v4619, 0
        %v4962 = vadd.f32 %v4943, %v4960
        %v4963 = vadd.f32 %v4944, %v4960
        %v4964 = vadd.f32 %v4945, %v4960
        %v4965 = vadd.f32 %v4946, %v4960
        %v4966 = vadd.f32 %v4947, %v4960
        %v4967 = vadd.f32 %v4948, %v4960
        %v4968 = vadd.f32 %v4949, %v4960
        %v4969 = vadd.f32 %v4950, %v4960
        %v4970 = vadd.f32 %v4951, %v4960
        %v4971 = vadd.f32 %v4952, %v4960
        %v4972 = vadd.f32 %v4953, %v4960
        %v4973 = vadd.f32 %v4954, %v4960
        %v4974 = vadd.f32 %v4955, %v4960
        %v4975 = vadd.f32 %v4956, %v4960
        %v4976 = vadd.f32 %v4957, %v4960
        %v4977 = vadd.f32 %v4958, %v4960
        %v4978 = vpack.c.bf16 %v4963, %v4962
        %v4979 = vpack.c.bf16 %v4965, %v4964
        %v4980 = vpack.c.bf16 %v4967, %v4966
        %v4981 = vpack.c.bf16 %v4969, %v4968
        %v4982 = vpack.c.bf16 %v4971, %v4970
        %v4983 = vpack.c.bf16 %v4973, %v4972
        %v4984 = vpack.c.bf16 %v4975, %v4974
        %v4985 = vpack.c.bf16 %v4977, %v4976
        %s4986 = scalar_lea.vmem [#allocation14], 192
        %v4987 = vld [vmem:[%s4986] sm:$0xff]
        %v4988 = vld [vmem:[%s4986 + $0x8] sm:$0xf]
        %v4989 = vld [vmem:[%s4986 + $0xc] sm:$0xff]
        %v4990 = vld [vmem:[%s4986 + $0x14] sm:$0xf]
        %v4991 = vld [vmem:[%s4986 + $0x18] sm:$0xff]
        %v4992 = vld [vmem:[%s4986 + $0x20] sm:$0xf]
        %v4993 = vld [vmem:[%s4986 + $0x24] sm:$0xff]
        %v4994 = vld [vmem:[%s4986 + $0x2c] sm:$0xf]
        %v4995 = vld [vmem:[%s4986 + $0x30] sm:$0xff]
        %v4996 = vld [vmem:[%s4986 + $0x38] sm:$0xf]
        %v4997 = vld [vmem:[%s4986 + $0x3c] sm:$0xff]
        %v4998 = vld [vmem:[%s4986 + $0x44] sm:$0xf]
        %v4999 = vld [vmem:[%s4986 + $0x48] sm:$0xff]
        %v5000 = vld [vmem:[%s4986 + $0x50] sm:$0xf]
        %v5001 = vld [vmem:[%s4986 + $0x54] sm:$0xff]
        %v5002 = vld [vmem:[%s4986 + $0x5c] sm:$0xf]
        %v5003 = vld [vmem:[%s4986 + $0x60] sm:$0xff]
        %v5004 = vld [vmem:[%s4986 + $0x68] sm:$0xf]
        %v5005 = vld [vmem:[%s4986 + $0x6c] sm:$0xff]
        %v5006 = vld [vmem:[%s4986 + $0x74] sm:$0xf]
        %v5007 = vld [vmem:[%s4986 + $0x78] sm:$0xff]
        %v5008 = vld [vmem:[%s4986 + $0x80] sm:$0xf]
        %v5009 = vld [vmem:[%s4986 + $0x84] sm:$0xff]
        %v5010 = vld [vmem:[%s4986 + $0x8c] sm:$0xf]
        %v5011 = vld [vmem:[%s4986 + $0x90] sm:$0xff]
        %v5012 = vld [vmem:[%s4986 + $0x98] sm:$0xf]
        %v5013 = vld [vmem:[%s4986 + $0x9c] sm:$0xff]
        %v5014 = vld [vmem:[%s4986 + $0xa4] sm:$0xf]
        %v5015 = vld [vmem:[%s4986 + $0xa8] sm:$0xff]
        %v5016 = vld [vmem:[%s4986 + $0xb0] sm:$0xf]
        %v5017 = vld [vmem:[%s4986 + $0xb4] sm:$0xff]
        %v5018 = vld [vmem:[%s4986 + $0xbc] sm:$0xf]
        %s5019 = scalar_lea.vmem %s12, 3
        %v5020 = vld [vmem:[%s5019] sm:$0x7]
        %v5022 = vperm.slane %v5020, 0
        %v5023 = vperm.slane %v5020, 1
        %v5024 = vperm.slane %v5020, 2
        %v5060 = vunpack.c.l.b16 %v4987
        %v5061 = vunpack.c.h.b16 %v4987
        %v5062 = vunpack.c.l.b16 %v4988
        %v5063 = vunpack.c.l.b16 %v4989
        %v5064 = vunpack.c.h.b16 %v4989
        %v5065 = vunpack.c.l.b16 %v4990
        %v5066 = vunpack.c.l.b16 %v4991
        %v5067 = vunpack.c.h.b16 %v4991
        %v5068 = vunpack.c.l.b16 %v4992
        %v5069 = vunpack.c.l.b16 %v4993
        %v5070 = vunpack.c.h.b16 %v4993
        %v5071 = vunpack.c.l.b16 %v4994
        %v5072 = vunpack.c.l.b16 %v4995
        %v5073 = vunpack.c.h.b16 %v4995
        %v5074 = vunpack.c.l.b16 %v4996
        %v5075 = vunpack.c.l.b16 %v4997
        %v5076 = vunpack.c.h.b16 %v4997
        %v5077 = vunpack.c.l.b16 %v4998
        %v5078 = vunpack.c.l.b16 %v4999
        %v5079 = vunpack.c.h.b16 %v4999
        %v5080 = vunpack.c.l.b16 %v5000
        %v5081 = vunpack.c.l.b16 %v5001
        %v5082 = vunpack.c.h.b16 %v5001
        %v5083 = vunpack.c.l.b16 %v5002
        %v5084 = vunpack.c.l.b16 %v5003
        %v5085 = vunpack.c.h.b16 %v5003
        %v5086 = vunpack.c.l.b16 %v5004
        %v5087 = vunpack.c.l.b16 %v5005
        %v5088 = vunpack.c.h.b16 %v5005
        %v5089 = vunpack.c.l.b16 %v5006
        %v5090 = vunpack.c.l.b16 %v5007
        %v5091 = vunpack.c.h.b16 %v5007
        %v5092 = vunpack.c.l.b16 %v5008
        %v5093 = vunpack.c.l.b16 %v5009
        %v5094 = vunpack.c.h.b16 %v5009
        %v5095 = vunpack.c.l.b16 %v5010
        %v5096 = vunpack.c.l.b16 %v5011
        %v5097 = vunpack.c.h.b16 %v5011
        %v5098 = vunpack.c.l.b16 %v5012
        %v5099 = vunpack.c.l.b16 %v5013
        %v5100 = vunpack.c.h.b16 %v5013
        %v5101 = vunpack.c.l.b16 %v5014
        %v5102 = vunpack.c.l.b16 %v5015
        %v5103 = vunpack.c.h.b16 %v5015
        %v5104 = vunpack.c.l.b16 %v5016
        %v5105 = vunpack.c.l.b16 %v5017
        %v5106 = vunpack.c.h.b16 %v5017
        %v5107 = vunpack.c.l.b16 %v5018
        %v5108 = vpack.c.b16 %v5063, %v5060
        %v5109 = vpack.c.b16 %v5064, %v5061
        %v5110 = vpack.c.b16 %v5065, %v5062
        %v5111 = vpack.c.b16 %v5069, %v5066
        %v5112 = vpack.c.b16 %v5070, %v5067
        %v5113 = vpack.c.b16 %v5071, %v5068
        %v5114 = vpack.c.b16 %v5075, %v5072
        %v5115 = vpack.c.b16 %v5076, %v5073
        %v5116 = vpack.c.b16 %v5077, %v5074
        %v5117 = vpack.c.b16 %v5081, %v5078
        %v5118 = vpack.c.b16 %v5082, %v5079
        %v5119 = vpack.c.b16 %v5083, %v5080
        %v5120 = vpack.c.b16 %v5087, %v5084
        %v5121 = vpack.c.b16 %v5088, %v5085
        %v5122 = vpack.c.b16 %v5089, %v5086
        %v5123 = vpack.c.b16 %v5093, %v5090
        %v5124 = vpack.c.b16 %v5094, %v5091
        %v5125 = vpack.c.b16 %v5095, %v5092
        %v5126 = vpack.c.b16 %v5099, %v5096
        %v5127 = vpack.c.b16 %v5100, %v5097
        %v5128 = vpack.c.b16 %v5101, %v5098
        %v5129 = vpack.c.b16 %v5105, %v5102
        %v5130 = vpack.c.b16 %v5106, %v5103
        %v5131 = vpack.c.b16 %v5107, %v5104
        %5156 = vmatpush.bf16.msra.mxu0 %v5129
        %5157 = vmatpush.bf16.msra.mxu0 %v5126
        %5158 = vmatpush.bf16.msra.mxu0 %v5123
        %5159 = vmatpush.bf16.msra.mxu0 %v5120
        %5160 = vmatpush.bf16.msra.mxu0 %v5117
        %5161 = vmatpush.bf16.msra.mxu0 %v5114
        %5162 = vmatpush.bf16.msra.mxu0 %v5111
        %5163 = vmatpush.bf16.msra.mxu0 %v5108
        %5164 = vmatmul.bf16.gmra.mxu0 %v4978
        %v5165 = vpop.f32.mrf.mxu0
        %v5166 = vadd.f32 %v5022, %v5165
        %v5167 = vpop.f32.mrf.mxu0
        %v5168 = vadd.f32 %v5022, %v5167
        %5169 = vmatmul.bf16.gmra.mxu0 %v4979
        %v5170 = vpop.f32.mrf.mxu0
        %v5171 = vadd.f32 %v5022, %v5170
        %v5172 = vpop.f32.mrf.mxu0
        %v5173 = vadd.f32 %v5022, %v5172
        %5174 = vmatmul.bf16.gmra.mxu0 %v4980
        %v5175 = vpop.f32.mrf.mxu0
        %v5176 = vadd.f32 %v5022, %v5175
        %v5177 = vpop.f32.mrf.mxu0
        %v5178 = vadd.f32 %v5022, %v5177
        %5179 = vmatmul.bf16.gmra.mxu0 %v4981
        %v5180 = vpop.f32.mrf.mxu0
        %v5181 = vadd.f32 %v5022, %v5180
        %v5182 = vpop.f32.mrf.mxu0
        %v5183 = vadd.f32 %v5022, %v5182
        %5184 = vmatmul.bf16.gmra.mxu0 %v4982
        %v5185 = vpop.f32.mrf.mxu0
        %v5186 = vadd.f32 %v5022, %v5185
        %v5187 = vpop.f32.mrf.mxu0
        %v5188 = vadd.f32 %v5022, %v5187
        %5189 = vmatmul.bf16.gmra.mxu0 %v4983
        %v5190 = vpop.f32.mrf.mxu0
        %v5191 = vadd.f32 %v5022, %v5190
        %v5192 = vpop.f32.mrf.mxu0
        %v5193 = vadd.f32 %v5022, %v5192
        %5194 = vmatmul.bf16.gmra.mxu0 %v4984
        %v5195 = vpop.f32.mrf.mxu0
        %v5196 = vadd.f32 %v5022, %v5195
        %v5197 = vpop.f32.mrf.mxu0
        %v5198 = vadd.f32 %v5022, %v5197
        %5199 = vmatmul.bf16.gmra.mxu0 %v4985
        %v5200 = vpop.f32.mrf.mxu0
        %v5201 = vadd.f32 %v5022, %v5200
        %v5202 = vpop.f32.mrf.mxu0
        %v5203 = vadd.f32 %v5022, %v5202
        %5204 = vdwg.mxu0
        %5205 = vmatpush.bf16.msra.mxu0 %v5130
        %5206 = vmatpush.bf16.msra.mxu0 %v5127
        %5207 = vmatpush.bf16.msra.mxu0 %v5124
        %5208 = vmatpush.bf16.msra.mxu0 %v5121
        %5209 = vmatpush.bf16.msra.mxu0 %v5118
        %5210 = vmatpush.bf16.msra.mxu0 %v5115
        %5211 = vmatpush.bf16.msra.mxu0 %v5112
        %5212 = vmatpush.bf16.msra.mxu0 %v5109
        %5213 = vmatmul.bf16.gmra.mxu0 %v4978
        %v5214 = vpop.f32.mrf.mxu0
        %v5215 = vadd.f32 %v5023, %v5214
        %v5216 = vpop.f32.mrf.mxu0
        %v5217 = vadd.f32 %v5023, %v5216
        %5218 = vmatmul.bf16.gmra.mxu0 %v4979
        %v5219 = vpop.f32.mrf.mxu0
        %v5220 = vadd.f32 %v5023, %v5219
        %v5221 = vpop.f32.mrf.mxu0
        %v5222 = vadd.f32 %v5023, %v5221
        %5223 = vmatmul.bf16.gmra.mxu0 %v4980
        %v5224 = vpop.f32.mrf.mxu0
        %v5225 = vadd.f32 %v5023, %v5224
        %v5226 = vpop.f32.mrf.mxu0
        %v5227 = vadd.f32 %v5023, %v5226
        %5228 = vmatmul.bf16.gmra.mxu0 %v4981
        %v5229 = vpop.f32.mrf.mxu0
        %v5230 = vadd.f32 %v5023, %v5229
        %v5231 = vpop.f32.mrf.mxu0
        %v5232 = vadd.f32 %v5023, %v5231
        %5233 = vmatmul.bf16.gmra.mxu0 %v4982
        %v5234 = vpop.f32.mrf.mxu0
        %v5235 = vadd.f32 %v5023, %v5234
        %v5236 = vpop.f32.mrf.mxu0
        %v5237 = vadd.f32 %v5023, %v5236
        %5238 = vmatmul.bf16.gmra.mxu0 %v4983
        %v5239 = vpop.f32.mrf.mxu0
        %v5240 = vadd.f32 %v5023, %v5239
        %v5241 = vpop.f32.mrf.mxu0
        %v5242 = vadd.f32 %v5023, %v5241
        %5243 = vmatmul.bf16.gmra.mxu0 %v4984
        %v5244 = vpop.f32.mrf.mxu0
        %v5245 = vadd.f32 %v5023, %v5244
        %v5246 = vpop.f32.mrf.mxu0
        %v5247 = vadd.f32 %v5023, %v5246
        %5248 = vmatmul.bf16.gmra.mxu0 %v4985
        %v5249 = vpop.f32.mrf.mxu0
        %v5250 = vadd.f32 %v5023, %v5249
        %v5251 = vpop.f32.mrf.mxu0
        %v5252 = vadd.f32 %v5023, %v5251
        %5253 = vdwg.mxu0
        %5254 = vmatpush.bf16.msra.mxu0 %v5131
        %5255 = vmatpush.bf16.msra.mxu0 %v5128
        %5256 = vmatpush.bf16.msra.mxu0 %v5125
        %5257 = vmatpush.bf16.msra.mxu0 %v5122
        %5258 = vmatpush.bf16.msra.mxu0 %v5119
        %5259 = vmatpush.bf16.msra.mxu0 %v5116
        %5260 = vmatpush.bf16.msra.mxu0 %v5113
        %5261 = vmatpush.bf16.msra.mxu0 %v5110
        %5262 = vmatmul.bf16.gmra.mxu0 %v4978
        %v5263 = vpop.f32.mrf.mxu0
        %v5264 = vadd.f32 %v5024, %v5263
        %v5265 = vpop.f32.mrf.mxu0
        %v5266 = vadd.f32 %v5024, %v5265
        %5267 = vmatmul.bf16.gmra.mxu0 %v4979
        %v5268 = vpop.f32.mrf.mxu0
        %v5269 = vadd.f32 %v5024, %v5268
        %v5270 = vpop.f32.mrf.mxu0
        %v5271 = vadd.f32 %v5024, %v5270
        %5272 = vmatmul.bf16.gmra.mxu0 %v4980
        %v5273 = vpop.f32.mrf.mxu0
        %v5274 = vadd.f32 %v5024, %v5273
        %v5275 = vpop.f32.mrf.mxu0
        %v5276 = vadd.f32 %v5024, %v5275
        %5277 = vmatmul.bf16.gmra.mxu0 %v4981
        %v5278 = vpop.f32.mrf.mxu0
        %v5279 = vadd.f32 %v5024, %v5278
        %v5280 = vpop.f32.mrf.mxu0
        %v5281 = vadd.f32 %v5024, %v5280
        %5282 = vmatmul.bf16.gmra.mxu0 %v4982
        %v5283 = vpop.f32.mrf.mxu0
        %v5284 = vadd.f32 %v5024, %v5283
        %v5285 = vpop.f32.mrf.mxu0
        %v5286 = vadd.f32 %v5024, %v5285
        %5287 = vmatmul.bf16.gmra.mxu0 %v4983
        %v5288 = vpop.f32.mrf.mxu0
        %v5289 = vadd.f32 %v5024, %v5288
        %v5290 = vpop.f32.mrf.mxu0
        %v5291 = vadd.f32 %v5024, %v5290
        %5292 = vmatmul.bf16.gmra.mxu0 %v4984
        %v5293 = vpop.f32.mrf.mxu0
        %v5294 = vadd.f32 %v5024, %v5293
        %v5295 = vpop.f32.mrf.mxu0
        %v5296 = vadd.f32 %v5024, %v5295
        %5297 = vmatmul.bf16.gmra.mxu0 %v4985
        %v5298 = vpop.f32.mrf.mxu0
        %v5299 = vadd.f32 %v5024, %v5298
        %v5300 = vpop.f32.mrf.mxu0
        %v5301 = vadd.f32 %v5024, %v5300
        %5302 = vdwg.mxu0
        %5303 = vmax.xlane.f32.xlu0 %v5166
        %v5304 = vpop.xlane.xlu0 %5303
        %5305 = vmax.xlane.f32.xlu0 %v5168
        %v5306 = vpop.xlane.xlu0 %5305
        %5307 = vmax.xlane.f32.xlu0 %v5171
        %v5308 = vpop.xlane.xlu0 %5307
        %5309 = vmax.xlane.f32.xlu0 %v5173
        %v5310 = vpop.xlane.xlu0 %5309
        %5311 = vmax.xlane.f32.xlu0 %v5176
        %v5312 = vpop.xlane.xlu0 %5311
        %5313 = vmax.xlane.f32.xlu0 %v5178
        %v5314 = vpop.xlane.xlu0 %5313
        %5315 = vmax.xlane.f32.xlu0 %v5181
        %v5316 = vpop.xlane.xlu0 %5315
        %5317 = vmax.xlane.f32.xlu0 %v5183
        %v5318 = vpop.xlane.xlu0 %5317
        %5319 = vmax.xlane.f32.xlu0 %v5186
        %v5320 = vpop.xlane.xlu0 %5319
        %5321 = vmax.xlane.f32.xlu0 %v5188
        %v5322 = vpop.xlane.xlu0 %5321
        %5323 = vmax.xlane.f32.xlu0 %v5191
        %v5324 = vpop.xlane.xlu0 %5323
        %5325 = vmax.xlane.f32.xlu0 %v5193
        %v5326 = vpop.xlane.xlu0 %5325
        %5327 = vmax.xlane.f32.xlu0 %v5196
        %v5328 = vpop.xlane.xlu0 %5327
        %5329 = vmax.xlane.f32.xlu0 %v5198
        %v5330 = vpop.xlane.xlu0 %5329
        %5331 = vmax.xlane.f32.xlu0 %v5201
        %v5332 = vpop.xlane.xlu0 %5331
        %5333 = vmax.xlane.f32.xlu0 %v5203
        %v5334 = vpop.xlane.xlu0 %5333
        %v5335 = vsub.f32 %v5166, %v5304
        %v5336 = vsub.f32 %v5168, %v5306
        %v5337 = vsub.f32 %v5171, %v5308
        %v5338 = vsub.f32 %v5173, %v5310
        %v5339 = vsub.f32 %v5176, %v5312
        %v5340 = vsub.f32 %v5178, %v5314
        %v5341 = vsub.f32 %v5181, %v5316
        %v5342 = vsub.f32 %v5183, %v5318
        %v5343 = vsub.f32 %v5186, %v5320
        %v5344 = vsub.f32 %v5188, %v5322
        %v5345 = vsub.f32 %v5191, %v5324
        %v5346 = vsub.f32 %v5193, %v5326
        %v5347 = vsub.f32 %v5196, %v5328
        %v5348 = vsub.f32 %v5198, %v5330
        %v5349 = vsub.f32 %v5201, %v5332
        %v5350 = vsub.f32 %v5203, %v5334
        %v5351 = vmul.f32 %v5335, 1.442695
        %v5352 = vpow.pop %v5351
        %v5353 = vmul.f32 %v5336, 1.442695
        %v5354 = vpow.pop %v5353
        %v5355 = vmul.f32 %v5337, 1.442695
        %v5356 = vpow.pop %v5355
        %v5357 = vmul.f32 %v5338, 1.442695
        %v5358 = vpow.pop %v5357
        %v5359 = vmul.f32 %v5339, 1.442695
        %v5360 = vpow.pop %v5359
        %v5361 = vmul.f32 %v5340, 1.442695
        %v5362 = vpow.pop %v5361
        %v5363 = vmul.f32 %v5341, 1.442695
        %v5364 = vpow.pop %v5363
        %v5365 = vmul.f32 %v5342, 1.442695
        %v5366 = vpow.pop %v5365
        %v5367 = vmul.f32 %v5343, 1.442695
        %v5368 = vpow.pop %v5367
        %v5369 = vmul.f32 %v5344, 1.442695
        %v5370 = vpow.pop %v5369
        %v5371 = vmul.f32 %v5345, 1.442695
        %v5372 = vpow.pop %v5371
        %v5373 = vmul.f32 %v5346, 1.442695
        %v5374 = vpow.pop %v5373
        %v5375 = vmul.f32 %v5347, 1.442695
        %v5376 = vpow.pop %v5375
        %v5377 = vmul.f32 %v5348, 1.442695
        %v5378 = vpow.pop %v5377
        %v5379 = vmul.f32 %v5349, 1.442695
        %v5380 = vpow.pop %v5379
        %v5381 = vmul.f32 %v5350, 1.442695
        %v5382 = vpow.pop %v5381
        %v5383 = vpack.c.bf16 %v5354, %v5352
        %v5384 = vpack.c.bf16 %v5358, %v5356
        %v5385 = vpack.c.bf16 %v5362, %v5360
        %v5386 = vpack.c.bf16 %v5366, %v5364
        %v5387 = vpack.c.bf16 %v5370, %v5368
        %v5388 = vpack.c.bf16 %v5374, %v5372
        %v5389 = vpack.c.bf16 %v5378, %v5376
        %v5390 = vpack.c.bf16 %v5382, %v5380
        %5391 = vmatpush.bf16.msra.mxu0 %v1969
        %5392 = vmatpush.bf16.msra.mxu0 %v1968
        %5393 = vmatpush.bf16.msra.mxu0 %v1967
        %5394 = vmatpush.bf16.msra.mxu0 %v1966
        %5395 = vmatpush.bf16.msra.mxu0 %v1965
        %5396 = vmatpush.bf16.msra.mxu0 %v1964
        %5397 = vmatpush.bf16.msra.mxu0 %v1963
        %5398 = vmatpush.bf16.msra.mxu0 %v1962
        %5399 = vmatmul.bf16.gmra.mxu0 %v5383
        %v5400 = vpop.f32.mrf.mxu0
        %v5401 = vadd.f32 0.0, %v5400
        %v5402 = vpop.f32.mrf.mxu0
        %v5403 = vadd.f32 0.0, %v5402
        %5404 = vmatmul.bf16.gmra.mxu0 %v5384
        %v5405 = vpop.f32.mrf.mxu0
        %v5406 = vadd.f32 0.0, %v5405
        %v5407 = vpop.f32.mrf.mxu0
        %v5408 = vadd.f32 0.0, %v5407
        %5409 = vmatmul.bf16.gmra.mxu0 %v5385
        %v5410 = vpop.f32.mrf.mxu0
        %v5411 = vadd.f32 0.0, %v5410
        %v5412 = vpop.f32.mrf.mxu0
        %v5413 = vadd.f32 0.0, %v5412
        %5414 = vmatmul.bf16.gmra.mxu0 %v5386
        %v5415 = vpop.f32.mrf.mxu0
        %v5416 = vadd.f32 0.0, %v5415
        %v5417 = vpop.f32.mrf.mxu0
        %v5418 = vadd.f32 0.0, %v5417
        %5419 = vmatmul.bf16.gmra.mxu0 %v5387
        %v5420 = vpop.f32.mrf.mxu0
        %v5421 = vadd.f32 0.0, %v5420
        %v5422 = vpop.f32.mrf.mxu0
        %v5423 = vadd.f32 0.0, %v5422
        %5424 = vmatmul.bf16.gmra.mxu0 %v5388
        %v5425 = vpop.f32.mrf.mxu0
        %v5426 = vadd.f32 0.0, %v5425
        %v5427 = vpop.f32.mrf.mxu0
        %v5428 = vadd.f32 0.0, %v5427
        %5429 = vmatmul.bf16.gmra.mxu0 %v5389
        %v5430 = vpop.f32.mrf.mxu0
        %v5431 = vadd.f32 0.0, %v5430
        %v5432 = vpop.f32.mrf.mxu0
        %v5433 = vadd.f32 0.0, %v5432
        %5434 = vmatmul.bf16.gmra.mxu0 %v5390
        %v5435 = vpop.f32.mrf.mxu0
        %v5436 = vadd.f32 0.0, %v5435
        %v5437 = vpop.f32.mrf.mxu0
        %v5438 = vadd.f32 0.0, %v5437
        %5439 = vdwg.mxu0
        %v5440 = vrcp.pop %v5401
        %v5441 = vmul.f32 %v5401, %v5440
        %v5442 = vsub.f32 1.0, %v5441
        %v5443 = vmul.f32 %v5440, %v5442
        %v5444 = vadd.f32 %v5440, %v5443
        %vm5445 = vweird.f32 %v5401
        %vm5446 = vweird.f32 %v5440
        %vm5447 = vmor %vm5445, %vm5446
        %v5448 = vsel %vm5447, %v5440, %v5444
        %v5449 = vand.u32 2147483647, %v5401
        %vm5450 = vcmp.eq.f32.partialorder %v5449, 8.507059e+37
        %v5451 = vand.u32 %v5401, 2147483648
        %v5452 = vor.u32 1.1754944e-38, %v5451
        %v5453 = vsel %vm5450, %v5452, %v5448
        %v5454 = vmul.f32 %v5352, %v5453
        %v5455 = vrcp.pop %v5403
        %v5456 = vmul.f32 %v5403, %v5455
        %v5457 = vsub.f32 1.0, %v5456
        %v5458 = vmul.f32 %v5455, %v5457
        %v5459 = vadd.f32 %v5455, %v5458
        %vm5460 = vweird.f32 %v5403
        %vm5461 = vweird.f32 %v5455
        %vm5462 = vmor %vm5460, %vm5461
        %v5463 = vsel %vm5462, %v5455, %v5459
        %v5464 = vand.u32 2147483647, %v5403
        %vm5465 = vcmp.eq.f32.partialorder %v5464, 8.507059e+37
        %v5466 = vand.u32 %v5403, 2147483648
        %v5467 = vor.u32 1.1754944e-38, %v5466
        %v5468 = vsel %vm5465, %v5467, %v5463
        %v5469 = vmul.f32 %v5354, %v5468
        %v5470 = vrcp.pop %v5406
        %v5471 = vmul.f32 %v5406, %v5470
        %v5472 = vsub.f32 1.0, %v5471
        %v5473 = vmul.f32 %v5470, %v5472
        %v5474 = vadd.f32 %v5470, %v5473
        %vm5475 = vweird.f32 %v5406
        %vm5476 = vweird.f32 %v5470
        %vm5477 = vmor %vm5475, %vm5476
        %v5478 = vsel %vm5477, %v5470, %v5474
        %v5479 = vand.u32 2147483647, %v5406
        %vm5480 = vcmp.eq.f32.partialorder %v5479, 8.507059e+37
        %v5481 = vand.u32 %v5406, 2147483648
        %v5482 = vor.u32 1.1754944e-38, %v5481
        %v5483 = vsel %vm5480, %v5482, %v5478
        %v5484 = vmul.f32 %v5356, %v5483
        %v5485 = vrcp.pop %v5408
        %v5486 = vmul.f32 %v5408, %v5485
        %v5487 = vsub.f32 1.0, %v5486
        %v5488 = vmul.f32 %v5485, %v5487
        %v5489 = vadd.f32 %v5485, %v5488
        %vm5490 = vweird.f32 %v5408
        %vm5491 = vweird.f32 %v5485
        %vm5492 = vmor %vm5490, %vm5491
        %v5493 = vsel %vm5492, %v5485, %v5489
        %v5494 = vand.u32 2147483647, %v5408
        %vm5495 = vcmp.eq.f32.partialorder %v5494, 8.507059e+37
        %v5496 = vand.u32 %v5408, 2147483648
        %v5497 = vor.u32 1.1754944e-38, %v5496
        %v5498 = vsel %vm5495, %v5497, %v5493
        %v5499 = vmul.f32 %v5358, %v5498
        %v5500 = vrcp.pop %v5411
        %v5501 = vmul.f32 %v5411, %v5500
        %v5502 = vsub.f32 1.0, %v5501
        %v5503 = vmul.f32 %v5500, %v5502
        %v5504 = vadd.f32 %v5500, %v5503
        %vm5505 = vweird.f32 %v5411
        %vm5506 = vweird.f32 %v5500
        %vm5507 = vmor %vm5505, %vm5506
        %v5508 = vsel %vm5507, %v5500, %v5504
        %v5509 = vand.u32 2147483647, %v5411
        %vm5510 = vcmp.eq.f32.partialorder %v5509, 8.507059e+37
        %v5511 = vand.u32 %v5411, 2147483648
        %v5512 = vor.u32 1.1754944e-38, %v5511
        %v5513 = vsel %vm5510, %v5512, %v5508
        %v5514 = vmul.f32 %v5360, %v5513
        %v5515 = vrcp.pop %v5413
        %v5516 = vmul.f32 %v5413, %v5515
        %v5517 = vsub.f32 1.0, %v5516
        %v5518 = vmul.f32 %v5515, %v5517
        %v5519 = vadd.f32 %v5515, %v5518
        %vm5520 = vweird.f32 %v5413
        %vm5521 = vweird.f32 %v5515
        %vm5522 = vmor %vm5520, %vm5521
        %v5523 = vsel %vm5522, %v5515, %v5519
        %v5524 = vand.u32 2147483647, %v5413
        %vm5525 = vcmp.eq.f32.partialorder %v5524, 8.507059e+37
        %v5526 = vand.u32 %v5413, 2147483648
        %v5527 = vor.u32 1.1754944e-38, %v5526
        %v5528 = vsel %vm5525, %v5527, %v5523
        %v5529 = vmul.f32 %v5362, %v5528
        %v5530 = vrcp.pop %v5416
        %v5531 = vmul.f32 %v5416, %v5530
        %v5532 = vsub.f32 1.0, %v5531
        %v5533 = vmul.f32 %v5530, %v5532
        %v5534 = vadd.f32 %v5530, %v5533
        %vm5535 = vweird.f32 %v5416
        %vm5536 = vweird.f32 %v5530
        %vm5537 = vmor %vm5535, %vm5536
        %v5538 = vsel %vm5537, %v5530, %v5534
        %v5539 = vand.u32 2147483647, %v5416
        %vm5540 = vcmp.eq.f32.partialorder %v5539, 8.507059e+37
        %v5541 = vand.u32 %v5416, 2147483648
        %v5542 = vor.u32 1.1754944e-38, %v5541
        %v5543 = vsel %vm5540, %v5542, %v5538
        %v5544 = vmul.f32 %v5364, %v5543
        %v5545 = vrcp.pop %v5418
        %v5546 = vmul.f32 %v5418, %v5545
        %v5547 = vsub.f32 1.0, %v5546
        %v5548 = vmul.f32 %v5545, %v5547
        %v5549 = vadd.f32 %v5545, %v5548
        %vm5550 = vweird.f32 %v5418
        %vm5551 = vweird.f32 %v5545
        %vm5552 = vmor %vm5550, %vm5551
        %v5553 = vsel %vm5552, %v5545, %v5549
        %v5554 = vand.u32 2147483647, %v5418
        %vm5555 = vcmp.eq.f32.partialorder %v5554, 8.507059e+37
        %v5556 = vand.u32 %v5418, 2147483648
        %v5557 = vor.u32 1.1754944e-38, %v5556
        %v5558 = vsel %vm5555, %v5557, %v5553
        %v5559 = vmul.f32 %v5366, %v5558
        %v5560 = vrcp.pop %v5421
        %v5561 = vmul.f32 %v5421, %v5560
        %v5562 = vsub.f32 1.0, %v5561
        %v5563 = vmul.f32 %v5560, %v5562
        %v5564 = vadd.f32 %v5560, %v5563
        %vm5565 = vweird.f32 %v5421
        %vm5566 = vweird.f32 %v5560
        %vm5567 = vmor %vm5565, %vm5566
        %v5568 = vsel %vm5567, %v5560, %v5564
        %v5569 = vand.u32 2147483647, %v5421
        %vm5570 = vcmp.eq.f32.partialorder %v5569, 8.507059e+37
        %v5571 = vand.u32 %v5421, 2147483648
        %v5572 = vor.u32 1.1754944e-38, %v5571
        %v5573 = vsel %vm5570, %v5572, %v5568
        %v5574 = vmul.f32 %v5368, %v5573
        %v5575 = vrcp.pop %v5423
        %v5576 = vmul.f32 %v5423, %v5575
        %v5577 = vsub.f32 1.0, %v5576
        %v5578 = vmul.f32 %v5575, %v5577
        %v5579 = vadd.f32 %v5575, %v5578
        %vm5580 = vweird.f32 %v5423
        %vm5581 = vweird.f32 %v5575
        %vm5582 = vmor %vm5580, %vm5581
        %v5583 = vsel %vm5582, %v5575, %v5579
        %v5584 = vand.u32 2147483647, %v5423
        %vm5585 = vcmp.eq.f32.partialorder %v5584, 8.507059e+37
        %v5586 = vand.u32 %v5423, 2147483648
        %v5587 = vor.u32 1.1754944e-38, %v5586
        %v5588 = vsel %vm5585, %v5587, %v5583
        %v5589 = vmul.f32 %v5370, %v5588
        %v5590 = vrcp.pop %v5426
        %v5591 = vmul.f32 %v5426, %v5590
        %v5592 = vsub.f32 1.0, %v5591
        %v5593 = vmul.f32 %v5590, %v5592
        %v5594 = vadd.f32 %v5590, %v5593
        %vm5595 = vweird.f32 %v5426
        %vm5596 = vweird.f32 %v5590
        %vm5597 = vmor %vm5595, %vm5596
        %v5598 = vsel %vm5597, %v5590, %v5594
        %v5599 = vand.u32 2147483647, %v5426
        %vm5600 = vcmp.eq.f32.partialorder %v5599, 8.507059e+37
        %v5601 = vand.u32 %v5426, 2147483648
        %v5602 = vor.u32 1.1754944e-38, %v5601
        %v5603 = vsel %vm5600, %v5602, %v5598
        %v5604 = vmul.f32 %v5372, %v5603
        %v5605 = vrcp.pop %v5428
        %v5606 = vmul.f32 %v5428, %v5605
        %v5607 = vsub.f32 1.0, %v5606
        %v5608 = vmul.f32 %v5605, %v5607
        %v5609 = vadd.f32 %v5605, %v5608
        %vm5610 = vweird.f32 %v5428
        %vm5611 = vweird.f32 %v5605
        %vm5612 = vmor %vm5610, %vm5611
        %v5613 = vsel %vm5612, %v5605, %v5609
        %v5614 = vand.u32 2147483647, %v5428
        %vm5615 = vcmp.eq.f32.partialorder %v5614, 8.507059e+37
        %v5616 = vand.u32 %v5428, 2147483648
        %v5617 = vor.u32 1.1754944e-38, %v5616
        %v5618 = vsel %vm5615, %v5617, %v5613
        %v5619 = vmul.f32 %v5374, %v5618
        %v5620 = vrcp.pop %v5431
        %v5621 = vmul.f32 %v5431, %v5620
        %v5622 = vsub.f32 1.0, %v5621
        %v5623 = vmul.f32 %v5620, %v5622
        %v5624 = vadd.f32 %v5620, %v5623
        %vm5625 = vweird.f32 %v5431
        %vm5626 = vweird.f32 %v5620
        %vm5627 = vmor %vm5625, %vm5626
        %v5628 = vsel %vm5627, %v5620, %v5624
        %v5629 = vand.u32 2147483647, %v5431
        %vm5630 = vcmp.eq.f32.partialorder %v5629, 8.507059e+37
        %v5631 = vand.u32 %v5431, 2147483648
        %v5632 = vor.u32 1.1754944e-38, %v5631
        %v5633 = vsel %vm5630, %v5632, %v5628
        %v5634 = vmul.f32 %v5376, %v5633
        %v5635 = vrcp.pop %v5433
        %v5636 = vmul.f32 %v5433, %v5635
        %v5637 = vsub.f32 1.0, %v5636
        %v5638 = vmul.f32 %v5635, %v5637
        %v5639 = vadd.f32 %v5635, %v5638
        %vm5640 = vweird.f32 %v5433
        %vm5641 = vweird.f32 %v5635
        %vm5642 = vmor %vm5640, %vm5641
        %v5643 = vsel %vm5642, %v5635, %v5639
        %v5644 = vand.u32 2147483647, %v5433
        %vm5645 = vcmp.eq.f32.partialorder %v5644, 8.507059e+37
        %v5646 = vand.u32 %v5433, 2147483648
        %v5647 = vor.u32 1.1754944e-38, %v5646
        %v5648 = vsel %vm5645, %v5647, %v5643
        %v5649 = vmul.f32 %v5378, %v5648
        %v5650 = vrcp.pop %v5436
        %v5651 = vmul.f32 %v5436, %v5650
        %v5652 = vsub.f32 1.0, %v5651
        %v5653 = vmul.f32 %v5650, %v5652
        %v5654 = vadd.f32 %v5650, %v5653
        %vm5655 = vweird.f32 %v5436
        %vm5656 = vweird.f32 %v5650
        %vm5657 = vmor %vm5655, %vm5656
        %v5658 = vsel %vm5657, %v5650, %v5654
        %v5659 = vand.u32 2147483647, %v5436
        %vm5660 = vcmp.eq.f32.partialorder %v5659, 8.507059e+37
        %v5661 = vand.u32 %v5436, 2147483648
        %v5662 = vor.u32 1.1754944e-38, %v5661
        %v5663 = vsel %vm5660, %v5662, %v5658
        %v5664 = vmul.f32 %v5380, %v5663
        %v5665 = vrcp.pop %v5438
        %v5666 = vmul.f32 %v5438, %v5665
        %v5667 = vsub.f32 1.0, %v5666
        %v5668 = vmul.f32 %v5665, %v5667
        %v5669 = vadd.f32 %v5665, %v5668
        %vm5670 = vweird.f32 %v5438
        %vm5671 = vweird.f32 %v5665
        %vm5672 = vmor %vm5670, %vm5671
        %v5673 = vsel %vm5672, %v5665, %v5669
        %v5674 = vand.u32 2147483647, %v5438
        %vm5675 = vcmp.eq.f32.partialorder %v5674, 8.507059e+37
        %v5676 = vand.u32 %v5438, 2147483648
        %v5677 = vor.u32 1.1754944e-38, %v5676
        %v5678 = vsel %vm5675, %v5677, %v5673
        %v5679 = vmul.f32 %v5382, %v5678
        %v5680 = vmul.f32 %v5454, 0.17677669
        %v5681 = vmul.f32 %v5469, 0.17677669
        %v5682 = vmul.f32 %v5484, 0.17677669
        %v5683 = vmul.f32 %v5499, 0.17677669
        %v5684 = vmul.f32 %v5514, 0.17677669
        %v5685 = vmul.f32 %v5529, 0.17677669
        %v5686 = vmul.f32 %v5544, 0.17677669
        %v5687 = vmul.f32 %v5559, 0.17677669
        %v5688 = vmul.f32 %v5574, 0.17677669
        %v5689 = vmul.f32 %v5589, 0.17677669
        %v5690 = vmul.f32 %v5604, 0.17677669
        %v5691 = vmul.f32 %v5619, 0.17677669
        %v5692 = vmul.f32 %v5634, 0.17677669
        %v5693 = vmul.f32 %v5649, 0.17677669
        %v5694 = vmul.f32 %v5664, 0.17677669
        %v5695 = vmul.f32 %v5679, 0.17677669
        %v5696 = vmax.f32 %v5215, %v5225
        %v5697 = vmax.f32 %v5217, %v5227
        %v5698 = vmax.f32 %v5220, %v5230
        %v5699 = vmax.f32 %v5222, %v5232
        %v5700 = vmax.f32 %v5696, %v5235
        %v5701 = vmax.f32 %v5697, %v5237
        %v5702 = vmax.f32 %v5698, %v5240
        %v5703 = vmax.f32 %v5699, %v5242
        %v5704 = vmax.f32 %v5700, %v5245
        %v5705 = vmax.f32 %v5701, %v5247
        %v5706 = vmax.f32 %v5702, %v5250
        %v5707 = vmax.f32 %v5703, %v5252
        %v5708 = vmax.f32 %v5704, %v5705
        %v5709 = vmax.f32 %v5706, %v5707
        %v5710 = vmax.f32 %v5708, %v5709
        %v5711 = vrot.slane %v5710, 4
        %v5712 = vmax.f32 %v5710, %v5711
        %v5713 = vrot.slane %v5712, 2
        %v5714 = vmax.f32 %v5712, %v5713
        %v5715 = vrot.slane %v5714, 1
        %v5716 = vmax.f32 %v5714, %v5715
        %v5717 = vsub.f32 %v5215, %v5716
        %v5718 = vsub.f32 %v5217, %v5716
        %v5719 = vsub.f32 %v5220, %v5716
        %v5720 = vsub.f32 %v5222, %v5716
        %v5721 = vsub.f32 %v5225, %v5716
        %v5722 = vsub.f32 %v5227, %v5716
        %v5723 = vsub.f32 %v5230, %v5716
        %v5724 = vsub.f32 %v5232, %v5716
        %v5725 = vsub.f32 %v5235, %v5716
        %v5726 = vsub.f32 %v5237, %v5716
        %v5727 = vsub.f32 %v5240, %v5716
        %v5728 = vsub.f32 %v5242, %v5716
        %v5729 = vsub.f32 %v5245, %v5716
        %v5730 = vsub.f32 %v5247, %v5716
        %v5731 = vsub.f32 %v5250, %v5716
        %v5732 = vsub.f32 %v5252, %v5716
        %v5733 = vmul.f32 %v5717, 1.442695
        %v5734 = vpow.pop %v5733
        %v5735 = vmul.f32 %v5718, 1.442695
        %v5736 = vpow.pop %v5735
        %v5737 = vmul.f32 %v5719, 1.442695
        %v5738 = vpow.pop %v5737
        %v5739 = vmul.f32 %v5720, 1.442695
        %v5740 = vpow.pop %v5739
        %v5741 = vmul.f32 %v5721, 1.442695
        %v5742 = vpow.pop %v5741
        %v5743 = vmul.f32 %v5722, 1.442695
        %v5744 = vpow.pop %v5743
        %v5745 = vmul.f32 %v5723, 1.442695
        %v5746 = vpow.pop %v5745
        %v5747 = vmul.f32 %v5724, 1.442695
        %v5748 = vpow.pop %v5747
        %v5749 = vmul.f32 %v5725, 1.442695
        %v5750 = vpow.pop %v5749
        %v5751 = vmul.f32 %v5726, 1.442695
        %v5752 = vpow.pop %v5751
        %v5753 = vmul.f32 %v5727, 1.442695
        %v5754 = vpow.pop %v5753
        %v5755 = vmul.f32 %v5728, 1.442695
        %v5756 = vpow.pop %v5755
        %v5757 = vmul.f32 %v5729, 1.442695
        %v5758 = vpow.pop %v5757
        %v5759 = vmul.f32 %v5730, 1.442695
        %v5760 = vpow.pop %v5759
        %v5761 = vmul.f32 %v5731, 1.442695
        %v5762 = vpow.pop %v5761
        %v5763 = vmul.f32 %v5732, 1.442695
        %v5764 = vpow.pop %v5763
        %v5765 = vadd.f32 %v5734, %v5736
        %v5766 = vadd.f32 %v5765, %v5738
        %v5767 = vadd.f32 %v5766, %v5740
        %v5768 = vadd.f32 %v5767, %v5742
        %v5769 = vadd.f32 %v5768, %v5744
        %v5770 = vadd.f32 %v5769, %v5746
        %v5771 = vadd.f32 %v5770, %v5748
        %v5772 = vadd.f32 %v5771, %v5750
        %v5773 = vadd.f32 %v5772, %v5752
        %v5774 = vadd.f32 %v5773, %v5754
        %v5775 = vadd.f32 %v5774, %v5756
        %v5776 = vadd.f32 %v5775, %v5758
        %v5777 = vadd.f32 %v5776, %v5760
        %v5778 = vadd.f32 %v5777, %v5762
        %v5779 = vadd.f32 %v5778, %v5764
        %v5780 = vrot.slane %v5779, 4
        %v5781 = vadd.f32 %v5779, %v5780
        %v5782 = vrot.slane %v5781, 2
        %v5783 = vadd.f32 %v5781, %v5782
        %v5784 = vrot.slane %v5783, 1
        %v5785 = vadd.f32 %v5783, %v5784
        %v5786 = vrcp.pop %v5785
        %v5787 = vmul.f32 %v5785, %v5786
        %v5788 = vsub.f32 1.0, %v5787
        %v5789 = vmul.f32 %v5786, %v5788
        %v5790 = vadd.f32 %v5786, %v5789
        %vm5791 = vweird.f32 %v5785
        %vm5792 = vweird.f32 %v5786
        %vm5793 = vmor %vm5791, %vm5792
        %v5794 = vsel %vm5793, %v5786, %v5790
        %v5795 = vand.u32 2147483647, %v5785
        %vm5796 = vcmp.eq.f32.partialorder %v5795, 8.507059e+37
        %v5797 = vand.u32 %v5785, 2147483648
        %v5798 = vor.u32 1.1754944e-38, %v5797
        %v5799 = vsel %vm5796, %v5798, %v5794
        %v5800 = vmul.f32 %v5734, %v5799
        %v5801 = vmul.f32 %v5736, %v5799
        %v5802 = vmul.f32 %v5738, %v5799
        %v5803 = vmul.f32 %v5740, %v5799
        %v5804 = vmul.f32 %v5742, %v5799
        %v5805 = vmul.f32 %v5744, %v5799
        %v5806 = vmul.f32 %v5746, %v5799
        %v5807 = vmul.f32 %v5748, %v5799
        %v5808 = vmul.f32 %v5750, %v5799
        %v5809 = vmul.f32 %v5752, %v5799
        %v5810 = vmul.f32 %v5754, %v5799
        %v5811 = vmul.f32 %v5756, %v5799
        %v5812 = vmul.f32 %v5758, %v5799
        %v5813 = vmul.f32 %v5760, %v5799
        %v5814 = vmul.f32 %v5762, %v5799
        %v5815 = vmul.f32 %v5764, %v5799
        %v5816 = vpack.c.bf16 %v5801, %v5800
        %v5817 = vpack.c.bf16 %v5803, %v5802
        %v5818 = vpack.c.bf16 %v5805, %v5804
        %v5819 = vpack.c.bf16 %v5807, %v5806
        %v5820 = vpack.c.bf16 %v5809, %v5808
        %v5821 = vpack.c.bf16 %v5811, %v5810
        %v5822 = vpack.c.bf16 %v5813, %v5812
        %v5823 = vpack.c.bf16 %v5815, %v5814
        %v5824 = vpack.c.bf16 %v5266, %v5264
        %v5825 = vpack.c.bf16 %v5271, %v5269
        %v5826 = vpack.c.bf16 %v5276, %v5274
        %v5827 = vpack.c.bf16 %v5281, %v5279
        %v5828 = vpack.c.bf16 %v5286, %v5284
        %v5829 = vpack.c.bf16 %v5291, %v5289
        %v5830 = vpack.c.bf16 %v5296, %v5294
        %v5831 = vpack.c.bf16 %v5301, %v5299
        %5832 = vxpose.xlu0.c.b16.start [1/8] %v5816, 128
        %5833 = vxpose.xlu0.c.b16.cont [2/8] %v5817, 128
        %5834 = vxpose.xlu0.c.b16.cont [3/8] %v5818, 128
        %5835 = vxpose.xlu0.c.b16.cont [4/8] %v5819, 128
        %5836 = vxpose.xlu0.c.b16.cont [5/8] %v5820, 128
        %5837 = vxpose.xlu0.c.b16.cont [6/8] %v5821, 128
        %5838 = vxpose.xlu0.c.b16.cont [7/8] %v5822, 128
        %5839 = vxpose.xlu0.c.b16.end [8/8] %v5823, 128
        %v5840 = vpop.trf.xlu0
        %v5841 = vpop.trf.xlu0
        %v5842 = vpop.trf.xlu0
        %v5843 = vpop.trf.xlu0
        %v5844 = vpop.trf.xlu0
        %v5845 = vpop.trf.xlu0
        %v5846 = vpop.trf.xlu0
        %v5847 = vpop.trf.xlu0
        %5848 = vmatpush.bf16.msra.mxu0 %v5831
        %5849 = vmatpush.bf16.msra.mxu0 %v5830
        %5850 = vmatpush.bf16.msra.mxu0 %v5829
        %5851 = vmatpush.bf16.msra.mxu0 %v5828
        %5852 = vmatpush.bf16.msra.mxu0 %v5827
        %5853 = vmatpush.bf16.msra.mxu0 %v5826
        %5854 = vmatpush.bf16.msra.mxu0 %v5825
        %5855 = vmatpush.bf16.msra.mxu0 %v5824
        %5856 = vmatmul.bf16.gmra.mxu0 %v5840
        %v5857 = vpop.f32.mrf.mxu0
        %v5858 = vadd.f32 0.0, %v5857
        %v5859 = vpop.f32.mrf.mxu0
        %v5860 = vadd.f32 0.0, %v5859
        %5861 = vmatmul.bf16.gmra.mxu0 %v5841
        %v5862 = vpop.f32.mrf.mxu0
        %v5863 = vadd.f32 0.0, %v5862
        %v5864 = vpop.f32.mrf.mxu0
        %v5865 = vadd.f32 0.0, %v5864
        %5866 = vmatmul.bf16.gmra.mxu0 %v5842
        %v5867 = vpop.f32.mrf.mxu0
        %v5868 = vadd.f32 0.0, %v5867
        %v5869 = vpop.f32.mrf.mxu0
        %v5870 = vadd.f32 0.0, %v5869
        %5871 = vmatmul.bf16.gmra.mxu0 %v5843
        %v5872 = vpop.f32.mrf.mxu0
        %v5873 = vadd.f32 0.0, %v5872
        %v5874 = vpop.f32.mrf.mxu0
        %v5875 = vadd.f32 0.0, %v5874
        %5876 = vmatmul.bf16.gmra.mxu0 %v5844
        %v5877 = vpop.f32.mrf.mxu0
        %v5878 = vadd.f32 0.0, %v5877
        %v5879 = vpop.f32.mrf.mxu0
        %v5880 = vadd.f32 0.0, %v5879
        %5881 = vmatmul.bf16.gmra.mxu0 %v5845
        %v5882 = vpop.f32.mrf.mxu0
        %v5883 = vadd.f32 0.0, %v5882
        %v5884 = vpop.f32.mrf.mxu0
        %v5885 = vadd.f32 0.0, %v5884
        %5886 = vmatmul.bf16.gmra.mxu0 %v5846
        %v5887 = vpop.f32.mrf.mxu0
        %v5888 = vadd.f32 0.0, %v5887
        %v5889 = vpop.f32.mrf.mxu0
        %v5890 = vadd.f32 0.0, %v5889
        %5891 = vmatmul.bf16.gmra.mxu0 %v5847
        %v5892 = vpop.f32.mrf.mxu0
        %v5893 = vadd.f32 0.0, %v5892
        %v5894 = vpop.f32.mrf.mxu0
        %v5895 = vadd.f32 0.0, %v5894
        %5896 = vdwg.mxu0
        %v5897 = vmul.f32 %v5858, %v1120
        %v5898 = vmul.f32 %v5860, %v1121
        %v5899 = vmul.f32 %v5863, %v1122
        %v5900 = vmul.f32 %v5865, %v1123
        %v5901 = vmul.f32 %v5868, %v1124
        %v5902 = vmul.f32 %v5870, %v1125
        %v5903 = vmul.f32 %v5873, %v1126
        %v5904 = vmul.f32 %v5875, %v1127
        %v5905 = vmul.f32 %v5878, %v1128
        %v5906 = vmul.f32 %v5880, %v1129
        %v5907 = vmul.f32 %v5883, %v1130
        %v5908 = vmul.f32 %v5885, %v1131
        %v5909 = vmul.f32 %v5888, %v1132
        %v5910 = vmul.f32 %v5890, %v1133
        %v5911 = vmul.f32 %v5893, %v1134
        %v5912 = vmul.f32 %v5895, %v1135
        %v5913 = vpack.c.bf16 %v5681, %v5680
        %v5914 = vpack.c.bf16 %v5683, %v5682
        %v5915 = vpack.c.bf16 %v5685, %v5684
        %v5916 = vpack.c.bf16 %v5687, %v5686
        %v5917 = vpack.c.bf16 %v5689, %v5688
        %v5918 = vpack.c.bf16 %v5691, %v5690
        %v5919 = vpack.c.bf16 %v5693, %v5692
        %v5920 = vpack.c.bf16 %v5695, %v5694
        %v5921 = vpack.c.bf16 %v5898, %v5897
        %v5922 = vpack.c.bf16 %v5900, %v5899
        %v5923 = vpack.c.bf16 %v5902, %v5901
        %v5924 = vpack.c.bf16 %v5904, %v5903
        %v5925 = vpack.c.bf16 %v5906, %v5905
        %v5926 = vpack.c.bf16 %v5908, %v5907
        %v5927 = vpack.c.bf16 %v5910, %v5909
        %v5928 = vpack.c.bf16 %v5912, %v5911
        %5929 = vmatpush.bf16.msra.mxu0 %v5928
        %5930 = vmatpush.bf16.msra.mxu0 %v5927
        %5931 = vmatpush.bf16.msra.mxu0 %v5926
        %5932 = vmatpush.bf16.msra.mxu0 %v5925
        %5933 = vmatpush.bf16.msra.mxu0 %v5924
        %5934 = vmatpush.bf16.msra.mxu0 %v5923
        %5935 = vmatpush.bf16.msra.mxu0 %v5922
        %5936 = vmatpush.bf16.msra.mxu0 %v5921
        %5937 = vmatmul.bf16.gmra.mxu0 %v5913
        %v5938 = vpop.f32.mrf.mxu0
        %v5939 = vadd.f32 0.0, %v5938
        %v5940 = vpop.f32.mrf.mxu0
        %v5941 = vadd.f32 0.0, %v5940
        %5942 = vmatmul.bf16.gmra.mxu0 %v5914
        %v5943 = vpop.f32.mrf.mxu0
        %v5944 = vadd.f32 0.0, %v5943
        %v5945 = vpop.f32.mrf.mxu0
        %v5946 = vadd.f32 0.0, %v5945
        %5947 = vmatmul.bf16.gmra.mxu0 %v5915
        %v5948 = vpop.f32.mrf.mxu0
        %v5949 = vadd.f32 0.0, %v5948
        %v5950 = vpop.f32.mrf.mxu0
        %v5951 = vadd.f32 0.0, %v5950
        %5952 = vmatmul.bf16.gmra.mxu0 %v5916
        %v5953 = vpop.f32.mrf.mxu0
        %v5954 = vadd.f32 0.0, %v5953
        %v5955 = vpop.f32.mrf.mxu0
        %v5956 = vadd.f32 0.0, %v5955
        %5957 = vmatmul.bf16.gmra.mxu0 %v5917
        %v5958 = vpop.f32.mrf.mxu0
        %v5959 = vadd.f32 0.0, %v5958
        %v5960 = vpop.f32.mrf.mxu0
        %v5961 = vadd.f32 0.0, %v5960
        %5962 = vmatmul.bf16.gmra.mxu0 %v5918
        %v5963 = vpop.f32.mrf.mxu0
        %v5964 = vadd.f32 0.0, %v5963
        %v5965 = vpop.f32.mrf.mxu0
        %v5966 = vadd.f32 0.0, %v5965
        %5967 = vmatmul.bf16.gmra.mxu0 %v5919
        %v5968 = vpop.f32.mrf.mxu0
        %v5969 = vadd.f32 0.0, %v5968
        %v5970 = vpop.f32.mrf.mxu0
        %v5971 = vadd.f32 0.0, %v5970
        %5972 = vmatmul.bf16.gmra.mxu0 %v5920
        %v5973 = vpop.f32.mrf.mxu0
        %v5974 = vadd.f32 0.0, %v5973
        %v5975 = vpop.f32.mrf.mxu0
        %v5976 = vadd.f32 0.0, %v5975
        %5977 = vdwg.mxu0
        %v5978 = vpack.c.bf16 %v5941, %v5939
        %v5979 = vpack.c.bf16 %v5946, %v5944
        %v5980 = vpack.c.bf16 %v5951, %v5949
        %v5981 = vpack.c.bf16 %v5956, %v5954
        %v5982 = vpack.c.bf16 %v5961, %v5959
        %v5983 = vpack.c.bf16 %v5966, %v5964
        %v5984 = vpack.c.bf16 %v5971, %v5969
        %v5985 = vpack.c.bf16 %v5976, %v5974
        %s5986 = scalar_lea.vmem %s13, 64
        %v5987 = vld [vmem:[%s5986] sm:$0xf]
        %v5988 = vld [vmem:[%s5986 + $0x4] sm:$0xf]
        %v5989 = vld [vmem:[%s5986 + $0x8] sm:$0xf]
        %v5990 = vld [vmem:[%s5986 + $0xc] sm:$0xf]
        %v5991 = vld [vmem:[%s5986 + $0x10] sm:$0xf]
        %v5992 = vld [vmem:[%s5986 + $0x14] sm:$0xf]
        %v5993 = vld [vmem:[%s5986 + $0x18] sm:$0xf]
        %v5994 = vld [vmem:[%s5986 + $0x1c] sm:$0xf]
        %v5995 = vld [vmem:[%s5986 + $0x20] sm:$0xf]
        %v5996 = vld [vmem:[%s5986 + $0x24] sm:$0xf]
        %v5997 = vld [vmem:[%s5986 + $0x28] sm:$0xf]
        %v5998 = vld [vmem:[%s5986 + $0x2c] sm:$0xf]
        %v5999 = vld [vmem:[%s5986 + $0x30] sm:$0xf]
        %v6000 = vld [vmem:[%s5986 + $0x34] sm:$0xf]
        %v6001 = vld [vmem:[%s5986 + $0x38] sm:$0xf]
        %v6002 = vld [vmem:[%s5986 + $0x3c] sm:$0xf]
        %s6003 = scalar_lea.vmem [#allocation16], 1
        %v6004 = vld [vmem:[%s6003] sm:$0x1]
        %v6006 = vperm.slane %v6004, 0
        %v6024 = vunpack.c.l.b16 %v5987
        %v6025 = vunpack.c.l.b16 %v5988
        %v6026 = vunpack.c.l.b16 %v5989
        %v6027 = vunpack.c.l.b16 %v5990
        %v6028 = vunpack.c.l.b16 %v5991
        %v6029 = vunpack.c.l.b16 %v5992
        %v6030 = vunpack.c.l.b16 %v5993
        %v6031 = vunpack.c.l.b16 %v5994
        %v6032 = vunpack.c.l.b16 %v5995
        %v6033 = vunpack.c.l.b16 %v5996
        %v6034 = vunpack.c.l.b16 %v5997
        %v6035 = vunpack.c.l.b16 %v5998
        %v6036 = vunpack.c.l.b16 %v5999
        %v6037 = vunpack.c.l.b16 %v6000
        %v6038 = vunpack.c.l.b16 %v6001
        %v6039 = vunpack.c.l.b16 %v6002
        %v6040 = vpack.c.b16 %v6025, %v6024
        %v6041 = vpack.c.b16 %v6027, %v6026
        %v6042 = vpack.c.b16 %v6029, %v6028
        %v6043 = vpack.c.b16 %v6031, %v6030
        %v6044 = vpack.c.b16 %v6033, %v6032
        %v6045 = vpack.c.b16 %v6035, %v6034
        %v6046 = vpack.c.b16 %v6037, %v6036
        %v6047 = vpack.c.b16 %v6039, %v6038
        %6056 = vmatpush.bf16.msra.mxu0 %v6047
        %6057 = vmatpush.bf16.msra.mxu0 %v6046
        %6058 = vmatpush.bf16.msra.mxu0 %v6045
        %6059 = vmatpush.bf16.msra.mxu0 %v6044
        %6060 = vmatpush.bf16.msra.mxu0 %v6043
        %6061 = vmatpush.bf16.msra.mxu0 %v6042
        %6062 = vmatpush.bf16.msra.mxu0 %v6041
        %6063 = vmatpush.bf16.msra.mxu0 %v6040
        %6064 = vmatmul.bf16.gmra.mxu0 %v5978
        %v6065 = vpop.f32.mrf.mxu0
        %v6066 = vadd.f32 %v6006, %v6065
        %v6067 = vpop.f32.mrf.mxu0
        %v6068 = vadd.f32 %v6006, %v6067
        %6069 = vmatmul.bf16.gmra.mxu0 %v5979
        %v6070 = vpop.f32.mrf.mxu0
        %v6071 = vadd.f32 %v6006, %v6070
        %v6072 = vpop.f32.mrf.mxu0
        %v6073 = vadd.f32 %v6006, %v6072
        %6074 = vmatmul.bf16.gmra.mxu0 %v5980
        %v6075 = vpop.f32.mrf.mxu0
        %v6076 = vadd.f32 %v6006, %v6075
        %v6077 = vpop.f32.mrf.mxu0
        %v6078 = vadd.f32 %v6006, %v6077
        %6079 = vmatmul.bf16.gmra.mxu0 %v5981
        %v6080 = vpop.f32.mrf.mxu0
        %v6081 = vadd.f32 %v6006, %v6080
        %v6082 = vpop.f32.mrf.mxu0
        %v6083 = vadd.f32 %v6006, %v6082
        %6084 = vmatmul.bf16.gmra.mxu0 %v5982
        %v6085 = vpop.f32.mrf.mxu0
        %v6086 = vadd.f32 %v6006, %v6085
        %v6087 = vpop.f32.mrf.mxu0
        %v6088 = vadd.f32 %v6006, %v6087
        %6089 = vmatmul.bf16.gmra.mxu0 %v5983
        %v6090 = vpop.f32.mrf.mxu0
        %v6091 = vadd.f32 %v6006, %v6090
        %v6092 = vpop.f32.mrf.mxu0
        %v6093 = vadd.f32 %v6006, %v6092
        %6094 = vmatmul.bf16.gmra.mxu0 %v5984
        %v6095 = vpop.f32.mrf.mxu0
        %v6096 = vadd.f32 %v6006, %v6095
        %v6097 = vpop.f32.mrf.mxu0
        %v6098 = vadd.f32 %v6006, %v6097
        %6099 = vmatmul.bf16.gmra.mxu0 %v5985
        %v6100 = vpop.f32.mrf.mxu0
        %v6101 = vadd.f32 %v6006, %v6100
        %v6102 = vpop.f32.mrf.mxu0
        %v6103 = vadd.f32 %v6006, %v6102
        %6104 = vdwg.mxu0
        %v6105 = vadd.f32 %v4600, %v6066
        %v6106 = vadd.f32 %v4601, %v6068
        %v6107 = vadd.f32 %v4602, %v6071
        %v6108 = vadd.f32 %v4603, %v6073
        %v6109 = vadd.f32 %v4604, %v6076
        %v6110 = vadd.f32 %v4605, %v6078
        %v6111 = vadd.f32 %v4606, %v6081
        %v6112 = vadd.f32 %v4607, %v6083
        %v6113 = vadd.f32 %v4608, %v6086
        %v6114 = vadd.f32 %v4609, %v6088
        %v6115 = vadd.f32 %v4610, %v6091
        %v6116 = vadd.f32 %v4611, %v6093
        %v6117 = vadd.f32 %v4612, %v6096
        %v6118 = vadd.f32 %v4613, %v6098
        %v6119 = vadd.f32 %v4614, %v6101
        %v6120 = vadd.f32 %v4615, %v6103
        %6121 = vst [vmem:[#allocation2] sm:$0xff] %v6105
        %6122 = vst [vmem:[#allocation2 + $0x8] sm:$0xff] %v6106
        %6123 = vst [vmem:[#allocation2 + $0x10] sm:$0xff] %v6107
        %6124 = vst [vmem:[#allocation2 + $0x18] sm:$0xff] %v6108
        %6125 = vst [vmem:[#allocation2 + $0x20] sm:$0xff] %v6109
        %6126 = vst [vmem:[#allocation2 + $0x28] sm:$0xff] %v6110
        %6127 = vst [vmem:[#allocation2 + $0x30] sm:$0xff] %v6111
        %6128 = vst [vmem:[#allocation2 + $0x38] sm:$0xff] %v6112
        %6129 = vst [vmem:[#allocation2 + $0x40] sm:$0xff] %v6113
        %6130 = vst [vmem:[#allocation2 + $0x48] sm:$0xff] %v6114
        %6131 = vst [vmem:[#allocation2 + $0x50] sm:$0xff] %v6115
        %6132 = vst [vmem:[#allocation2 + $0x58] sm:$0xff] %v6116
        %6133 = vst [vmem:[#allocation2 + $0x60] sm:$0xff] %v6117
        %6134 = vst [vmem:[#allocation2 + $0x68] sm:$0xff] %v6118
        %6135 = vst [vmem:[#allocation2 + $0x70] sm:$0xff] %v6119
        %6136 = vst [vmem:[#allocation2 + $0x78] sm:$0xff] %v6120
        %v6137 = vld [vmem:[#allocation2] sm:$0xff]
        %v6138 = vld [vmem:[#allocation2 + $0x8] sm:$0xff]
        %v6139 = vld [vmem:[#allocation2 + $0x10] sm:$0xff]
        %v6140 = vld [vmem:[#allocation2 + $0x18] sm:$0xff]
        %v6141 = vld [vmem:[#allocation2 + $0x20] sm:$0xff]
        %v6142 = vld [vmem:[#allocation2 + $0x28] sm:$0xff]
        %v6143 = vld [vmem:[#allocation2 + $0x30] sm:$0xff]
        %v6144 = vld [vmem:[#allocation2 + $0x38] sm:$0xff]
        %v6145 = vld [vmem:[#allocation2 + $0x40] sm:$0xff]
        %v6146 = vld [vmem:[#allocation2 + $0x48] sm:$0xff]
        %v6147 = vld [vmem:[#allocation2 + $0x50] sm:$0xff]
        %v6148 = vld [vmem:[#allocation2 + $0x58] sm:$0xff]
        %v6149 = vld [vmem:[#allocation2 + $0x60] sm:$0xff]
        %v6150 = vld [vmem:[#allocation2 + $0x68] sm:$0xff]
        %v6151 = vld [vmem:[#allocation2 + $0x70] sm:$0xff]
        %v6152 = vld [vmem:[#allocation2 + $0x78] sm:$0xff]
        %s6153 = scalar_lea.vmem %s15, 1
        %v6154 = vld [vmem:[%s6153] sm:$0x1]
        %s6155 = scalar_lea.vmem %s16, 1
        %v6156 = vld [vmem:[%s6155] sm:$0x1]
        %6157 = vadd.xlane.f32.xlu0 %v6137
        %v6158 = vpop.xlane.xlu0 %6157
        %6159 = vadd.xlane.f32.xlu0 %v6138
        %v6160 = vpop.xlane.xlu0 %6159
        %6161 = vadd.xlane.f32.xlu0 %v6139
        %v6162 = vpop.xlane.xlu0 %6161
        %6163 = vadd.xlane.f32.xlu0 %v6140
        %v6164 = vpop.xlane.xlu0 %6163
        %6165 = vadd.xlane.f32.xlu0 %v6141
        %v6166 = vpop.xlane.xlu0 %6165
        %6167 = vadd.xlane.f32.xlu0 %v6142
        %v6168 = vpop.xlane.xlu0 %6167
        %6169 = vadd.xlane.f32.xlu0 %v6143
        %v6170 = vpop.xlane.xlu0 %6169
        %6171 = vadd.xlane.f32.xlu0 %v6144
        %v6172 = vpop.xlane.xlu0 %6171
        %6173 = vadd.xlane.f32.xlu0 %v6145
        %v6174 = vpop.xlane.xlu0 %6173
        %6175 = vadd.xlane.f32.xlu0 %v6146
        %v6176 = vpop.xlane.xlu0 %6175
        %6177 = vadd.xlane.f32.xlu0 %v6147
        %v6178 = vpop.xlane.xlu0 %6177
        %6179 = vadd.xlane.f32.xlu0 %v6148
        %v6180 = vpop.xlane.xlu0 %6179
        %6181 = vadd.xlane.f32.xlu0 %v6149
        %v6182 = vpop.xlane.xlu0 %6181
        %6183 = vadd.xlane.f32.xlu0 %v6150
        %v6184 = vpop.xlane.xlu0 %6183
        %6185 = vadd.xlane.f32.xlu0 %v6151
        %v6186 = vpop.xlane.xlu0 %6185
        %6187 = vadd.xlane.f32.xlu0 %v6152
        %v6188 = vpop.xlane.xlu0 %6187
        %v6189 = vmul.f32 %v6158, %v1192
        %v6190 = vmul.f32 %v6160, %v1192
        %v6191 = vmul.f32 %v6162, %v1192
        %v6192 = vmul.f32 %v6164, %v1192
        %v6193 = vmul.f32 %v6166, %v1192
        %v6194 = vmul.f32 %v6168, %v1192
        %v6195 = vmul.f32 %v6170, %v1192
        %v6196 = vmul.f32 %v6172, %v1192
        %v6197 = vmul.f32 %v6174, %v1192
        %v6198 = vmul.f32 %v6176, %v1192
        %v6199 = vmul.f32 %v6178, %v1192
        %v6200 = vmul.f32 %v6180, %v1192
        %v6201 = vmul.f32 %v6182, %v1192
        %v6202 = vmul.f32 %v6184, %v1192
        %v6203 = vmul.f32 %v6186, %v1192
        %v6204 = vmul.f32 %v6188, %v1192
        %v6205 = vsub.f32 %v6137, %v6189
        %v6206 = vsub.f32 %v6138, %v6190
        %v6207 = vsub.f32 %v6139, %v6191
        %v6208 = vsub.f32 %v6140, %v6192
        %v6209 = vsub.f32 %v6141, %v6193
        %v6210 = vsub.f32 %v6142, %v6194
        %v6211 = vsub.f32 %v6143, %v6195
        %v6212 = vsub.f32 %v6144, %v6196
        %v6213 = vsub.f32 %v6145, %v6197
        %v6214 = vsub.f32 %v6146, %v6198
        %v6215 = vsub.f32 %v6147, %v6199
        %v6216 = vsub.f32 %v6148, %v6200
        %v6217 = vsub.f32 %v6149, %v6201
        %v6218 = vsub.f32 %v6150, %v6202
        %v6219 = vsub.f32 %v6151, %v6203
        %v6220 = vsub.f32 %v6152, %v6204
        %v6221 = vmul.f32 %v6205, %v6205
        %v6222 = vmul.f32 %v6206, %v6206
        %v6223 = vmul.f32 %v6207, %v6207
        %v6224 = vmul.f32 %v6208, %v6208
        %v6225 = vmul.f32 %v6209, %v6209
        %v6226 = vmul.f32 %v6210, %v6210
        %v6227 = vmul.f32 %v6211, %v6211
        %v6228 = vmul.f32 %v6212, %v6212
        %v6229 = vmul.f32 %v6213, %v6213
        %v6230 = vmul.f32 %v6214, %v6214
        %v6231 = vmul.f32 %v6215, %v6215
        %v6232 = vmul.f32 %v6216, %v6216
        %v6233 = vmul.f32 %v6217, %v6217
        %v6234 = vmul.f32 %v6218, %v6218
        %v6235 = vmul.f32 %v6219, %v6219
        %v6236 = vmul.f32 %v6220, %v6220
        %6237 = vadd.xlane.f32.xlu0 %v6221
        %v6238 = vpop.xlane.xlu0 %6237
        %6239 = vadd.xlane.f32.xlu0 %v6222
        %v6240 = vpop.xlane.xlu0 %6239
        %6241 = vadd.xlane.f32.xlu0 %v6223
        %v6242 = vpop.xlane.xlu0 %6241
        %6243 = vadd.xlane.f32.xlu0 %v6224
        %v6244 = vpop.xlane.xlu0 %6243
        %6245 = vadd.xlane.f32.xlu0 %v6225
        %v6246 = vpop.xlane.xlu0 %6245
        %6247 = vadd.xlane.f32.xlu0 %v6226
        %v6248 = vpop.xlane.xlu0 %6247
        %6249 = vadd.xlane.f32.xlu0 %v6227
        %v6250 = vpop.xlane.xlu0 %6249
        %6251 = vadd.xlane.f32.xlu0 %v6228
        %v6252 = vpop.xlane.xlu0 %6251
        %6253 = vadd.xlane.f32.xlu0 %v6229
        %v6254 = vpop.xlane.xlu0 %6253
        %6255 = vadd.xlane.f32.xlu0 %v6230
        %v6256 = vpop.xlane.xlu0 %6255
        %6257 = vadd.xlane.f32.xlu0 %v6231
        %v6258 = vpop.xlane.xlu0 %6257
        %6259 = vadd.xlane.f32.xlu0 %v6232
        %v6260 = vpop.xlane.xlu0 %6259
        %6261 = vadd.xlane.f32.xlu0 %v6233
        %v6262 = vpop.xlane.xlu0 %6261
        %6263 = vadd.xlane.f32.xlu0 %v6234
        %v6264 = vpop.xlane.xlu0 %6263
        %6265 = vadd.xlane.f32.xlu0 %v6235
        %v6266 = vpop.xlane.xlu0 %6265
        %6267 = vadd.xlane.f32.xlu0 %v6236
        %v6268 = vpop.xlane.xlu0 %6267
        %v6269 = vmul.f32 %v6238, %v1192
        %v6270 = vmul.f32 %v6240, %v1192
        %v6271 = vmul.f32 %v6242, %v1192
        %v6272 = vmul.f32 %v6244, %v1192
        %v6273 = vmul.f32 %v6246, %v1192
        %v6274 = vmul.f32 %v6248, %v1192
        %v6275 = vmul.f32 %v6250, %v1192
        %v6276 = vmul.f32 %v6252, %v1192
        %v6277 = vmul.f32 %v6254, %v1192
        %v6278 = vmul.f32 %v6256, %v1192
        %v6279 = vmul.f32 %v6258, %v1192
        %v6280 = vmul.f32 %v6260, %v1192
        %v6281 = vmul.f32 %v6262, %v1192
        %v6282 = vmul.f32 %v6264, %v1192
        %v6283 = vmul.f32 %v6266, %v1192
        %v6284 = vmul.f32 %v6268, %v1192
        %v6285 = vadd.f32 %v6269, 1e-05
        %v6286 = vadd.f32 %v6270, 1e-05
        %v6287 = vadd.f32 %v6271, 1e-05
        %v6288 = vadd.f32 %v6272, 1e-05
        %v6289 = vadd.f32 %v6273, 1e-05
        %v6290 = vadd.f32 %v6274, 1e-05
        %v6291 = vadd.f32 %v6275, 1e-05
        %v6292 = vadd.f32 %v6276, 1e-05
        %v6293 = vadd.f32 %v6277, 1e-05
        %v6294 = vadd.f32 %v6278, 1e-05
        %v6295 = vadd.f32 %v6279, 1e-05
        %v6296 = vadd.f32 %v6280, 1e-05
        %v6297 = vadd.f32 %v6281, 1e-05
        %v6298 = vadd.f32 %v6282, 1e-05
        %v6299 = vadd.f32 %v6283, 1e-05
        %v6300 = vadd.f32 %v6284, 1e-05
        %v6301 = vrsqrt.pop %v6285
        %v6302 = vmul.f32 %v6301, %v6285
        %v6303 = vmul.f32 %v6302, %v6301
        %v6304 = vmul.f32 0.5, %v6303
        %v6305 = vsub.f32 1.5, %v6304
        %v6306 = vmul.f32 %v6301, %v6305
        %vm6307 = vweird.f32 %v6285
        %vm6308 = vweird.f32 %v6301
        %vm6309 = vmor %vm6307, %vm6308
        %v6310 = vsel %vm6309, %v6301, %v6306
        %v6311 = vrsqrt.pop %v6286
        %v6312 = vmul.f32 %v6311, %v6286
        %v6313 = vmul.f32 %v6312, %v6311
        %v6314 = vmul.f32 0.5, %v6313
        %v6315 = vsub.f32 1.5, %v6314
        %v6316 = vmul.f32 %v6311, %v6315
        %vm6317 = vweird.f32 %v6286
        %vm6318 = vweird.f32 %v6311
        %vm6319 = vmor %vm6317, %vm6318
        %v6320 = vsel %vm6319, %v6311, %v6316
        %v6321 = vrsqrt.pop %v6287
        %v6322 = vmul.f32 %v6321, %v6287
        %v6323 = vmul.f32 %v6322, %v6321
        %v6324 = vmul.f32 0.5, %v6323
        %v6325 = vsub.f32 1.5, %v6324
        %v6326 = vmul.f32 %v6321, %v6325
        %vm6327 = vweird.f32 %v6287
        %vm6328 = vweird.f32 %v6321
        %vm6329 = vmor %vm6327, %vm6328
        %v6330 = vsel %vm6329, %v6321, %v6326
        %v6331 = vrsqrt.pop %v6288
        %v6332 = vmul.f32 %v6331, %v6288
        %v6333 = vmul.f32 %v6332, %v6331
        %v6334 = vmul.f32 0.5, %v6333
        %v6335 = vsub.f32 1.5, %v6334
        %v6336 = vmul.f32 %v6331, %v6335
        %vm6337 = vweird.f32 %v6288
        %vm6338 = vweird.f32 %v6331
        %vm6339 = vmor %vm6337, %vm6338
        %v6340 = vsel %vm6339, %v6331, %v6336
        %v6341 = vrsqrt.pop %v6289
        %v6342 = vmul.f32 %v6341, %v6289
        %v6343 = vmul.f32 %v6342, %v6341
        %v6344 = vmul.f32 0.5, %v6343
        %v6345 = vsub.f32 1.5, %v6344
        %v6346 = vmul.f32 %v6341, %v6345
        %vm6347 = vweird.f32 %v6289
        %vm6348 = vweird.f32 %v6341
        %vm6349 = vmor %vm6347, %vm6348
        %v6350 = vsel %vm6349, %v6341, %v6346
        %v6351 = vrsqrt.pop %v6290
        %v6352 = vmul.f32 %v6351, %v6290
        %v6353 = vmul.f32 %v6352, %v6351
        %v6354 = vmul.f32 0.5, %v6353
        %v6355 = vsub.f32 1.5, %v6354
        %v6356 = vmul.f32 %v6351, %v6355
        %vm6357 = vweird.f32 %v6290
        %vm6358 = vweird.f32 %v6351
        %vm6359 = vmor %vm6357, %vm6358
        %v6360 = vsel %vm6359, %v6351, %v6356
        %v6361 = vrsqrt.pop %v6291
        %v6362 = vmul.f32 %v6361, %v6291
        %v6363 = vmul.f32 %v6362, %v6361
        %v6364 = vmul.f32 0.5, %v6363
        %v6365 = vsub.f32 1.5, %v6364
        %v6366 = vmul.f32 %v6361, %v6365
        %vm6367 = vweird.f32 %v6291
        %vm6368 = vweird.f32 %v6361
        %vm6369 = vmor %vm6367, %vm6368
        %v6370 = vsel %vm6369, %v6361, %v6366
        %v6371 = vrsqrt.pop %v6292
        %v6372 = vmul.f32 %v6371, %v6292
        %v6373 = vmul.f32 %v6372, %v6371
        %v6374 = vmul.f32 0.5, %v6373
        %v6375 = vsub.f32 1.5, %v6374
        %v6376 = vmul.f32 %v6371, %v6375
        %vm6377 = vweird.f32 %v6292
        %vm6378 = vweird.f32 %v6371
        %vm6379 = vmor %vm6377, %vm6378
        %v6380 = vsel %vm6379, %v6371, %v6376
        %v6381 = vrsqrt.pop %v6293
        %v6382 = vmul.f32 %v6381, %v6293
        %v6383 = vmul.f32 %v6382, %v6381
        %v6384 = vmul.f32 0.5, %v6383
        %v6385 = vsub.f32 1.5, %v6384
        %v6386 = vmul.f32 %v6381, %v6385
        %vm6387 = vweird.f32 %v6293
        %vm6388 = vweird.f32 %v6381
        %vm6389 = vmor %vm6387, %vm6388
        %v6390 = vsel %vm6389, %v6381, %v6386
        %v6391 = vrsqrt.pop %v6294
        %v6392 = vmul.f32 %v6391, %v6294
        %v6393 = vmul.f32 %v6392, %v6391
        %v6394 = vmul.f32 0.5, %v6393
        %v6395 = vsub.f32 1.5, %v6394
        %v6396 = vmul.f32 %v6391, %v6395
        %vm6397 = vweird.f32 %v6294
        %vm6398 = vweird.f32 %v6391
        %vm6399 = vmor %vm6397, %vm6398
        %v6400 = vsel %vm6399, %v6391, %v6396
        %v6401 = vrsqrt.pop %v6295
        %v6402 = vmul.f32 %v6401, %v6295
        %v6403 = vmul.f32 %v6402, %v6401
        %v6404 = vmul.f32 0.5, %v6403
        %v6405 = vsub.f32 1.5, %v6404
        %v6406 = vmul.f32 %v6401, %v6405
        %vm6407 = vweird.f32 %v6295
        %vm6408 = vweird.f32 %v6401
        %vm6409 = vmor %vm6407, %vm6408
        %v6410 = vsel %vm6409, %v6401, %v6406
        %v6411 = vrsqrt.pop %v6296
        %v6412 = vmul.f32 %v6411, %v6296
        %v6413 = vmul.f32 %v6412, %v6411
        %v6414 = vmul.f32 0.5, %v6413
        %v6415 = vsub.f32 1.5, %v6414
        %v6416 = vmul.f32 %v6411, %v6415
        %vm6417 = vweird.f32 %v6296
        %vm6418 = vweird.f32 %v6411
        %vm6419 = vmor %vm6417, %vm6418
        %v6420 = vsel %vm6419, %v6411, %v6416
        %v6421 = vrsqrt.pop %v6297
        %v6422 = vmul.f32 %v6421, %v6297
        %v6423 = vmul.f32 %v6422, %v6421
        %v6424 = vmul.f32 0.5, %v6423
        %v6425 = vsub.f32 1.5, %v6424
        %v6426 = vmul.f32 %v6421, %v6425
        %vm6427 = vweird.f32 %v6297
        %vm6428 = vweird.f32 %v6421
        %vm6429 = vmor %vm6427, %vm6428
        %v6430 = vsel %vm6429, %v6421, %v6426
        %v6431 = vrsqrt.pop %v6298
        %v6432 = vmul.f32 %v6431, %v6298
        %v6433 = vmul.f32 %v6432, %v6431
        %v6434 = vmul.f32 0.5, %v6433
        %v6435 = vsub.f32 1.5, %v6434
        %v6436 = vmul.f32 %v6431, %v6435
        %vm6437 = vweird.f32 %v6298
        %vm6438 = vweird.f32 %v6431
        %vm6439 = vmor %vm6437, %vm6438
        %v6440 = vsel %vm6439, %v6431, %v6436
        %v6441 = vrsqrt.pop %v6299
        %v6442 = vmul.f32 %v6441, %v6299
        %v6443 = vmul.f32 %v6442, %v6441
        %v6444 = vmul.f32 0.5, %v6443
        %v6445 = vsub.f32 1.5, %v6444
        %v6446 = vmul.f32 %v6441, %v6445
        %vm6447 = vweird.f32 %v6299
        %vm6448 = vweird.f32 %v6441
        %vm6449 = vmor %vm6447, %vm6448
        %v6450 = vsel %vm6449, %v6441, %v6446
        %v6451 = vrsqrt.pop %v6300
        %v6452 = vmul.f32 %v6451, %v6300
        %v6453 = vmul.f32 %v6452, %v6451
        %v6454 = vmul.f32 0.5, %v6453
        %v6455 = vsub.f32 1.5, %v6454
        %v6456 = vmul.f32 %v6451, %v6455
        %vm6457 = vweird.f32 %v6300
        %vm6458 = vweird.f32 %v6451
        %vm6459 = vmor %vm6457, %vm6458
        %v6460 = vsel %vm6459, %v6451, %v6456
        %v6461 = vmul.f32 %v6205, %v6310
        %v6462 = vmul.f32 %v6206, %v6320
        %v6463 = vmul.f32 %v6207, %v6330
        %v6464 = vmul.f32 %v6208, %v6340
        %v6465 = vmul.f32 %v6209, %v6350
        %v6466 = vmul.f32 %v6210, %v6360
        %v6467 = vmul.f32 %v6211, %v6370
        %v6468 = vmul.f32 %v6212, %v6380
        %v6469 = vmul.f32 %v6213, %v6390
        %v6470 = vmul.f32 %v6214, %v6400
        %v6471 = vmul.f32 %v6215, %v6410
        %v6472 = vmul.f32 %v6216, %v6420
        %v6473 = vmul.f32 %v6217, %v6430
        %v6474 = vmul.f32 %v6218, %v6440
        %v6475 = vmul.f32 %v6219, %v6450
        %v6476 = vmul.f32 %v6220, %v6460
        %v6478 = vperm.slane %v6154, 0
        %v6480 = vmul.f32 %v6461, %v6478
        %v6481 = vmul.f32 %v6462, %v6478
        %v6482 = vmul.f32 %v6463, %v6478
        %v6483 = vmul.f32 %v6464, %v6478
        %v6484 = vmul.f32 %v6465, %v6478
        %v6485 = vmul.f32 %v6466, %v6478
        %v6486 = vmul.f32 %v6467, %v6478
        %v6487 = vmul.f32 %v6468, %v6478
        %v6488 = vmul.f32 %v6469, %v6478
        %v6489 = vmul.f32 %v6470, %v6478
        %v6490 = vmul.f32 %v6471, %v6478
        %v6491 = vmul.f32 %v6472, %v6478
        %v6492 = vmul.f32 %v6473, %v6478
        %v6493 = vmul.f32 %v6474, %v6478
        %v6494 = vmul.f32 %v6475, %v6478
        %v6495 = vmul.f32 %v6476, %v6478
        %v6497 = vperm.slane %v6156, 0
        %v6499 = vadd.f32 %v6480, %v6497
        %v6500 = vadd.f32 %v6481, %v6497
        %v6501 = vadd.f32 %v6482, %v6497
        %v6502 = vadd.f32 %v6483, %v6497
        %v6503 = vadd.f32 %v6484, %v6497
        %v6504 = vadd.f32 %v6485, %v6497
        %v6505 = vadd.f32 %v6486, %v6497
        %v6506 = vadd.f32 %v6487, %v6497
        %v6507 = vadd.f32 %v6488, %v6497
        %v6508 = vadd.f32 %v6489, %v6497
        %v6509 = vadd.f32 %v6490, %v6497
        %v6510 = vadd.f32 %v6491, %v6497
        %v6511 = vadd.f32 %v6492, %v6497
        %v6512 = vadd.f32 %v6493, %v6497
        %v6513 = vadd.f32 %v6494, %v6497
        %v6514 = vadd.f32 %v6495, %v6497
        %v6515 = vpack.c.bf16 %v6500, %v6499
        %v6516 = vpack.c.bf16 %v6502, %v6501
        %v6517 = vpack.c.bf16 %v6504, %v6503
        %v6518 = vpack.c.bf16 %v6506, %v6505
        %v6519 = vpack.c.bf16 %v6508, %v6507
        %v6520 = vpack.c.bf16 %v6510, %v6509
        %v6521 = vpack.c.bf16 %v6512, %v6511
        %v6522 = vpack.c.bf16 %v6514, %v6513
        %s6523 = scalar_lea.vmem [#allocation17], 256
        %v6524 = vld [vmem:[%s6523] sm:$0xff]
        %v6525 = vld [vmem:[%s6523 + $0x8] sm:$0xff]
        %v6526 = vld [vmem:[%s6523 + $0x10] sm:$0xff]
        %v6527 = vld [vmem:[%s6523 + $0x18] sm:$0xff]
        %v6528 = vld [vmem:[%s6523 + $0x20] sm:$0xff]
        %v6529 = vld [vmem:[%s6523 + $0x28] sm:$0xff]
        %v6530 = vld [vmem:[%s6523 + $0x30] sm:$0xff]
        %v6531 = vld [vmem:[%s6523 + $0x38] sm:$0xff]
        %v6532 = vld [vmem:[%s6523 + $0x40] sm:$0xff]
        %v6533 = vld [vmem:[%s6523 + $0x48] sm:$0xff]
        %v6534 = vld [vmem:[%s6523 + $0x50] sm:$0xff]
        %v6535 = vld [vmem:[%s6523 + $0x58] sm:$0xff]
        %v6536 = vld [vmem:[%s6523 + $0x60] sm:$0xff]
        %v6537 = vld [vmem:[%s6523 + $0x68] sm:$0xff]
        %v6538 = vld [vmem:[%s6523 + $0x70] sm:$0xff]
        %v6539 = vld [vmem:[%s6523 + $0x78] sm:$0xff]
        %v6540 = vld [vmem:[%s6523 + $0x80] sm:$0xff]
        %v6541 = vld [vmem:[%s6523 + $0x88] sm:$0xff]
        %v6542 = vld [vmem:[%s6523 + $0x90] sm:$0xff]
        %v6543 = vld [vmem:[%s6523 + $0x98] sm:$0xff]
        %v6544 = vld [vmem:[%s6523 + $0xa0] sm:$0xff]
        %v6545 = vld [vmem:[%s6523 + $0xa8] sm:$0xff]
        %v6546 = vld [vmem:[%s6523 + $0xb0] sm:$0xff]
        %v6547 = vld [vmem:[%s6523 + $0xb8] sm:$0xff]
        %v6548 = vld [vmem:[%s6523 + $0xc0] sm:$0xff]
        %v6549 = vld [vmem:[%s6523 + $0xc8] sm:$0xff]
        %v6550 = vld [vmem:[%s6523 + $0xd0] sm:$0xff]
        %v6551 = vld [vmem:[%s6523 + $0xd8] sm:$0xff]
        %v6552 = vld [vmem:[%s6523 + $0xe0] sm:$0xff]
        %v6553 = vld [vmem:[%s6523 + $0xe8] sm:$0xff]
        %v6554 = vld [vmem:[%s6523 + $0xf0] sm:$0xff]
        %v6555 = vld [vmem:[%s6523 + $0xf8] sm:$0xff]
        %s6556 = scalar_lea.vmem %s18, 4
        %v6557 = vld [vmem:[%s6556] sm:$0xf]
        %v6559 = vperm.slane %v6557, 0
        %v6560 = vperm.slane %v6557, 1
        %v6561 = vperm.slane %v6557, 2
        %v6562 = vperm.slane %v6557, 3
        %v6599 = vunpack.c.l.b16 %v6524
        %v6600 = vunpack.c.h.b16 %v6524
        %v6601 = vunpack.c.l.b16 %v6525
        %v6602 = vunpack.c.h.b16 %v6525
        %v6603 = vunpack.c.l.b16 %v6526
        %v6604 = vunpack.c.h.b16 %v6526
        %v6605 = vunpack.c.l.b16 %v6527
        %v6606 = vunpack.c.h.b16 %v6527
        %v6607 = vunpack.c.l.b16 %v6528
        %v6608 = vunpack.c.h.b16 %v6528
        %v6609 = vunpack.c.l.b16 %v6529
        %v6610 = vunpack.c.h.b16 %v6529
        %v6611 = vunpack.c.l.b16 %v6530
        %v6612 = vunpack.c.h.b16 %v6530
        %v6613 = vunpack.c.l.b16 %v6531
        %v6614 = vunpack.c.h.b16 %v6531
        %v6615 = vunpack.c.l.b16 %v6532
        %v6616 = vunpack.c.h.b16 %v6532
        %v6617 = vunpack.c.l.b16 %v6533
        %v6618 = vunpack.c.h.b16 %v6533
        %v6619 = vunpack.c.l.b16 %v6534
        %v6620 = vunpack.c.h.b16 %v6534
        %v6621 = vunpack.c.l.b16 %v6535
        %v6622 = vunpack.c.h.b16 %v6535
        %v6623 = vunpack.c.l.b16 %v6536
        %v6624 = vunpack.c.h.b16 %v6536
        %v6625 = vunpack.c.l.b16 %v6537
        %v6626 = vunpack.c.h.b16 %v6537
        %v6627 = vunpack.c.l.b16 %v6538
        %v6628 = vunpack.c.h.b16 %v6538
        %v6629 = vunpack.c.l.b16 %v6539
        %v6630 = vunpack.c.h.b16 %v6539
        %v6631 = vunpack.c.l.b16 %v6540
        %v6632 = vunpack.c.h.b16 %v6540
        %v6633 = vunpack.c.l.b16 %v6541
        %v6634 = vunpack.c.h.b16 %v6541
        %v6635 = vunpack.c.l.b16 %v6542
        %v6636 = vunpack.c.h.b16 %v6542
        %v6637 = vunpack.c.l.b16 %v6543
        %v6638 = vunpack.c.h.b16 %v6543
        %v6639 = vunpack.c.l.b16 %v6544
        %v6640 = vunpack.c.h.b16 %v6544
        %v6641 = vunpack.c.l.b16 %v6545
        %v6642 = vunpack.c.h.b16 %v6545
        %v6643 = vunpack.c.l.b16 %v6546
        %v6644 = vunpack.c.h.b16 %v6546
        %v6645 = vunpack.c.l.b16 %v6547
        %v6646 = vunpack.c.h.b16 %v6547
        %v6647 = vunpack.c.l.b16 %v6548
        %v6648 = vunpack.c.h.b16 %v6548
        %v6649 = vunpack.c.l.b16 %v6549
        %v6650 = vunpack.c.h.b16 %v6549
        %v6651 = vunpack.c.l.b16 %v6550
        %v6652 = vunpack.c.h.b16 %v6550
        %v6653 = vunpack.c.l.b16 %v6551
        %v6654 = vunpack.c.h.b16 %v6551
        %v6655 = vunpack.c.l.b16 %v6552
        %v6656 = vunpack.c.h.b16 %v6552
        %v6657 = vunpack.c.l.b16 %v6553
        %v6658 = vunpack.c.h.b16 %v6553
        %v6659 = vunpack.c.l.b16 %v6554
        %v6660 = vunpack.c.h.b16 %v6554
        %v6661 = vunpack.c.l.b16 %v6555
        %v6662 = vunpack.c.h.b16 %v6555
        %v6663 = vpack.c.b16 %v6603, %v6599
        %v6664 = vpack.c.b16 %v6604, %v6600
        %v6665 = vpack.c.b16 %v6605, %v6601
        %v6666 = vpack.c.b16 %v6606, %v6602
        %v6667 = vpack.c.b16 %v6611, %v6607
        %v6668 = vpack.c.b16 %v6612, %v6608
        %v6669 = vpack.c.b16 %v6613, %v6609
        %v6670 = vpack.c.b16 %v6614, %v6610
        %v6671 = vpack.c.b16 %v6619, %v6615
        %v6672 = vpack.c.b16 %v6620, %v6616
        %v6673 = vpack.c.b16 %v6621, %v6617
        %v6674 = vpack.c.b16 %v6622, %v6618
        %v6675 = vpack.c.b16 %v6627, %v6623
        %v6676 = vpack.c.b16 %v6628, %v6624
        %v6677 = vpack.c.b16 %v6629, %v6625
        %v6678 = vpack.c.b16 %v6630, %v6626
        %v6679 = vpack.c.b16 %v6635, %v6631
        %v6680 = vpack.c.b16 %v6636, %v6632
        %v6681 = vpack.c.b16 %v6637, %v6633
        %v6682 = vpack.c.b16 %v6638, %v6634
        %v6683 = vpack.c.b16 %v6643, %v6639
        %v6684 = vpack.c.b16 %v6644, %v6640
        %v6685 = vpack.c.b16 %v6645, %v6641
        %v6686 = vpack.c.b16 %v6646, %v6642
        %v6687 = vpack.c.b16 %v6651, %v6647
        %v6688 = vpack.c.b16 %v6652, %v6648
        %v6689 = vpack.c.b16 %v6653, %v6649
        %v6690 = vpack.c.b16 %v6654, %v6650
        %v6691 = vpack.c.b16 %v6659, %v6655
        %v6692 = vpack.c.b16 %v6660, %v6656
        %v6693 = vpack.c.b16 %v6661, %v6657
        %v6694 = vpack.c.b16 %v6662, %v6658
        %6727 = vmatpush.bf16.msra.mxu0 %v6691
        %6728 = vmatpush.bf16.msra.mxu0 %v6687
        %6729 = vmatpush.bf16.msra.mxu0 %v6683
        %6730 = vmatpush.bf16.msra.mxu0 %v6679
        %6731 = vmatpush.bf16.msra.mxu0 %v6675
        %6732 = vmatpush.bf16.msra.mxu0 %v6671
        %6733 = vmatpush.bf16.msra.mxu0 %v6667
        %6734 = vmatpush.bf16.msra.mxu0 %v6663
        %6735 = vmatmul.bf16.gmra.mxu0 %v6515
        %v6736 = vpop.f32.mrf.mxu0
        %v6737 = vadd.f32 %v6559, %v6736
        %v6738 = vpop.f32.mrf.mxu0
        %v6739 = vadd.f32 %v6559, %v6738
        %6740 = vmatmul.bf16.gmra.mxu0 %v6516
        %v6741 = vpop.f32.mrf.mxu0
        %v6742 = vadd.f32 %v6559, %v6741
        %v6743 = vpop.f32.mrf.mxu0
        %v6744 = vadd.f32 %v6559, %v6743
        %6745 = vmatmul.bf16.gmra.mxu0 %v6517
        %v6746 = vpop.f32.mrf.mxu0
        %v6747 = vadd.f32 %v6559, %v6746
        %v6748 = vpop.f32.mrf.mxu0
        %v6749 = vadd.f32 %v6559, %v6748
        %6750 = vmatmul.bf16.gmra.mxu0 %v6518
        %v6751 = vpop.f32.mrf.mxu0
        %v6752 = vadd.f32 %v6559, %v6751
        %v6753 = vpop.f32.mrf.mxu0
        %v6754 = vadd.f32 %v6559, %v6753
        %6755 = vmatmul.bf16.gmra.mxu0 %v6519
        %v6756 = vpop.f32.mrf.mxu0
        %v6757 = vadd.f32 %v6559, %v6756
        %v6758 = vpop.f32.mrf.mxu0
        %v6759 = vadd.f32 %v6559, %v6758
        %6760 = vmatmul.bf16.gmra.mxu0 %v6520
        %v6761 = vpop.f32.mrf.mxu0
        %v6762 = vadd.f32 %v6559, %v6761
        %v6763 = vpop.f32.mrf.mxu0
        %v6764 = vadd.f32 %v6559, %v6763
        %6765 = vmatmul.bf16.gmra.mxu0 %v6521
        %v6766 = vpop.f32.mrf.mxu0
        %v6767 = vadd.f32 %v6559, %v6766
        %v6768 = vpop.f32.mrf.mxu0
        %v6769 = vadd.f32 %v6559, %v6768
        %6770 = vmatmul.bf16.gmra.mxu0 %v6522
        %v6771 = vpop.f32.mrf.mxu0
        %v6772 = vadd.f32 %v6559, %v6771
        %v6773 = vpop.f32.mrf.mxu0
        %v6774 = vadd.f32 %v6559, %v6773
        %6775 = vdwg.mxu0
        %6776 = vmatpush.bf16.msra.mxu0 %v6692
        %6777 = vmatpush.bf16.msra.mxu0 %v6688
        %6778 = vmatpush.bf16.msra.mxu0 %v6684
        %6779 = vmatpush.bf16.msra.mxu0 %v6680
        %6780 = vmatpush.bf16.msra.mxu0 %v6676
        %6781 = vmatpush.bf16.msra.mxu0 %v6672
        %6782 = vmatpush.bf16.msra.mxu0 %v6668
        %6783 = vmatpush.bf16.msra.mxu0 %v6664
        %6784 = vmatmul.bf16.gmra.mxu0 %v6515
        %v6785 = vpop.f32.mrf.mxu0
        %v6786 = vadd.f32 %v6560, %v6785
        %v6787 = vpop.f32.mrf.mxu0
        %v6788 = vadd.f32 %v6560, %v6787
        %6789 = vmatmul.bf16.gmra.mxu0 %v6516
        %v6790 = vpop.f32.mrf.mxu0
        %v6791 = vadd.f32 %v6560, %v6790
        %v6792 = vpop.f32.mrf.mxu0
        %v6793 = vadd.f32 %v6560, %v6792
        %6794 = vmatmul.bf16.gmra.mxu0 %v6517
        %v6795 = vpop.f32.mrf.mxu0
        %v6796 = vadd.f32 %v6560, %v6795
        %v6797 = vpop.f32.mrf.mxu0
        %v6798 = vadd.f32 %v6560, %v6797
        %6799 = vmatmul.bf16.gmra.mxu0 %v6518
        %v6800 = vpop.f32.mrf.mxu0
        %v6801 = vadd.f32 %v6560, %v6800
        %v6802 = vpop.f32.mrf.mxu0
        %v6803 = vadd.f32 %v6560, %v6802
        %6804 = vmatmul.bf16.gmra.mxu0 %v6519
        %v6805 = vpop.f32.mrf.mxu0
        %v6806 = vadd.f32 %v6560, %v6805
        %v6807 = vpop.f32.mrf.mxu0
        %v6808 = vadd.f32 %v6560, %v6807
        %6809 = vmatmul.bf16.gmra.mxu0 %v6520
        %v6810 = vpop.f32.mrf.mxu0
        %v6811 = vadd.f32 %v6560, %v6810
        %v6812 = vpop.f32.mrf.mxu0
        %v6813 = vadd.f32 %v6560, %v6812
        %6814 = vmatmul.bf16.gmra.mxu0 %v6521
        %v6815 = vpop.f32.mrf.mxu0
        %v6816 = vadd.f32 %v6560, %v6815
        %v6817 = vpop.f32.mrf.mxu0
        %v6818 = vadd.f32 %v6560, %v6817
        %6819 = vmatmul.bf16.gmra.mxu0 %v6522
        %v6820 = vpop.f32.mrf.mxu0
        %v6821 = vadd.f32 %v6560, %v6820
        %v6822 = vpop.f32.mrf.mxu0
        %v6823 = vadd.f32 %v6560, %v6822
        %6824 = vdwg.mxu0
        %6825 = vmatpush.bf16.msra.mxu0 %v6693
        %6826 = vmatpush.bf16.msra.mxu0 %v6689
        %6827 = vmatpush.bf16.msra.mxu0 %v6685
        %6828 = vmatpush.bf16.msra.mxu0 %v6681
        %6829 = vmatpush.bf16.msra.mxu0 %v6677
        %6830 = vmatpush.bf16.msra.mxu0 %v6673
        %6831 = vmatpush.bf16.msra.mxu0 %v6669
        %6832 = vmatpush.bf16.msra.mxu0 %v6665
        %6833 = vmatmul.bf16.gmra.mxu0 %v6515
        %v6834 = vpop.f32.mrf.mxu0
        %v6835 = vadd.f32 %v6561, %v6834
        %v6836 = vpop.f32.mrf.mxu0
        %v6837 = vadd.f32 %v6561, %v6836
        %6838 = vmatmul.bf16.gmra.mxu0 %v6516
        %v6839 = vpop.f32.mrf.mxu0
        %v6840 = vadd.f32 %v6561, %v6839
        %v6841 = vpop.f32.mrf.mxu0
        %v6842 = vadd.f32 %v6561, %v6841
        %6843 = vmatmul.bf16.gmra.mxu0 %v6517
        %v6844 = vpop.f32.mrf.mxu0
        %v6845 = vadd.f32 %v6561, %v6844
        %v6846 = vpop.f32.mrf.mxu0
        %v6847 = vadd.f32 %v6561, %v6846
        %6848 = vmatmul.bf16.gmra.mxu0 %v6518
        %v6849 = vpop.f32.mrf.mxu0
        %v6850 = vadd.f32 %v6561, %v6849
        %v6851 = vpop.f32.mrf.mxu0
        %v6852 = vadd.f32 %v6561, %v6851
        %6853 = vmatmul.bf16.gmra.mxu0 %v6519
        %v6854 = vpop.f32.mrf.mxu0
        %v6855 = vadd.f32 %v6561, %v6854
        %v6856 = vpop.f32.mrf.mxu0
        %v6857 = vadd.f32 %v6561, %v6856
        %6858 = vmatmul.bf16.gmra.mxu0 %v6520
        %v6859 = vpop.f32.mrf.mxu0
        %v6860 = vadd.f32 %v6561, %v6859
        %v6861 = vpop.f32.mrf.mxu0
        %v6862 = vadd.f32 %v6561, %v6861
        %6863 = vmatmul.bf16.gmra.mxu0 %v6521
        %v6864 = vpop.f32.mrf.mxu0
        %v6865 = vadd.f32 %v6561, %v6864
        %v6866 = vpop.f32.mrf.mxu0
        %v6867 = vadd.f32 %v6561, %v6866
        %6868 = vmatmul.bf16.gmra.mxu0 %v6522
        %v6869 = vpop.f32.mrf.mxu0
        %v6870 = vadd.f32 %v6561, %v6869
        %v6871 = vpop.f32.mrf.mxu0
        %v6872 = vadd.f32 %v6561, %v6871
        %6873 = vdwg.mxu0
        %6874 = vmatpush.bf16.msra.mxu0 %v6694
        %6875 = vmatpush.bf16.msra.mxu0 %v6690
        %6876 = vmatpush.bf16.msra.mxu0 %v6686
        %6877 = vmatpush.bf16.msra.mxu0 %v6682
        %6878 = vmatpush.bf16.msra.mxu0 %v6678
        %6879 = vmatpush.bf16.msra.mxu0 %v6674
        %6880 = vmatpush.bf16.msra.mxu0 %v6670
        %6881 = vmatpush.bf16.msra.mxu0 %v6666
        %6882 = vmatmul.bf16.gmra.mxu0 %v6515
        %v6883 = vpop.f32.mrf.mxu0
        %v6884 = vadd.f32 %v6562, %v6883
        %v6885 = vpop.f32.mrf.mxu0
        %v6886 = vadd.f32 %v6562, %v6885
        %6887 = vmatmul.bf16.gmra.mxu0 %v6516
        %v6888 = vpop.f32.mrf.mxu0
        %v6889 = vadd.f32 %v6562, %v6888
        %v6890 = vpop.f32.mrf.mxu0
        %v6891 = vadd.f32 %v6562, %v6890
        %6892 = vmatmul.bf16.gmra.mxu0 %v6517
        %v6893 = vpop.f32.mrf.mxu0
        %v6894 = vadd.f32 %v6562, %v6893
        %v6895 = vpop.f32.mrf.mxu0
        %v6896 = vadd.f32 %v6562, %v6895
        %6897 = vmatmul.bf16.gmra.mxu0 %v6518
        %v6898 = vpop.f32.mrf.mxu0
        %v6899 = vadd.f32 %v6562, %v6898
        %v6900 = vpop.f32.mrf.mxu0
        %v6901 = vadd.f32 %v6562, %v6900
        %6902 = vmatmul.bf16.gmra.mxu0 %v6519
        %v6903 = vpop.f32.mrf.mxu0
        %v6904 = vadd.f32 %v6562, %v6903
        %v6905 = vpop.f32.mrf.mxu0
        %v6906 = vadd.f32 %v6562, %v6905
        %6907 = vmatmul.bf16.gmra.mxu0 %v6520
        %v6908 = vpop.f32.mrf.mxu0
        %v6909 = vadd.f32 %v6562, %v6908
        %v6910 = vpop.f32.mrf.mxu0
        %v6911 = vadd.f32 %v6562, %v6910
        %6912 = vmatmul.bf16.gmra.mxu0 %v6521
        %v6913 = vpop.f32.mrf.mxu0
        %v6914 = vadd.f32 %v6562, %v6913
        %v6915 = vpop.f32.mrf.mxu0
        %v6916 = vadd.f32 %v6562, %v6915
        %6917 = vmatmul.bf16.gmra.mxu0 %v6522
        %v6918 = vpop.f32.mrf.mxu0
        %v6919 = vadd.f32 %v6562, %v6918
        %v6920 = vpop.f32.mrf.mxu0
        %v6921 = vadd.f32 %v6562, %v6920
        %6922 = vdwg.mxu0
        %v6923 = vmul.f32 %v6737, %v6737
        %v6924 = vmul.f32 %v6786, %v6786
        %v6925 = vmul.f32 %v6835, %v6835
        %v6926 = vmul.f32 %v6884, %v6884
        %v6927 = vmul.f32 %v6739, %v6739
        %v6928 = vmul.f32 %v6788, %v6788
        %v6929 = vmul.f32 %v6837, %v6837
        %v6930 = vmul.f32 %v6886, %v6886
        %v6931 = vmul.f32 %v6742, %v6742
        %v6932 = vmul.f32 %v6791, %v6791
        %v6933 = vmul.f32 %v6840, %v6840
        %v6934 = vmul.f32 %v6889, %v6889
        %v6935 = vmul.f32 %v6744, %v6744
        %v6936 = vmul.f32 %v6793, %v6793
        %v6937 = vmul.f32 %v6842, %v6842
        %v6938 = vmul.f32 %v6891, %v6891
        %v6939 = vmul.f32 %v6747, %v6747
        %v6940 = vmul.f32 %v6796, %v6796
        %v6941 = vmul.f32 %v6845, %v6845
        %v6942 = vmul.f32 %v6894, %v6894
        %v6943 = vmul.f32 %v6749, %v6749
        %v6944 = vmul.f32 %v6798, %v6798
        %v6945 = vmul.f32 %v6847, %v6847
        %v6946 = vmul.f32 %v6896, %v6896
        %v6947 = vmul.f32 %v6752, %v6752
        %v6948 = vmul.f32 %v6801, %v6801
        %v6949 = vmul.f32 %v6850, %v6850
        %v6950 = vmul.f32 %v6899, %v6899
        %v6951 = vmul.f32 %v6754, %v6754
        %v6952 = vmul.f32 %v6803, %v6803
        %v6953 = vmul.f32 %v6852, %v6852
        %v6954 = vmul.f32 %v6901, %v6901
        %v6955 = vmul.f32 %v6757, %v6757
        %v6956 = vmul.f32 %v6806, %v6806
        %v6957 = vmul.f32 %v6855, %v6855
        %v6958 = vmul.f32 %v6904, %v6904
        %v6959 = vmul.f32 %v6759, %v6759
        %v6960 = vmul.f32 %v6808, %v6808
        %v6961 = vmul.f32 %v6857, %v6857
        %v6962 = vmul.f32 %v6906, %v6906
        %v6963 = vmul.f32 %v6762, %v6762
        %v6964 = vmul.f32 %v6811, %v6811
        %v6965 = vmul.f32 %v6860, %v6860
        %v6966 = vmul.f32 %v6909, %v6909
        %v6967 = vmul.f32 %v6764, %v6764
        %v6968 = vmul.f32 %v6813, %v6813
        %v6969 = vmul.f32 %v6862, %v6862
        %v6970 = vmul.f32 %v6911, %v6911
        %v6971 = vmul.f32 %v6767, %v6767
        %v6972 = vmul.f32 %v6816, %v6816
        %v6973 = vmul.f32 %v6865, %v6865
        %v6974 = vmul.f32 %v6914, %v6914
        %v6975 = vmul.f32 %v6769, %v6769
        %v6976 = vmul.f32 %v6818, %v6818
        %v6977 = vmul.f32 %v6867, %v6867
        %v6978 = vmul.f32 %v6916, %v6916
        %v6979 = vmul.f32 %v6772, %v6772
        %v6980 = vmul.f32 %v6821, %v6821
        %v6981 = vmul.f32 %v6870, %v6870
        %v6982 = vmul.f32 %v6919, %v6919
        %v6983 = vmul.f32 %v6774, %v6774
        %v6984 = vmul.f32 %v6823, %v6823
        %v6985 = vmul.f32 %v6872, %v6872
        %v6986 = vmul.f32 %v6921, %v6921
        %v6987 = vmul.f32 %v6737, %v6923
        %v6988 = vmul.f32 %v6786, %v6924
        %v6989 = vmul.f32 %v6835, %v6925
        %v6990 = vmul.f32 %v6884, %v6926
        %v6991 = vmul.f32 %v6739, %v6927
        %v6992 = vmul.f32 %v6788, %v6928
        %v6993 = vmul.f32 %v6837, %v6929
        %v6994 = vmul.f32 %v6886, %v6930
        %v6995 = vmul.f32 %v6742, %v6931
        %v6996 = vmul.f32 %v6791, %v6932
        %v6997 = vmul.f32 %v6840, %v6933
        %v6998 = vmul.f32 %v6889, %v6934
        %v6999 = vmul.f32 %v6744, %v6935
        %v7000 = vmul.f32 %v6793, %v6936
        %v7001 = vmul.f32 %v6842, %v6937
        %v7002 = vmul.f32 %v6891, %v6938
        %v7003 = vmul.f32 %v6747, %v6939
        %v7004 = vmul.f32 %v6796, %v6940
        %v7005 = vmul.f32 %v6845, %v6941
        %v7006 = vmul.f32 %v6894, %v6942
        %v7007 = vmul.f32 %v6749, %v6943
        %v7008 = vmul.f32 %v6798, %v6944
        %v7009 = vmul.f32 %v6847, %v6945
        %v7010 = vmul.f32 %v6896, %v6946
        %v7011 = vmul.f32 %v6752, %v6947
        %v7012 = vmul.f32 %v6801, %v6948
        %v7013 = vmul.f32 %v6850, %v6949
        %v7014 = vmul.f32 %v6899, %v6950
        %v7015 = vmul.f32 %v6754, %v6951
        %v7016 = vmul.f32 %v6803, %v6952
        %v7017 = vmul.f32 %v6852, %v6953
        %v7018 = vmul.f32 %v6901, %v6954
        %v7019 = vmul.f32 %v6757, %v6955
        %v7020 = vmul.f32 %v6806, %v6956
        %v7021 = vmul.f32 %v6855, %v6957
        %v7022 = vmul.f32 %v6904, %v6958
        %v7023 = vmul.f32 %v6759, %v6959
        %v7024 = vmul.f32 %v6808, %v6960
        %v7025 = vmul.f32 %v6857, %v6961
        %v7026 = vmul.f32 %v6906, %v6962
        %v7027 = vmul.f32 %v6762, %v6963
        %v7028 = vmul.f32 %v6811, %v6964
        %v7029 = vmul.f32 %v6860, %v6965
        %v7030 = vmul.f32 %v6909, %v6966
        %v7031 = vmul.f32 %v6764, %v6967
        %v7032 = vmul.f32 %v6813, %v6968
        %v7033 = vmul.f32 %v6862, %v6969
        %v7034 = vmul.f32 %v6911, %v6970
        %v7035 = vmul.f32 %v6767, %v6971
        %v7036 = vmul.f32 %v6816, %v6972
        %v7037 = vmul.f32 %v6865, %v6973
        %v7038 = vmul.f32 %v6914, %v6974
        %v7039 = vmul.f32 %v6769, %v6975
        %v7040 = vmul.f32 %v6818, %v6976
        %v7041 = vmul.f32 %v6867, %v6977
        %v7042 = vmul.f32 %v6916, %v6978
        %v7043 = vmul.f32 %v6772, %v6979
        %v7044 = vmul.f32 %v6821, %v6980
        %v7045 = vmul.f32 %v6870, %v6981
        %v7046 = vmul.f32 %v6919, %v6982
        %v7047 = vmul.f32 %v6774, %v6983
        %v7048 = vmul.f32 %v6823, %v6984
        %v7049 = vmul.f32 %v6872, %v6985
        %v7050 = vmul.f32 %v6921, %v6986
        %v7051 = vmul.f32 %v6987, 0.044715
        %v7052 = vmul.f32 %v6988, 0.044715
        %v7053 = vmul.f32 %v6989, 0.044715
        %v7054 = vmul.f32 %v6990, 0.044715
        %v7055 = vmul.f32 %v6991, 0.044715
        %v7056 = vmul.f32 %v6992, 0.044715
        %v7057 = vmul.f32 %v6993, 0.044715
        %v7058 = vmul.f32 %v6994, 0.044715
        %v7059 = vmul.f32 %v6995, 0.044715
        %v7060 = vmul.f32 %v6996, 0.044715
        %v7061 = vmul.f32 %v6997, 0.044715
        %v7062 = vmul.f32 %v6998, 0.044715
        %v7063 = vmul.f32 %v6999, 0.044715
        %v7064 = vmul.f32 %v7000, 0.044715
        %v7065 = vmul.f32 %v7001, 0.044715
        %v7066 = vmul.f32 %v7002, 0.044715
        %v7067 = vmul.f32 %v7003, 0.044715
        %v7068 = vmul.f32 %v7004, 0.044715
        %v7069 = vmul.f32 %v7005, 0.044715
        %v7070 = vmul.f32 %v7006, 0.044715
        %v7071 = vmul.f32 %v7007, 0.044715
        %v7072 = vmul.f32 %v7008, 0.044715
        %v7073 = vmul.f32 %v7009, 0.044715
        %v7074 = vmul.f32 %v7010, 0.044715
        %v7075 = vmul.f32 %v7011, 0.044715
        %v7076 = vmul.f32 %v7012, 0.044715
        %v7077 = vmul.f32 %v7013, 0.044715
        %v7078 = vmul.f32 %v7014, 0.044715
        %v7079 = vmul.f32 %v7015, 0.044715
        %v7080 = vmul.f32 %v7016, 0.044715
        %v7081 = vmul.f32 %v7017, 0.044715
        %v7082 = vmul.f32 %v7018, 0.044715
        %v7083 = vmul.f32 %v7019, 0.044715
        %v7084 = vmul.f32 %v7020, 0.044715
        %v7085 = vmul.f32 %v7021, 0.044715
        %v7086 = vmul.f32 %v7022, 0.044715
        %v7087 = vmul.f32 %v7023, 0.044715
        %v7088 = vmul.f32 %v7024, 0.044715
        %v7089 = vmul.f32 %v7025, 0.044715
        %v7090 = vmul.f32 %v7026, 0.044715
        %v7091 = vmul.f32 %v7027, 0.044715
        %v7092 = vmul.f32 %v7028, 0.044715
        %v7093 = vmul.f32 %v7029, 0.044715
        %v7094 = vmul.f32 %v7030, 0.044715
        %v7095 = vmul.f32 %v7031, 0.044715
        %v7096 = vmul.f32 %v7032, 0.044715
        %v7097 = vmul.f32 %v7033, 0.044715
        %v7098 = vmul.f32 %v7034, 0.044715
        %v7099 = vmul.f32 %v7035, 0.044715
        %v7100 = vmul.f32 %v7036, 0.044715
        %v7101 = vmul.f32 %v7037, 0.044715
        %v7102 = vmul.f32 %v7038, 0.044715
        %v7103 = vmul.f32 %v7039, 0.044715
        %v7104 = vmul.f32 %v7040, 0.044715
        %v7105 = vmul.f32 %v7041, 0.044715
        %v7106 = vmul.f32 %v7042, 0.044715
        %v7107 = vmul.f32 %v7043, 0.044715
        %v7108 = vmul.f32 %v7044, 0.044715
        %v7109 = vmul.f32 %v7045, 0.044715
        %v7110 = vmul.f32 %v7046, 0.044715
        %v7111 = vmul.f32 %v7047, 0.044715
        %v7112 = vmul.f32 %v7048, 0.044715
        %v7113 = vmul.f32 %v7049, 0.044715
        %v7114 = vmul.f32 %v7050, 0.044715
        %v7115 = vadd.f32 %v6737, %v7051
        %v7116 = vadd.f32 %v6786, %v7052
        %v7117 = vadd.f32 %v6835, %v7053
        %v7118 = vadd.f32 %v6884, %v7054
        %v7119 = vadd.f32 %v6739, %v7055
        %v7120 = vadd.f32 %v6788, %v7056
        %v7121 = vadd.f32 %v6837, %v7057
        %v7122 = vadd.f32 %v6886, %v7058
        %v7123 = vadd.f32 %v6742, %v7059
        %v7124 = vadd.f32 %v6791, %v7060
        %v7125 = vadd.f32 %v6840, %v7061
        %v7126 = vadd.f32 %v6889, %v7062
        %v7127 = vadd.f32 %v6744, %v7063
        %v7128 = vadd.f32 %v6793, %v7064
        %v7129 = vadd.f32 %v6842, %v7065
        %v7130 = vadd.f32 %v6891, %v7066
        %v7131 = vadd.f32 %v6747, %v7067
        %v7132 = vadd.f32 %v6796, %v7068
        %v7133 = vadd.f32 %v6845, %v7069
        %v7134 = vadd.f32 %v6894, %v7070
        %v7135 = vadd.f32 %v6749, %v7071
        %v7136 = vadd.f32 %v6798, %v7072
        %v7137 = vadd.f32 %v6847, %v7073
        %v7138 = vadd.f32 %v6896, %v7074
        %v7139 = vadd.f32 %v6752, %v7075
        %v7140 = vadd.f32 %v6801, %v7076
        %v7141 = vadd.f32 %v6850, %v7077
        %v7142 = vadd.f32 %v6899, %v7078
        %v7143 = vadd.f32 %v6754, %v7079
        %v7144 = vadd.f32 %v6803, %v7080
        %v7145 = vadd.f32 %v6852, %v7081
        %v7146 = vadd.f32 %v6901, %v7082
        %v7147 = vadd.f32 %v6757, %v7083
        %v7148 = vadd.f32 %v6806, %v7084
        %v7149 = vadd.f32 %v6855, %v7085
        %v7150 = vadd.f32 %v6904, %v7086
        %v7151 = vadd.f32 %v6759, %v7087
        %v7152 = vadd.f32 %v6808, %v7088
        %v7153 = vadd.f32 %v6857, %v7089
        %v7154 = vadd.f32 %v6906, %v7090
        %v7155 = vadd.f32 %v6762, %v7091
        %v7156 = vadd.f32 %v6811, %v7092
        %v7157 = vadd.f32 %v6860, %v7093
        %v7158 = vadd.f32 %v6909, %v7094
        %v7159 = vadd.f32 %v6764, %v7095
        %v7160 = vadd.f32 %v6813, %v7096
        %v7161 = vadd.f32 %v6862, %v7097
        %v7162 = vadd.f32 %v6911, %v7098
        %v7163 = vadd.f32 %v6767, %v7099
        %v7164 = vadd.f32 %v6816, %v7100
        %v7165 = vadd.f32 %v6865, %v7101
        %v7166 = vadd.f32 %v6914, %v7102
        %v7167 = vadd.f32 %v6769, %v7103
        %v7168 = vadd.f32 %v6818, %v7104
        %v7169 = vadd.f32 %v6867, %v7105
        %v7170 = vadd.f32 %v6916, %v7106
        %v7171 = vadd.f32 %v6772, %v7107
        %v7172 = vadd.f32 %v6821, %v7108
        %v7173 = vadd.f32 %v6870, %v7109
        %v7174 = vadd.f32 %v6919, %v7110
        %v7175 = vadd.f32 %v6774, %v7111
        %v7176 = vadd.f32 %v6823, %v7112
        %v7177 = vadd.f32 %v6872, %v7113
        %v7178 = vadd.f32 %v6921, %v7114
        %v7179 = vmul.f32 %v7115, 0.7978846
        %v7180 = vmul.f32 %v7116, 0.7978846
        %v7181 = vmul.f32 %v7117, 0.7978846
        %v7182 = vmul.f32 %v7118, 0.7978846
        %v7183 = vmul.f32 %v7119, 0.7978846
        %v7184 = vmul.f32 %v7120, 0.7978846
        %v7185 = vmul.f32 %v7121, 0.7978846
        %v7186 = vmul.f32 %v7122, 0.7978846
        %v7187 = vmul.f32 %v7123, 0.7978846
        %v7188 = vmul.f32 %v7124, 0.7978846
        %v7189 = vmul.f32 %v7125, 0.7978846
        %v7190 = vmul.f32 %v7126, 0.7978846
        %v7191 = vmul.f32 %v7127, 0.7978846
        %v7192 = vmul.f32 %v7128, 0.7978846
        %v7193 = vmul.f32 %v7129, 0.7978846
        %v7194 = vmul.f32 %v7130, 0.7978846
        %v7195 = vmul.f32 %v7131, 0.7978846
        %v7196 = vmul.f32 %v7132, 0.7978846
        %v7197 = vmul.f32 %v7133, 0.7978846
        %v7198 = vmul.f32 %v7134, 0.7978846
        %v7199 = vmul.f32 %v7135, 0.7978846
        %v7200 = vmul.f32 %v7136, 0.7978846
        %v7201 = vmul.f32 %v7137, 0.7978846
        %v7202 = vmul.f32 %v7138, 0.7978846
        %v7203 = vmul.f32 %v7139, 0.7978846
        %v7204 = vmul.f32 %v7140, 0.7978846
        %v7205 = vmul.f32 %v7141, 0.7978846
        %v7206 = vmul.f32 %v7142, 0.7978846
        %v7207 = vmul.f32 %v7143, 0.7978846
        %v7208 = vmul.f32 %v7144, 0.7978846
        %v7209 = vmul.f32 %v7145, 0.7978846
        %v7210 = vmul.f32 %v7146, 0.7978846
        %v7211 = vmul.f32 %v7147, 0.7978846
        %v7212 = vmul.f32 %v7148, 0.7978846
        %v7213 = vmul.f32 %v7149, 0.7978846
        %v7214 = vmul.f32 %v7150, 0.7978846
        %v7215 = vmul.f32 %v7151, 0.7978846
        %v7216 = vmul.f32 %v7152, 0.7978846
        %v7217 = vmul.f32 %v7153, 0.7978846
        %v7218 = vmul.f32 %v7154, 0.7978846
        %v7219 = vmul.f32 %v7155, 0.7978846
        %v7220 = vmul.f32 %v7156, 0.7978846
        %v7221 = vmul.f32 %v7157, 0.7978846
        %v7222 = vmul.f32 %v7158, 0.7978846
        %v7223 = vmul.f32 %v7159, 0.7978846
        %v7224 = vmul.f32 %v7160, 0.7978846
        %v7225 = vmul.f32 %v7161, 0.7978846
        %v7226 = vmul.f32 %v7162, 0.7978846
        %v7227 = vmul.f32 %v7163, 0.7978846
        %v7228 = vmul.f32 %v7164, 0.7978846
        %v7229 = vmul.f32 %v7165, 0.7978846
        %v7230 = vmul.f32 %v7166, 0.7978846
        %v7231 = vmul.f32 %v7167, 0.7978846
        %v7232 = vmul.f32 %v7168, 0.7978846
        %v7233 = vmul.f32 %v7169, 0.7978846
        %v7234 = vmul.f32 %v7170, 0.7978846
        %v7235 = vmul.f32 %v7171, 0.7978846
        %v7236 = vmul.f32 %v7172, 0.7978846
        %v7237 = vmul.f32 %v7173, 0.7978846
        %v7238 = vmul.f32 %v7174, 0.7978846
        %v7239 = vmul.f32 %v7175, 0.7978846
        %v7240 = vmul.f32 %v7176, 0.7978846
        %v7241 = vmul.f32 %v7177, 0.7978846
        %v7242 = vmul.f32 %v7178, 0.7978846
        %v7243 = vtanh.pop %v7179
        %v7244 = vtanh.pop %v7180
        %v7245 = vtanh.pop %v7181
        %v7246 = vtanh.pop %v7182
        %v7247 = vtanh.pop %v7183
        %v7248 = vtanh.pop %v7184
        %v7249 = vtanh.pop %v7185
        %v7250 = vtanh.pop %v7186
        %v7251 = vtanh.pop %v7187
        %v7252 = vtanh.pop %v7188
        %v7253 = vtanh.pop %v7189
        %v7254 = vtanh.pop %v7190
        %v7255 = vtanh.pop %v7191
        %v7256 = vtanh.pop %v7192
        %v7257 = vtanh.pop %v7193
        %v7258 = vtanh.pop %v7194
        %v7259 = vtanh.pop %v7195
        %v7260 = vtanh.pop %v7196
        %v7261 = vtanh.pop %v7197
        %v7262 = vtanh.pop %v7198
        %v7263 = vtanh.pop %v7199
        %v7264 = vtanh.pop %v7200
        %v7265 = vtanh.pop %v7201
        %v7266 = vtanh.pop %v7202
        %v7267 = vtanh.pop %v7203
        %v7268 = vtanh.pop %v7204
        %v7269 = vtanh.pop %v7205
        %v7270 = vtanh.pop %v7206
        %v7271 = vtanh.pop %v7207
        %v7272 = vtanh.pop %v7208
        %v7273 = vtanh.pop %v7209
        %v7274 = vtanh.pop %v7210
        %v7275 = vtanh.pop %v7211
        %v7276 = vtanh.pop %v7212
        %v7277 = vtanh.pop %v7213
        %v7278 = vtanh.pop %v7214
        %v7279 = vtanh.pop %v7215
        %v7280 = vtanh.pop %v7216
        %v7281 = vtanh.pop %v7217
        %v7282 = vtanh.pop %v7218
        %v7283 = vtanh.pop %v7219
        %v7284 = vtanh.pop %v7220
        %v7285 = vtanh.pop %v7221
        %v7286 = vtanh.pop %v7222
        %v7287 = vtanh.pop %v7223
        %v7288 = vtanh.pop %v7224
        %v7289 = vtanh.pop %v7225
        %v7290 = vtanh.pop %v7226
        %v7291 = vtanh.pop %v7227
        %v7292 = vtanh.pop %v7228
        %v7293 = vtanh.pop %v7229
        %v7294 = vtanh.pop %v7230
        %v7295 = vtanh.pop %v7231
        %v7296 = vtanh.pop %v7232
        %v7297 = vtanh.pop %v7233
        %v7298 = vtanh.pop %v7234
        %v7299 = vtanh.pop %v7235
        %v7300 = vtanh.pop %v7236
        %v7301 = vtanh.pop %v7237
        %v7302 = vtanh.pop %v7238
        %v7303 = vtanh.pop %v7239
        %v7304 = vtanh.pop %v7240
        %v7305 = vtanh.pop %v7241
        %v7306 = vtanh.pop %v7242
        %v7307 = vadd.f32 %v7243, 1.0
        %v7308 = vadd.f32 %v7244, 1.0
        %v7309 = vadd.f32 %v7245, 1.0
        %v7310 = vadd.f32 %v7246, 1.0
        %v7311 = vadd.f32 %v7247, 1.0
        %v7312 = vadd.f32 %v7248, 1.0
        %v7313 = vadd.f32 %v7249, 1.0
        %v7314 = vadd.f32 %v7250, 1.0
        %v7315 = vadd.f32 %v7251, 1.0
        %v7316 = vadd.f32 %v7252, 1.0
        %v7317 = vadd.f32 %v7253, 1.0
        %v7318 = vadd.f32 %v7254, 1.0
        %v7319 = vadd.f32 %v7255, 1.0
        %v7320 = vadd.f32 %v7256, 1.0
        %v7321 = vadd.f32 %v7257, 1.0
        %v7322 = vadd.f32 %v7258, 1.0
        %v7323 = vadd.f32 %v7259, 1.0
        %v7324 = vadd.f32 %v7260, 1.0
        %v7325 = vadd.f32 %v7261, 1.0
        %v7326 = vadd.f32 %v7262, 1.0
        %v7327 = vadd.f32 %v7263, 1.0
        %v7328 = vadd.f32 %v7264, 1.0
        %v7329 = vadd.f32 %v7265, 1.0
        %v7330 = vadd.f32 %v7266, 1.0
        %v7331 = vadd.f32 %v7267, 1.0
        %v7332 = vadd.f32 %v7268, 1.0
        %v7333 = vadd.f32 %v7269, 1.0
        %v7334 = vadd.f32 %v7270, 1.0
        %v7335 = vadd.f32 %v7271, 1.0
        %v7336 = vadd.f32 %v7272, 1.0
        %v7337 = vadd.f32 %v7273, 1.0
        %v7338 = vadd.f32 %v7274, 1.0
        %v7339 = vadd.f32 %v7275, 1.0
        %v7340 = vadd.f32 %v7276, 1.0
        %v7341 = vadd.f32 %v7277, 1.0
        %v7342 = vadd.f32 %v7278, 1.0
        %v7343 = vadd.f32 %v7279, 1.0
        %v7344 = vadd.f32 %v7280, 1.0
        %v7345 = vadd.f32 %v7281, 1.0
        %v7346 = vadd.f32 %v7282, 1.0
        %v7347 = vadd.f32 %v7283, 1.0
        %v7348 = vadd.f32 %v7284, 1.0
        %v7349 = vadd.f32 %v7285, 1.0
        %v7350 = vadd.f32 %v7286, 1.0
        %v7351 = vadd.f32 %v7287, 1.0
        %v7352 = vadd.f32 %v7288, 1.0
        %v7353 = vadd.f32 %v7289, 1.0
        %v7354 = vadd.f32 %v7290, 1.0
        %v7355 = vadd.f32 %v7291, 1.0
        %v7356 = vadd.f32 %v7292, 1.0
        %v7357 = vadd.f32 %v7293, 1.0
        %v7358 = vadd.f32 %v7294, 1.0
        %v7359 = vadd.f32 %v7295, 1.0
        %v7360 = vadd.f32 %v7296, 1.0
        %v7361 = vadd.f32 %v7297, 1.0
        %v7362 = vadd.f32 %v7298, 1.0
        %v7363 = vadd.f32 %v7299, 1.0
        %v7364 = vadd.f32 %v7300, 1.0
        %v7365 = vadd.f32 %v7301, 1.0
        %v7366 = vadd.f32 %v7302, 1.0
        %v7367 = vadd.f32 %v7303, 1.0
        %v7368 = vadd.f32 %v7304, 1.0
        %v7369 = vadd.f32 %v7305, 1.0
        %v7370 = vadd.f32 %v7306, 1.0
        %v7371 = vmul.f32 %v7307, 0.5
        %v7372 = vmul.f32 %v7308, 0.5
        %v7373 = vmul.f32 %v7309, 0.5
        %v7374 = vmul.f32 %v7310, 0.5
        %v7375 = vmul.f32 %v7311, 0.5
        %v7376 = vmul.f32 %v7312, 0.5
        %v7377 = vmul.f32 %v7313, 0.5
        %v7378 = vmul.f32 %v7314, 0.5
        %v7379 = vmul.f32 %v7315, 0.5
        %v7380 = vmul.f32 %v7316, 0.5
        %v7381 = vmul.f32 %v7317, 0.5
        %v7382 = vmul.f32 %v7318, 0.5
        %v7383 = vmul.f32 %v7319, 0.5
        %v7384 = vmul.f32 %v7320, 0.5
        %v7385 = vmul.f32 %v7321, 0.5
        %v7386 = vmul.f32 %v7322, 0.5
        %v7387 = vmul.f32 %v7323, 0.5
        %v7388 = vmul.f32 %v7324, 0.5
        %v7389 = vmul.f32 %v7325, 0.5
        %v7390 = vmul.f32 %v7326, 0.5
        %v7391 = vmul.f32 %v7327, 0.5
        %v7392 = vmul.f32 %v7328, 0.5
        %v7393 = vmul.f32 %v7329, 0.5
        %v7394 = vmul.f32 %v7330, 0.5
        %v7395 = vmul.f32 %v7331, 0.5
        %v7396 = vmul.f32 %v7332, 0.5
        %v7397 = vmul.f32 %v7333, 0.5
        %v7398 = vmul.f32 %v7334, 0.5
        %v7399 = vmul.f32 %v7335, 0.5
        %v7400 = vmul.f32 %v7336, 0.5
        %v7401 = vmul.f32 %v7337, 0.5
        %v7402 = vmul.f32 %v7338, 0.5
        %v7403 = vmul.f32 %v7339, 0.5
        %v7404 = vmul.f32 %v7340, 0.5
        %v7405 = vmul.f32 %v7341, 0.5
        %v7406 = vmul.f32 %v7342, 0.5
        %v7407 = vmul.f32 %v7343, 0.5
        %v7408 = vmul.f32 %v7344, 0.5
        %v7409 = vmul.f32 %v7345, 0.5
        %v7410 = vmul.f32 %v7346, 0.5
        %v7411 = vmul.f32 %v7347, 0.5
        %v7412 = vmul.f32 %v7348, 0.5
        %v7413 = vmul.f32 %v7349, 0.5
        %v7414 = vmul.f32 %v7350, 0.5
        %v7415 = vmul.f32 %v7351, 0.5
        %v7416 = vmul.f32 %v7352, 0.5
        %v7417 = vmul.f32 %v7353, 0.5
        %v7418 = vmul.f32 %v7354, 0.5
        %v7419 = vmul.f32 %v7355, 0.5
        %v7420 = vmul.f32 %v7356, 0.5
        %v7421 = vmul.f32 %v7357, 0.5
        %v7422 = vmul.f32 %v7358, 0.5
        %v7423 = vmul.f32 %v7359, 0.5
        %v7424 = vmul.f32 %v7360, 0.5
        %v7425 = vmul.f32 %v7361, 0.5
        %v7426 = vmul.f32 %v7362, 0.5
        %v7427 = vmul.f32 %v7363, 0.5
        %v7428 = vmul.f32 %v7364, 0.5
        %v7429 = vmul.f32 %v7365, 0.5
        %v7430 = vmul.f32 %v7366, 0.5
        %v7431 = vmul.f32 %v7367, 0.5
        %v7432 = vmul.f32 %v7368, 0.5
        %v7433 = vmul.f32 %v7369, 0.5
        %v7434 = vmul.f32 %v7370, 0.5
        %v7435 = vmul.f32 %v6737, %v7371
        %v7436 = vmul.f32 %v6786, %v7372
        %v7437 = vmul.f32 %v6835, %v7373
        %v7438 = vmul.f32 %v6884, %v7374
        %v7439 = vmul.f32 %v6739, %v7375
        %v7440 = vmul.f32 %v6788, %v7376
        %v7441 = vmul.f32 %v6837, %v7377
        %v7442 = vmul.f32 %v6886, %v7378
        %v7443 = vmul.f32 %v6742, %v7379
        %v7444 = vmul.f32 %v6791, %v7380
        %v7445 = vmul.f32 %v6840, %v7381
        %v7446 = vmul.f32 %v6889, %v7382
        %v7447 = vmul.f32 %v6744, %v7383
        %v7448 = vmul.f32 %v6793, %v7384
        %v7449 = vmul.f32 %v6842, %v7385
        %v7450 = vmul.f32 %v6891, %v7386
        %v7451 = vmul.f32 %v6747, %v7387
        %v7452 = vmul.f32 %v6796, %v7388
        %v7453 = vmul.f32 %v6845, %v7389
        %v7454 = vmul.f32 %v6894, %v7390
        %v7455 = vmul.f32 %v6749, %v7391
        %v7456 = vmul.f32 %v6798, %v7392
        %v7457 = vmul.f32 %v6847, %v7393
        %v7458 = vmul.f32 %v6896, %v7394
        %v7459 = vmul.f32 %v6752, %v7395
        %v7460 = vmul.f32 %v6801, %v7396
        %v7461 = vmul.f32 %v6850, %v7397
        %v7462 = vmul.f32 %v6899, %v7398
        %v7463 = vmul.f32 %v6754, %v7399
        %v7464 = vmul.f32 %v6803, %v7400
        %v7465 = vmul.f32 %v6852, %v7401
        %v7466 = vmul.f32 %v6901, %v7402
        %v7467 = vmul.f32 %v6757, %v7403
        %v7468 = vmul.f32 %v6806, %v7404
        %v7469 = vmul.f32 %v6855, %v7405
        %v7470 = vmul.f32 %v6904, %v7406
        %v7471 = vmul.f32 %v6759, %v7407
        %v7472 = vmul.f32 %v6808, %v7408
        %v7473 = vmul.f32 %v6857, %v7409
        %v7474 = vmul.f32 %v6906, %v7410
        %v7475 = vmul.f32 %v6762, %v7411
        %v7476 = vmul.f32 %v6811, %v7412
        %v7477 = vmul.f32 %v6860, %v7413
        %v7478 = vmul.f32 %v6909, %v7414
        %v7479 = vmul.f32 %v6764, %v7415
        %v7480 = vmul.f32 %v6813, %v7416
        %v7481 = vmul.f32 %v6862, %v7417
        %v7482 = vmul.f32 %v6911, %v7418
        %v7483 = vmul.f32 %v6767, %v7419
        %v7484 = vmul.f32 %v6816, %v7420
        %v7485 = vmul.f32 %v6865, %v7421
        %v7486 = vmul.f32 %v6914, %v7422
        %v7487 = vmul.f32 %v6769, %v7423
        %v7488 = vmul.f32 %v6818, %v7424
        %v7489 = vmul.f32 %v6867, %v7425
        %v7490 = vmul.f32 %v6916, %v7426
        %v7491 = vmul.f32 %v6772, %v7427
        %v7492 = vmul.f32 %v6821, %v7428
        %v7493 = vmul.f32 %v6870, %v7429
        %v7494 = vmul.f32 %v6919, %v7430
        %v7495 = vmul.f32 %v6774, %v7431
        %v7496 = vmul.f32 %v6823, %v7432
        %v7497 = vmul.f32 %v6872, %v7433
        %v7498 = vmul.f32 %v6921, %v7434
        %v7499 = vpack.c.bf16 %v7439, %v7435
        %v7500 = vpack.c.bf16 %v7440, %v7436
        %v7501 = vpack.c.bf16 %v7441, %v7437
        %v7502 = vpack.c.bf16 %v7442, %v7438
        %v7503 = vpack.c.bf16 %v7447, %v7443
        %v7504 = vpack.c.bf16 %v7448, %v7444
        %v7505 = vpack.c.bf16 %v7449, %v7445
        %v7506 = vpack.c.bf16 %v7450, %v7446
        %v7507 = vpack.c.bf16 %v7455, %v7451
        %v7508 = vpack.c.bf16 %v7456, %v7452
        %v7509 = vpack.c.bf16 %v7457, %v7453
        %v7510 = vpack.c.bf16 %v7458, %v7454
        %v7511 = vpack.c.bf16 %v7463, %v7459
        %v7512 = vpack.c.bf16 %v7464, %v7460
        %v7513 = vpack.c.bf16 %v7465, %v7461
        %v7514 = vpack.c.bf16 %v7466, %v7462
        %v7515 = vpack.c.bf16 %v7471, %v7467
        %v7516 = vpack.c.bf16 %v7472, %v7468
        %v7517 = vpack.c.bf16 %v7473, %v7469
        %v7518 = vpack.c.bf16 %v7474, %v7470
        %v7519 = vpack.c.bf16 %v7479, %v7475
        %v7520 = vpack.c.bf16 %v7480, %v7476
        %v7521 = vpack.c.bf16 %v7481, %v7477
        %v7522 = vpack.c.bf16 %v7482, %v7478
        %v7523 = vpack.c.bf16 %v7487, %v7483
        %v7524 = vpack.c.bf16 %v7488, %v7484
        %v7525 = vpack.c.bf16 %v7489, %v7485
        %v7526 = vpack.c.bf16 %v7490, %v7486
        %v7527 = vpack.c.bf16 %v7495, %v7491
        %v7528 = vpack.c.bf16 %v7496, %v7492
        %v7529 = vpack.c.bf16 %v7497, %v7493
        %v7530 = vpack.c.bf16 %v7498, %v7494
        %s7531 = scalar_lea.vmem [#allocation19], 256
        %v7532 = vld [vmem:[%s7531] sm:$0xf]
        %v7533 = vld [vmem:[%s7531 + $0x4] sm:$0xf]
        %v7534 = vld [vmem:[%s7531 + $0x8] sm:$0xf]
        %v7535 = vld [vmem:[%s7531 + $0xc] sm:$0xf]
        %v7536 = vld [vmem:[%s7531 + $0x10] sm:$0xf]
        %v7537 = vld [vmem:[%s7531 + $0x14] sm:$0xf]
        %v7538 = vld [vmem:[%s7531 + $0x18] sm:$0xf]
        %v7539 = vld [vmem:[%s7531 + $0x1c] sm:$0xf]
        %v7540 = vld [vmem:[%s7531 + $0x20] sm:$0xf]
        %v7541 = vld [vmem:[%s7531 + $0x24] sm:$0xf]
        %v7542 = vld [vmem:[%s7531 + $0x28] sm:$0xf]
        %v7543 = vld [vmem:[%s7531 + $0x2c] sm:$0xf]
        %v7544 = vld [vmem:[%s7531 + $0x30] sm:$0xf]
        %v7545 = vld [vmem:[%s7531 + $0x34] sm:$0xf]
        %v7546 = vld [vmem:[%s7531 + $0x38] sm:$0xf]
        %v7547 = vld [vmem:[%s7531 + $0x3c] sm:$0xf]
        %v7548 = vld [vmem:[%s7531 + $0x40] sm:$0xf]
        %v7549 = vld [vmem:[%s7531 + $0x44] sm:$0xf]
        %v7550 = vld [vmem:[%s7531 + $0x48] sm:$0xf]
        %v7551 = vld [vmem:[%s7531 + $0x4c] sm:$0xf]
        %v7552 = vld [vmem:[%s7531 + $0x50] sm:$0xf]
        %v7553 = vld [vmem:[%s7531 + $0x54] sm:$0xf]
        %v7554 = vld [vmem:[%s7531 + $0x58] sm:$0xf]
        %v7555 = vld [vmem:[%s7531 + $0x5c] sm:$0xf]
        %v7556 = vld [vmem:[%s7531 + $0x60] sm:$0xf]
        %v7557 = vld [vmem:[%s7531 + $0x64] sm:$0xf]
        %v7558 = vld [vmem:[%s7531 + $0x68] sm:$0xf]
        %v7559 = vld [vmem:[%s7531 + $0x6c] sm:$0xf]
        %v7560 = vld [vmem:[%s7531 + $0x70] sm:$0xf]
        %v7561 = vld [vmem:[%s7531 + $0x74] sm:$0xf]
        %v7562 = vld [vmem:[%s7531 + $0x78] sm:$0xf]
        %v7563 = vld [vmem:[%s7531 + $0x7c] sm:$0xf]
        %v7564 = vld [vmem:[%s7531 + $0x80] sm:$0xf]
        %v7565 = vld [vmem:[%s7531 + $0x84] sm:$0xf]
        %v7566 = vld [vmem:[%s7531 + $0x88] sm:$0xf]
        %v7567 = vld [vmem:[%s7531 + $0x8c] sm:$0xf]
        %v7568 = vld [vmem:[%s7531 + $0x90] sm:$0xf]
        %v7569 = vld [vmem:[%s7531 + $0x94] sm:$0xf]
        %v7570 = vld [vmem:[%s7531 + $0x98] sm:$0xf]
        %v7571 = vld [vmem:[%s7531 + $0x9c] sm:$0xf]
        %v7572 = vld [vmem:[%s7531 + $0xa0] sm:$0xf]
        %v7573 = vld [vmem:[%s7531 + $0xa4] sm:$0xf]
        %v7574 = vld [vmem:[%s7531 + $0xa8] sm:$0xf]
        %v7575 = vld [vmem:[%s7531 + $0xac] sm:$0xf]
        %v7576 = vld [vmem:[%s7531 + $0xb0] sm:$0xf]
        %v7577 = vld [vmem:[%s7531 + $0xb4] sm:$0xf]
        %v7578 = vld [vmem:[%s7531 + $0xb8] sm:$0xf]
        %v7579 = vld [vmem:[%s7531 + $0xbc] sm:$0xf]
        %v7580 = vld [vmem:[%s7531 + $0xc0] sm:$0xf]
        %v7581 = vld [vmem:[%s7531 + $0xc4] sm:$0xf]
        %v7582 = vld [vmem:[%s7531 + $0xc8] sm:$0xf]
        %v7583 = vld [vmem:[%s7531 + $0xcc] sm:$0xf]
        %v7584 = vld [vmem:[%s7531 + $0xd0] sm:$0xf]
        %v7585 = vld [vmem:[%s7531 + $0xd4] sm:$0xf]
        %v7586 = vld [vmem:[%s7531 + $0xd8] sm:$0xf]
        %v7587 = vld [vmem:[%s7531 + $0xdc] sm:$0xf]
        %v7588 = vld [vmem:[%s7531 + $0xe0] sm:$0xf]
        %v7589 = vld [vmem:[%s7531 + $0xe4] sm:$0xf]
        %v7590 = vld [vmem:[%s7531 + $0xe8] sm:$0xf]
        %v7591 = vld [vmem:[%s7531 + $0xec] sm:$0xf]
        %v7592 = vld [vmem:[%s7531 + $0xf0] sm:$0xf]
        %v7593 = vld [vmem:[%s7531 + $0xf4] sm:$0xf]
        %v7594 = vld [vmem:[%s7531 + $0xf8] sm:$0xf]
        %v7595 = vld [vmem:[%s7531 + $0xfc] sm:$0xf]
        %s7596 = scalar_lea.vmem %s20, 1
        %v7597 = vld [vmem:[%s7596] sm:$0x1]
        %v7599 = vperm.slane %v7597, 0
        %v7665 = vunpack.c.l.b16 %v7532
        %v7666 = vunpack.c.l.b16 %v7533
        %v7667 = vunpack.c.l.b16 %v7534
        %v7668 = vunpack.c.l.b16 %v7535
        %v7669 = vunpack.c.l.b16 %v7536
        %v7670 = vunpack.c.l.b16 %v7537
        %v7671 = vunpack.c.l.b16 %v7538
        %v7672 = vunpack.c.l.b16 %v7539
        %v7673 = vunpack.c.l.b16 %v7540
        %v7674 = vunpack.c.l.b16 %v7541
        %v7675 = vunpack.c.l.b16 %v7542
        %v7676 = vunpack.c.l.b16 %v7543
        %v7677 = vunpack.c.l.b16 %v7544
        %v7678 = vunpack.c.l.b16 %v7545
        %v7679 = vunpack.c.l.b16 %v7546
        %v7680 = vunpack.c.l.b16 %v7547
        %v7681 = vunpack.c.l.b16 %v7548
        %v7682 = vunpack.c.l.b16 %v7549
        %v7683 = vunpack.c.l.b16 %v7550
        %v7684 = vunpack.c.l.b16 %v7551
        %v7685 = vunpack.c.l.b16 %v7552
        %v7686 = vunpack.c.l.b16 %v7553
        %v7687 = vunpack.c.l.b16 %v7554
        %v7688 = vunpack.c.l.b16 %v7555
        %v7689 = vunpack.c.l.b16 %v7556
        %v7690 = vunpack.c.l.b16 %v7557
        %v7691 = vunpack.c.l.b16 %v7558
        %v7692 = vunpack.c.l.b16 %v7559
        %v7693 = vunpack.c.l.b16 %v7560
        %v7694 = vunpack.c.l.b16 %v7561
        %v7695 = vunpack.c.l.b16 %v7562
        %v7696 = vunpack.c.l.b16 %v7563
        %v7697 = vunpack.c.l.b16 %v7564
        %v7698 = vunpack.c.l.b16 %v7565
        %v7699 = vunpack.c.l.b16 %v7566
        %v7700 = vunpack.c.l.b16 %v7567
        %v7701 = vunpack.c.l.b16 %v7568
        %v7702 = vunpack.c.l.b16 %v7569
        %v7703 = vunpack.c.l.b16 %v7570
        %v7704 = vunpack.c.l.b16 %v7571
        %v7705 = vunpack.c.l.b16 %v7572
        %v7706 = vunpack.c.l.b16 %v7573
        %v7707 = vunpack.c.l.b16 %v7574
        %v7708 = vunpack.c.l.b16 %v7575
        %v7709 = vunpack.c.l.b16 %v7576
        %v7710 = vunpack.c.l.b16 %v7577
        %v7711 = vunpack.c.l.b16 %v7578
        %v7712 = vunpack.c.l.b16 %v7579
        %v7713 = vunpack.c.l.b16 %v7580
        %v7714 = vunpack.c.l.b16 %v7581
        %v7715 = vunpack.c.l.b16 %v7582
        %v7716 = vunpack.c.l.b16 %v7583
        %v7717 = vunpack.c.l.b16 %v7584
        %v7718 = vunpack.c.l.b16 %v7585
        %v7719 = vunpack.c.l.b16 %v7586
        %v7720 = vunpack.c.l.b16 %v7587
        %v7721 = vunpack.c.l.b16 %v7588
        %v7722 = vunpack.c.l.b16 %v7589
        %v7723 = vunpack.c.l.b16 %v7590
        %v7724 = vunpack.c.l.b16 %v7591
        %v7725 = vunpack.c.l.b16 %v7592
        %v7726 = vunpack.c.l.b16 %v7593
        %v7727 = vunpack.c.l.b16 %v7594
        %v7728 = vunpack.c.l.b16 %v7595
        %v7729 = vpack.c.b16 %v7666, %v7665
        %v7730 = vpack.c.b16 %v7668, %v7667
        %v7731 = vpack.c.b16 %v7670, %v7669
        %v7732 = vpack.c.b16 %v7672, %v7671
        %v7733 = vpack.c.b16 %v7674, %v7673
        %v7734 = vpack.c.b16 %v7676, %v7675
        %v7735 = vpack.c.b16 %v7678, %v7677
        %v7736 = vpack.c.b16 %v7680, %v7679
        %v7737 = vpack.c.b16 %v7682, %v7681
        %v7738 = vpack.c.b16 %v7684, %v7683
        %v7739 = vpack.c.b16 %v7686, %v7685
        %v7740 = vpack.c.b16 %v7688, %v7687
        %v7741 = vpack.c.b16 %v7690, %v7689
        %v7742 = vpack.c.b16 %v7692, %v7691
        %v7743 = vpack.c.b16 %v7694, %v7693
        %v7744 = vpack.c.b16 %v7696, %v7695
        %v7745 = vpack.c.b16 %v7698, %v7697
        %v7746 = vpack.c.b16 %v7700, %v7699
        %v7747 = vpack.c.b16 %v7702, %v7701
        %v7748 = vpack.c.b16 %v7704, %v7703
        %v7749 = vpack.c.b16 %v7706, %v7705
        %v7750 = vpack.c.b16 %v7708, %v7707
        %v7751 = vpack.c.b16 %v7710, %v7709
        %v7752 = vpack.c.b16 %v7712, %v7711
        %v7753 = vpack.c.b16 %v7714, %v7713
        %v7754 = vpack.c.b16 %v7716, %v7715
        %v7755 = vpack.c.b16 %v7718, %v7717
        %v7756 = vpack.c.b16 %v7720, %v7719
        %v7757 = vpack.c.b16 %v7722, %v7721
        %v7758 = vpack.c.b16 %v7724, %v7723
        %v7759 = vpack.c.b16 %v7726, %v7725
        %v7760 = vpack.c.b16 %v7728, %v7727
        %7793 = vmatpush.bf16.msra.mxu0 %v7736
        %7794 = vmatpush.bf16.msra.mxu0 %v7735
        %7795 = vmatpush.bf16.msra.mxu0 %v7734
        %7796 = vmatpush.bf16.msra.mxu0 %v7733
        %7797 = vmatpush.bf16.msra.mxu0 %v7732
        %7798 = vmatpush.bf16.msra.mxu0 %v7731
        %7799 = vmatpush.bf16.msra.mxu0 %v7730
        %7800 = vmatpush.bf16.msra.mxu0 %v7729
        %7801 = vmatmul.bf16.gmra.mxu0 %v7499
        %v7802 = vpop.f32.mrf.mxu0
        %v7803 = vadd.f32 %v7599, %v7802
        %v7804 = vpop.f32.mrf.mxu0
        %v7805 = vadd.f32 %v7599, %v7804
        %7806 = vmatmul.bf16.gmra.mxu0 %v7503
        %v7807 = vpop.f32.mrf.mxu0
        %v7808 = vadd.f32 %v7599, %v7807
        %v7809 = vpop.f32.mrf.mxu0
        %v7810 = vadd.f32 %v7599, %v7809
        %7811 = vmatmul.bf16.gmra.mxu0 %v7507
        %v7812 = vpop.f32.mrf.mxu0
        %v7813 = vadd.f32 %v7599, %v7812
        %v7814 = vpop.f32.mrf.mxu0
        %v7815 = vadd.f32 %v7599, %v7814
        %7816 = vmatmul.bf16.gmra.mxu0 %v7511
        %v7817 = vpop.f32.mrf.mxu0
        %v7818 = vadd.f32 %v7599, %v7817
        %v7819 = vpop.f32.mrf.mxu0
        %v7820 = vadd.f32 %v7599, %v7819
        %7821 = vmatmul.bf16.gmra.mxu0 %v7515
        %v7822 = vpop.f32.mrf.mxu0
        %v7823 = vadd.f32 %v7599, %v7822
        %v7824 = vpop.f32.mrf.mxu0
        %v7825 = vadd.f32 %v7599, %v7824
        %7826 = vmatmul.bf16.gmra.mxu0 %v7519
        %v7827 = vpop.f32.mrf.mxu0
        %v7828 = vadd.f32 %v7599, %v7827
        %v7829 = vpop.f32.mrf.mxu0
        %v7830 = vadd.f32 %v7599, %v7829
        %7831 = vmatmul.bf16.gmra.mxu0 %v7523
        %v7832 = vpop.f32.mrf.mxu0
        %v7833 = vadd.f32 %v7599, %v7832
        %v7834 = vpop.f32.mrf.mxu0
        %v7835 = vadd.f32 %v7599, %v7834
        %7836 = vmatmul.bf16.gmra.mxu0 %v7527
        %v7837 = vpop.f32.mrf.mxu0
        %v7838 = vadd.f32 %v7599, %v7837
        %v7839 = vpop.f32.mrf.mxu0
        %v7840 = vadd.f32 %v7599, %v7839
        %7841 = vdwg.mxu0
        %7842 = vmatpush.bf16.msra.mxu0 %v7744
        %7843 = vmatpush.bf16.msra.mxu0 %v7743
        %7844 = vmatpush.bf16.msra.mxu0 %v7742
        %7845 = vmatpush.bf16.msra.mxu0 %v7741
        %7846 = vmatpush.bf16.msra.mxu0 %v7740
        %7847 = vmatpush.bf16.msra.mxu0 %v7739
        %7848 = vmatpush.bf16.msra.mxu0 %v7738
        %7849 = vmatpush.bf16.msra.mxu0 %v7737
        %7850 = vmatmul.bf16.gmra.mxu0 %v7500
        %v7851 = vpop.f32.mrf.mxu0
        %v7852 = vadd.f32 %v7803, %v7851
        %v7853 = vpop.f32.mrf.mxu0
        %v7854 = vadd.f32 %v7805, %v7853
        %7855 = vmatmul.bf16.gmra.mxu0 %v7504
        %v7856 = vpop.f32.mrf.mxu0
        %v7857 = vadd.f32 %v7808, %v7856
        %v7858 = vpop.f32.mrf.mxu0
        %v7859 = vadd.f32 %v7810, %v7858
        %7860 = vmatmul.bf16.gmra.mxu0 %v7508
        %v7861 = vpop.f32.mrf.mxu0
        %v7862 = vadd.f32 %v7813, %v7861
        %v7863 = vpop.f32.mrf.mxu0
        %v7864 = vadd.f32 %v7815, %v7863
        %7865 = vmatmul.bf16.gmra.mxu0 %v7512
        %v7866 = vpop.f32.mrf.mxu0
        %v7867 = vadd.f32 %v7818, %v7866
        %v7868 = vpop.f32.mrf.mxu0
        %v7869 = vadd.f32 %v7820, %v7868
        %7870 = vmatmul.bf16.gmra.mxu0 %v7516
        %v7871 = vpop.f32.mrf.mxu0
        %v7872 = vadd.f32 %v7823, %v7871
        %v7873 = vpop.f32.mrf.mxu0
        %v7874 = vadd.f32 %v7825, %v7873
        %7875 = vmatmul.bf16.gmra.mxu0 %v7520
        %v7876 = vpop.f32.mrf.mxu0
        %v7877 = vadd.f32 %v7828, %v7876
        %v7878 = vpop.f32.mrf.mxu0
        %v7879 = vadd.f32 %v7830, %v7878
        %7880 = vmatmul.bf16.gmra.mxu0 %v7524
        %v7881 = vpop.f32.mrf.mxu0
        %v7882 = vadd.f32 %v7833, %v7881
        %v7883 = vpop.f32.mrf.mxu0
        %v7884 = vadd.f32 %v7835, %v7883
        %7885 = vmatmul.bf16.gmra.mxu0 %v7528
        %v7886 = vpop.f32.mrf.mxu0
        %v7887 = vadd.f32 %v7838, %v7886
        %v7888 = vpop.f32.mrf.mxu0
        %v7889 = vadd.f32 %v7840, %v7888
        %7890 = vdwg.mxu0
        %7891 = vmatpush.bf16.msra.mxu0 %v7752
        %7892 = vmatpush.bf16.msra.mxu0 %v7751
        %7893 = vmatpush.bf16.msra.mxu0 %v7750
        %7894 = vmatpush.bf16.msra.mxu0 %v7749
        %7895 = vmatpush.bf16.msra.mxu0 %v7748
        %7896 = vmatpush.bf16.msra.mxu0 %v7747
        %7897 = vmatpush.bf16.msra.mxu0 %v7746
        %7898 = vmatpush.bf16.msra.mxu0 %v7745
        %7899 = vmatmul.bf16.gmra.mxu0 %v7501
        %v7900 = vpop.f32.mrf.mxu0
        %v7901 = vadd.f32 %v7852, %v7900
        %v7902 = vpop.f32.mrf.mxu0
        %v7903 = vadd.f32 %v7854, %v7902
        %7904 = vmatmul.bf16.gmra.mxu0 %v7505
        %v7905 = vpop.f32.mrf.mxu0
        %v7906 = vadd.f32 %v7857, %v7905
        %v7907 = vpop.f32.mrf.mxu0
        %v7908 = vadd.f32 %v7859, %v7907
        %7909 = vmatmul.bf16.gmra.mxu0 %v7509
        %v7910 = vpop.f32.mrf.mxu0
        %v7911 = vadd.f32 %v7862, %v7910
        %v7912 = vpop.f32.mrf.mxu0
        %v7913 = vadd.f32 %v7864, %v7912
        %7914 = vmatmul.bf16.gmra.mxu0 %v7513
        %v7915 = vpop.f32.mrf.mxu0
        %v7916 = vadd.f32 %v7867, %v7915
        %v7917 = vpop.f32.mrf.mxu0
        %v7918 = vadd.f32 %v7869, %v7917
        %7919 = vmatmul.bf16.gmra.mxu0 %v7517
        %v7920 = vpop.f32.mrf.mxu0
        %v7921 = vadd.f32 %v7872, %v7920
        %v7922 = vpop.f32.mrf.mxu0
        %v7923 = vadd.f32 %v7874, %v7922
        %7924 = vmatmul.bf16.gmra.mxu0 %v7521
        %v7925 = vpop.f32.mrf.mxu0
        %v7926 = vadd.f32 %v7877, %v7925
        %v7927 = vpop.f32.mrf.mxu0
        %v7928 = vadd.f32 %v7879, %v7927
        %7929 = vmatmul.bf16.gmra.mxu0 %v7525
        %v7930 = vpop.f32.mrf.mxu0
        %v7931 = vadd.f32 %v7882, %v7930
        %v7932 = vpop.f32.mrf.mxu0
        %v7933 = vadd.f32 %v7884, %v7932
        %7934 = vmatmul.bf16.gmra.mxu0 %v7529
        %v7935 = vpop.f32.mrf.mxu0
        %v7936 = vadd.f32 %v7887, %v7935
        %v7937 = vpop.f32.mrf.mxu0
        %v7938 = vadd.f32 %v7889, %v7937
        %7939 = vdwg.mxu0
        %7940 = vmatpush.bf16.msra.mxu0 %v7760
        %7941 = vmatpush.bf16.msra.mxu0 %v7759
        %7942 = vmatpush.bf16.msra.mxu0 %v7758
        %7943 = vmatpush.bf16.msra.mxu0 %v7757
        %7944 = vmatpush.bf16.msra.mxu0 %v7756
        %7945 = vmatpush.bf16.msra.mxu0 %v7755
        %7946 = vmatpush.bf16.msra.mxu0 %v7754
        %7947 = vmatpush.bf16.msra.mxu0 %v7753
        %7948 = vmatmul.bf16.gmra.mxu0 %v7502
        %v7949 = vpop.f32.mrf.mxu0
        %v7950 = vadd.f32 %v7901, %v7949
        %v7951 = vpop.f32.mrf.mxu0
        %v7952 = vadd.f32 %v7903, %v7951
        %7953 = vmatmul.bf16.gmra.mxu0 %v7506
        %v7954 = vpop.f32.mrf.mxu0
        %v7955 = vadd.f32 %v7906, %v7954
        %v7956 = vpop.f32.mrf.mxu0
        %v7957 = vadd.f32 %v7908, %v7956
        %7958 = vmatmul.bf16.gmra.mxu0 %v7510
        %v7959 = vpop.f32.mrf.mxu0
        %v7960 = vadd.f32 %v7911, %v7959
        %v7961 = vpop.f32.mrf.mxu0
        %v7962 = vadd.f32 %v7913, %v7961
        %7963 = vmatmul.bf16.gmra.mxu0 %v7514
        %v7964 = vpop.f32.mrf.mxu0
        %v7965 = vadd.f32 %v7916, %v7964
        %v7966 = vpop.f32.mrf.mxu0
        %v7967 = vadd.f32 %v7918, %v7966
        %7968 = vmatmul.bf16.gmra.mxu0 %v7518
        %v7969 = vpop.f32.mrf.mxu0
        %v7970 = vadd.f32 %v7921, %v7969
        %v7971 = vpop.f32.mrf.mxu0
        %v7972 = vadd.f32 %v7923, %v7971
        %7973 = vmatmul.bf16.gmra.mxu0 %v7522
        %v7974 = vpop.f32.mrf.mxu0
        %v7975 = vadd.f32 %v7926, %v7974
        %v7976 = vpop.f32.mrf.mxu0
        %v7977 = vadd.f32 %v7928, %v7976
        %7978 = vmatmul.bf16.gmra.mxu0 %v7526
        %v7979 = vpop.f32.mrf.mxu0
        %v7980 = vadd.f32 %v7931, %v7979
        %v7981 = vpop.f32.mrf.mxu0
        %v7982 = vadd.f32 %v7933, %v7981
        %7983 = vmatmul.bf16.gmra.mxu0 %v7530
        %v7984 = vpop.f32.mrf.mxu0
        %v7985 = vadd.f32 %v7936, %v7984
        %v7986 = vpop.f32.mrf.mxu0
        %v7987 = vadd.f32 %v7938, %v7986
        %7988 = vdwg.mxu0
        %v7989 = vadd.f32 %v6137, %v7950
        %v7990 = vadd.f32 %v6138, %v7952
        %v7991 = vadd.f32 %v6139, %v7955
        %v7992 = vadd.f32 %v6140, %v7957
        %v7993 = vadd.f32 %v6141, %v7960
        %v7994 = vadd.f32 %v6142, %v7962
        %v7995 = vadd.f32 %v6143, %v7965
        %v7996 = vadd.f32 %v6144, %v7967
        %v7997 = vadd.f32 %v6145, %v7970
        %v7998 = vadd.f32 %v6146, %v7972
        %v7999 = vadd.f32 %v6147, %v7975
        %v8000 = vadd.f32 %v6148, %v7977
        %v8001 = vadd.f32 %v6149, %v7980
        %v8002 = vadd.f32 %v6150, %v7982
        %v8003 = vadd.f32 %v6151, %v7985
        %v8004 = vadd.f32 %v6152, %v7987
        %8005 = vst [vmem:[#allocation2] sm:$0xff] %v7989
        %8006 = vst [vmem:[#allocation2 + $0x8] sm:$0xff] %v7990
        %8007 = vst [vmem:[#allocation2 + $0x10] sm:$0xff] %v7991
        %8008 = vst [vmem:[#allocation2 + $0x18] sm:$0xff] %v7992
        %8009 = vst [vmem:[#allocation2 + $0x20] sm:$0xff] %v7993
        %8010 = vst [vmem:[#allocation2 + $0x28] sm:$0xff] %v7994
        %8011 = vst [vmem:[#allocation2 + $0x30] sm:$0xff] %v7995
        %8012 = vst [vmem:[#allocation2 + $0x38] sm:$0xff] %v7996
        %8013 = vst [vmem:[#allocation2 + $0x40] sm:$0xff] %v7997
        %8014 = vst [vmem:[#allocation2 + $0x48] sm:$0xff] %v7998
        %8015 = vst [vmem:[#allocation2 + $0x50] sm:$0xff] %v7999
        %8016 = vst [vmem:[#allocation2 + $0x58] sm:$0xff] %v8000
        %8017 = vst [vmem:[#allocation2 + $0x60] sm:$0xff] %v8001
        %8018 = vst [vmem:[#allocation2 + $0x68] sm:$0xff] %v8002
        %8019 = vst [vmem:[#allocation2 + $0x70] sm:$0xff] %v8003
        %8020 = vst [vmem:[#allocation2 + $0x78] sm:$0xff] %v8004
        %v8021 = vld [vmem:[%s21] sm:$0xf]
        %v8022 = vld [vmem:[%s21 + $0x4] sm:$0xf]
        %v8023 = vld [vmem:[%s21 + $0x8] sm:$0xf]
        %v8024 = vld [vmem:[%s21 + $0xc] sm:$0xf]
        %v8025 = vld [vmem:[%s21 + $0x10] sm:$0xf]
        %v8026 = vld [vmem:[%s21 + $0x14] sm:$0xf]
        %v8027 = vld [vmem:[%s21 + $0x18] sm:$0xf]
        %v8028 = vld [vmem:[%s21 + $0x1c] sm:$0xf]
        %v8029 = vld [vmem:[%s21 + $0x20] sm:$0xf]
        %v8030 = vld [vmem:[%s21 + $0x24] sm:$0xf]
        %v8031 = vld [vmem:[%s21 + $0x28] sm:$0xf]
        %v8032 = vld [vmem:[%s21 + $0x2c] sm:$0xf]
        %v8033 = vld [vmem:[%s21 + $0x30] sm:$0xf]
        %v8034 = vld [vmem:[%s21 + $0x34] sm:$0xf]
        %v8035 = vld [vmem:[%s21 + $0x38] sm:$0xf]
        %v8036 = vld [vmem:[%s21 + $0x3c] sm:$0xf]
        %v8037 = vld [vmem:[#allocation2] sm:$0xff]
        %v8038 = vld [vmem:[#allocation2 + $0x8] sm:$0xff]
        %v8039 = vld [vmem:[#allocation2 + $0x10] sm:$0xff]
        %v8040 = vld [vmem:[#allocation2 + $0x18] sm:$0xff]
        %v8041 = vld [vmem:[#allocation2 + $0x20] sm:$0xff]
        %v8042 = vld [vmem:[#allocation2 + $0x28] sm:$0xff]
        %v8043 = vld [vmem:[#allocation2 + $0x30] sm:$0xff]
        %v8044 = vld [vmem:[#allocation2 + $0x38] sm:$0xff]
        %v8045 = vld [vmem:[#allocation2 + $0x40] sm:$0xff]
        %v8046 = vld [vmem:[#allocation2 + $0x48] sm:$0xff]
        %v8047 = vld [vmem:[#allocation2 + $0x50] sm:$0xff]
        %v8048 = vld [vmem:[#allocation2 + $0x58] sm:$0xff]
        %v8049 = vld [vmem:[#allocation2 + $0x60] sm:$0xff]
        %v8050 = vld [vmem:[#allocation2 + $0x68] sm:$0xff]
        %v8051 = vld [vmem:[#allocation2 + $0x70] sm:$0xff]
        %v8052 = vld [vmem:[#allocation2 + $0x78] sm:$0xff]
        %v8053 = vpack.c.bf16 %v8038, %v8037
        %v8054 = vpack.c.bf16 %v8040, %v8039
        %v8055 = vpack.c.bf16 %v8042, %v8041
        %v8056 = vpack.c.bf16 %v8044, %v8043
        %v8057 = vpack.c.bf16 %v8046, %v8045
        %v8058 = vpack.c.bf16 %v8048, %v8047
        %v8059 = vpack.c.bf16 %v8050, %v8049
        %v8060 = vpack.c.bf16 %v8052, %v8051
        %v8061 = vld [vmem:[%s22] sm:$0xff]
        %v8062 = vld [vmem:[%s22 + $0x8] sm:$0xff]
        %8064 = vset.pattern.permute.xlu0 0
        %8065 = vperm.xlu0 %8064, %v8061
        %v8066 = vpop.permute.xlu0 %8065
        %8069 = vset.pattern.permute.xlu0 0
        %8070 = vperm.xlu0 %8069, %v8062
        %v8071 = vpop.permute.xlu0 %8070
        %v8089 = vunpack.c.l.b16 %v8021
        %v8090 = vunpack.c.l.b16 %v8022
        %v8091 = vunpack.c.l.b16 %v8023
        %v8092 = vunpack.c.l.b16 %v8024
        %v8093 = vunpack.c.l.b16 %v8025
        %v8094 = vunpack.c.l.b16 %v8026
        %v8095 = vunpack.c.l.b16 %v8027
        %v8096 = vunpack.c.l.b16 %v8028
        %v8097 = vunpack.c.l.b16 %v8029
        %v8098 = vunpack.c.l.b16 %v8030
        %v8099 = vunpack.c.l.b16 %v8031
        %v8100 = vunpack.c.l.b16 %v8032
        %v8101 = vunpack.c.l.b16 %v8033
        %v8102 = vunpack.c.l.b16 %v8034
        %v8103 = vunpack.c.l.b16 %v8035
        %v8104 = vunpack.c.l.b16 %v8036
        %v8105 = vpack.c.b16 %v8090, %v8089
        %v8106 = vpack.c.b16 %v8092, %v8091
        %v8107 = vpack.c.b16 %v8094, %v8093
        %v8108 = vpack.c.b16 %v8096, %v8095
        %v8109 = vpack.c.b16 %v8098, %v8097
        %v8110 = vpack.c.b16 %v8100, %v8099
        %v8111 = vpack.c.b16 %v8102, %v8101
        %v8112 = vpack.c.b16 %v8104, %v8103
        %8121 = vxpose.xlu0.c.b16.start [1/8] %v8105, 128
        %8122 = vxpose.xlu0.c.b16.cont [2/8] %v8106, 128
        %8123 = vxpose.xlu0.c.b16.cont [3/8] %v8107, 128
        %8124 = vxpose.xlu0.c.b16.cont [4/8] %v8108, 128
        %8125 = vxpose.xlu0.c.b16.cont [5/8] %v8109, 128
        %8126 = vxpose.xlu0.c.b16.cont [6/8] %v8110, 128
        %8127 = vxpose.xlu0.c.b16.cont [7/8] %v8111, 128
        %8128 = vxpose.xlu0.c.b16.end [8/8] %v8112, 128
        %v8129 = vpop.trf.xlu0
        %v8130 = vpop.trf.xlu0
        %v8131 = vpop.trf.xlu0
        %v8132 = vpop.trf.xlu0
        %v8133 = vpop.trf.xlu0
        %v8134 = vpop.trf.xlu0
        %v8135 = vpop.trf.xlu0
        %v8136 = vpop.trf.xlu0
        %8137 = vmatpush.bf16.xpose.msra.mxu0 %v8060
        %8138 = vmatpush.bf16.xpose.msra.mxu0 %v8059
        %8139 = vmatpush.bf16.xpose.msra.mxu0 %v8058
        %8140 = vmatpush.bf16.xpose.msra.mxu0 %v8057
        %8141 = vmatpush.bf16.xpose.msra.mxu0 %v8056
        %8142 = vmatpush.bf16.xpose.msra.mxu0 %v8055
        %8143 = vmatpush.bf16.xpose.msra.mxu0 %v8054
        %8144 = vmatpush.bf16.xpose.msra.mxu0 %v8053
        %8145 = vmatmul.bf16.gmra.mxu0 %v8129
        %v8146 = vpop.f32.mrf.mxu0
        %v8147 = vadd.f32 %v8066, %v8146
        %v8148 = vpop.f32.mrf.mxu0
        %v8149 = vadd.f32 %v8071, %v8148
        %8150 = vdwg.mxu0
        %v8151 = vstv %s925
        %v8152 = vmul.f32 %v8147, %v8151
        %v8153 = vmul.f32 %v8149, %v8151
        %v8154 = vld [vmem:[%s792] sm:$0xff]
        %v8155 = vld [vmem:[%s792 + $0x8] sm:$0xff]
        %v8156 = vld [vmem:[%s802] sm:$0xff]
        %v8157 = vld [vmem:[%s802 + $0x8] sm:$0xff]
        %v8158 = vmax.f32 %v8152, %v8153
        %v8159 = vrot.slane %v8158, 4
        %v8160 = vmax.f32 %v8158, %v8159
        %v8161 = vrot.slane %v8160, 2
        %v8162 = vmax.f32 %v8160, %v8161
        %v8163 = vrot.slane %v8162, 1
        %v8164 = vmax.f32 %v8162, %v8163
        %v8165 = vsub.f32 %v8152, %v8164
        %v8166 = vsub.f32 %v8153, %v8164
        %v8167 = vmul.f32 %v8165, 1.442695
        %v8168 = vpow.pop %v8167
        %v8169 = vmul.f32 %v8166, 1.442695
        %v8170 = vpow.pop %v8169
        %v8171 = vadd.f32 %v8168, %v8170
        %v8172 = vrot.slane %v8171, 4
        %v8173 = vadd.f32 %v8171, %v8172
        %v8174 = vrot.slane %v8173, 2
        %v8175 = vadd.f32 %v8173, %v8174
        %v8176 = vrot.slane %v8175, 1
        %v8177 = vadd.f32 %v8175, %v8176
        %v8178 = vlog2.pop %v8177
        %v8179 = vmul.f32 %v8178, 0.6931472
        %v8180 = vadd.f32 %v8164, %v8179
        %v8181 = vsub.f32 %v8152, %v8180
        %v8182 = vsub.f32 %v8153, %v8180
        %v8183 = vstv %s919
        %v8184 = vadd.f32 %v8156, %v8183
        %v8185 = vadd.f32 %v8157, %v8183
        %s8186 = ssub.f32 %s920, 2.7725887
        %v8187 = vstv %s8186
        %v8188 = vmax.f32 %v8184, %v8187
        %v8189 = vmax.f32 %v8185, %v8187
        %v8190 = vsub.f32 %v8184, %v8188
        %v8191 = vsub.f32 %v8185, %v8189
        %v8192 = vmul.f32 %v8190, 1.442695
        %v8193 = vpow.pop %v8192
        %v8194 = vmul.f32 %v8191, 1.442695
        %v8195 = vpow.pop %v8194
        %v8196 = vsub.f32 %v8187, %v8188
        %v8197 = vsub.f32 %v8187, %v8189
        %v8198 = vmul.f32 %v8196, 1.442695
        %v8199 = vpow.pop %v8198
        %v8200 = vmul.f32 %v8197, 1.442695
        %v8201 = vpow.pop %v8200
        %v8202 = vadd.f32 %v8193, %v8199
        %v8203 = vadd.f32 %v8195, %v8201
        %v8204 = vlog2.pop %v8202
        %v8205 = vmul.f32 %v8204, 0.6931472
        %v8206 = vlog2.pop %v8203
        %v8207 = vmul.f32 %v8206, 0.6931472
        %v8208 = vadd.f32 %v8188, %v8205
        %v8209 = vadd.f32 %v8189, %v8207
        %v8210 = vstv %s921
        %v8211 = vadd.f32 %v8154, %v8210
        %v8212 = vadd.f32 %v8155, %v8210
        %s8213 = ssub.f32 %s922, 2.7725887
        %v8214 = vstv %s8213
        %v8215 = vmax.f32 %v8211, %v8214
        %v8216 = vmax.f32 %v8212, %v8214
        %v8217 = vsub.f32 %v8211, %v8215
        %v8218 = vsub.f32 %v8212, %v8216
        %v8219 = vmul.f32 %v8217, 1.442695
        %v8220 = vpow.pop %v8219
        %v8221 = vmul.f32 %v8218, 1.442695
        %v8222 = vpow.pop %v8221
        %v8223 = vsub.f32 %v8214, %v8215
        %v8224 = vsub.f32 %v8214, %v8216
        %v8225 = vmul.f32 %v8223, 1.442695
        %v8226 = vpow.pop %v8225
        %v8227 = vmul.f32 %v8224, 1.442695
        %v8228 = vpow.pop %v8227
        %v8229 = vadd.f32 %v8220, %v8226
        %v8230 = vadd.f32 %v8222, %v8228
        %v8231 = vlog2.pop %v8229
        %v8232 = vmul.f32 %v8231, 0.6931472
        %v8233 = vlog2.pop %v8230
        %v8234 = vmul.f32 %v8233, 0.6931472
        %v8235 = vadd.f32 %v8215, %v8232
        %v8236 = vadd.f32 %v8216, %v8234
        %v8237 = vadd.f32 %v8235, %v8208
        %v8238 = vadd.f32 %v8236, %v8209
        %v8239 = vmax.f32 %v8237, %v8238
        %v8240 = vrot.slane %v8239, 4
        %v8241 = vmax.f32 %v8239, %v8240
        %v8242 = vrot.slane %v8241, 2
        %v8243 = vmax.f32 %v8241, %v8242
        %v8244 = vrot.slane %v8243, 1
        %v8245 = vmax.f32 %v8243, %v8244
        %v8246 = vsub.f32 %v8237, %v8245
        %v8247 = vsub.f32 %v8238, %v8245
        %v8248 = vmul.f32 %v8246, 1.442695
        %v8249 = vpow.pop %v8248
        %v8250 = vmul.f32 %v8247, 1.442695
        %v8251 = vpow.pop %v8250
        %v8252 = vadd.f32 %v8249, %v8251
        %v8253 = vrot.slane %v8252, 4
        %v8254 = vadd.f32 %v8252, %v8253
        %v8255 = vrot.slane %v8254, 2
        %v8256 = vadd.f32 %v8254, %v8255
        %v8257 = vrot.slane %v8256, 1
        %v8258 = vadd.f32 %v8256, %v8257
        %v8259 = vlog2.pop %v8258
        %v8260 = vmul.f32 %v8259, 0.6931472
        %v8261 = vadd.f32 %v8245, %v8260
        %v8262 = vsub.f32 %v8237, %v8261
        %v8263 = vsub.f32 %v8238, %v8261
        %v8264 = vadd.f32 %v8181, %v8210
        %v8265 = vadd.f32 %v8182, %v8210
        %v8266 = vmax.f32 %v8264, %v8214
        %v8267 = vmax.f32 %v8265, %v8214
        %v8268 = vsub.f32 %v8264, %v8266
        %v8269 = vsub.f32 %v8265, %v8267
        %v8270 = vmul.f32 %v8268, 1.442695
        %v8271 = vpow.pop %v8270
        %v8272 = vmul.f32 %v8269, 1.442695
        %v8273 = vpow.pop %v8272
        %v8274 = vsub.f32 %v8214, %v8266
        %v8275 = vsub.f32 %v8214, %v8267
        %v8276 = vmul.f32 %v8274, 1.442695
        %v8277 = vpow.pop %v8276
        %v8278 = vmul.f32 %v8275, 1.442695
        %v8279 = vpow.pop %v8278
        %v8280 = vadd.f32 %v8271, %v8277
        %v8281 = vadd.f32 %v8273, %v8279
        %v8282 = vlog2.pop %v8280
        %v8283 = vmul.f32 %v8282, 0.6931472
        %v8284 = vlog2.pop %v8281
        %v8285 = vmul.f32 %v8284, 0.6931472
        %v8286 = vadd.f32 %v8266, %v8283
        %v8287 = vadd.f32 %v8267, %v8285
        %v8288 = vadd.f32 %v8286, %v8208
        %v8289 = vadd.f32 %v8287, %v8209
        %v8290 = vmax.f32 %v8288, %v8289
        %v8291 = vrot.slane %v8290, 4
        %v8292 = vmax.f32 %v8290, %v8291
        %v8293 = vrot.slane %v8292, 2
        %v8294 = vmax.f32 %v8292, %v8293
        %v8295 = vrot.slane %v8294, 1
        %v8296 = vmax.f32 %v8294, %v8295
        %v8297 = vsub.f32 %v8288, %v8296
        %v8298 = vsub.f32 %v8289, %v8296
        %v8299 = vmul.f32 %v8297, 1.442695
        %v8300 = vpow.pop %v8299
        %v8301 = vmul.f32 %v8298, 1.442695
        %v8302 = vpow.pop %v8301
        %v8303 = vadd.f32 %v8300, %v8302
        %v8304 = vrot.slane %v8303, 4
        %v8305 = vadd.f32 %v8303, %v8304
        %v8306 = vrot.slane %v8305, 2
        %v8307 = vadd.f32 %v8305, %v8306
        %v8308 = vrot.slane %v8307, 1
        %v8309 = vadd.f32 %v8307, %v8308
        %v8310 = vlog2.pop %v8309
        %v8311 = vmul.f32 %v8310, 0.6931472
        %v8312 = vadd.f32 %v8296, %v8311
        %v8313 = vsub.f32 %v8288, %v8312
        %v8314 = vsub.f32 %v8289, %v8312
        %v8315 = vmul.f32 %v8262, 1.442695
        %v8316 = vpow.pop %v8315
        %v8317 = vmul.f32 %v8263, 1.442695
        %v8318 = vpow.pop %v8317
        %v8319 = vsub.f32 %v8262, %v8313
        %v8320 = vsub.f32 %v8263, %v8314
        %v8321 = vmul.f32 %v8316, %v8319
        %v8322 = vmul.f32 %v8318, %v8320
        %v8323 = vadd.f32 %v8321, %v8322
        %v8324 = vrot.slane %v8323, 4
        %v8325 = vadd.f32 %v8323, %v8324
        %v8326 = vrot.slane %v8325, 2
        %v8327 = vadd.f32 %v8325, %v8326
        %v8328 = vrot.slane %v8327, 1
        %v8329 = vadd.f32 %v8327, %v8328
        %v8330 = vstv %s923
        %v8331 = vadd.f32 %v8154, %v8330
        %v8332 = vadd.f32 %v8155, %v8330
        %s8333 = ssub.f32 %s924, 2.7725887
        %v8334 = vstv %s8333
        %v8335 = vmax.f32 %v8331, %v8334
        %v8336 = vmax.f32 %v8332, %v8334
        %v8337 = vsub.f32 %v8331, %v8335
        %v8338 = vsub.f32 %v8332, %v8336
        %v8339 = vmul.f32 %v8337, 1.442695
        %v8340 = vpow.pop %v8339
        %v8341 = vmul.f32 %v8338, 1.442695
        %v8342 = vpow.pop %v8341
        %v8343 = vsub.f32 %v8334, %v8335
        %v8344 = vsub.f32 %v8334, %v8336
        %v8345 = vmul.f32 %v8343, 1.442695
        %v8346 = vpow.pop %v8345
        %v8347 = vmul.f32 %v8344, 1.442695
        %v8348 = vpow.pop %v8347
        %v8349 = vadd.f32 %v8340, %v8346
        %v8350 = vadd.f32 %v8342, %v8348
        %v8351 = vlog2.pop %v8349
        %v8352 = vmul.f32 %v8351, 0.6931472
        %v8353 = vlog2.pop %v8350
        %v8354 = vmul.f32 %v8353, 0.6931472
        %v8355 = vadd.f32 %v8335, %v8352
        %v8356 = vadd.f32 %v8336, %v8354
        %v8357 = vmul.f32 %v8355, 1.442695
        %v8358 = vpow.pop %v8357
        %v8359 = vmul.f32 %v8356, 1.442695
        %v8360 = vpow.pop %v8359
        %v8361 = vadd.f32 %v8355, 2.7725887
        %v8362 = vadd.f32 %v8356, 2.7725887
        %v8363 = vmul.f32 %v8358, %v8361
        %v8364 = vmul.f32 %v8360, %v8362
        %v8365 = vadd.f32 %v8363, %v8364
        %v8366 = vrot.slane %v8365, 4
        %v8367 = vadd.f32 %v8365, %v8366
        %v8368 = vrot.slane %v8367, 2
        %v8369 = vadd.f32 %v8367, %v8368
        %v8370 = vrot.slane %v8369, 1
        %v8371 = vadd.f32 %v8369, %v8370
        %vm8372 = vcmask 1040384
        %v8373 = vsel %vm8372, %v8329, %v8371
        %8374 = vst [vmem:[%s911] sm:$0x3] %v8373
        %s8375 = sand.u32 %s553, 1
        %s8376 = scalar_lea.sflag [#allocation5], %s8375
        %s8377 = sand.u32 %s553, 1
        %s8378 = smul.addr %s8377, 2
        %s8379 = scalar_lea.vmem [#allocation20], %s8378
        // Predicated region
        $region153: #{tpu_custom_call.1} parent=111 // pred_check
          %p8380 = pneg %p563
        $region154: #{tpu_custom_call.1} parent=111 // pred_check_branch
          %8382 = sbr.rel (%p8380) target = $region156
        $region155: #{tpu_custom_call.1} parent=111 // pred_region
          %8384 = vsyncadd %s8376, 0
          %s8385 = smul.addr %s47, 2
          %s8386 = scalar_lea.hbm %s23, %s8385
          %s8388 = sshll.u32 %s8379, 4
          %s8389 = int_to_ptr.vmem [resolvable:$true] %s8388
          %s8390 = sshll.u32 %s8386, 4
          %s8391 = int_to_ptr.hbm [resolvable:$true] %s8390
          %8393 = dma.vmem_to_hbm [thread:$0]  %s8389, 32, %s8391, %s8376
        $region156: #{tpu_custom_call.1} parent=111 // pred_fallthru
          _
      $region112: #{tpu_custom_call.1} parent=5 // pred_fallthru
        _
      %p8394 = scmp.le.s32.totalorder 2, %s42
      // Predicated region
      $region157: #{tpu_custom_call.1} parent=5 // pred_check
        %p8395 = pneg %p8394
      $region158: #{tpu_custom_call.1} parent=5 // pred_check_branch
        %8397 = sbr.rel (%p8395) target = $region160
      $region159: #{tpu_custom_call.1} parent=5 // pred_region
        %s8398 = ssub.s32 %s42, 2
        // Predicated region
        $region161: #{tpu_custom_call.1} parent=159 // pred_check
          %p8399 = pneg %p569
        $region162: #{tpu_custom_call.1} parent=159 // pred_check_branch
          %8401 = sbr.rel (%p8399) target = $region164
        $region163: #{tpu_custom_call.1} parent=159 // pred_region
          %s8402 = sand.u32 %s554, 1
          %s8403 = scalar_lea.sflag [#allocation5], %s8402
          %s8404 = sand.u32 %s554, 1
          %s8405 = smul.addr %s8404, 2
          %s8406 = scalar_lea.vmem [#allocation20], %s8405
          %8408 = dma.done %s8403, 32
        $region164: #{tpu_custom_call.1} parent=159 // pred_fallthru
          _
      $region160: #{tpu_custom_call.1} parent=5 // pred_fallthru
        _
    $region6: #{tpu_custom_call.1} parent=1 // loop_footer
      %s46 = sadd.s32 1, %s42
    $region7: #{tpu_custom_call.1} parent=1 // loop_footer_branch
      %41 = sbr.rel target = $region3
    $region8: #{tpu_custom_call.1} parent=1 // loop_exit
      _
    %8409 = vsyncpa [#allocation4], 1
    %s8410 = scalar_lea.sflag [#allocation4], 1
    %8411 = vsyncpa %s8410, 1
    %8412 = vsyncpa [#allocation9], 1
    %s8413 = scalar_lea.sflag [#allocation9], 1
    %8414 = vsyncpa %s8413, 1
    %8415 = vsyncpa [#allocation12], 1
    %8416 = vsyncpa [#allocation15], 1
    %8417 = vsyncpa [#allocation18], 1
    %8418 = vsyncpa [#allocation5], 1
    %s8419 = scalar_lea.sflag [#allocation5], 1
    %8420 = vsyncpa %s8419, 1
    %8421 = vsyncpa [#allocation6], 1
    %s8422 = scalar_lea.sflag [#allocation6], 1
    %8423 = vsyncpa %s8422, 1

</llo_original>
